<compile_context>
chip_gen: v5e
topology: v5e:2x2
jax: 0.10.0
libtpu: 0.0.40
codegen_flags: <defaults>
</compile_context>

<pallas_src>
import jax
import jax.numpy as jnp
from jax import lax
from jax.experimental import pallas as pl
from jax.experimental.pallas import tpu as pltpu

PADT = 4   # zero rows added above and below every image
PADL = 8   # zero columns added to the left of every image row (right pad = 0)


# --------------------------------- kernel ------------------------------------

def _nutty_kernel(x1_ref, w1_ref, b1_ref, w2_ref, b2_ref, w3_ref, b3_ref,
                  w4_ref, b4_ref, w5_ref, b5_ref, o_ref,
                  x2_ref, x3_ref, flat_ref,
                  tile1_ref, acc1_ref, tile2_ref, acc2_ref, tile3_ref, acc3_ref):
    # Inter-layer buffers: the padding border must be exact zeros.
    x2_ref[...] = jnp.zeros_like(x2_ref)
    x3_ref[...] = jnp.zeros_like(x3_ref)

    def conv_pool(src_ref, w_ref, b_ref, tile_ref, acc_ref,
                  H, W, Cin, rows_per_chunk, emit):
        """5x5 'same' conv + bias + 2x2/2 max-pool, K-folded im2col per chunk."""
        Wp = W + PADL                     # padded row stride (multiple of 8)
        Wo = W // 2
        chunk = rows_per_chunk * Wp       # conv rows computed per MXU matmul
        taps = [(kh - 2) * Wp + (kw - 2) for kh in range(5) for kw in range(5)]

        def chunk_body(c, carry):
            base = (PADT + c * rows_per_chunk) * Wp
            if not isinstance(base, int):
                base = pl.multiple_of(base, 8)
            # im2col staging: 25 shifted row-slab copies -> (chunk, 25*Cin).
            for t, d in enumerate(taps):
                tile_ref[:, t * Cin:(t + 1) * Cin] = (
                    src_ref[pl.ds(base + d, chunk), :])
            # One MXU matmul with the taps folded into K; bias in the accumulator.
            acc_ref[...] = jnp.dot(
                tile_ref[...].astype(jnp.bfloat16), w_ref[...],
                preferred_element_type=jnp.float32) + b_ref[...]
            # Fused 2x2 / stride-2 max-pool over this chunk's image-row pairs.
            for r in range(rows_per_chunk // 2):
                r0 = (2 * r) * Wp + PADL
                r1 = (2 * r + 1) * Wp + PADL
                p00 = acc_ref[pl.ds(r0, Wo, stride=2), :]
                p01 = acc_ref[pl.ds(r0 + 1, Wo, stride=2), :]
                p10 = acc_ref[pl.ds(r1, Wo, stride=2), :]
                p11 = acc_ref[pl.ds(r1 + 1, Wo, stride=2), :]
                pooled = jnp.maximum(jnp.maximum(p00, p01),
                                     jnp.maximum(p10, p11))
                emit(c * (rows_per_chunk // 2) + r, pooled)   # (Wo, Cout)
            return carry

        n_chunks = H // rows_per_chunk
        if n_chunks == 1:
            chunk_body(0, 0)              # fully static path (layer 3)
        else:
            lax.fori_loop(0, n_chunks, chunk_body, 0)

    # ---- layer 1: 32x32x4 (3 + zero pad ch) -> conv 32 -> pool -> x2 interior -
    W2P = 16 + PADL

    def emit1(io, pooled):                # pooled: (16, 32)
        row = pl.multiple_of((io + PADT) * W2P + PADL, 8)
        x2_ref[pl.ds(row, 16), :] = pooled

    conv_pool(x1_ref, w1_ref, b1_ref, tile1_ref, acc1_ref,
              H=32, W=32, Cin=4, rows_per_chunk=4, emit=emit1)

    # ---- layer 2: 16x16x32 -> conv 32 -> pool -> x3 interior ------------------
    W3P = 8 + PADL

    def emit2(io, pooled):                # pooled: (8, 32)
        row = pl.multiple_of((io + PADT) * W3P + PADL, 8)
        x3_ref[pl.ds(row, 8), :] = pooled

    conv_pool(x2_ref, w2_ref, b2_ref, tile2_ref, acc2_ref,
              H=16, W=16, Cin=32, rows_per_chunk=4, emit=emit2)

    # ---- layer 3: 8x8x32 -> conv 64 -> pool -> flat (spatial, channel) --------
    def emit3(io, pooled):                # pooled: (4, 64); io is a Python int
        for jo in range(4):
            col = (io * 4 + jo) * 64
            flat_ref[:, col:col + 64] = pooled[jo:jo + 1, :]

    conv_pool(x3_ref, w3_ref, b3_ref, tile3_ref, acc3_ref,
              H=8, W=8, Cin=32, rows_per_chunk=8, emit=emit3)

    # ---- fc1 + fc2 (fused epilogue) -------------------------------------------
    xf = flat_ref[...].astype(jnp.bfloat16)                       # (1, 1024)
    h = jnp.dot(xf, w4_ref[...],
                preferred_element_type=jnp.float32) + b4_ref[...]
    o_ref[...] = jnp.dot(h.astype(jnp.bfloat16), w5_ref[...],
                         preferred_element_type=jnp.float32) + b5_ref[...]


# --------------------------------- forward -----------------------------------

def nutty_forward(x_nchw, params):
    N = x_nchw.shape[0]
    x = jnp.transpose(x_nchw, (0, 2, 3, 1)).astype(jnp.float32)      # NHWC
    x = jnp.pad(x, ((0, 0), (0, 0), (0, 0), (0, 1)))                 # Cin 3 -> 4
    x = jnp.pad(x, ((0, 0), (PADT, PADT), (PADL, 0), (0, 0)))        # 40 x 40
    x_flat = x.reshape(N, 40 * 40, 4)

    out = pl.pallas_call(
        _nutty_kernel,
        out_shape=jax.ShapeDtypeStruct((N, 1, 10), jnp.float32),
        grid=(N,),
        in_specs=[
            pl.BlockSpec((None, 40 * 40, 4), lambda n: (n, 0, 0)),   # image
            pl.BlockSpec((25 * 4, 32), lambda n: (0, 0)),            # conv1 w
            pl.BlockSpec((1, 32), lambda n: (0, 0)),                 # conv1 b
            pl.BlockSpec((25 * 32, 32), lambda n: (0, 0)),           # conv2 w
            pl.BlockSpec((1, 32), lambda n: (0, 0)),                 # conv2 b
            pl.BlockSpec((25 * 32, 64), lambda n: (0, 0)),           # conv3 w
            pl.BlockSpec((1, 64), lambda n: (0, 0)),                 # conv3 b
            pl.BlockSpec((1024, 64), lambda n: (0, 0)),              # fc1 w
            pl.BlockSpec((1, 64), lambda n: (0, 0)),                 # fc1 b
            pl.BlockSpec((64, 10), lambda n: (0, 0)),                # fc2 w
            pl.BlockSpec((1, 10), lambda n: (0, 0)),                 # fc2 b
        ],
        out_specs=pl.BlockSpec((None, 1, 10), lambda n: (n, 0, 0)),
        scratch_shapes=[
            pltpu.VMEM((24 * 24, 32), jnp.float32),      # x2  (padded 16x16x32)
            pltpu.VMEM((16 * 16, 32), jnp.float32),      # x3  (padded 8x8x32)
            pltpu.VMEM((1, 1024), jnp.float32),          # flattened fc input
            pltpu.VMEM((4 * 40, 25 * 4), jnp.float32),   # tile1 (im2col, K=100)
            pltpu.VMEM((4 * 40, 32), jnp.float32),       # acc1
            pltpu.VMEM((4 * 24, 25 * 32), jnp.float32),  # tile2 (im2col, K=800)
            pltpu.VMEM((4 * 24, 32), jnp.float32),       # acc2
            pltpu.VMEM((8 * 16, 25 * 32), jnp.float32),  # tile3 (im2col, K=800)
            pltpu.VMEM((8 * 16, 64), jnp.float32),       # acc3
        ],
        compiler_params=pltpu.CompilerParams(
            dimension_semantics=("parallel",)),
    )(x_flat, params["w1"], params["b1"], params["w2"], params["b2"],
      params["w3"], params["b3"], params["fc1_w"], params["fc1_b"],
      params["fc2_w"], params["fc2_b"])
    return out.reshape(N, 10)


# ------------------------------ parameters -----------------------------------

def init_params(key):
    """Deterministic synthetic parameters with the PyTorch module's shapes."""
    ks = jax.random.split(key, 10)

    def u(k, shape, fan_in):
        bound = 1.0 / jnp.sqrt(fan_in)
        return jax.random.uniform(k, shape, jnp.float32, -bound, bound)

    return {
        "w1": u(ks[0], (32, 3, 5, 5), 3 * 25),
        "b1": u(ks[1], (32,), 3 * 25),
        "w2": u(ks[2], (32, 32, 5, 5), 32 * 25),
        "b2": u(ks[3], (32,), 32 * 25),
        "w3": u(ks[4], (64, 32, 5, 5), 32 * 25),
        "b3": u(ks[5], (64,), 32 * 25),
        "fc1_w": u(ks[6], (64, 1024), 1024),   # PyTorch Linear: (out, in)
        "fc1_b": u(ks[7], (64,), 1024),
        "fc2_w": u(ks[8], (10, 64), 64),
        "fc2_b": u(ks[9], (10,), 64),
    }


def prepare_params(p):
    """One-time weight layout transforms + bf16 casts, hoisted out of forward."""
    def conv_w(w, cin_pad=None):
        cout, cin = w.shape[0], w.shape[1]
        if cin_pad is not None and cin_pad > cin:
            w = jnp.pad(w, ((0, 0), (0, cin_pad - cin), (0, 0), (0, 0)))
            cin = cin_pad
        # (Cout, Cin, 5, 5) -> rows ordered ((kh*5 + kw)*Cin + ci), cols = Cout
        wt = jnp.transpose(w, (2, 3, 1, 0)).reshape(25 * cin, cout)
        return wt.astype(jnp.bfloat16)

    # Kernel flattens layer-3 output as (spatial, channel); PyTorch flattens
    # NCHW (channel-major).  Fold that permutation into fc1's rows once.
    S, C, O1 = 16, 64, 64
    fc1 = p["fc1_w"].reshape(O1, C, S)                           # [out, c, s]
    fc1 = jnp.transpose(fc1, (2, 1, 0)).reshape(S * C, O1)       # [(s, c), out]

    f32 = jnp.float32
    return {
        "w1": conv_w(p["w1"], cin_pad=4),
        "b1": p["b1"].reshape(1, -1).astype(f32),
        "w2": conv_w(p["w2"]),
        "b2": p["b2"].reshape(1, -1).astype(f32),
        "w3": conv_w(p["w3"]),
        "b3": p["b3"].reshape(1, -1).astype(f32),
        "fc1_w": fc1.astype(jnp.bfloat16),
        "fc1_b": p["fc1_b"].reshape(1, -1).astype(f32),
        "fc2_w": p["fc2_w"].T.astype(jnp.bfloat16),
        "fc2_b": p["fc2_b"].reshape(1, -1).astype(f32),
    }


if __name__ == "__main__":
    key = jax.random.PRNGKey(0)
    k_x, k_p = jax.random.split(key)
    # Linear(1024, 64) after three 2x2 pools forces a 3x32x32 input.
    x = jax.random.normal(k_x, (2, 3, 32, 32), jnp.float32)   # NCHW, like PyTorch
    params = prepare_params(init_params(k_p))

    out = jax.jit(nutty_forward)(x, params)
    out = jax.block_until_ready(out)
    assert out.shape == (2, 10), out.shape
    print("KERNEL_OK")
</pallas_src>

<mosaic_0001>
module attributes {stable_mosaic.version = 11 : i64} {
  func.func @_nutty_kernel(%arg0: i32, %arg1: memref<1x1600x4xf32, #tpu.memory_space<vmem>>, %arg2: memref<100x32xbf16, #tpu.memory_space<vmem>>, %arg3: memref<1x32xf32, #tpu.memory_space<vmem>>, %arg4: memref<800x32xbf16, #tpu.memory_space<vmem>>, %arg5: memref<1x32xf32, #tpu.memory_space<vmem>>, %arg6: memref<800x64xbf16, #tpu.memory_space<vmem>>, %arg7: memref<1x64xf32, #tpu.memory_space<vmem>>, %arg8: memref<1024x64xbf16, #tpu.memory_space<vmem>>, %arg9: memref<1x64xf32, #tpu.memory_space<vmem>>, %arg10: memref<64x10xbf16, #tpu.memory_space<vmem>>, %arg11: memref<1x10xf32, #tpu.memory_space<vmem>>, %arg12: memref<1x1x10xf32, #tpu.memory_space<vmem>>, %arg13: memref<576x32xf32, #tpu.memory_space<vmem>>, %arg14: memref<256x32xf32, #tpu.memory_space<vmem>>, %arg15: memref<1x1024xf32, #tpu.memory_space<vmem>>, %arg16: memref<160x100xf32, #tpu.memory_space<vmem>>, %arg17: memref<160x32xf32, #tpu.memory_space<vmem>>, %arg18: memref<96x800xf32, #tpu.memory_space<vmem>>, %arg19: memref<96x32xf32, #tpu.memory_space<vmem>>, %arg20: memref<128x800xf32, #tpu.memory_space<vmem>>, %arg21: memref<128x64xf32, #tpu.memory_space<vmem>>) attributes {dimension_semantics = [#tpu.dimension_semantics<parallel>], iteration_bounds = array<i64: 2>, scalar_prefetch = 0 : i64, scratch_operands = 9 : i64, tpu.core_type = #tpu.core_type<tc>, window_params = [{transform_indices = @transform_0, window_bounds = array<i64: 1, 1600, 4>}, {pipeline_mode = #tpu.pipeline_mode<synchronous>, transform_indices = @transform_1, window_bounds = array<i64: 100, 32>}, {pipeline_mode = #tpu.pipeline_mode<synchronous>, transform_indices = @transform_2, window_bounds = array<i64: 1, 32>}, {pipeline_mode = #tpu.pipeline_mode<synchronous>, transform_indices = @transform_3, window_bounds = array<i64: 800, 32>}, {pipeline_mode = #tpu.pipeline_mode<synchronous>, transform_indices = @transform_4, window_bounds = array<i64: 1, 32>}, {pipeline_mode = #tpu.pipeline_mode<synchronous>, transform_indices = @transform_5, window_bounds = array<i64: 800, 64>}, {pipeline_mode = #tpu.pipeline_mode<synchronous>, transform_indices = @transform_6, window_bounds = array<i64: 1, 64>}, {pipeline_mode = #tpu.pipeline_mode<synchronous>, transform_indices = @transform_7, window_bounds = array<i64: 1024, 64>}, {pipeline_mode = #tpu.pipeline_mode<synchronous>, transform_indices = @transform_8, window_bounds = array<i64: 1, 64>}, {pipeline_mode = #tpu.pipeline_mode<synchronous>, transform_indices = @transform_9, window_bounds = array<i64: 64, 10>}, {pipeline_mode = #tpu.pipeline_mode<synchronous>, transform_indices = @transform_10, window_bounds = array<i64: 1, 10>}, {transform_indices = @transform_11, window_bounds = array<i64: 1, 1, 10>}]} {
    %cst = arith.constant 0.000000e+00 : f32
    %0 = vector.broadcast %cst : f32 to vector<576x32xf32>
    %c0 = arith.constant 0 : index
    %c0_0 = arith.constant 0 : index
    %1 = vector.load %arg13[%c0, %c0_0] : memref<576x32xf32, #tpu.memory_space<vmem>>, vector<576x32xf32>
    tpu.vector_store %arg13[%c0, %c0_0], %0 {strides = array<i32>} : memref<576x32xf32, #tpu.memory_space<vmem>>, vector<576x32xf32>,
    %cst_1 = arith.constant 0.000000e+00 : f32
    %2 = vector.broadcast %cst_1 : f32 to vector<256x32xf32>
    %c0_2 = arith.constant 0 : index
    %c0_3 = arith.constant 0 : index
    %3 = vector.load %arg14[%c0_2, %c0_3] : memref<256x32xf32, #tpu.memory_space<vmem>>, vector<256x32xf32>
    tpu.vector_store %arg14[%c0_2, %c0_3], %2 {strides = array<i32>} : memref<256x32xf32, #tpu.memory_space<vmem>>, vector<256x32xf32>,
    %c0_i32 = arith.constant 0 : i32
    %c8_i32 = arith.constant 8 : i32
    %4 = arith.addi %c0_i32, %c8_i32 : i32
    %c1_i32 = arith.constant 1 : i32
    scf.for %arg22 = %c0_i32 to %4 step %c1_i32  : i32 {
      %c4_i32_131 = arith.constant 4 : i32
      %138 = arith.muli %arg22, %c4_i32_131 : i32
      %c4_i32_132 = arith.constant 4 : i32
      %139 = arith.addi %c4_i32_132, %138 : i32
      %c40_i32 = arith.constant 40 : i32
      %140 = arith.muli %139, %c40_i32 : i32
      %141 = tpu.assume_multiple %140, 8 : i32
      %c-82_i32 = arith.constant -82 : i32
      %142 = arith.addi %141, %c-82_i32 : i32
      %c0_133 = arith.constant 0 : index
      %143 = arith.index_cast %142 : i32 to index
      %c0_134 = arith.constant 0 : index
      %144 = vector.load %arg1[%c0_133, %143, %c0_134] : memref<1x1600x4xf32, #tpu.memory_space<vmem>>, vector<1x160x4xf32>
      %145 = vector.shape_cast %144 : vector<1x160x4xf32> to vector<160x4xf32>
      %c0_135 = arith.constant 0 : index
      %c0_136 = arith.constant 0 : index
      %146 = vector.load %arg16[%c0_135, %c0_136] : memref<160x100xf32, #tpu.memory_space<vmem>>, vector<160x4xf32>
      tpu.vector_store %arg16[%c0_135, %c0_136], %145 {strides = array<i32>} : memref<160x100xf32, #tpu.memory_space<vmem>>, vector<160x4xf32>,
      %c-81_i32 = arith.constant -81 : i32
      %147 = arith.addi %141, %c-81_i32 : i32
      %c0_137 = arith.constant 0 : index
      %148 = arith.index_cast %147 : i32 to index
      %c0_138 = arith.constant 0 : index
      %149 = vector.load %arg1[%c0_137, %148, %c0_138] : memref<1x1600x4xf32, #tpu.memory_space<vmem>>, vector<1x160x4xf32>
      %150 = vector.shape_cast %149 : vector<1x160x4xf32> to vector<160x4xf32>
      %c0_139 = arith.constant 0 : index
      %c4 = arith.constant 4 : index
      %151 = vector.load %arg16[%c0_139, %c4] : memref<160x100xf32, #tpu.memory_space<vmem>>, vector<160x4xf32>
      tpu.vector_store %arg16[%c0_139, %c4], %150 {strides = array<i32>} : memref<160x100xf32, #tpu.memory_space<vmem>>, vector<160x4xf32>,
      %c-80_i32 = arith.constant -80 : i32
      %152 = arith.addi %141, %c-80_i32 : i32
      %c0_140 = arith.constant 0 : index
      %153 = arith.index_cast %152 : i32 to index
      %c0_141 = arith.constant 0 : index
      %154 = vector.load %arg1[%c0_140, %153, %c0_141] : memref<1x1600x4xf32, #tpu.memory_space<vmem>>, vector<1x160x4xf32>
      %155 = vector.shape_cast %154 : vector<1x160x4xf32> to vector<160x4xf32>
      %c0_142 = arith.constant 0 : index
      %c8_143 = arith.constant 8 : index
      %156 = vector.load %arg16[%c0_142, %c8_143] : memref<160x100xf32, #tpu.memory_space<vmem>>, vector<160x4xf32>
      tpu.vector_store %arg16[%c0_142, %c8_143], %155 {strides = array<i32>} : memref<160x100xf32, #tpu.memory_space<vmem>>, vector<160x4xf32>,
      %c-79_i32 = arith.constant -79 : i32
      %157 = arith.addi %141, %c-79_i32 : i32
      %c0_144 = arith.constant 0 : index
      %158 = arith.index_cast %157 : i32 to index
      %c0_145 = arith.constant 0 : index
      %159 = vector.load %arg1[%c0_144, %158, %c0_145] : memref<1x1600x4xf32, #tpu.memory_space<vmem>>, vector<1x160x4xf32>
      %160 = vector.shape_cast %159 : vector<1x160x4xf32> to vector<160x4xf32>
      %c0_146 = arith.constant 0 : index
      %c12 = arith.constant 12 : index
      %161 = vector.load %arg16[%c0_146, %c12] : memref<160x100xf32, #tpu.memory_space<vmem>>, vector<160x4xf32>
      tpu.vector_store %arg16[%c0_146, %c12], %160 {strides = array<i32>} : memref<160x100xf32, #tpu.memory_space<vmem>>, vector<160x4xf32>,
      %c-78_i32 = arith.constant -78 : i32
      %162 = arith.addi %141, %c-78_i32 : i32
      %c0_147 = arith.constant 0 : index
      %163 = arith.index_cast %162 : i32 to index
      %c0_148 = arith.constant 0 : index
      %164 = vector.load %arg1[%c0_147, %163, %c0_148] : memref<1x1600x4xf32, #tpu.memory_space<vmem>>, vector<1x160x4xf32>
      %165 = vector.shape_cast %164 : vector<1x160x4xf32> to vector<160x4xf32>
      %c0_149 = arith.constant 0 : index
      %c16 = arith.constant 16 : index
      %166 = vector.load %arg16[%c0_149, %c16] : memref<160x100xf32, #tpu.memory_space<vmem>>, vector<160x4xf32>
      tpu.vector_store %arg16[%c0_149, %c16], %165 {strides = array<i32>} : memref<160x100xf32, #tpu.memory_space<vmem>>, vector<160x4xf32>,
      %c-42_i32 = arith.constant -42 : i32
      %167 = arith.addi %141, %c-42_i32 : i32
      %c0_150 = arith.constant 0 : index
      %168 = arith.index_cast %167 : i32 to index
      %c0_151 = arith.constant 0 : index
      %169 = vector.load %arg1[%c0_150, %168, %c0_151] : memref<1x1600x4xf32, #tpu.memory_space<vmem>>, vector<1x160x4xf32>
      %170 = vector.shape_cast %169 : vector<1x160x4xf32> to vector<160x4xf32>
      %c0_152 = arith.constant 0 : index
      %c20 = arith.constant 20 : index
      %171 = vector.load %arg16[%c0_152, %c20] : memref<160x100xf32, #tpu.memory_space<vmem>>, vector<160x4xf32>
      tpu.vector_store %arg16[%c0_152, %c20], %170 {strides = array<i32>} : memref<160x100xf32, #tpu.memory_space<vmem>>, vector<160x4xf32>,
      %c-41_i32 = arith.constant -41 : i32
      %172 = arith.addi %141, %c-41_i32 : i32
      %c0_153 = arith.constant 0 : index
      %173 = arith.index_cast %172 : i32 to index
      %c0_154 = arith.constant 0 : index
      %174 = vector.load %arg1[%c0_153, %173, %c0_154] : memref<1x1600x4xf32, #tpu.memory_space<vmem>>, vector<1x160x4xf32>
      %175 = vector.shape_cast %174 : vector<1x160x4xf32> to vector<160x4xf32>
      %c0_155 = arith.constant 0 : index
      %c24_156 = arith.constant 24 : index
      %176 = vector.load %arg16[%c0_155, %c24_156] : memref<160x100xf32, #tpu.memory_space<vmem>>, vector<160x4xf32>
      tpu.vector_store %arg16[%c0_155, %c24_156], %175 {strides = array<i32>} : memref<160x100xf32, #tpu.memory_space<vmem>>, vector<160x4xf32>,
      %c-40_i32 = arith.constant -40 : i32
      %177 = arith.addi %141, %c-40_i32 : i32
      %c0_157 = arith.constant 0 : index
      %178 = arith.index_cast %177 : i32 to index
      %c0_158 = arith.constant 0 : index
      %179 = vector.load %arg1[%c0_157, %178, %c0_158] : memref<1x1600x4xf32, #tpu.memory_space<vmem>>, vector<1x160x4xf32>
      %180 = vector.shape_cast %179 : vector<1x160x4xf32> to vector<160x4xf32>
      %c0_159 = arith.constant 0 : index
      %c28 = arith.constant 28 : index
      %181 = vector.load %arg16[%c0_159, %c28] : memref<160x100xf32, #tpu.memory_space<vmem>>, vector<160x4xf32>
      tpu.vector_store %arg16[%c0_159, %c28], %180 {strides = array<i32>} : memref<160x100xf32, #tpu.memory_space<vmem>>, vector<160x4xf32>,
      %c-39_i32 = arith.constant -39 : i32
      %182 = arith.addi %141, %c-39_i32 : i32
      %c0_160 = arith.constant 0 : index
      %183 = arith.index_cast %182 : i32 to index
      %c0_161 = arith.constant 0 : index
      %184 = vector.load %arg1[%c0_160, %183, %c0_161] : memref<1x1600x4xf32, #tpu.memory_space<vmem>>, vector<1x160x4xf32>
      %185 = vector.shape_cast %184 : vector<1x160x4xf32> to vector<160x4xf32>
      %c0_162 = arith.constant 0 : index
      %c32_163 = arith.constant 32 : index
      %186 = vector.load %arg16[%c0_162, %c32_163] : memref<160x100xf32, #tpu.memory_space<vmem>>, vector<160x4xf32>
      tpu.vector_store %arg16[%c0_162, %c32_163], %185 {strides = array<i32>} : memref<160x100xf32, #tpu.memory_space<vmem>>, vector<160x4xf32>,
      %c-38_i32 = arith.constant -38 : i32
      %187 = arith.addi %141, %c-38_i32 : i32
      %c0_164 = arith.constant 0 : index
      %188 = arith.index_cast %187 : i32 to index
      %c0_165 = arith.constant 0 : index
      %189 = vector.load %arg1[%c0_164, %188, %c0_165] : memref<1x1600x4xf32, #tpu.memory_space<vmem>>, vector<1x160x4xf32>
      %190 = vector.shape_cast %189 : vector<1x160x4xf32> to vector<160x4xf32>
      %c0_166 = arith.constant 0 : index
      %c36 = arith.constant 36 : index
      %191 = vector.load %arg16[%c0_166, %c36] : memref<160x100xf32, #tpu.memory_space<vmem>>, vector<160x4xf32>
      tpu.vector_store %arg16[%c0_166, %c36], %190 {strides = array<i32>} : memref<160x100xf32, #tpu.memory_space<vmem>>, vector<160x4xf32>,
      %c-2_i32 = arith.constant -2 : i32
      %192 = arith.addi %141, %c-2_i32 : i32
      %c0_167 = arith.constant 0 : index
      %193 = arith.index_cast %192 : i32 to index
      %c0_168 = arith.constant 0 : index
      %194 = vector.load %arg1[%c0_167, %193, %c0_168] : memref<1x1600x4xf32, #tpu.memory_space<vmem>>, vector<1x160x4xf32>
      %195 = vector.shape_cast %194 : vector<1x160x4xf32> to vector<160x4xf32>
      %c0_169 = arith.constant 0 : index
      %c40_170 = arith.constant 40 : index
      %196 = vector.load %arg16[%c0_169, %c40_170] : memref<160x100xf32, #tpu.memory_space<vmem>>, vector<160x4xf32>
      tpu.vector_store %arg16[%c0_169, %c40_170], %195 {strides = array<i32>} : memref<160x100xf32, #tpu.memory_space<vmem>>, vector<160x4xf32>,
      %c-1_i32 = arith.constant -1 : i32
      %197 = arith.addi %141, %c-1_i32 : i32
      %c0_171 = arith.constant 0 : index
      %198 = arith.index_cast %197 : i32 to index
      %c0_172 = arith.constant 0 : index
      %199 = vector.load %arg1[%c0_171, %198, %c0_172] : memref<1x1600x4xf32, #tpu.memory_space<vmem>>, vector<1x160x4xf32>
      %200 = vector.shape_cast %199 : vector<1x160x4xf32> to vector<160x4xf32>
      %c0_173 = arith.constant 0 : index
      %c44 = arith.constant 44 : index
      %201 = vector.load %arg16[%c0_173, %c44] : memref<160x100xf32, #tpu.memory_space<vmem>>, vector<160x4xf32>
      tpu.vector_store %arg16[%c0_173, %c44], %200 {strides = array<i32>} : memref<160x100xf32, #tpu.memory_space<vmem>>, vector<160x4xf32>,
      %c0_i32_174 = arith.constant 0 : i32
      %202 = arith.addi %141, %c0_i32_174 : i32
      %c0_175 = arith.constant 0 : index
      %203 = arith.index_cast %202 : i32 to index
      %c0_176 = arith.constant 0 : index
      %204 = vector.load %arg1[%c0_175, %203, %c0_176] : memref<1x1600x4xf32, #tpu.memory_space<vmem>>, vector<1x160x4xf32>
      %205 = vector.shape_cast %204 : vector<1x160x4xf32> to vector<160x4xf32>
      %c0_177 = arith.constant 0 : index
      %c48_178 = arith.constant 48 : index
      %206 = vector.load %arg16[%c0_177, %c48_178] : memref<160x100xf32, #tpu.memory_space<vmem>>, vector<160x4xf32>
      tpu.vector_store %arg16[%c0_177, %c48_178], %205 {strides = array<i32>} : memref<160x100xf32, #tpu.memory_space<vmem>>, vector<160x4xf32>,
      %c1_i32_179 = arith.constant 1 : i32
      %207 = arith.addi %141, %c1_i32_179 : i32
      %c0_180 = arith.constant 0 : index
      %208 = arith.index_cast %207 : i32 to index
      %c0_181 = arith.constant 0 : index
      %209 = vector.load %arg1[%c0_180, %208, %c0_181] : memref<1x1600x4xf32, #tpu.memory_space<vmem>>, vector<1x160x4xf32>
      %210 = vector.shape_cast %209 : vector<1x160x4xf32> to vector<160x4xf32>
      %c0_182 = arith.constant 0 : index
      %c52 = arith.constant 52 : index
      %211 = vector.load %arg16[%c0_182, %c52] : memref<160x100xf32, #tpu.memory_space<vmem>>, vector<160x4xf32>
      tpu.vector_store %arg16[%c0_182, %c52], %210 {strides = array<i32>} : memref<160x100xf32, #tpu.memory_space<vmem>>, vector<160x4xf32>,
      %c2_i32 = arith.constant 2 : i32
      %212 = arith.addi %141, %c2_i32 : i32
      %c0_183 = arith.constant 0 : index
      %213 = arith.index_cast %212 : i32 to index
      %c0_184 = arith.constant 0 : index
      %214 = vector.load %arg1[%c0_183, %213, %c0_184] : memref<1x1600x4xf32, #tpu.memory_space<vmem>>, vector<1x160x4xf32>
      %215 = vector.shape_cast %214 : vector<1x160x4xf32> to vector<160x4xf32>
      %c0_185 = arith.constant 0 : index
      %c56_186 = arith.constant 56 : index
      %216 = vector.load %arg16[%c0_185, %c56_186] : memref<160x100xf32, #tpu.memory_space<vmem>>, vector<160x4xf32>
      tpu.vector_store %arg16[%c0_185, %c56_186], %215 {strides = array<i32>} : memref<160x100xf32, #tpu.memory_space<vmem>>, vector<160x4xf32>,
      %c38_i32 = arith.constant 38 : i32
      %217 = arith.addi %141, %c38_i32 : i32
      %c0_187 = arith.constant 0 : index
      %218 = arith.index_cast %217 : i32 to index
      %c0_188 = arith.constant 0 : index
      %219 = vector.load %arg1[%c0_187, %218, %c0_188] : memref<1x1600x4xf32, #tpu.memory_space<vmem>>, vector<1x160x4xf32>
      %220 = vector.shape_cast %219 : vector<1x160x4xf32> to vector<160x4xf32>
      %c0_189 = arith.constant 0 : index
      %c60 = arith.constant 60 : index
      %221 = vector.load %arg16[%c0_189, %c60] : memref<160x100xf32, #tpu.memory_space<vmem>>, vector<160x4xf32>
      tpu.vector_store %arg16[%c0_189, %c60], %220 {strides = array<i32>} : memref<160x100xf32, #tpu.memory_space<vmem>>, vector<160x4xf32>,
      %c39_i32 = arith.constant 39 : i32
      %222 = arith.addi %141, %c39_i32 : i32
      %c0_190 = arith.constant 0 : index
      %223 = arith.index_cast %222 : i32 to index
      %c0_191 = arith.constant 0 : index
      %224 = vector.load %arg1[%c0_190, %223, %c0_191] : memref<1x1600x4xf32, #tpu.memory_space<vmem>>, vector<1x160x4xf32>
      %225 = vector.shape_cast %224 : vector<1x160x4xf32> to vector<160x4xf32>
      %c0_192 = arith.constant 0 : index
      %c64_193 = arith.constant 64 : index
      %226 = vector.load %arg16[%c0_192, %c64_193] : memref<160x100xf32, #tpu.memory_space<vmem>>, vector<160x4xf32>
      tpu.vector_store %arg16[%c0_192, %c64_193], %225 {strides = array<i32>} : memref<160x100xf32, #tpu.memory_space<vmem>>, vector<160x4xf32>,
      %c40_i32_194 = arith.constant 40 : i32
      %227 = arith.addi %141, %c40_i32_194 : i32
      %c0_195 = arith.constant 0 : index
      %228 = arith.index_cast %227 : i32 to index
      %c0_196 = arith.constant 0 : index
      %229 = vector.load %arg1[%c0_195, %228, %c0_196] : memref<1x1600x4xf32, #tpu.memory_space<vmem>>, vector<1x160x4xf32>
      %230 = vector.shape_cast %229 : vector<1x160x4xf32> to vector<160x4xf32>
      %c0_197 = arith.constant 0 : index
      %c68 = arith.constant 68 : index
      %231 = vector.load %arg16[%c0_197, %c68] : memref<160x100xf32, #tpu.memory_space<vmem>>, vector<160x4xf32>
      tpu.vector_store %arg16[%c0_197, %c68], %230 {strides = array<i32>} : memref<160x100xf32, #tpu.memory_space<vmem>>, vector<160x4xf32>,
      %c41_i32 = arith.constant 41 : i32
      %232 = arith.addi %141, %c41_i32 : i32
      %c0_198 = arith.constant 0 : index
      %233 = arith.index_cast %232 : i32 to index
      %c0_199 = arith.constant 0 : index
      %234 = vector.load %arg1[%c0_198, %233, %c0_199] : memref<1x1600x4xf32, #tpu.memory_space<vmem>>, vector<1x160x4xf32>
      %235 = vector.shape_cast %234 : vector<1x160x4xf32> to vector<160x4xf32>
      %c0_200 = arith.constant 0 : index
      %c72_201 = arith.constant 72 : index
      %236 = vector.load %arg16[%c0_200, %c72_201] : memref<160x100xf32, #tpu.memory_space<vmem>>, vector<160x4xf32>
      tpu.vector_store %arg16[%c0_200, %c72_201], %235 {strides = array<i32>} : memref<160x100xf32, #tpu.memory_space<vmem>>, vector<160x4xf32>,
      %c42_i32 = arith.constant 42 : i32
      %237 = arith.addi %141, %c42_i32 : i32
      %c0_202 = arith.constant 0 : index
      %238 = arith.index_cast %237 : i32 to index
      %c0_203 = arith.constant 0 : index
      %239 = vector.load %arg1[%c0_202, %238, %c0_203] : memref<1x1600x4xf32, #tpu.memory_space<vmem>>, vector<1x160x4xf32>
      %240 = vector.shape_cast %239 : vector<1x160x4xf32> to vector<160x4xf32>
      %c0_204 = arith.constant 0 : index
      %c76 = arith.constant 76 : index
      %241 = vector.load %arg16[%c0_204, %c76] : memref<160x100xf32, #tpu.memory_space<vmem>>, vector<160x4xf32>
      tpu.vector_store %arg16[%c0_204, %c76], %240 {strides = array<i32>} : memref<160x100xf32, #tpu.memory_space<vmem>>, vector<160x4xf32>,
      %c78_i32 = arith.constant 78 : i32
      %242 = arith.addi %141, %c78_i32 : i32
      %c0_205 = arith.constant 0 : index
      %243 = arith.index_cast %242 : i32 to index
      %c0_206 = arith.constant 0 : index
      %244 = vector.load %arg1[%c0_205, %243, %c0_206] : memref<1x1600x4xf32, #tpu.memory_space<vmem>>, vector<1x160x4xf32>
      %245 = vector.shape_cast %244 : vector<1x160x4xf32> to vector<160x4xf32>
      %c0_207 = arith.constant 0 : index
      %c80_208 = arith.constant 80 : index
      %246 = vector.load %arg16[%c0_207, %c80_208] : memref<160x100xf32, #tpu.memory_space<vmem>>, vector<160x4xf32>
      tpu.vector_store %arg16[%c0_207, %c80_208], %245 {strides = array<i32>} : memref<160x100xf32, #tpu.memory_space<vmem>>, vector<160x4xf32>,
      %c79_i32 = arith.constant 79 : i32
      %247 = arith.addi %141, %c79_i32 : i32
      %c0_209 = arith.constant 0 : index
      %248 = arith.index_cast %247 : i32 to index
      %c0_210 = arith.constant 0 : index
      %249 = vector.load %arg1[%c0_209, %248, %c0_210] : memref<1x1600x4xf32, #tpu.memory_space<vmem>>, vector<1x160x4xf32>
      %250 = vector.shape_cast %249 : vector<1x160x4xf32> to vector<160x4xf32>
      %c0_211 = arith.constant 0 : index
      %c84 = arith.constant 84 : index
      %251 = vector.load %arg16[%c0_211, %c84] : memref<160x100xf32, #tpu.memory_space<vmem>>, vector<160x4xf32>
      tpu.vector_store %arg16[%c0_211, %c84], %250 {strides = array<i32>} : memref<160x100xf32, #tpu.memory_space<vmem>>, vector<160x4xf32>,
      %c80_i32 = arith.constant 80 : i32
      %252 = arith.addi %141, %c80_i32 : i32
      %c0_212 = arith.constant 0 : index
      %253 = arith.index_cast %252 : i32 to index
      %c0_213 = arith.constant 0 : index
      %254 = vector.load %arg1[%c0_212, %253, %c0_213] : memref<1x1600x4xf32, #tpu.memory_space<vmem>>, vector<1x160x4xf32>
      %255 = vector.shape_cast %254 : vector<1x160x4xf32> to vector<160x4xf32>
      %c0_214 = arith.constant 0 : index
      %c88_215 = arith.constant 88 : index
      %256 = vector.load %arg16[%c0_214, %c88_215] : memref<160x100xf32, #tpu.memory_space<vmem>>, vector<160x4xf32>
      tpu.vector_store %arg16[%c0_214, %c88_215], %255 {strides = array<i32>} : memref<160x100xf32, #tpu.memory_space<vmem>>, vector<160x4xf32>,
      %c81_i32 = arith.constant 81 : i32
      %257 = arith.addi %141, %c81_i32 : i32
      %c0_216 = arith.constant 0 : index
      %258 = arith.index_cast %257 : i32 to index
      %c0_217 = arith.constant 0 : index
      %259 = vector.load %arg1[%c0_216, %258, %c0_217] : memref<1x1600x4xf32, #tpu.memory_space<vmem>>, vector<1x160x4xf32>
      %260 = vector.shape_cast %259 : vector<1x160x4xf32> to vector<160x4xf32>
      %c0_218 = arith.constant 0 : index
      %c92 = arith.constant 92 : index
      %261 = vector.load %arg16[%c0_218, %c92] : memref<160x100xf32, #tpu.memory_space<vmem>>, vector<160x4xf32>
      tpu.vector_store %arg16[%c0_218, %c92], %260 {strides = array<i32>} : memref<160x100xf32, #tpu.memory_space<vmem>>, vector<160x4xf32>,
      %c82_i32 = arith.constant 82 : i32
      %262 = arith.addi %141, %c82_i32 : i32
      %c0_219 = arith.constant 0 : index
      %263 = arith.index_cast %262 : i32 to index
      %c0_220 = arith.constant 0 : index
      %264 = vector.load %arg1[%c0_219, %263, %c0_220] : memref<1x1600x4xf32, #tpu.memory_space<vmem>>, vector<1x160x4xf32>
      %265 = vector.shape_cast %264 : vector<1x160x4xf32> to vector<160x4xf32>
      %c0_221 = arith.constant 0 : index
      %c96_222 = arith.constant 96 : index
      %266 = vector.load %arg16[%c0_221, %c96_222] : memref<160x100xf32, #tpu.memory_space<vmem>>, vector<160x4xf32>
      tpu.vector_store %arg16[%c0_221, %c96_222], %265 {strides = array<i32>} : memref<160x100xf32, #tpu.memory_space<vmem>>, vector<160x4xf32>,
      %c0_223 = arith.constant 0 : index
      %c0_224 = arith.constant 0 : index
      %267 = vector.load %arg16[%c0_223, %c0_224] : memref<160x100xf32, #tpu.memory_space<vmem>>, vector<160x100xf32>
      %268 = arith.truncf %267 : vector<160x100xf32> to vector<160x100xbf16>
      %c0_225 = arith.constant 0 : index
      %c0_226 = arith.constant 0 : index
      %269 = vector.load %arg2[%c0_225, %c0_226] : memref<100x32xbf16, #tpu.memory_space<vmem>>, vector<100x32xbf16>
      %cst_227 = arith.constant dense<0.000000e+00> : vector<160x32xf32>
      %270 = tpu.matmul %268, %269, %cst_227 {dimension_numbers = #tpu.dot_dimension_numbers<[1], [0], [0], [1], [0, 0, 1, 1], [], []>} : vector<160x100xbf16>, vector<100x32xbf16>, vector<160x32xf32> -> vector<160x32xf32>
      %c0_228 = arith.constant 0 : index
      %c0_229 = arith.constant 0 : index
      %271 = vector.load %arg3[%c0_228, %c0_229] : memref<1x32xf32, #tpu.memory_space<vmem>>, vector<1x32xf32>
      %272 = vector.broadcast %271 : vector<1x32xf32> to vector<160x32xf32>
      %273 = arith.addf %270, %272 : vector<160x32xf32>
      %c0_230 = arith.constant 0 : index
      %c0_231 = arith.constant 0 : index
      %274 = vector.load %arg17[%c0_230, %c0_231] : memref<160x32xf32, #tpu.memory_space<vmem>>, vector<160x32xf32>
      tpu.vector_store %arg17[%c0_230, %c0_231], %273 {strides = array<i32>} : memref<160x32xf32, #tpu.memory_space<vmem>>, vector<160x32xf32>,
      %c8_232 = arith.constant 8 : index
      %c0_233 = arith.constant 0 : index
      %275 = tpu.strided_load %arg17[%c8_232, %c0_233] {strides = array<i32: 2, 1>} : memref<160x32xf32, #tpu.memory_space<vmem>>, vector<16x32xf32>
      %c9_234 = arith.constant 9 : index
      %c0_235 = arith.constant 0 : index
      %276 = tpu.strided_load %arg17[%c9_234, %c0_235] {strides = array<i32: 2, 1>} : memref<160x32xf32, #tpu.memory_space<vmem>>, vector<16x32xf32>
      %c48_236 = arith.constant 48 : index
      %c0_237 = arith.constant 0 : index
      %277 = tpu.strided_load %arg17[%c48_236, %c0_237] {strides = array<i32: 2, 1>} : memref<160x32xf32, #tpu.memory_space<vmem>>, vector<16x32xf32>
      %c49_238 = arith.constant 49 : index
      %c0_239 = arith.constant 0 : index
      %278 = tpu.strided_load %arg17[%c49_238, %c0_239] {strides = array<i32: 2, 1>} : memref<160x32xf32, #tpu.memory_space<vmem>>, vector<16x32xf32>
      %279 = arith.maximumf %275, %276 : vector<16x32xf32>
      %280 = arith.maximumf %277, %278 : vector<16x32xf32>
      %281 = arith.maximumf %279, %280 : vector<16x32xf32>
      %c2_i32_240 = arith.constant 2 : i32
      %282 = arith.muli %arg22, %c2_i32_240 : i32
      %c0_i32_241 = arith.constant 0 : i32
      %283 = arith.addi %282, %c0_i32_241 : i32
      %c4_i32_242 = arith.constant 4 : i32
      %284 = arith.addi %283, %c4_i32_242 : i32
      %c24_i32 = arith.constant 24 : i32
      %285 = arith.muli %284, %c24_i32 : i32
      %c8_i32_243 = arith.constant 8 : i32
      %286 = arith.addi %285, %c8_i32_243 : i32
      %287 = tpu.assume_multiple %286, 8 : i32
      %288 = arith.index_cast %287 : i32 to index
      %c0_244 = arith.constant 0 : index
      %289 = vector.load %arg13[%288, %c0_244] : memref<576x32xf32, #tpu.memory_space<vmem>>, vector<16x32xf32>
      tpu.vector_store %arg13[%288, %c0_244], %281 {strides = array<i32>} : memref<576x32xf32, #tpu.memory_space<vmem>>, vector<16x32xf32>,
      %c88_245 = arith.constant 88 : index
      %c0_246 = arith.constant 0 : index
      %290 = tpu.strided_load %arg17[%c88_245, %c0_246] {strides = array<i32: 2, 1>} : memref<160x32xf32, #tpu.memory_space<vmem>>, vector<16x32xf32>
      %c89_247 = arith.constant 89 : index
      %c0_248 = arith.constant 0 : index
      %291 = tpu.strided_load %arg17[%c89_247, %c0_248] {strides = array<i32: 2, 1>} : memref<160x32xf32, #tpu.memory_space<vmem>>, vector<16x32xf32>
      %c128_249 = arith.constant 128 : index
      %c0_250 = arith.constant 0 : index
      %292 = tpu.strided_load %arg17[%c128_249, %c0_250] {strides = array<i32: 2, 1>} : memref<160x32xf32, #tpu.memory_space<vmem>>, vector<16x32xf32>
      %c129 = arith.constant 129 : index
      %c0_251 = arith.constant 0 : index
      %293 = tpu.strided_load %arg17[%c129, %c0_251] {strides = array<i32: 2, 1>} : memref<160x32xf32, #tpu.memory_space<vmem>>, vector<16x32xf32>
      %294 = arith.maximumf %290, %291 : vector<16x32xf32>
      %295 = arith.maximumf %292, %293 : vector<16x32xf32>
      %296 = arith.maximumf %294, %295 : vector<16x32xf32>
      %c2_i32_252 = arith.constant 2 : i32
      %297 = arith.muli %arg22, %c2_i32_252 : i32
      %c1_i32_253 = arith.constant 1 : i32
      %298 = arith.addi %297, %c1_i32_253 : i32
      %c4_i32_254 = arith.constant 4 : i32
      %299 = arith.addi %298, %c4_i32_254 : i32
      %c24_i32_255 = arith.constant 24 : i32
      %300 = arith.muli %299, %c24_i32_255 : i32
      %c8_i32_256 = arith.constant 8 : i32
      %301 = arith.addi %300, %c8_i32_256 : i32
      %302 = tpu.assume_multiple %301, 8 : i32
      %303 = arith.index_cast %302 : i32 to index
      %c0_257 = arith.constant 0 : index
      %304 = vector.load %arg13[%303, %c0_257] : memref<576x32xf32, #tpu.memory_space<vmem>>, vector<16x32xf32>
      tpu.vector_store %arg13[%303, %c0_257], %296 {strides = array<i32>} : memref<576x32xf32, #tpu.memory_space<vmem>>, vector<16x32xf32>,
    }
    %c8_i32_4 = arith.constant 8 : i32
    %c0_i32_5 = arith.constant 0 : i32
    %c4_i32 = arith.constant 4 : i32
    %5 = arith.addi %c0_i32_5, %c4_i32 : i32
    %c1_i32_6 = arith.constant 1 : i32
    scf.for %arg22 = %c0_i32_5 to %5 step %c1_i32_6  : i32 {
      %c4_i32_131 = arith.constant 4 : i32
      %138 = arith.muli %arg22, %c4_i32_131 : i32
      %c4_i32_132 = arith.constant 4 : i32
      %139 = arith.addi %c4_i32_132, %138 : i32
      %c24_i32 = arith.constant 24 : i32
      %140 = arith.muli %139, %c24_i32 : i32
      %141 = tpu.assume_multiple %140, 8 : i32
      %c-50_i32 = arith.constant -50 : i32
      %142 = arith.addi %141, %c-50_i32 : i32
      %143 = arith.index_cast %142 : i32 to index
      %c0_133 = arith.constant 0 : index
      %144 = vector.load %arg13[%143, %c0_133] : memref<576x32xf32, #tpu.memory_space<vmem>>, vector<96x32xf32>
      %c0_134 = arith.constant 0 : index
      %c0_135 = arith.constant 0 : index
      %145 = vector.load %arg18[%c0_134, %c0_135] : memref<96x800xf32, #tpu.memory_space<vmem>>, vector<96x32xf32>
      tpu.vector_store %arg18[%c0_134, %c0_135], %144 {strides = array<i32>} : memref<96x800xf32, #tpu.memory_space<vmem>>, vector<96x32xf32>,
      %c-49_i32 = arith.constant -49 : i32
      %146 = arith.addi %141, %c-49_i32 : i32
      %147 = arith.index_cast %146 : i32 to index
      %c0_136 = arith.constant 0 : index
      %148 = vector.load %arg13[%147, %c0_136] : memref<576x32xf32, #tpu.memory_space<vmem>>, vector<96x32xf32>
      %c0_137 = arith.constant 0 : index
      %c32_138 = arith.constant 32 : index
      %149 = vector.load %arg18[%c0_137, %c32_138] : memref<96x800xf32, #tpu.memory_space<vmem>>, vector<96x32xf32>
      tpu.vector_store %arg18[%c0_137, %c32_138], %148 {strides = array<i32>} : memref<96x800xf32, #tpu.memory_space<vmem>>, vector<96x32xf32>,
      %c-48_i32 = arith.constant -48 : i32
      %150 = arith.addi %141, %c-48_i32 : i32
      %151 = arith.index_cast %150 : i32 to index
      %c0_139 = arith.constant 0 : index
      %152 = vector.load %arg13[%151, %c0_139] : memref<576x32xf32, #tpu.memory_space<vmem>>, vector<96x32xf32>
      %c0_140 = arith.constant 0 : index
      %c64_141 = arith.constant 64 : index
      %153 = vector.load %arg18[%c0_140, %c64_141] : memref<96x800xf32, #tpu.memory_space<vmem>>, vector<96x32xf32>
      tpu.vector_store %arg18[%c0_140, %c64_141], %152 {strides = array<i32>} : memref<96x800xf32, #tpu.memory_space<vmem>>, vector<96x32xf32>,
      %c-47_i32 = arith.constant -47 : i32
      %154 = arith.addi %141, %c-47_i32 : i32
      %155 = arith.index_cast %154 : i32 to index
      %c0_142 = arith.constant 0 : index
      %156 = vector.load %arg13[%155, %c0_142] : memref<576x32xf32, #tpu.memory_space<vmem>>, vector<96x32xf32>
      %c0_143 = arith.constant 0 : index
      %c96_144 = arith.constant 96 : index
      %157 = vector.load %arg18[%c0_143, %c96_144] : memref<96x800xf32, #tpu.memory_space<vmem>>, vector<96x32xf32>
      tpu.vector_store %arg18[%c0_143, %c96_144], %156 {strides = array<i32>} : memref<96x800xf32, #tpu.memory_space<vmem>>, vector<96x32xf32>,
      %c-46_i32 = arith.constant -46 : i32
      %158 = arith.addi %141, %c-46_i32 : i32
      %159 = arith.index_cast %158 : i32 to index
      %c0_145 = arith.constant 0 : index
      %160 = vector.load %arg13[%159, %c0_145] : memref<576x32xf32, #tpu.memory_space<vmem>>, vector<96x32xf32>
      %c0_146 = arith.constant 0 : index
      %c128_147 = arith.constant 128 : index
      %161 = vector.load %arg18[%c0_146, %c128_147] : memref<96x800xf32, #tpu.memory_space<vmem>>, vector<96x32xf32>
      tpu.vector_store %arg18[%c0_146, %c128_147], %160 {strides = array<i32>} : memref<96x800xf32, #tpu.memory_space<vmem>>, vector<96x32xf32>,
      %c-26_i32 = arith.constant -26 : i32
      %162 = arith.addi %141, %c-26_i32 : i32
      %163 = arith.index_cast %162 : i32 to index
      %c0_148 = arith.constant 0 : index
      %164 = vector.load %arg13[%163, %c0_148] : memref<576x32xf32, #tpu.memory_space<vmem>>, vector<96x32xf32>
      %c0_149 = arith.constant 0 : index
      %c160_150 = arith.constant 160 : index
      %165 = vector.load %arg18[%c0_149, %c160_150] : memref<96x800xf32, #tpu.memory_space<vmem>>, vector<96x32xf32>
      tpu.vector_store %arg18[%c0_149, %c160_150], %164 {strides = array<i32>} : memref<96x800xf32, #tpu.memory_space<vmem>>, vector<96x32xf32>,
      %c-25_i32 = arith.constant -25 : i32
      %166 = arith.addi %141, %c-25_i32 : i32
      %167 = arith.index_cast %166 : i32 to index
      %c0_151 = arith.constant 0 : index
      %168 = vector.load %arg13[%167, %c0_151] : memref<576x32xf32, #tpu.memory_space<vmem>>, vector<96x32xf32>
      %c0_152 = arith.constant 0 : index
      %c192_153 = arith.constant 192 : index
      %169 = vector.load %arg18[%c0_152, %c192_153] : memref<96x800xf32, #tpu.memory_space<vmem>>, vector<96x32xf32>
      tpu.vector_store %arg18[%c0_152, %c192_153], %168 {strides = array<i32>} : memref<96x800xf32, #tpu.memory_space<vmem>>, vector<96x32xf32>,
      %c-24_i32 = arith.constant -24 : i32
      %170 = arith.addi %141, %c-24_i32 : i32
      %171 = arith.index_cast %170 : i32 to index
      %c0_154 = arith.constant 0 : index
      %172 = vector.load %arg13[%171, %c0_154] : memref<576x32xf32, #tpu.memory_space<vmem>>, vector<96x32xf32>
      %c0_155 = arith.constant 0 : index
      %c224_156 = arith.constant 224 : index
      %173 = vector.load %arg18[%c0_155, %c224_156] : memref<96x800xf32, #tpu.memory_space<vmem>>, vector<96x32xf32>
      tpu.vector_store %arg18[%c0_155, %c224_156], %172 {strides = array<i32>} : memref<96x800xf32, #tpu.memory_space<vmem>>, vector<96x32xf32>,
      %c-23_i32 = arith.constant -23 : i32
      %174 = arith.addi %141, %c-23_i32 : i32
      %175 = arith.index_cast %174 : i32 to index
      %c0_157 = arith.constant 0 : index
      %176 = vector.load %arg13[%175, %c0_157] : memref<576x32xf32, #tpu.memory_space<vmem>>, vector<96x32xf32>
      %c0_158 = arith.constant 0 : index
      %c256_159 = arith.constant 256 : index
      %177 = vector.load %arg18[%c0_158, %c256_159] : memref<96x800xf32, #tpu.memory_space<vmem>>, vector<96x32xf32>
      tpu.vector_store %arg18[%c0_158, %c256_159], %176 {strides = array<i32>} : memref<96x800xf32, #tpu.memory_space<vmem>>, vector<96x32xf32>,
      %c-22_i32 = arith.constant -22 : i32
      %178 = arith.addi %141, %c-22_i32 : i32
      %179 = arith.index_cast %178 : i32 to index
      %c0_160 = arith.constant 0 : index
      %180 = vector.load %arg13[%179, %c0_160] : memref<576x32xf32, #tpu.memory_space<vmem>>, vector<96x32xf32>
      %c0_161 = arith.constant 0 : index
      %c288_162 = arith.constant 288 : index
      %181 = vector.load %arg18[%c0_161, %c288_162] : memref<96x800xf32, #tpu.memory_space<vmem>>, vector<96x32xf32>
      tpu.vector_store %arg18[%c0_161, %c288_162], %180 {strides = array<i32>} : memref<96x800xf32, #tpu.memory_space<vmem>>, vector<96x32xf32>,
      %c-2_i32 = arith.constant -2 : i32
      %182 = arith.addi %141, %c-2_i32 : i32
      %183 = arith.index_cast %182 : i32 to index
      %c0_163 = arith.constant 0 : index
      %184 = vector.load %arg13[%183, %c0_163] : memref<576x32xf32, #tpu.memory_space<vmem>>, vector<96x32xf32>
      %c0_164 = arith.constant 0 : index
      %c320_165 = arith.constant 320 : index
      %185 = vector.load %arg18[%c0_164, %c320_165] : memref<96x800xf32, #tpu.memory_space<vmem>>, vector<96x32xf32>
      tpu.vector_store %arg18[%c0_164, %c320_165], %184 {strides = array<i32>} : memref<96x800xf32, #tpu.memory_space<vmem>>, vector<96x32xf32>,
      %c-1_i32 = arith.constant -1 : i32
      %186 = arith.addi %141, %c-1_i32 : i32
      %187 = arith.index_cast %186 : i32 to index
      %c0_166 = arith.constant 0 : index
      %188 = vector.load %arg13[%187, %c0_166] : memref<576x32xf32, #tpu.memory_space<vmem>>, vector<96x32xf32>
      %c0_167 = arith.constant 0 : index
      %c352_168 = arith.constant 352 : index
      %189 = vector.load %arg18[%c0_167, %c352_168] : memref<96x800xf32, #tpu.memory_space<vmem>>, vector<96x32xf32>
      tpu.vector_store %arg18[%c0_167, %c352_168], %188 {strides = array<i32>} : memref<96x800xf32, #tpu.memory_space<vmem>>, vector<96x32xf32>,
      %c0_i32_169 = arith.constant 0 : i32
      %190 = arith.addi %141, %c0_i32_169 : i32
      %191 = arith.index_cast %190 : i32 to index
      %c0_170 = arith.constant 0 : index
      %192 = vector.load %arg13[%191, %c0_170] : memref<576x32xf32, #tpu.memory_space<vmem>>, vector<96x32xf32>
      %c0_171 = arith.constant 0 : index
      %c384_172 = arith.constant 384 : index
      %193 = vector.load %arg18[%c0_171, %c384_172] : memref<96x800xf32, #tpu.memory_space<vmem>>, vector<96x32xf32>
      tpu.vector_store %arg18[%c0_171, %c384_172], %192 {strides = array<i32>} : memref<96x800xf32, #tpu.memory_space<vmem>>, vector<96x32xf32>,
      %c1_i32_173 = arith.constant 1 : i32
      %194 = arith.addi %141, %c1_i32_173 : i32
      %195 = arith.index_cast %194 : i32 to index
      %c0_174 = arith.constant 0 : index
      %196 = vector.load %arg13[%195, %c0_174] : memref<576x32xf32, #tpu.memory_space<vmem>>, vector<96x32xf32>
      %c0_175 = arith.constant 0 : index
      %c416_176 = arith.constant 416 : index
      %197 = vector.load %arg18[%c0_175, %c416_176] : memref<96x800xf32, #tpu.memory_space<vmem>>, vector<96x32xf32>
      tpu.vector_store %arg18[%c0_175, %c416_176], %196 {strides = array<i32>} : memref<96x800xf32, #tpu.memory_space<vmem>>, vector<96x32xf32>,
      %c2_i32 = arith.constant 2 : i32
      %198 = arith.addi %141, %c2_i32 : i32
      %199 = arith.index_cast %198 : i32 to index
      %c0_177 = arith.constant 0 : index
      %200 = vector.load %arg13[%199, %c0_177] : memref<576x32xf32, #tpu.memory_space<vmem>>, vector<96x32xf32>
      %c0_178 = arith.constant 0 : index
      %c448_179 = arith.constant 448 : index
      %201 = vector.load %arg18[%c0_178, %c448_179] : memref<96x800xf32, #tpu.memory_space<vmem>>, vector<96x32xf32>
      tpu.vector_store %arg18[%c0_178, %c448_179], %200 {strides = array<i32>} : memref<96x800xf32, #tpu.memory_space<vmem>>, vector<96x32xf32>,
      %c22_i32 = arith.constant 22 : i32
      %202 = arith.addi %141, %c22_i32 : i32
      %203 = arith.index_cast %202 : i32 to index
      %c0_180 = arith.constant 0 : index
      %204 = vector.load %arg13[%203, %c0_180] : memref<576x32xf32, #tpu.memory_space<vmem>>, vector<96x32xf32>
      %c0_181 = arith.constant 0 : index
      %c480_182 = arith.constant 480 : index
      %205 = vector.load %arg18[%c0_181, %c480_182] : memref<96x800xf32, #tpu.memory_space<vmem>>, vector<96x32xf32>
      tpu.vector_store %arg18[%c0_181, %c480_182], %204 {strides = array<i32>} : memref<96x800xf32, #tpu.memory_space<vmem>>, vector<96x32xf32>,
      %c23_i32 = arith.constant 23 : i32
      %206 = arith.addi %141, %c23_i32 : i32
      %207 = arith.index_cast %206 : i32 to index
      %c0_183 = arith.constant 0 : index
      %208 = vector.load %arg13[%207, %c0_183] : memref<576x32xf32, #tpu.memory_space<vmem>>, vector<96x32xf32>
      %c0_184 = arith.constant 0 : index
      %c512_185 = arith.constant 512 : index
      %209 = vector.load %arg18[%c0_184, %c512_185] : memref<96x800xf32, #tpu.memory_space<vmem>>, vector<96x32xf32>
      tpu.vector_store %arg18[%c0_184, %c512_185], %208 {strides = array<i32>} : memref<96x800xf32, #tpu.memory_space<vmem>>, vector<96x32xf32>,
      %c24_i32_186 = arith.constant 24 : i32
      %210 = arith.addi %141, %c24_i32_186 : i32
      %211 = arith.index_cast %210 : i32 to index
      %c0_187 = arith.constant 0 : index
      %212 = vector.load %arg13[%211, %c0_187] : memref<576x32xf32, #tpu.memory_space<vmem>>, vector<96x32xf32>
      %c0_188 = arith.constant 0 : index
      %c544_189 = arith.constant 544 : index
      %213 = vector.load %arg18[%c0_188, %c544_189] : memref<96x800xf32, #tpu.memory_space<vmem>>, vector<96x32xf32>
      tpu.vector_store %arg18[%c0_188, %c544_189], %212 {strides = array<i32>} : memref<96x800xf32, #tpu.memory_space<vmem>>, vector<96x32xf32>,
      %c25_i32 = arith.constant 25 : i32
      %214 = arith.addi %141, %c25_i32 : i32
      %215 = arith.index_cast %214 : i32 to index
      %c0_190 = arith.constant 0 : index
      %216 = vector.load %arg13[%215, %c0_190] : memref<576x32xf32, #tpu.memory_space<vmem>>, vector<96x32xf32>
      %c0_191 = arith.constant 0 : index
      %c576_192 = arith.constant 576 : index
      %217 = vector.load %arg18[%c0_191, %c576_192] : memref<96x800xf32, #tpu.memory_space<vmem>>, vector<96x32xf32>
      tpu.vector_store %arg18[%c0_191, %c576_192], %216 {strides = array<i32>} : memref<96x800xf32, #tpu.memory_space<vmem>>, vector<96x32xf32>,
      %c26_i32 = arith.constant 26 : i32
      %218 = arith.addi %141, %c26_i32 : i32
      %219 = arith.index_cast %218 : i32 to index
      %c0_193 = arith.constant 0 : index
      %220 = vector.load %arg13[%219, %c0_193] : memref<576x32xf32, #tpu.memory_space<vmem>>, vector<96x32xf32>
      %c0_194 = arith.constant 0 : index
      %c608_195 = arith.constant 608 : index
      %221 = vector.load %arg18[%c0_194, %c608_195] : memref<96x800xf32, #tpu.memory_space<vmem>>, vector<96x32xf32>
      tpu.vector_store %arg18[%c0_194, %c608_195], %220 {strides = array<i32>} : memref<96x800xf32, #tpu.memory_space<vmem>>, vector<96x32xf32>,
      %c46_i32 = arith.constant 46 : i32
      %222 = arith.addi %141, %c46_i32 : i32
      %223 = arith.index_cast %222 : i32 to index
      %c0_196 = arith.constant 0 : index
      %224 = vector.load %arg13[%223, %c0_196] : memref<576x32xf32, #tpu.memory_space<vmem>>, vector<96x32xf32>
      %c0_197 = arith.constant 0 : index
      %c640_198 = arith.constant 640 : index
      %225 = vector.load %arg18[%c0_197, %c640_198] : memref<96x800xf32, #tpu.memory_space<vmem>>, vector<96x32xf32>
      tpu.vector_store %arg18[%c0_197, %c640_198], %224 {strides = array<i32>} : memref<96x800xf32, #tpu.memory_space<vmem>>, vector<96x32xf32>,
      %c47_i32 = arith.constant 47 : i32
      %226 = arith.addi %141, %c47_i32 : i32
      %227 = arith.index_cast %226 : i32 to index
      %c0_199 = arith.constant 0 : index
      %228 = vector.load %arg13[%227, %c0_199] : memref<576x32xf32, #tpu.memory_space<vmem>>, vector<96x32xf32>
      %c0_200 = arith.constant 0 : index
      %c672_201 = arith.constant 672 : index
      %229 = vector.load %arg18[%c0_200, %c672_201] : memref<96x800xf32, #tpu.memory_space<vmem>>, vector<96x32xf32>
      tpu.vector_store %arg18[%c0_200, %c672_201], %228 {strides = array<i32>} : memref<96x800xf32, #tpu.memory_space<vmem>>, vector<96x32xf32>,
      %c48_i32 = arith.constant 48 : i32
      %230 = arith.addi %141, %c48_i32 : i32
      %231 = arith.index_cast %230 : i32 to index
      %c0_202 = arith.constant 0 : index
      %232 = vector.load %arg13[%231, %c0_202] : memref<576x32xf32, #tpu.memory_space<vmem>>, vector<96x32xf32>
      %c0_203 = arith.constant 0 : index
      %c704_204 = arith.constant 704 : index
      %233 = vector.load %arg18[%c0_203, %c704_204] : memref<96x800xf32, #tpu.memory_space<vmem>>, vector<96x32xf32>
      tpu.vector_store %arg18[%c0_203, %c704_204], %232 {strides = array<i32>} : memref<96x800xf32, #tpu.memory_space<vmem>>, vector<96x32xf32>,
      %c49_i32 = arith.constant 49 : i32
      %234 = arith.addi %141, %c49_i32 : i32
      %235 = arith.index_cast %234 : i32 to index
      %c0_205 = arith.constant 0 : index
      %236 = vector.load %arg13[%235, %c0_205] : memref<576x32xf32, #tpu.memory_space<vmem>>, vector<96x32xf32>
      %c0_206 = arith.constant 0 : index
      %c736_207 = arith.constant 736 : index
      %237 = vector.load %arg18[%c0_206, %c736_207] : memref<96x800xf32, #tpu.memory_space<vmem>>, vector<96x32xf32>
      tpu.vector_store %arg18[%c0_206, %c736_207], %236 {strides = array<i32>} : memref<96x800xf32, #tpu.memory_space<vmem>>, vector<96x32xf32>,
      %c50_i32 = arith.constant 50 : i32
      %238 = arith.addi %141, %c50_i32 : i32
      %239 = arith.index_cast %238 : i32 to index
      %c0_208 = arith.constant 0 : index
      %240 = vector.load %arg13[%239, %c0_208] : memref<576x32xf32, #tpu.memory_space<vmem>>, vector<96x32xf32>
      %c0_209 = arith.constant 0 : index
      %c768_210 = arith.constant 768 : index
      %241 = vector.load %arg18[%c0_209, %c768_210] : memref<96x800xf32, #tpu.memory_space<vmem>>, vector<96x32xf32>
      tpu.vector_store %arg18[%c0_209, %c768_210], %240 {strides = array<i32>} : memref<96x800xf32, #tpu.memory_space<vmem>>, vector<96x32xf32>,
      %c0_211 = arith.constant 0 : index
      %c0_212 = arith.constant 0 : index
      %242 = vector.load %arg18[%c0_211, %c0_212] : memref<96x800xf32, #tpu.memory_space<vmem>>, vector<96x800xf32>
      %243 = arith.truncf %242 : vector<96x800xf32> to vector<96x800xbf16>
      %c0_213 = arith.constant 0 : index
      %c0_214 = arith.constant 0 : index
      %244 = vector.load %arg4[%c0_213, %c0_214] : memref<800x32xbf16, #tpu.memory_space<vmem>>, vector<800x32xbf16>
      %cst_215 = arith.constant dense<0.000000e+00> : vector<96x32xf32>
      %245 = tpu.matmul %243, %244, %cst_215 {dimension_numbers = #tpu.dot_dimension_numbers<[1], [0], [0], [1], [0, 0, 1, 1], [], []>} : vector<96x800xbf16>, vector<800x32xbf16>, vector<96x32xf32> -> vector<96x32xf32>
      %c0_216 = arith.constant 0 : index
      %c0_217 = arith.constant 0 : index
      %246 = vector.load %arg5[%c0_216, %c0_217] : memref<1x32xf32, #tpu.memory_space<vmem>>, vector<1x32xf32>
      %247 = vector.broadcast %246 : vector<1x32xf32> to vector<96x32xf32>
      %248 = arith.addf %245, %247 : vector<96x32xf32>
      %c0_218 = arith.constant 0 : index
      %c0_219 = arith.constant 0 : index
      %249 = vector.load %arg19[%c0_218, %c0_219] : memref<96x32xf32, #tpu.memory_space<vmem>>, vector<96x32xf32>
      tpu.vector_store %arg19[%c0_218, %c0_219], %248 {strides = array<i32>} : memref<96x32xf32, #tpu.memory_space<vmem>>, vector<96x32xf32>,
      %c8_220 = arith.constant 8 : index
      %c0_221 = arith.constant 0 : index
      %250 = tpu.strided_load %arg19[%c8_220, %c0_221] {strides = array<i32: 2, 1>} : memref<96x32xf32, #tpu.memory_space<vmem>>, vector<8x32xf32>
      %c9_222 = arith.constant 9 : index
      %c0_223 = arith.constant 0 : index
      %251 = tpu.strided_load %arg19[%c9_222, %c0_223] {strides = array<i32: 2, 1>} : memref<96x32xf32, #tpu.memory_space<vmem>>, vector<8x32xf32>
      %c32_224 = arith.constant 32 : index
      %c0_225 = arith.constant 0 : index
      %252 = tpu.strided_load %arg19[%c32_224, %c0_225] {strides = array<i32: 2, 1>} : memref<96x32xf32, #tpu.memory_space<vmem>>, vector<8x32xf32>
      %c33_226 = arith.constant 33 : index
      %c0_227 = arith.constant 0 : index
      %253 = tpu.strided_load %arg19[%c33_226, %c0_227] {strides = array<i32: 2, 1>} : memref<96x32xf32, #tpu.memory_space<vmem>>, vector<8x32xf32>
      %254 = arith.maximumf %250, %251 : vector<8x32xf32>
      %255 = arith.maximumf %252, %253 : vector<8x32xf32>
      %256 = arith.maximumf %254, %255 : vector<8x32xf32>
      %c2_i32_228 = arith.constant 2 : i32
      %257 = arith.muli %arg22, %c2_i32_228 : i32
      %c0_i32_229 = arith.constant 0 : i32
      %258 = arith.addi %257, %c0_i32_229 : i32
      %c4_i32_230 = arith.constant 4 : i32
      %259 = arith.addi %258, %c4_i32_230 : i32
      %c16_i32 = arith.constant 16 : i32
      %260 = arith.muli %259, %c16_i32 : i32
      %c8_i32_231 = arith.constant 8 : i32
      %261 = arith.addi %260, %c8_i32_231 : i32
      %262 = tpu.assume_multiple %261, 8 : i32
      %263 = arith.index_cast %262 : i32 to index
      %c0_232 = arith.constant 0 : index
      %264 = vector.load %arg14[%263, %c0_232] : memref<256x32xf32, #tpu.memory_space<vmem>>, vector<8x32xf32>
      tpu.vector_store %arg14[%263, %c0_232], %256 {strides = array<i32>} : memref<256x32xf32, #tpu.memory_space<vmem>>, vector<8x32xf32>,
      %c56_233 = arith.constant 56 : index
      %c0_234 = arith.constant 0 : index
      %265 = tpu.strided_load %arg19[%c56_233, %c0_234] {strides = array<i32: 2, 1>} : memref<96x32xf32, #tpu.memory_space<vmem>>, vector<8x32xf32>
      %c57_235 = arith.constant 57 : index
      %c0_236 = arith.constant 0 : index
      %266 = tpu.strided_load %arg19[%c57_235, %c0_236] {strides = array<i32: 2, 1>} : memref<96x32xf32, #tpu.memory_space<vmem>>, vector<8x32xf32>
      %c80_237 = arith.constant 80 : index
      %c0_238 = arith.constant 0 : index
      %267 = tpu.strided_load %arg19[%c80_237, %c0_238] {strides = array<i32: 2, 1>} : memref<96x32xf32, #tpu.memory_space<vmem>>, vector<8x32xf32>
      %c81_239 = arith.constant 81 : index
      %c0_240 = arith.constant 0 : index
      %268 = tpu.strided_load %arg19[%c81_239, %c0_240] {strides = array<i32: 2, 1>} : memref<96x32xf32, #tpu.memory_space<vmem>>, vector<8x32xf32>
      %269 = arith.maximumf %265, %266 : vector<8x32xf32>
      %270 = arith.maximumf %267, %268 : vector<8x32xf32>
      %271 = arith.maximumf %269, %270 : vector<8x32xf32>
      %c2_i32_241 = arith.constant 2 : i32
      %272 = arith.muli %arg22, %c2_i32_241 : i32
      %c1_i32_242 = arith.constant 1 : i32
      %273 = arith.addi %272, %c1_i32_242 : i32
      %c4_i32_243 = arith.constant 4 : i32
      %274 = arith.addi %273, %c4_i32_243 : i32
      %c16_i32_244 = arith.constant 16 : i32
      %275 = arith.muli %274, %c16_i32_244 : i32
      %c8_i32_245 = arith.constant 8 : i32
      %276 = arith.addi %275, %c8_i32_245 : i32
      %277 = tpu.assume_multiple %276, 8 : i32
      %278 = arith.index_cast %277 : i32 to index
      %c0_246 = arith.constant 0 : index
      %279 = vector.load %arg14[%278, %c0_246] : memref<256x32xf32, #tpu.memory_space<vmem>>, vector<8x32xf32>
      tpu.vector_store %arg14[%278, %c0_246], %271 {strides = array<i32>} : memref<256x32xf32, #tpu.memory_space<vmem>>, vector<8x32xf32>,
    }
    %c4_i32_7 = arith.constant 4 : i32
    %c30 = arith.constant 30 : index
    %c0_8 = arith.constant 0 : index
    %6 = vector.load %arg14[%c30, %c0_8] : memref<256x32xf32, #tpu.memory_space<vmem>>, vector<128x32xf32>
    %c0_9 = arith.constant 0 : index
    %c0_10 = arith.constant 0 : index
    %7 = vector.load %arg20[%c0_9, %c0_10] : memref<128x800xf32, #tpu.memory_space<vmem>>, vector<128x32xf32>
    tpu.vector_store %arg20[%c0_9, %c0_10], %6 {strides = array<i32>} : memref<128x800xf32, #tpu.memory_space<vmem>>, vector<128x32xf32>,
    %c31 = arith.constant 31 : index
    %c0_11 = arith.constant 0 : index
    %8 = vector.load %arg14[%c31, %c0_11] : memref<256x32xf32, #tpu.memory_space<vmem>>, vector<128x32xf32>
    %c0_12 = arith.constant 0 : index
    %c32 = arith.constant 32 : index
    %9 = vector.load %arg20[%c0_12, %c32] : memref<128x800xf32, #tpu.memory_space<vmem>>, vector<128x32xf32>
    tpu.vector_store %arg20[%c0_12, %c32], %8 {strides = array<i32>} : memref<128x800xf32, #tpu.memory_space<vmem>>, vector<128x32xf32>,
    %c32_13 = arith.constant 32 : index
    %c0_14 = arith.constant 0 : index
    %10 = vector.load %arg14[%c32_13, %c0_14] : memref<256x32xf32, #tpu.memory_space<vmem>>, vector<128x32xf32>
    %c0_15 = arith.constant 0 : index
    %c64 = arith.constant 64 : index
    %11 = vector.load %arg20[%c0_15, %c64] : memref<128x800xf32, #tpu.memory_space<vmem>>, vector<128x32xf32>
    tpu.vector_store %arg20[%c0_15, %c64], %10 {strides = array<i32>} : memref<128x800xf32, #tpu.memory_space<vmem>>, vector<128x32xf32>,
    %c33 = arith.constant 33 : index
    %c0_16 = arith.constant 0 : index
    %12 = vector.load %arg14[%c33, %c0_16] : memref<256x32xf32, #tpu.memory_space<vmem>>, vector<128x32xf32>
    %c0_17 = arith.constant 0 : index
    %c96 = arith.constant 96 : index
    %13 = vector.load %arg20[%c0_17, %c96] : memref<128x800xf32, #tpu.memory_space<vmem>>, vector<128x32xf32>
    tpu.vector_store %arg20[%c0_17, %c96], %12 {strides = array<i32>} : memref<128x800xf32, #tpu.memory_space<vmem>>, vector<128x32xf32>,
    %c34 = arith.constant 34 : index
    %c0_18 = arith.constant 0 : index
    %14 = vector.load %arg14[%c34, %c0_18] : memref<256x32xf32, #tpu.memory_space<vmem>>, vector<128x32xf32>
    %c0_19 = arith.constant 0 : index
    %c128 = arith.constant 128 : index
    %15 = vector.load %arg20[%c0_19, %c128] : memref<128x800xf32, #tpu.memory_space<vmem>>, vector<128x32xf32>
    tpu.vector_store %arg20[%c0_19, %c128], %14 {strides = array<i32>} : memref<128x800xf32, #tpu.memory_space<vmem>>, vector<128x32xf32>,
    %c46 = arith.constant 46 : index
    %c0_20 = arith.constant 0 : index
    %16 = vector.load %arg14[%c46, %c0_20] : memref<256x32xf32, #tpu.memory_space<vmem>>, vector<128x32xf32>
    %c0_21 = arith.constant 0 : index
    %c160 = arith.constant 160 : index
    %17 = vector.load %arg20[%c0_21, %c160] : memref<128x800xf32, #tpu.memory_space<vmem>>, vector<128x32xf32>
    tpu.vector_store %arg20[%c0_21, %c160], %16 {strides = array<i32>} : memref<128x800xf32, #tpu.memory_space<vmem>>, vector<128x32xf32>,
    %c47 = arith.constant 47 : index
    %c0_22 = arith.constant 0 : index
    %18 = vector.load %arg14[%c47, %c0_22] : memref<256x32xf32, #tpu.memory_space<vmem>>, vector<128x32xf32>
    %c0_23 = arith.constant 0 : index
    %c192 = arith.constant 192 : index
    %19 = vector.load %arg20[%c0_23, %c192] : memref<128x800xf32, #tpu.memory_space<vmem>>, vector<128x32xf32>
    tpu.vector_store %arg20[%c0_23, %c192], %18 {strides = array<i32>} : memref<128x800xf32, #tpu.memory_space<vmem>>, vector<128x32xf32>,
    %c48 = arith.constant 48 : index
    %c0_24 = arith.constant 0 : index
    %20 = vector.load %arg14[%c48, %c0_24] : memref<256x32xf32, #tpu.memory_space<vmem>>, vector<128x32xf32>
    %c0_25 = arith.constant 0 : index
    %c224 = arith.constant 224 : index
    %21 = vector.load %arg20[%c0_25, %c224] : memref<128x800xf32, #tpu.memory_space<vmem>>, vector<128x32xf32>
    tpu.vector_store %arg20[%c0_25, %c224], %20 {strides = array<i32>} : memref<128x800xf32, #tpu.memory_space<vmem>>, vector<128x32xf32>,
    %c49 = arith.constant 49 : index
    %c0_26 = arith.constant 0 : index
    %22 = vector.load %arg14[%c49, %c0_26] : memref<256x32xf32, #tpu.memory_space<vmem>>, vector<128x32xf32>
    %c0_27 = arith.constant 0 : index
    %c256 = arith.constant 256 : index
    %23 = vector.load %arg20[%c0_27, %c256] : memref<128x800xf32, #tpu.memory_space<vmem>>, vector<128x32xf32>
    tpu.vector_store %arg20[%c0_27, %c256], %22 {strides = array<i32>} : memref<128x800xf32, #tpu.memory_space<vmem>>, vector<128x32xf32>,
    %c50 = arith.constant 50 : index
    %c0_28 = arith.constant 0 : index
    %24 = vector.load %arg14[%c50, %c0_28] : memref<256x32xf32, #tpu.memory_space<vmem>>, vector<128x32xf32>
    %c0_29 = arith.constant 0 : index
    %c288 = arith.constant 288 : index
    %25 = vector.load %arg20[%c0_29, %c288] : memref<128x800xf32, #tpu.memory_space<vmem>>, vector<128x32xf32>
    tpu.vector_store %arg20[%c0_29, %c288], %24 {strides = array<i32>} : memref<128x800xf32, #tpu.memory_space<vmem>>, vector<128x32xf32>,
    %c62 = arith.constant 62 : index
    %c0_30 = arith.constant 0 : index
    %26 = vector.load %arg14[%c62, %c0_30] : memref<256x32xf32, #tpu.memory_space<vmem>>, vector<128x32xf32>
    %c0_31 = arith.constant 0 : index
    %c320 = arith.constant 320 : index
    %27 = vector.load %arg20[%c0_31, %c320] : memref<128x800xf32, #tpu.memory_space<vmem>>, vector<128x32xf32>
    tpu.vector_store %arg20[%c0_31, %c320], %26 {strides = array<i32>} : memref<128x800xf32, #tpu.memory_space<vmem>>, vector<128x32xf32>,
    %c63 = arith.constant 63 : index
    %c0_32 = arith.constant 0 : index
    %28 = vector.load %arg14[%c63, %c0_32] : memref<256x32xf32, #tpu.memory_space<vmem>>, vector<128x32xf32>
    %c0_33 = arith.constant 0 : index
    %c352 = arith.constant 352 : index
    %29 = vector.load %arg20[%c0_33, %c352] : memref<128x800xf32, #tpu.memory_space<vmem>>, vector<128x32xf32>
    tpu.vector_store %arg20[%c0_33, %c352], %28 {strides = array<i32>} : memref<128x800xf32, #tpu.memory_space<vmem>>, vector<128x32xf32>,
    %c64_34 = arith.constant 64 : index
    %c0_35 = arith.constant 0 : index
    %30 = vector.load %arg14[%c64_34, %c0_35] : memref<256x32xf32, #tpu.memory_space<vmem>>, vector<128x32xf32>
    %c0_36 = arith.constant 0 : index
    %c384 = arith.constant 384 : index
    %31 = vector.load %arg20[%c0_36, %c384] : memref<128x800xf32, #tpu.memory_space<vmem>>, vector<128x32xf32>
    tpu.vector_store %arg20[%c0_36, %c384], %30 {strides = array<i32>} : memref<128x800xf32, #tpu.memory_space<vmem>>, vector<128x32xf32>,
    %c65 = arith.constant 65 : index
    %c0_37 = arith.constant 0 : index
    %32 = vector.load %arg14[%c65, %c0_37] : memref<256x32xf32, #tpu.memory_space<vmem>>, vector<128x32xf32>
    %c0_38 = arith.constant 0 : index
    %c416 = arith.constant 416 : index
    %33 = vector.load %arg20[%c0_38, %c416] : memref<128x800xf32, #tpu.memory_space<vmem>>, vector<128x32xf32>
    tpu.vector_store %arg20[%c0_38, %c416], %32 {strides = array<i32>} : memref<128x800xf32, #tpu.memory_space<vmem>>, vector<128x32xf32>,
    %c66 = arith.constant 66 : index
    %c0_39 = arith.constant 0 : index
    %34 = vector.load %arg14[%c66, %c0_39] : memref<256x32xf32, #tpu.memory_space<vmem>>, vector<128x32xf32>
    %c0_40 = arith.constant 0 : index
    %c448 = arith.constant 448 : index
    %35 = vector.load %arg20[%c0_40, %c448] : memref<128x800xf32, #tpu.memory_space<vmem>>, vector<128x32xf32>
    tpu.vector_store %arg20[%c0_40, %c448], %34 {strides = array<i32>} : memref<128x800xf32, #tpu.memory_space<vmem>>, vector<128x32xf32>,
    %c78 = arith.constant 78 : index
    %c0_41 = arith.constant 0 : index
    %36 = vector.load %arg14[%c78, %c0_41] : memref<256x32xf32, #tpu.memory_space<vmem>>, vector<128x32xf32>
    %c0_42 = arith.constant 0 : index
    %c480 = arith.constant 480 : index
    %37 = vector.load %arg20[%c0_42, %c480] : memref<128x800xf32, #tpu.memory_space<vmem>>, vector<128x32xf32>
    tpu.vector_store %arg20[%c0_42, %c480], %36 {strides = array<i32>} : memref<128x800xf32, #tpu.memory_space<vmem>>, vector<128x32xf32>,
    %c79 = arith.constant 79 : index
    %c0_43 = arith.constant 0 : index
    %38 = vector.load %arg14[%c79, %c0_43] : memref<256x32xf32, #tpu.memory_space<vmem>>, vector<128x32xf32>
    %c0_44 = arith.constant 0 : index
    %c512 = arith.constant 512 : index
    %39 = vector.load %arg20[%c0_44, %c512] : memref<128x800xf32, #tpu.memory_space<vmem>>, vector<128x32xf32>
    tpu.vector_store %arg20[%c0_44, %c512], %38 {strides = array<i32>} : memref<128x800xf32, #tpu.memory_space<vmem>>, vector<128x32xf32>,
    %c80 = arith.constant 80 : index
    %c0_45 = arith.constant 0 : index
    %40 = vector.load %arg14[%c80, %c0_45] : memref<256x32xf32, #tpu.memory_space<vmem>>, vector<128x32xf32>
    %c0_46 = arith.constant 0 : index
    %c544 = arith.constant 544 : index
    %41 = vector.load %arg20[%c0_46, %c544] : memref<128x800xf32, #tpu.memory_space<vmem>>, vector<128x32xf32>
    tpu.vector_store %arg20[%c0_46, %c544], %40 {strides = array<i32>} : memref<128x800xf32, #tpu.memory_space<vmem>>, vector<128x32xf32>,
    %c81 = arith.constant 81 : index
    %c0_47 = arith.constant 0 : index
    %42 = vector.load %arg14[%c81, %c0_47] : memref<256x32xf32, #tpu.memory_space<vmem>>, vector<128x32xf32>
    %c0_48 = arith.constant 0 : index
    %c576 = arith.constant 576 : index
    %43 = vector.load %arg20[%c0_48, %c576] : memref<128x800xf32, #tpu.memory_space<vmem>>, vector<128x32xf32>
    tpu.vector_store %arg20[%c0_48, %c576], %42 {strides = array<i32>} : memref<128x800xf32, #tpu.memory_space<vmem>>, vector<128x32xf32>,
    %c82 = arith.constant 82 : index
    %c0_49 = arith.constant 0 : index
    %44 = vector.load %arg14[%c82, %c0_49] : memref<256x32xf32, #tpu.memory_space<vmem>>, vector<128x32xf32>
    %c0_50 = arith.constant 0 : index
    %c608 = arith.constant 608 : index
    %45 = vector.load %arg20[%c0_50, %c608] : memref<128x800xf32, #tpu.memory_space<vmem>>, vector<128x32xf32>
    tpu.vector_store %arg20[%c0_50, %c608], %44 {strides = array<i32>} : memref<128x800xf32, #tpu.memory_space<vmem>>, vector<128x32xf32>,
    %c94 = arith.constant 94 : index
    %c0_51 = arith.constant 0 : index
    %46 = vector.load %arg14[%c94, %c0_51] : memref<256x32xf32, #tpu.memory_space<vmem>>, vector<128x32xf32>
    %c0_52 = arith.constant 0 : index
    %c640 = arith.constant 640 : index
    %47 = vector.load %arg20[%c0_52, %c640] : memref<128x800xf32, #tpu.memory_space<vmem>>, vector<128x32xf32>
    tpu.vector_store %arg20[%c0_52, %c640], %46 {strides = array<i32>} : memref<128x800xf32, #tpu.memory_space<vmem>>, vector<128x32xf32>,
    %c95 = arith.constant 95 : index
    %c0_53 = arith.constant 0 : index
    %48 = vector.load %arg14[%c95, %c0_53] : memref<256x32xf32, #tpu.memory_space<vmem>>, vector<128x32xf32>
    %c0_54 = arith.constant 0 : index
    %c672 = arith.constant 672 : index
    %49 = vector.load %arg20[%c0_54, %c672] : memref<128x800xf32, #tpu.memory_space<vmem>>, vector<128x32xf32>
    tpu.vector_store %arg20[%c0_54, %c672], %48 {strides = array<i32>} : memref<128x800xf32, #tpu.memory_space<vmem>>, vector<128x32xf32>,
    %c96_55 = arith.constant 96 : index
    %c0_56 = arith.constant 0 : index
    %50 = vector.load %arg14[%c96_55, %c0_56] : memref<256x32xf32, #tpu.memory_space<vmem>>, vector<128x32xf32>
    %c0_57 = arith.constant 0 : index
    %c704 = arith.constant 704 : index
    %51 = vector.load %arg20[%c0_57, %c704] : memref<128x800xf32, #tpu.memory_space<vmem>>, vector<128x32xf32>
    tpu.vector_store %arg20[%c0_57, %c704], %50 {strides = array<i32>} : memref<128x800xf32, #tpu.memory_space<vmem>>, vector<128x32xf32>,
    %c97 = arith.constant 97 : index
    %c0_58 = arith.constant 0 : index
    %52 = vector.load %arg14[%c97, %c0_58] : memref<256x32xf32, #tpu.memory_space<vmem>>, vector<128x32xf32>
    %c0_59 = arith.constant 0 : index
    %c736 = arith.constant 736 : index
    %53 = vector.load %arg20[%c0_59, %c736] : memref<128x800xf32, #tpu.memory_space<vmem>>, vector<128x32xf32>
    tpu.vector_store %arg20[%c0_59, %c736], %52 {strides = array<i32>} : memref<128x800xf32, #tpu.memory_space<vmem>>, vector<128x32xf32>,
    %c98 = arith.constant 98 : index
    %c0_60 = arith.constant 0 : index
    %54 = vector.load %arg14[%c98, %c0_60] : memref<256x32xf32, #tpu.memory_space<vmem>>, vector<128x32xf32>
    %c0_61 = arith.constant 0 : index
    %c768 = arith.constant 768 : index
    %55 = vector.load %arg20[%c0_61, %c768] : memref<128x800xf32, #tpu.memory_space<vmem>>, vector<128x32xf32>
    tpu.vector_store %arg20[%c0_61, %c768], %54 {strides = array<i32>} : memref<128x800xf32, #tpu.memory_space<vmem>>, vector<128x32xf32>,
    %c0_62 = arith.constant 0 : index
    %c0_63 = arith.constant 0 : index
    %56 = vector.load %arg20[%c0_62, %c0_63] : memref<128x800xf32, #tpu.memory_space<vmem>>, vector<128x800xf32>
    %57 = arith.truncf %56 : vector<128x800xf32> to vector<128x800xbf16>
    %c0_64 = arith.constant 0 : index
    %c0_65 = arith.constant 0 : index
    %58 = vector.load %arg6[%c0_64, %c0_65] : memref<800x64xbf16, #tpu.memory_space<vmem>>, vector<800x64xbf16>
    %cst_66 = arith.constant dense<0.000000e+00> : vector<128x64xf32>
    %59 = tpu.matmul %57, %58, %cst_66 {dimension_numbers = #tpu.dot_dimension_numbers<[1], [0], [0], [1], [0, 0, 1, 1], [], []>} : vector<128x800xbf16>, vector<800x64xbf16>, vector<128x64xf32> -> vector<128x64xf32>
    %c0_67 = arith.constant 0 : index
    %c0_68 = arith.constant 0 : index
    %60 = vector.load %arg7[%c0_67, %c0_68] : memref<1x64xf32, #tpu.memory_space<vmem>>, vector<1x64xf32>
    %61 = vector.broadcast %60 : vector<1x64xf32> to vector<128x64xf32>
    %62 = arith.addf %59, %61 : vector<128x64xf32>
    %c0_69 = arith.constant 0 : index
    %c0_70 = arith.constant 0 : index
    %63 = vector.load %arg21[%c0_69, %c0_70] : memref<128x64xf32, #tpu.memory_space<vmem>>, vector<128x64xf32>
    tpu.vector_store %arg21[%c0_69, %c0_70], %62 {strides = array<i32>} : memref<128x64xf32, #tpu.memory_space<vmem>>, vector<128x64xf32>,
    %c8 = arith.constant 8 : index
    %c0_71 = arith.constant 0 : index
    %64 = tpu.strided_load %arg21[%c8, %c0_71] {strides = array<i32: 2, 1>} : memref<128x64xf32, #tpu.memory_space<vmem>>, vector<4x64xf32>
    %c9 = arith.constant 9 : index
    %c0_72 = arith.constant 0 : index
    %65 = tpu.strided_load %arg21[%c9, %c0_72] {strides = array<i32: 2, 1>} : memref<128x64xf32, #tpu.memory_space<vmem>>, vector<4x64xf32>
    %c24 = arith.constant 24 : index
    %c0_73 = arith.constant 0 : index
    %66 = tpu.strided_load %arg21[%c24, %c0_73] {strides = array<i32: 2, 1>} : memref<128x64xf32, #tpu.memory_space<vmem>>, vector<4x64xf32>
    %c25 = arith.constant 25 : index
    %c0_74 = arith.constant 0 : index
    %67 = tpu.strided_load %arg21[%c25, %c0_74] {strides = array<i32: 2, 1>} : memref<128x64xf32, #tpu.memory_space<vmem>>, vector<4x64xf32>
    %68 = arith.maximumf %64, %65 : vector<4x64xf32>
    %69 = arith.maximumf %66, %67 : vector<4x64xf32>
    %70 = arith.maximumf %68, %69 : vector<4x64xf32>
    %71 = vector.extract_strided_slice %70 {offsets = [0, 0], sizes = [1, 64], strides = [1, 1]} : vector<4x64xf32> to vector<1x64xf32>
    %c0_75 = arith.constant 0 : index
    %c0_76 = arith.constant 0 : index
    %72 = vector.load %arg15[%c0_75, %c0_76] : memref<1x1024xf32, #tpu.memory_space<vmem>>, vector<1x64xf32>
    tpu.vector_store %arg15[%c0_75, %c0_76], %71 {strides = array<i32>} : memref<1x1024xf32, #tpu.memory_space<vmem>>, vector<1x64xf32>,
    %73 = vector.extract_strided_slice %70 {offsets = [1, 0], sizes = [1, 64], strides = [1, 1]} : vector<4x64xf32> to vector<1x64xf32>
    %c0_77 = arith.constant 0 : index
    %c64_78 = arith.constant 64 : index
    %74 = vector.load %arg15[%c0_77, %c64_78] : memref<1x1024xf32, #tpu.memory_space<vmem>>, vector<1x64xf32>
    tpu.vector_store %arg15[%c0_77, %c64_78], %73 {strides = array<i32>} : memref<1x1024xf32, #tpu.memory_space<vmem>>, vector<1x64xf32>,
    %75 = vector.extract_strided_slice %70 {offsets = [2, 0], sizes = [1, 64], strides = [1, 1]} : vector<4x64xf32> to vector<1x64xf32>
    %c0_79 = arith.constant 0 : index
    %c128_80 = arith.constant 128 : index
    %76 = vector.load %arg15[%c0_79, %c128_80] : memref<1x1024xf32, #tpu.memory_space<vmem>>, vector<1x64xf32>
    tpu.vector_store %arg15[%c0_79, %c128_80], %75 {strides = array<i32>} : memref<1x1024xf32, #tpu.memory_space<vmem>>, vector<1x64xf32>,
    %77 = vector.extract_strided_slice %70 {offsets = [3, 0], sizes = [1, 64], strides = [1, 1]} : vector<4x64xf32> to vector<1x64xf32>
    %c0_81 = arith.constant 0 : index
    %c192_82 = arith.constant 192 : index
    %78 = vector.load %arg15[%c0_81, %c192_82] : memref<1x1024xf32, #tpu.memory_space<vmem>>, vector<1x64xf32>
    tpu.vector_store %arg15[%c0_81, %c192_82], %77 {strides = array<i32>} : memref<1x1024xf32, #tpu.memory_space<vmem>>, vector<1x64xf32>,
    %c40 = arith.constant 40 : index
    %c0_83 = arith.constant 0 : index
    %79 = tpu.strided_load %arg21[%c40, %c0_83] {strides = array<i32: 2, 1>} : memref<128x64xf32, #tpu.memory_space<vmem>>, vector<4x64xf32>
    %c41 = arith.constant 41 : index
    %c0_84 = arith.constant 0 : index
    %80 = tpu.strided_load %arg21[%c41, %c0_84] {strides = array<i32: 2, 1>} : memref<128x64xf32, #tpu.memory_space<vmem>>, vector<4x64xf32>
    %c56 = arith.constant 56 : index
    %c0_85 = arith.constant 0 : index
    %81 = tpu.strided_load %arg21[%c56, %c0_85] {strides = array<i32: 2, 1>} : memref<128x64xf32, #tpu.memory_space<vmem>>, vector<4x64xf32>
    %c57 = arith.constant 57 : index
    %c0_86 = arith.constant 0 : index
    %82 = tpu.strided_load %arg21[%c57, %c0_86] {strides = array<i32: 2, 1>} : memref<128x64xf32, #tpu.memory_space<vmem>>, vector<4x64xf32>
    %83 = arith.maximumf %79, %80 : vector<4x64xf32>
    %84 = arith.maximumf %81, %82 : vector<4x64xf32>
    %85 = arith.maximumf %83, %84 : vector<4x64xf32>
    %86 = vector.extract_strided_slice %85 {offsets = [0, 0], sizes = [1, 64], strides = [1, 1]} : vector<4x64xf32> to vector<1x64xf32>
    %c0_87 = arith.constant 0 : index
    %c256_88 = arith.constant 256 : index
    %87 = vector.load %arg15[%c0_87, %c256_88] : memref<1x1024xf32, #tpu.memory_space<vmem>>, vector<1x64xf32>
    tpu.vector_store %arg15[%c0_87, %c256_88], %86 {strides = array<i32>} : memref<1x1024xf32, #tpu.memory_space<vmem>>, vector<1x64xf32>,
    %88 = vector.extract_strided_slice %85 {offsets = [1, 0], sizes = [1, 64], strides = [1, 1]} : vector<4x64xf32> to vector<1x64xf32>
    %c0_89 = arith.constant 0 : index
    %c320_90 = arith.constant 320 : index
    %89 = vector.load %arg15[%c0_89, %c320_90] : memref<1x1024xf32, #tpu.memory_space<vmem>>, vector<1x64xf32>
    tpu.vector_store %arg15[%c0_89, %c320_90], %88 {strides = array<i32>} : memref<1x1024xf32, #tpu.memory_space<vmem>>, vector<1x64xf32>,
    %90 = vector.extract_strided_slice %85 {offsets = [2, 0], sizes = [1, 64], strides = [1, 1]} : vector<4x64xf32> to vector<1x64xf32>
    %c0_91 = arith.constant 0 : index
    %c384_92 = arith.constant 384 : index
    %91 = vector.load %arg15[%c0_91, %c384_92] : memref<1x1024xf32, #tpu.memory_space<vmem>>, vector<1x64xf32>
    tpu.vector_store %arg15[%c0_91, %c384_92], %90 {strides = array<i32>} : memref<1x1024xf32, #tpu.memory_space<vmem>>, vector<1x64xf32>,
    %92 = vector.extract_strided_slice %85 {offsets = [3, 0], sizes = [1, 64], strides = [1, 1]} : vector<4x64xf32> to vector<1x64xf32>
    %c0_93 = arith.constant 0 : index
    %c448_94 = arith.constant 448 : index
    %93 = vector.load %arg15[%c0_93, %c448_94] : memref<1x1024xf32, #tpu.memory_space<vmem>>, vector<1x64xf32>
    tpu.vector_store %arg15[%c0_93, %c448_94], %92 {strides = array<i32>} : memref<1x1024xf32, #tpu.memory_space<vmem>>, vector<1x64xf32>,
    %c72 = arith.constant 72 : index
    %c0_95 = arith.constant 0 : index
    %94 = tpu.strided_load %arg21[%c72, %c0_95] {strides = array<i32: 2, 1>} : memref<128x64xf32, #tpu.memory_space<vmem>>, vector<4x64xf32>
    %c73 = arith.constant 73 : index
    %c0_96 = arith.constant 0 : index
    %95 = tpu.strided_load %arg21[%c73, %c0_96] {strides = array<i32: 2, 1>} : memref<128x64xf32, #tpu.memory_space<vmem>>, vector<4x64xf32>
    %c88 = arith.constant 88 : index
    %c0_97 = arith.constant 0 : index
    %96 = tpu.strided_load %arg21[%c88, %c0_97] {strides = array<i32: 2, 1>} : memref<128x64xf32, #tpu.memory_space<vmem>>, vector<4x64xf32>
    %c89 = arith.constant 89 : index
    %c0_98 = arith.constant 0 : index
    %97 = tpu.strided_load %arg21[%c89, %c0_98] {strides = array<i32: 2, 1>} : memref<128x64xf32, #tpu.memory_space<vmem>>, vector<4x64xf32>
    %98 = arith.maximumf %94, %95 : vector<4x64xf32>
    %99 = arith.maximumf %96, %97 : vector<4x64xf32>
    %100 = arith.maximumf %98, %99 : vector<4x64xf32>
    %101 = vector.extract_strided_slice %100 {offsets = [0, 0], sizes = [1, 64], strides = [1, 1]} : vector<4x64xf32> to vector<1x64xf32>
    %c0_99 = arith.constant 0 : index
    %c512_100 = arith.constant 512 : index
    %102 = vector.load %arg15[%c0_99, %c512_100] : memref<1x1024xf32, #tpu.memory_space<vmem>>, vector<1x64xf32>
    tpu.vector_store %arg15[%c0_99, %c512_100], %101 {strides = array<i32>} : memref<1x1024xf32, #tpu.memory_space<vmem>>, vector<1x64xf32>,
    %103 = vector.extract_strided_slice %100 {offsets = [1, 0], sizes = [1, 64], strides = [1, 1]} : vector<4x64xf32> to vector<1x64xf32>
    %c0_101 = arith.constant 0 : index
    %c576_102 = arith.constant 576 : index
    %104 = vector.load %arg15[%c0_101, %c576_102] : memref<1x1024xf32, #tpu.memory_space<vmem>>, vector<1x64xf32>
    tpu.vector_store %arg15[%c0_101, %c576_102], %103 {strides = array<i32>} : memref<1x1024xf32, #tpu.memory_space<vmem>>, vector<1x64xf32>,
    %105 = vector.extract_strided_slice %100 {offsets = [2, 0], sizes = [1, 64], strides = [1, 1]} : vector<4x64xf32> to vector<1x64xf32>
    %c0_103 = arith.constant 0 : index
    %c640_104 = arith.constant 640 : index
    %106 = vector.load %arg15[%c0_103, %c640_104] : memref<1x1024xf32, #tpu.memory_space<vmem>>, vector<1x64xf32>
    tpu.vector_store %arg15[%c0_103, %c640_104], %105 {strides = array<i32>} : memref<1x1024xf32, #tpu.memory_space<vmem>>, vector<1x64xf32>,
    %107 = vector.extract_strided_slice %100 {offsets = [3, 0], sizes = [1, 64], strides = [1, 1]} : vector<4x64xf32> to vector<1x64xf32>
    %c0_105 = arith.constant 0 : index
    %c704_106 = arith.constant 704 : index
    %108 = vector.load %arg15[%c0_105, %c704_106] : memref<1x1024xf32, #tpu.memory_space<vmem>>, vector<1x64xf32>
    tpu.vector_store %arg15[%c0_105, %c704_106], %107 {strides = array<i32>} : memref<1x1024xf32, #tpu.memory_space<vmem>>, vector<1x64xf32>,
    %c104 = arith.constant 104 : index
    %c0_107 = arith.constant 0 : index
    %109 = tpu.strided_load %arg21[%c104, %c0_107] {strides = array<i32: 2, 1>} : memref<128x64xf32, #tpu.memory_space<vmem>>, vector<4x64xf32>
    %c105 = arith.constant 105 : index
    %c0_108 = arith.constant 0 : index
    %110 = tpu.strided_load %arg21[%c105, %c0_108] {strides = array<i32: 2, 1>} : memref<128x64xf32, #tpu.memory_space<vmem>>, vector<4x64xf32>
    %c120 = arith.constant 120 : index
    %c0_109 = arith.constant 0 : index
    %111 = tpu.strided_load %arg21[%c120, %c0_109] {strides = array<i32: 2, 1>} : memref<128x64xf32, #tpu.memory_space<vmem>>, vector<4x64xf32>
    %c121 = arith.constant 121 : index
    %c0_110 = arith.constant 0 : index
    %112 = tpu.strided_load %arg21[%c121, %c0_110] {strides = array<i32: 2, 1>} : memref<128x64xf32, #tpu.memory_space<vmem>>, vector<4x64xf32>
    %113 = arith.maximumf %109, %110 : vector<4x64xf32>
    %114 = arith.maximumf %111, %112 : vector<4x64xf32>
    %115 = arith.maximumf %113, %114 : vector<4x64xf32>
    %116 = vector.extract_strided_slice %115 {offsets = [0, 0], sizes = [1, 64], strides = [1, 1]} : vector<4x64xf32> to vector<1x64xf32>
    %c0_111 = arith.constant 0 : index
    %c768_112 = arith.constant 768 : index
    %117 = vector.load %arg15[%c0_111, %c768_112] : memref<1x1024xf32, #tpu.memory_space<vmem>>, vector<1x64xf32>
    tpu.vector_store %arg15[%c0_111, %c768_112], %116 {strides = array<i32>} : memref<1x1024xf32, #tpu.memory_space<vmem>>, vector<1x64xf32>,
    %118 = vector.extract_strided_slice %115 {offsets = [1, 0], sizes = [1, 64], strides = [1, 1]} : vector<4x64xf32> to vector<1x64xf32>
    %c0_113 = arith.constant 0 : index
    %c832 = arith.constant 832 : index
    %119 = vector.load %arg15[%c0_113, %c832] : memref<1x1024xf32, #tpu.memory_space<vmem>>, vector<1x64xf32>
    tpu.vector_store %arg15[%c0_113, %c832], %118 {strides = array<i32>} : memref<1x1024xf32, #tpu.memory_space<vmem>>, vector<1x64xf32>,
    %120 = vector.extract_strided_slice %115 {offsets = [2, 0], sizes = [1, 64], strides = [1, 1]} : vector<4x64xf32> to vector<1x64xf32>
    %c0_114 = arith.constant 0 : index
    %c896 = arith.constant 896 : index
    %121 = vector.load %arg15[%c0_114, %c896] : memref<1x1024xf32, #tpu.memory_space<vmem>>, vector<1x64xf32>
    tpu.vector_store %arg15[%c0_114, %c896], %120 {strides = array<i32>} : memref<1x1024xf32, #tpu.memory_space<vmem>>, vector<1x64xf32>,
    %122 = vector.extract_strided_slice %115 {offsets = [3, 0], sizes = [1, 64], strides = [1, 1]} : vector<4x64xf32> to vector<1x64xf32>
    %c0_115 = arith.constant 0 : index
    %c960 = arith.constant 960 : index
    %123 = vector.load %arg15[%c0_115, %c960] : memref<1x1024xf32, #tpu.memory_space<vmem>>, vector<1x64xf32>
    tpu.vector_store %arg15[%c0_115, %c960], %122 {strides = array<i32>} : memref<1x1024xf32, #tpu.memory_space<vmem>>, vector<1x64xf32>,
    %c0_116 = arith.constant 0 : index
    %c0_117 = arith.constant 0 : index
    %124 = vector.load %arg15[%c0_116, %c0_117] : memref<1x1024xf32, #tpu.memory_space<vmem>>, vector<1x1024xf32>
    %125 = arith.truncf %124 : vector<1x1024xf32> to vector<1x1024xbf16>
    %c0_118 = arith.constant 0 : index
    %c0_119 = arith.constant 0 : index
    %126 = vector.load %arg8[%c0_118, %c0_119] : memref<1024x64xbf16, #tpu.memory_space<vmem>>, vector<1024x64xbf16>
    %cst_120 = arith.constant dense<0.000000e+00> : vector<1x64xf32>
    %127 = tpu.matmul %125, %126, %cst_120 {dimension_numbers = #tpu.dot_dimension_numbers<[1], [0], [0], [1], [0, 0, 1, 1], [], []>} : vector<1x1024xbf16>, vector<1024x64xbf16>, vector<1x64xf32> -> vector<1x64xf32>
    %c0_121 = arith.constant 0 : index
    %c0_122 = arith.constant 0 : index
    %128 = vector.load %arg9[%c0_121, %c0_122] : memref<1x64xf32, #tpu.memory_space<vmem>>, vector<1x64xf32>
    %129 = arith.addf %127, %128 : vector<1x64xf32>
    %130 = arith.truncf %129 : vector<1x64xf32> to vector<1x64xbf16>
    %c0_123 = arith.constant 0 : index
    %c0_124 = arith.constant 0 : index
    %131 = vector.load %arg10[%c0_123, %c0_124] : memref<64x10xbf16, #tpu.memory_space<vmem>>, vector<64x10xbf16>
    %cst_125 = arith.constant dense<0.000000e+00> : vector<1x10xf32>
    %132 = tpu.matmul %130, %131, %cst_125 {dimension_numbers = #tpu.dot_dimension_numbers<[1], [0], [0], [1], [0, 0, 1, 1], [], []>} : vector<1x64xbf16>, vector<64x10xbf16>, vector<1x10xf32> -> vector<1x10xf32>
    %c0_126 = arith.constant 0 : index
    %c0_127 = arith.constant 0 : index
    %133 = vector.load %arg11[%c0_126, %c0_127] : memref<1x10xf32, #tpu.memory_space<vmem>>, vector<1x10xf32>
    %134 = arith.addf %132, %133 : vector<1x10xf32>
    %c0_128 = arith.constant 0 : index
    %c0_129 = arith.constant 0 : index
    %c0_130 = arith.constant 0 : index
    %135 = vector.load %arg12[%c0_128, %c0_129, %c0_130] : memref<1x1x10xf32, #tpu.memory_space<vmem>>, vector<1x1x10xf32>
    %136 = vector.shape_cast %135 : vector<1x1x10xf32> to vector<1x10xf32>
    %137 = vector.shape_cast %134 : vector<1x10xf32> to vector<1x1x10xf32>
    tpu.vector_store %arg12[%c0_128, %c0_129, %c0_130], %137 {strides = array<i32>} : memref<1x1x10xf32, #tpu.memory_space<vmem>>, vector<1x1x10xf32>,
    return
  }
  func.func @transform_0(%arg0: i32) -> (i32, i32, i32) {
    %c0_i32 = arith.constant 0 : i32
    %c0_i32_0 = arith.constant 0 : i32
    %c0_i32_1 = arith.constant 0 : i32
    return %arg0, %c0_i32, %c0_i32_0 : i32, i32, i32
  }
  func.func @transform_1(%arg0: i32) -> (i32, i32) {
    %c0_i32 = arith.constant 0 : i32
    %c0_i32_0 = arith.constant 0 : i32
    %c0_i32_1 = arith.constant 0 : i32
    return %c0_i32, %c0_i32_0 : i32, i32
  }
  func.func @transform_2(%arg0: i32) -> (i32, i32) {
    %c0_i32 = arith.constant 0 : i32
    %c0_i32_0 = arith.constant 0 : i32
    %c0_i32_1 = arith.constant 0 : i32
    return %c0_i32, %c0_i32_0 : i32, i32
  }
  func.func @transform_3(%arg0: i32) -> (i32, i32) {
    %c0_i32 = arith.constant 0 : i32
    %c0_i32_0 = arith.constant 0 : i32
    %c0_i32_1 = arith.constant 0 : i32
    return %c0_i32, %c0_i32_0 : i32, i32
  }
  func.func @transform_4(%arg0: i32) -> (i32, i32) {
    %c0_i32 = arith.constant 0 : i32
    %c0_i32_0 = arith.constant 0 : i32
    %c0_i32_1 = arith.constant 0 : i32
    return %c0_i32, %c0_i32_0 : i32, i32
  }
  func.func @transform_5(%arg0: i32) -> (i32, i32) {
    %c0_i32 = arith.constant 0 : i32
    %c0_i32_0 = arith.constant 0 : i32
    %c0_i32_1 = arith.constant 0 : i32
    return %c0_i32, %c0_i32_0 : i32, i32
  }
  func.func @transform_6(%arg0: i32) -> (i32, i32) {
    %c0_i32 = arith.constant 0 : i32
    %c0_i32_0 = arith.constant 0 : i32
    %c0_i32_1 = arith.constant 0 : i32
    return %c0_i32, %c0_i32_0 : i32, i32
  }
  func.func @transform_7(%arg0: i32) -> (i32, i32) {
    %c0_i32 = arith.constant 0 : i32
    %c0_i32_0 = arith.constant 0 : i32
    %c0_i32_1 = arith.constant 0 : i32
    return %c0_i32, %c0_i32_0 : i32, i32
  }
  func.func @transform_8(%arg0: i32) -> (i32, i32) {
    %c0_i32 = arith.constant 0 : i32
    %c0_i32_0 = arith.constant 0 : i32
    %c0_i32_1 = arith.constant 0 : i32
    return %c0_i32, %c0_i32_0 : i32, i32
  }
  func.func @transform_9(%arg0: i32) -> (i32, i32) {
    %c0_i32 = arith.constant 0 : i32
    %c0_i32_0 = arith.constant 0 : i32
    %c0_i32_1 = arith.constant 0 : i32
    return %c0_i32, %c0_i32_0 : i32, i32
  }
  func.func @transform_10(%arg0: i32) -> (i32, i32) {
    %c0_i32 = arith.constant 0 : i32
    %c0_i32_0 = arith.constant 0 : i32
    %c0_i32_1 = arith.constant 0 : i32
    return %c0_i32, %c0_i32_0 : i32, i32
  }
  func.func @transform_11(%arg0: i32) -> (i32, i32, i32) {
    %c0_i32 = arith.constant 0 : i32
    %c0_i32_0 = arith.constant 0 : i32
    %c0_i32_1 = arith.constant 0 : i32
    return %arg0, %c0_i32, %c0_i32_0 : i32, i32, i32
  }
}

</mosaic_0001>

<llo_original>
// kernel: nutty_forward.1
$region0: #{nutty_forward.1}
  #allocation0 [shape = 'u32[]', space=smem, size = 0x4, offset = 0x4, fixed_abs, tag = 'smem constant byte address 0x4 - core index']
  #allocation1 [shape = 'u32[72,128]{1,0:T(1,128)}', space=vmem, size = 0x9000, scoped, tag = 'internal scratch']
  #allocation2 [shape = 'f32[576,32]{1,0:T(8,128)}', space=vmem, size = 0x48000, scoped, tag = 'scratch operand']
  #allocation3 [shape = 'f32[256,32]{1,0:T(8,128)}', space=vmem, size = 0x20000, scoped, tag = 'scratch operand']
  #allocation4 [shape = 'f32[1,1024]{1,0:T(1,128)}', space=vmem, size = 0x1000, scoped, tag = 'scratch operand']
  #allocation5 [shape = 'f32[160,100]{1,0:T(8,128)}', space=vmem, size = 0x14000, scoped, tag = 'scratch operand']
  #allocation6 [shape = 'f32[160,32]{1,0:T(8,128)}', space=vmem, size = 0x14000, scoped, tag = 'scratch operand']
  #allocation7 [shape = 'f32[96,800]{1,0:T(8,128)}', space=vmem, size = 0x54000, scoped, tag = 'scratch operand']
  #allocation8 [shape = 'f32[96,32]{1,0:T(8,128)}', space=vmem, size = 0xc000, scoped, tag = 'scratch operand']
  #allocation9 [shape = 'f32[128,800]{1,0:T(8,128)}', space=vmem, size = 0x70000, scoped, tag = 'scratch operand']
  #allocation10 [shape = 'f32[128,64]{1,0:T(8,128)}', space=vmem, size = 0x10000, scoped, tag = 'scratch operand']
  %s0 = inlined_call_operand.vmem [shape: f32[2,1600,4], index: 0, kind: input, shape index: {}]
  %s1 = inlined_call_operand.vmem [shape: bf16[100,32], index: 1, kind: input, shape index: {}]
  %s2 = inlined_call_operand.vmem [shape: f32[1,32], index: 2, kind: input, shape index: {}]
  %s3 = inlined_call_operand.vmem [shape: bf16[800,32], index: 3, kind: input, shape index: {}]
  %s4 = inlined_call_operand.vmem [shape: f32[1,32], index: 4, kind: input, shape index: {}]
  %s5 = inlined_call_operand.vmem [shape: bf16[800,64], index: 5, kind: input, shape index: {}]
  %s6 = inlined_call_operand.vmem [shape: f32[1,64], index: 6, kind: input, shape index: {}]
  %s7 = inlined_call_operand.vmem [shape: bf16[1024,64], index: 7, kind: input, shape index: {}]
  %s8 = inlined_call_operand.vmem [shape: f32[1,64], index: 8, kind: input, shape index: {}]
  %s9 = inlined_call_operand.vmem [shape: bf16[64,10], index: 9, kind: input, shape index: {}]
  %s10 = inlined_call_operand.vmem [shape: f32[1,10], index: 10, kind: input, shape index: {}]
  %s11 = inlined_call_operand.hbm [shape: f32[2,1,10], index: 11, kind: output, shape index: {}]
  %s12 = sld [smem:[#allocation0]]
  $region91: #{nutty_forward.1} parent=0
    _
  %s14 = ssub.s32 1, %s12
  %s15 = scalar_select 0, %s14, %s12
  $region1: #{nutty_forward.1} parent=0
    #allocation11 [shape = 'u8[1024]{0}', space=vmem, size = 0x400, scoped, tag = 'output window, operand 0']
    #allocation12 [shape = 's32[2]{0}', space=sflag, size = 0x8, scoped, tag = 'scoped memory for nutty_forward.1']
    %16 = vsyncpa [#allocation12], 0
    %s17 = scalar_lea.sflag [#allocation12], 1
    %18 = vsyncpa %s17, 0
    loop: start=0, step=1, limit=4
    $region2: #{nutty_forward.1} parent=1 // loop_pre_header
      _
    $region3: #{nutty_forward.1} parent=1 // loop_header
      %s20 = sphi 0, %s24
      %p21 = scmp.ge.s32.totalorder %s20, 4
      %s30 = sphi 0, %s32
      %s33 = sphi 0, %s30
      %s34 = sphi 0, %s33
      %s50 = sphi 0, %s34
      %s54 = sphi 0, %s54
      %s56 = sphi 0, %s54
      %s57 = sphi 0, %s56
      %s71 = sphi 0, %s57
      %s75 = sphi 0, %s75
      %s77 = sphi 0, %s75
      %s78 = sphi 0, %s77
      %s92 = sphi 0, %s78
      %s96 = sphi 0, %s96
      %s98 = sphi 0, %s96
      %s99 = sphi 0, %s98
      %s113 = sphi 0, %s99
      %s117 = sphi 0, %s117
      %s119 = sphi 0, %s117
      %s120 = sphi 0, %s119
      %s134 = sphi 0, %s120
      %s138 = sphi 0, %s138
      %s140 = sphi 0, %s138
      %s141 = sphi 0, %s140
      %s155 = sphi 0, %s141
      %s159 = sphi 0, %s159
      %s161 = sphi 0, %s159
      %s162 = sphi 0, %s161
      %s176 = sphi 0, %s162
      %s180 = sphi 0, %s180
      %s182 = sphi 0, %s180
      %s183 = sphi 0, %s182
      %s197 = sphi 0, %s183
      %s201 = sphi 0, %s201
      %s203 = sphi 0, %s201
      %s204 = sphi 0, %s203
      %s218 = sphi 0, %s204
      %s222 = sphi 0, %s222
      %s224 = sphi 0, %s222
      %s225 = sphi 0, %s224
      %s239 = sphi 0, %s225
      %s243 = sphi 0, %s243
      %s245 = sphi 0, %s243
      %s246 = sphi 0, %s245
      %s260 = sphi 0, %s246
      %s266 = sphi 0, %s268
      %s269 = sphi 0, %s266
      %s270 = sphi 0, %s269
      %s286 = sphi 0, %s270
    $region4: #{nutty_forward.1} parent=1 // loop_header_branch
      %23 = sbr.rel (%p21) target = $region8
    $region5: #{nutty_forward.1} parent=1 // loop_body
      %s25 = ssub.s32 %s20, 1
      %s26 = ssub.s32 %s20, 2
      %s27 = sadd.s32 %s20, 1
      %s28 = ssub.s32 %s20, %s27
      %p29 = scmp.eq.s32.totalorder %s28, 0
      %s31 = sadd.s32 %s30, 1
      %s32 = scalar_select %p29, %s30, %s31
      %p35 = pneg %p29
      %p36 = scmp.eq.s32.totalorder %s20, 1
      %p37 = por %p35, %p36
      %p38 = scmp.ne.s32.totalorder %s30, %s33
      %p39 = scmp.eq.s32.totalorder %s20, 0
      %p40 = por %p38, %p39
      %p41 = scmp.ne.s32.totalorder %s30, %s33
      %p42 = scmp.eq.s32.totalorder %s25, 1
      %p43 = por %p41, %p42
      %p44 = scmp.ne.s32.totalorder %s33, %s34
      %p45 = scmp.eq.s32.totalorder %s25, 0
      %p46 = por %p44, %p45
      %p47 = scmp.ne.s32.totalorder %s33, %s34
      %p48 = scmp.eq.s32.totalorder %s26, 1
      %p49 = por %p47, %p48
      %p51 = scmp.ne.s32.totalorder %s34, %s50
      %p52 = scmp.eq.s32.totalorder %s26, 0
      %p53 = por %p51, %p52
      %s55 = sadd.s32 %s54, 1
      %p58 = scmp.eq.s32.totalorder %s20, 1
      %p59 = scmp.ne.s32.totalorder %s54, %s56
      %p60 = scmp.eq.s32.totalorder %s20, 0
      %p61 = por %p59, %p60
      %p62 = scmp.ne.s32.totalorder %s54, %s56
      %p63 = scmp.eq.s32.totalorder %s25, 1
      %p64 = por %p62, %p63
      %p65 = scmp.ne.s32.totalorder %s56, %s57
      %p66 = scmp.eq.s32.totalorder %s25, 0
      %p67 = por %p65, %p66
      %p68 = scmp.ne.s32.totalorder %s56, %s57
      %p69 = scmp.eq.s32.totalorder %s26, 1
      %p70 = por %p68, %p69
      %p72 = scmp.ne.s32.totalorder %s57, %s71
      %p73 = scmp.eq.s32.totalorder %s26, 0
      %p74 = por %p72, %p73
      %s76 = sadd.s32 %s75, 1
      %p79 = scmp.eq.s32.totalorder %s20, 1
      %p80 = scmp.ne.s32.totalorder %s75, %s77
      %p81 = scmp.eq.s32.totalorder %s20, 0
      %p82 = por %p80, %p81
      %p83 = scmp.ne.s32.totalorder %s75, %s77
      %p84 = scmp.eq.s32.totalorder %s25, 1
      %p85 = por %p83, %p84
      %p86 = scmp.ne.s32.totalorder %s77, %s78
      %p87 = scmp.eq.s32.totalorder %s25, 0
      %p88 = por %p86, %p87
      %p89 = scmp.ne.s32.totalorder %s77, %s78
      %p90 = scmp.eq.s32.totalorder %s26, 1
      %p91 = por %p89, %p90
      %p93 = scmp.ne.s32.totalorder %s78, %s92
      %p94 = scmp.eq.s32.totalorder %s26, 0
      %p95 = por %p93, %p94
      %s97 = sadd.s32 %s96, 1
      %p100 = scmp.eq.s32.totalorder %s20, 1
      %p101 = scmp.ne.s32.totalorder %s96, %s98
      %p102 = scmp.eq.s32.totalorder %s20, 0
      %p103 = por %p101, %p102
      %p104 = scmp.ne.s32.totalorder %s96, %s98
      %p105 = scmp.eq.s32.totalorder %s25, 1
      %p106 = por %p104, %p105
      %p107 = scmp.ne.s32.totalorder %s98, %s99
      %p108 = scmp.eq.s32.totalorder %s25, 0
      %p109 = por %p107, %p108
      %p110 = scmp.ne.s32.totalorder %s98, %s99
      %p111 = scmp.eq.s32.totalorder %s26, 1
      %p112 = por %p110, %p111
      %p114 = scmp.ne.s32.totalorder %s99, %s113
      %p115 = scmp.eq.s32.totalorder %s26, 0
      %p116 = por %p114, %p115
      %s118 = sadd.s32 %s117, 1
      %p121 = scmp.eq.s32.totalorder %s20, 1
      %p122 = scmp.ne.s32.totalorder %s117, %s119
      %p123 = scmp.eq.s32.totalorder %s20, 0
      %p124 = por %p122, %p123
      %p125 = scmp.ne.s32.totalorder %s117, %s119
      %p126 = scmp.eq.s32.totalorder %s25, 1
      %p127 = por %p125, %p126
      %p128 = scmp.ne.s32.totalorder %s119, %s120
      %p129 = scmp.eq.s32.totalorder %s25, 0
      %p130 = por %p128, %p129
      %p131 = scmp.ne.s32.totalorder %s119, %s120
      %p132 = scmp.eq.s32.totalorder %s26, 1
      %p133 = por %p131, %p132
      %p135 = scmp.ne.s32.totalorder %s120, %s134
      %p136 = scmp.eq.s32.totalorder %s26, 0
      %p137 = por %p135, %p136
      %s139 = sadd.s32 %s138, 1
      %p142 = scmp.eq.s32.totalorder %s20, 1
      %p143 = scmp.ne.s32.totalorder %s138, %s140
      %p144 = scmp.eq.s32.totalorder %s20, 0
      %p145 = por %p143, %p144
      %p146 = scmp.ne.s32.totalorder %s138, %s140
      %p147 = scmp.eq.s32.totalorder %s25, 1
      %p148 = por %p146, %p147
      %p149 = scmp.ne.s32.totalorder %s140, %s141
      %p150 = scmp.eq.s32.totalorder %s25, 0
      %p151 = por %p149, %p150
      %p152 = scmp.ne.s32.totalorder %s140, %s141
      %p153 = scmp.eq.s32.totalorder %s26, 1
      %p154 = por %p152, %p153
      %p156 = scmp.ne.s32.totalorder %s141, %s155
      %p157 = scmp.eq.s32.totalorder %s26, 0
      %p158 = por %p156, %p157
      %s160 = sadd.s32 %s159, 1
      %p163 = scmp.eq.s32.totalorder %s20, 1
      %p164 = scmp.ne.s32.totalorder %s159, %s161
      %p165 = scmp.eq.s32.totalorder %s20, 0
      %p166 = por %p164, %p165
      %p167 = scmp.ne.s32.totalorder %s159, %s161
      %p168 = scmp.eq.s32.totalorder %s25, 1
      %p169 = por %p167, %p168
      %p170 = scmp.ne.s32.totalorder %s161, %s162
      %p171 = scmp.eq.s32.totalorder %s25, 0
      %p172 = por %p170, %p171
      %p173 = scmp.ne.s32.totalorder %s161, %s162
      %p174 = scmp.eq.s32.totalorder %s26, 1
      %p175 = por %p173, %p174
      %p177 = scmp.ne.s32.totalorder %s162, %s176
      %p178 = scmp.eq.s32.totalorder %s26, 0
      %p179 = por %p177, %p178
      %s181 = sadd.s32 %s180, 1
      %p184 = scmp.eq.s32.totalorder %s20, 1
      %p185 = scmp.ne.s32.totalorder %s180, %s182
      %p186 = scmp.eq.s32.totalorder %s20, 0
      %p187 = por %p185, %p186
      %p188 = scmp.ne.s32.totalorder %s180, %s182
      %p189 = scmp.eq.s32.totalorder %s25, 1
      %p190 = por %p188, %p189
      %p191 = scmp.ne.s32.totalorder %s182, %s183
      %p192 = scmp.eq.s32.totalorder %s25, 0
      %p193 = por %p191, %p192
      %p194 = scmp.ne.s32.totalorder %s182, %s183
      %p195 = scmp.eq.s32.totalorder %s26, 1
      %p196 = por %p194, %p195
      %p198 = scmp.ne.s32.totalorder %s183, %s197
      %p199 = scmp.eq.s32.totalorder %s26, 0
      %p200 = por %p198, %p199
      %s202 = sadd.s32 %s201, 1
      %p205 = scmp.eq.s32.totalorder %s20, 1
      %p206 = scmp.ne.s32.totalorder %s201, %s203
      %p207 = scmp.eq.s32.totalorder %s20, 0
      %p208 = por %p206, %p207
      %p209 = scmp.ne.s32.totalorder %s201, %s203
      %p210 = scmp.eq.s32.totalorder %s25, 1
      %p211 = por %p209, %p210
      %p212 = scmp.ne.s32.totalorder %s203, %s204
      %p213 = scmp.eq.s32.totalorder %s25, 0
      %p214 = por %p212, %p213
      %p215 = scmp.ne.s32.totalorder %s203, %s204
      %p216 = scmp.eq.s32.totalorder %s26, 1
      %p217 = por %p215, %p216
      %p219 = scmp.ne.s32.totalorder %s204, %s218
      %p220 = scmp.eq.s32.totalorder %s26, 0
      %p221 = por %p219, %p220
      %s223 = sadd.s32 %s222, 1
      %p226 = scmp.eq.s32.totalorder %s20, 1
      %p227 = scmp.ne.s32.totalorder %s222, %s224
      %p228 = scmp.eq.s32.totalorder %s20, 0
      %p229 = por %p227, %p228
      %p230 = scmp.ne.s32.totalorder %s222, %s224
      %p231 = scmp.eq.s32.totalorder %s25, 1
      %p232 = por %p230, %p231
      %p233 = scmp.ne.s32.totalorder %s224, %s225
      %p234 = scmp.eq.s32.totalorder %s25, 0
      %p235 = por %p233, %p234
      %p236 = scmp.ne.s32.totalorder %s224, %s225
      %p237 = scmp.eq.s32.totalorder %s26, 1
      %p238 = por %p236, %p237
      %p240 = scmp.ne.s32.totalorder %s225, %s239
      %p241 = scmp.eq.s32.totalorder %s26, 0
      %p242 = por %p240, %p241
      %s244 = sadd.s32 %s243, 1
      %p247 = scmp.eq.s32.totalorder %s20, 1
      %p248 = scmp.ne.s32.totalorder %s243, %s245
      %p249 = scmp.eq.s32.totalorder %s20, 0
      %p250 = por %p248, %p249
      %p251 = scmp.ne.s32.totalorder %s243, %s245
      %p252 = scmp.eq.s32.totalorder %s25, 1
      %p253 = por %p251, %p252
      %p254 = scmp.ne.s32.totalorder %s245, %s246
      %p255 = scmp.eq.s32.totalorder %s25, 0
      %p256 = por %p254, %p255
      %p257 = scmp.ne.s32.totalorder %s245, %s246
      %p258 = scmp.eq.s32.totalorder %s26, 1
      %p259 = por %p257, %p258
      %p261 = scmp.ne.s32.totalorder %s246, %s260
      %p262 = scmp.eq.s32.totalorder %s26, 0
      %p263 = por %p261, %p262
      %s264 = ssub.s32 %s20, %s27
      %p265 = scmp.eq.s32.totalorder %s264, 0
      %s267 = sadd.s32 %s266, 1
      %s268 = scalar_select %p265, %s266, %s267
      %p271 = pneg %p265
      %p272 = scmp.eq.s32.totalorder %s20, 1
      %p273 = por %p271, %p272
      %p274 = scmp.ne.s32.totalorder %s266, %s269
      %p275 = scmp.eq.s32.totalorder %s20, 0
      %p276 = por %p274, %p275
      %p277 = scmp.ne.s32.totalorder %s266, %s269
      %p278 = scmp.eq.s32.totalorder %s25, 1
      %p279 = por %p277, %p278
      %p280 = scmp.ne.s32.totalorder %s269, %s270
      %p281 = scmp.eq.s32.totalorder %s25, 0
      %p282 = por %p280, %p281
      %p283 = scmp.ne.s32.totalorder %s269, %s270
      %p284 = scmp.eq.s32.totalorder %s26, 1
      %p285 = por %p283, %p284
      %p287 = scmp.ne.s32.totalorder %s270, %s286
      %p288 = scmp.eq.s32.totalorder %s26, 0
      %p289 = por %p287, %p288
      %p290 = scmp.le.s32.totalorder 1, %s20
      %p291 = scmp.lt.s32.totalorder %s20, 3
      %p292 = pnand %p290, %p291
      %p293 = pneg %p292
      // Predicated region
      $region9: #{nutty_forward.1} parent=5 // pred_check
        _
      $region10: #{nutty_forward.1} parent=5 // pred_check_branch
        %295 = sbr.rel (%p292) target = $region12
      $region11: #{nutty_forward.1} parent=5 // pred_region
        %s296 = ssub.s32 %s20, 1
        // Predicated region
        $region13: #{nutty_forward.1} parent=11 // pred_check
          %p297 = pneg %p67
        $region14: #{nutty_forward.1} parent=11 // pred_check_branch
          %299 = sbr.rel (%p297) target = $region16
        $region15: #{nutty_forward.1} parent=11 // pred_region
          _
        $region16: #{nutty_forward.1} parent=11 // pred_fallthru
          _
        // Predicated region
        $region17: #{nutty_forward.1} parent=11 // pred_check
          %p300 = pneg %p88
        $region18: #{nutty_forward.1} parent=11 // pred_check_branch
          %302 = sbr.rel (%p300) target = $region20
        $region19: #{nutty_forward.1} parent=11 // pred_region
          _
        $region20: #{nutty_forward.1} parent=11 // pred_fallthru
          _
        // Predicated region
        $region21: #{nutty_forward.1} parent=11 // pred_check
          %p303 = pneg %p109
        $region22: #{nutty_forward.1} parent=11 // pred_check_branch
          %305 = sbr.rel (%p303) target = $region24
        $region23: #{nutty_forward.1} parent=11 // pred_region
          _
        $region24: #{nutty_forward.1} parent=11 // pred_fallthru
          _
        // Predicated region
        $region25: #{nutty_forward.1} parent=11 // pred_check
          %p306 = pneg %p130
        $region26: #{nutty_forward.1} parent=11 // pred_check_branch
          %308 = sbr.rel (%p306) target = $region28
        $region27: #{nutty_forward.1} parent=11 // pred_region
          _
        $region28: #{nutty_forward.1} parent=11 // pred_fallthru
          _
        // Predicated region
        $region29: #{nutty_forward.1} parent=11 // pred_check
          %p309 = pneg %p151
        $region30: #{nutty_forward.1} parent=11 // pred_check_branch
          %311 = sbr.rel (%p309) target = $region32
        $region31: #{nutty_forward.1} parent=11 // pred_region
          _
        $region32: #{nutty_forward.1} parent=11 // pred_fallthru
          _
        // Predicated region
        $region33: #{nutty_forward.1} parent=11 // pred_check
          %p312 = pneg %p172
        $region34: #{nutty_forward.1} parent=11 // pred_check_branch
          %314 = sbr.rel (%p312) target = $region36
        $region35: #{nutty_forward.1} parent=11 // pred_region
          _
        $region36: #{nutty_forward.1} parent=11 // pred_fallthru
          _
        // Predicated region
        $region37: #{nutty_forward.1} parent=11 // pred_check
          %p315 = pneg %p193
        $region38: #{nutty_forward.1} parent=11 // pred_check_branch
          %317 = sbr.rel (%p315) target = $region40
        $region39: #{nutty_forward.1} parent=11 // pred_region
          _
        $region40: #{nutty_forward.1} parent=11 // pred_fallthru
          _
        // Predicated region
        $region41: #{nutty_forward.1} parent=11 // pred_check
          %p318 = pneg %p214
        $region42: #{nutty_forward.1} parent=11 // pred_check_branch
          %320 = sbr.rel (%p318) target = $region44
        $region43: #{nutty_forward.1} parent=11 // pred_region
          _
        $region44: #{nutty_forward.1} parent=11 // pred_fallthru
          _
        // Predicated region
        $region45: #{nutty_forward.1} parent=11 // pred_check
          %p321 = pneg %p235
        $region46: #{nutty_forward.1} parent=11 // pred_check_branch
          %323 = sbr.rel (%p321) target = $region48
        $region47: #{nutty_forward.1} parent=11 // pred_region
          _
        $region48: #{nutty_forward.1} parent=11 // pred_fallthru
          _
        // Predicated region
        $region49: #{nutty_forward.1} parent=11 // pred_check
          %p324 = pneg %p256
        $region50: #{nutty_forward.1} parent=11 // pred_check_branch
          %326 = sbr.rel (%p324) target = $region52
        $region51: #{nutty_forward.1} parent=11 // pred_region
          _
        $region52: #{nutty_forward.1} parent=11 // pred_fallthru
          _
      $region12: #{nutty_forward.1} parent=5 // pred_fallthru
        _
      %p327 = scmp.lt.s32.totalorder %s20, 2
      // Predicated region
      $region53: #{nutty_forward.1} parent=5 // pred_check
        %p328 = pneg %p327
      $region54: #{nutty_forward.1} parent=5 // pred_check_branch
        %330 = sbr.rel (%p328) target = $region56
      $region55: #{nutty_forward.1} parent=5 // pred_region
        // Predicated region
        $region57: #{nutty_forward.1} parent=55 // pred_check
          %p331 = pneg %p40
        $region58: #{nutty_forward.1} parent=55 // pred_check_branch
          %333 = sbr.rel (%p331) target = $region60
        $region59: #{nutty_forward.1} parent=55 // pred_region
          %p334 = scmp.lt.s32.totalorder %s20, 1
          %s335 = scalar_select %p334, %s20, 1
          %s336 = smul.addr %s335, 200
          %s337 = smul.addr %s336, 8
          %s338 = scalar_lea.vmem %s0, %s337
        $region60: #{nutty_forward.1} parent=55 // pred_fallthru
          _
      $region56: #{nutty_forward.1} parent=5 // pred_fallthru
        _
      %p339 = scmp.le.s32.totalorder 1, %s20
      %p340 = scmp.lt.s32.totalorder %s20, 3
      %p341 = pnand %p339, %p340
      %p342 = pneg %p341
      // Predicated region
      $region61: #{nutty_forward.1} parent=5 // pred_check
        _
      $region62: #{nutty_forward.1} parent=5 // pred_check_branch
        %344 = sbr.rel (%p341) target = $region64
      $region63: #{nutty_forward.1} parent=5 // pred_region
        %s345 = ssub.s32 %s20, 1
        %p346 = scmp.lt.s32.totalorder %s25, 1
        %s347 = scalar_select %p346, %s25, 1
        %s348 = smul.addr %s347, 200
        %s349 = smul.addr %s348, 8
        %s350 = scalar_lea.vmem %s0, %s349
        %p351 = pneg %p46
        %p352 = pneg %p43
        %p353 = pneg %p67
        %p354 = pneg %p64
        %p355 = pneg %p88
        %p356 = pneg %p85
        %p357 = pneg %p109
        %p358 = pneg %p106
        %p359 = pneg %p130
        %p360 = pneg %p127
        %p361 = pneg %p151
        %p362 = pneg %p148
        %p363 = pneg %p172
        %p364 = pneg %p169
        %p365 = pneg %p193
        %p366 = pneg %p190
        %p367 = pneg %p214
        %p368 = pneg %p211
        %p369 = pneg %p235
        %p370 = pneg %p232
        %p371 = pneg %p256
        %p372 = pneg %p253
        %p373 = pneg %p282
        %p374 = pneg %p279
        %s375 = sand.u32 %s269, 1
        %s376 = scalar_lea.sflag [#allocation12], %s375
        %s377 = sand.u32 %s269, 1
        %s378 = scalar_lea.vmem [#allocation11], %s377
        %p379 = scmp.lt.s32.totalorder %s25, 1
        %s380 = scalar_select %p379, %s25, 1
        %s381 = smul.addr %s380, 200
        %s382 = smul.addr %s381, 8
        %s383 = scalar_lea.vmem %s0, %s382
        %vm385 = vcmask 261120
        %386 = vst.msk [vmem:[#allocation2] sm:$0xff] %vm385, 0.0
        %387 = vst.msk [vmem:[#allocation2 + $0x8] sm:$0xff] %vm385, 0.0
        %388 = vst.msk [vmem:[#allocation2 + $0x10] sm:$0xff] %vm385, 0.0
        %389 = vst.msk [vmem:[#allocation2 + $0x18] sm:$0xff] %vm385, 0.0
        %390 = vst.msk [vmem:[#allocation2 + $0x20] sm:$0xff] %vm385, 0.0
        %391 = vst.msk [vmem:[#allocation2 + $0x28] sm:$0xff] %vm385, 0.0
        %392 = vst.msk [vmem:[#allocation2 + $0x30] sm:$0xff] %vm385, 0.0
        %393 = vst.msk [vmem:[#allocation2 + $0x38] sm:$0xff] %vm385, 0.0
        %394 = vst.msk [vmem:[#allocation2 + $0x40] sm:$0xff] %vm385, 0.0
        %395 = vst.msk [vmem:[#allocation2 + $0x48] sm:$0xff] %vm385, 0.0
        %396 = vst.msk [vmem:[#allocation2 + $0x50] sm:$0xff] %vm385, 0.0
        %397 = vst.msk [vmem:[#allocation2 + $0x58] sm:$0xff] %vm385, 0.0
        %398 = vst.msk [vmem:[#allocation2 + $0x60] sm:$0xff] %vm385, 0.0
        %399 = vst.msk [vmem:[#allocation2 + $0x68] sm:$0xff] %vm385, 0.0
        %400 = vst.msk [vmem:[#allocation2 + $0x70] sm:$0xff] %vm385, 0.0
        %401 = vst.msk [vmem:[#allocation2 + $0x78] sm:$0xff] %vm385, 0.0
        %402 = vst.msk [vmem:[#allocation2 + $0x80] sm:$0xff] %vm385, 0.0
        %403 = vst.msk [vmem:[#allocation2 + $0x88] sm:$0xff] %vm385, 0.0
        %404 = vst.msk [vmem:[#allocation2 + $0x90] sm:$0xff] %vm385, 0.0
        %405 = vst.msk [vmem:[#allocation2 + $0x98] sm:$0xff] %vm385, 0.0
        %406 = vst.msk [vmem:[#allocation2 + $0xa0] sm:$0xff] %vm385, 0.0
        %407 = vst.msk [vmem:[#allocation2 + $0xa8] sm:$0xff] %vm385, 0.0
        %408 = vst.msk [vmem:[#allocation2 + $0xb0] sm:$0xff] %vm385, 0.0
        %409 = vst.msk [vmem:[#allocation2 + $0xb8] sm:$0xff] %vm385, 0.0
        %410 = vst.msk [vmem:[#allocation2 + $0xc0] sm:$0xff] %vm385, 0.0
        %411 = vst.msk [vmem:[#allocation2 + $0xc8] sm:$0xff] %vm385, 0.0
        %412 = vst.msk [vmem:[#allocation2 + $0xd0] sm:$0xff] %vm385, 0.0
        %413 = vst.msk [vmem:[#allocation2 + $0xd8] sm:$0xff] %vm385, 0.0
        %414 = vst.msk [vmem:[#allocation2 + $0xe0] sm:$0xff] %vm385, 0.0
        %415 = vst.msk [vmem:[#allocation2 + $0xe8] sm:$0xff] %vm385, 0.0
        %416 = vst.msk [vmem:[#allocation2 + $0xf0] sm:$0xff] %vm385, 0.0
        %417 = vst.msk [vmem:[#allocation2 + $0xf8] sm:$0xff] %vm385, 0.0
        %418 = vst.msk [vmem:[#allocation2 + $0x100] sm:$0xff] %vm385, 0.0
        %419 = vst.msk [vmem:[#allocation2 + $0x108] sm:$0xff] %vm385, 0.0
        %420 = vst.msk [vmem:[#allocation2 + $0x110] sm:$0xff] %vm385, 0.0
        %421 = vst.msk [vmem:[#allocation2 + $0x118] sm:$0xff] %vm385, 0.0
        %422 = vst.msk [vmem:[#allocation2 + $0x120] sm:$0xff] %vm385, 0.0
        %423 = vst.msk [vmem:[#allocation2 + $0x128] sm:$0xff] %vm385, 0.0
        %424 = vst.msk [vmem:[#allocation2 + $0x130] sm:$0xff] %vm385, 0.0
        %425 = vst.msk [vmem:[#allocation2 + $0x138] sm:$0xff] %vm385, 0.0
        %426 = vst.msk [vmem:[#allocation2 + $0x140] sm:$0xff] %vm385, 0.0
        %427 = vst.msk [vmem:[#allocation2 + $0x148] sm:$0xff] %vm385, 0.0
        %428 = vst.msk [vmem:[#allocation2 + $0x150] sm:$0xff] %vm385, 0.0
        %429 = vst.msk [vmem:[#allocation2 + $0x158] sm:$0xff] %vm385, 0.0
        %430 = vst.msk [vmem:[#allocation2 + $0x160] sm:$0xff] %vm385, 0.0
        %431 = vst.msk [vmem:[#allocation2 + $0x168] sm:$0xff] %vm385, 0.0
        %432 = vst.msk [vmem:[#allocation2 + $0x170] sm:$0xff] %vm385, 0.0
        %433 = vst.msk [vmem:[#allocation2 + $0x178] sm:$0xff] %vm385, 0.0
        %434 = vst.msk [vmem:[#allocation2 + $0x180] sm:$0xff] %vm385, 0.0
        %435 = vst.msk [vmem:[#allocation2 + $0x188] sm:$0xff] %vm385, 0.0
        %436 = vst.msk [vmem:[#allocation2 + $0x190] sm:$0xff] %vm385, 0.0
        %437 = vst.msk [vmem:[#allocation2 + $0x198] sm:$0xff] %vm385, 0.0
        %438 = vst.msk [vmem:[#allocation2 + $0x1a0] sm:$0xff] %vm385, 0.0
        %439 = vst.msk [vmem:[#allocation2 + $0x1a8] sm:$0xff] %vm385, 0.0
        %440 = vst.msk [vmem:[#allocation2 + $0x1b0] sm:$0xff] %vm385, 0.0
        %441 = vst.msk [vmem:[#allocation2 + $0x1b8] sm:$0xff] %vm385, 0.0
        %442 = vst.msk [vmem:[#allocation2 + $0x1c0] sm:$0xff] %vm385, 0.0
        %443 = vst.msk [vmem:[#allocation2 + $0x1c8] sm:$0xff] %vm385, 0.0
        %444 = vst.msk [vmem:[#allocation2 + $0x1d0] sm:$0xff] %vm385, 0.0
        %445 = vst.msk [vmem:[#allocation2 + $0x1d8] sm:$0xff] %vm385, 0.0
        %446 = vst.msk [vmem:[#allocation2 + $0x1e0] sm:$0xff] %vm385, 0.0
        %447 = vst.msk [vmem:[#allocation2 + $0x1e8] sm:$0xff] %vm385, 0.0
        %448 = vst.msk [vmem:[#allocation2 + $0x1f0] sm:$0xff] %vm385, 0.0
        %449 = vst.msk [vmem:[#allocation2 + $0x1f8] sm:$0xff] %vm385, 0.0
        %450 = vst.msk [vmem:[#allocation2 + $0x200] sm:$0xff] %vm385, 0.0
        %451 = vst.msk [vmem:[#allocation2 + $0x208] sm:$0xff] %vm385, 0.0
        %452 = vst.msk [vmem:[#allocation2 + $0x210] sm:$0xff] %vm385, 0.0
        %453 = vst.msk [vmem:[#allocation2 + $0x218] sm:$0xff] %vm385, 0.0
        %454 = vst.msk [vmem:[#allocation2 + $0x220] sm:$0xff] %vm385, 0.0
        %455 = vst.msk [vmem:[#allocation2 + $0x228] sm:$0xff] %vm385, 0.0
        %456 = vst.msk [vmem:[#allocation2 + $0x230] sm:$0xff] %vm385, 0.0
        %457 = vst.msk [vmem:[#allocation2 + $0x238] sm:$0xff] %vm385, 0.0
        %458 = vst.msk [vmem:[#allocation3] sm:$0xff] %vm385, 0.0
        %459 = vst.msk [vmem:[#allocation3 + $0x8] sm:$0xff] %vm385, 0.0
        %460 = vst.msk [vmem:[#allocation3 + $0x10] sm:$0xff] %vm385, 0.0
        %461 = vst.msk [vmem:[#allocation3 + $0x18] sm:$0xff] %vm385, 0.0
        %462 = vst.msk [vmem:[#allocation3 + $0x20] sm:$0xff] %vm385, 0.0
        %463 = vst.msk [vmem:[#allocation3 + $0x28] sm:$0xff] %vm385, 0.0
        %464 = vst.msk [vmem:[#allocation3 + $0x30] sm:$0xff] %vm385, 0.0
        %465 = vst.msk [vmem:[#allocation3 + $0x38] sm:$0xff] %vm385, 0.0
        %466 = vst.msk [vmem:[#allocation3 + $0x40] sm:$0xff] %vm385, 0.0
        %467 = vst.msk [vmem:[#allocation3 + $0x48] sm:$0xff] %vm385, 0.0
        %468 = vst.msk [vmem:[#allocation3 + $0x50] sm:$0xff] %vm385, 0.0
        %469 = vst.msk [vmem:[#allocation3 + $0x58] sm:$0xff] %vm385, 0.0
        %470 = vst.msk [vmem:[#allocation3 + $0x60] sm:$0xff] %vm385, 0.0
        %471 = vst.msk [vmem:[#allocation3 + $0x68] sm:$0xff] %vm385, 0.0
        %472 = vst.msk [vmem:[#allocation3 + $0x70] sm:$0xff] %vm385, 0.0
        %473 = vst.msk [vmem:[#allocation3 + $0x78] sm:$0xff] %vm385, 0.0
        %474 = vst.msk [vmem:[#allocation3 + $0x80] sm:$0xff] %vm385, 0.0
        %475 = vst.msk [vmem:[#allocation3 + $0x88] sm:$0xff] %vm385, 0.0
        %476 = vst.msk [vmem:[#allocation3 + $0x90] sm:$0xff] %vm385, 0.0
        %477 = vst.msk [vmem:[#allocation3 + $0x98] sm:$0xff] %vm385, 0.0
        %478 = vst.msk [vmem:[#allocation3 + $0xa0] sm:$0xff] %vm385, 0.0
        %479 = vst.msk [vmem:[#allocation3 + $0xa8] sm:$0xff] %vm385, 0.0
        %480 = vst.msk [vmem:[#allocation3 + $0xb0] sm:$0xff] %vm385, 0.0
        %481 = vst.msk [vmem:[#allocation3 + $0xb8] sm:$0xff] %vm385, 0.0
        %482 = vst.msk [vmem:[#allocation3 + $0xc0] sm:$0xff] %vm385, 0.0
        %483 = vst.msk [vmem:[#allocation3 + $0xc8] sm:$0xff] %vm385, 0.0
        %484 = vst.msk [vmem:[#allocation3 + $0xd0] sm:$0xff] %vm385, 0.0
        %485 = vst.msk [vmem:[#allocation3 + $0xd8] sm:$0xff] %vm385, 0.0
        %486 = vst.msk [vmem:[#allocation3 + $0xe0] sm:$0xff] %vm385, 0.0
        %487 = vst.msk [vmem:[#allocation3 + $0xe8] sm:$0xff] %vm385, 0.0
        %488 = vst.msk [vmem:[#allocation3 + $0xf0] sm:$0xff] %vm385, 0.0
        %489 = vst.msk [vmem:[#allocation3 + $0xf8] sm:$0xff] %vm385, 0.0
        loop: start=0, step=1, limit=8
        $region65: #{nutty_forward.1} parent=63 // loop_pre_header
          _
        $region66: #{nutty_forward.1} parent=63 // loop_header
          %s491 = sphi 0, %s495
          %p492 = scmp.ge.s32.totalorder %s491, 8
        $region67: #{nutty_forward.1} parent=63 // loop_header_branch
          %494 = sbr.rel (%p492) target = $region71
        $region68: #{nutty_forward.1} parent=63 // loop_body
          %s496 = smul.u32 %s491, 4
          %s497 = sadd.s32 %s496, 4
          %s498 = smul.u32 %s497, 40
          %s499 = sadd.s32 %s498, 4294967214
          %s500 = scalar_lea.vmem %s383, %s499
          %v501 = vld [vmem:[%s500] sm:$0xff]
          %v502 = vld [vmem:[%s500 + $0x8] sm:$0xff]
          %v503 = vld [vmem:[%s500 + $0x10] sm:$0xff]
          %v504 = vld [vmem:[%s500 + $0x18] sm:$0xff]
          %v505 = vld [vmem:[%s500 + $0x20] sm:$0xff]
          %v506 = vld [vmem:[%s500 + $0x28] sm:$0xff]
          %v507 = vld [vmem:[%s500 + $0x30] sm:$0xff]
          %v508 = vld [vmem:[%s500 + $0x38] sm:$0xff]
          %v509 = vld [vmem:[%s500 + $0x40] sm:$0xff]
          %v510 = vld [vmem:[%s500 + $0x48] sm:$0xff]
          %v511 = vld [vmem:[%s500 + $0x50] sm:$0xff]
          %v512 = vld [vmem:[%s500 + $0x58] sm:$0xff]
          %v513 = vld [vmem:[%s500 + $0x60] sm:$0xff]
          %v514 = vld [vmem:[%s500 + $0x68] sm:$0xff]
          %v515 = vld [vmem:[%s500 + $0x70] sm:$0xff]
          %v516 = vld [vmem:[%s500 + $0x78] sm:$0xff]
          %v517 = vld [vmem:[%s500 + $0x80] sm:$0xff]
          %v518 = vld [vmem:[%s500 + $0x88] sm:$0xff]
          %v519 = vld [vmem:[%s500 + $0x90] sm:$0xff]
          %v520 = vld [vmem:[%s500 + $0x98] sm:$0xff]
          %vm521 = vcmask 31744
          %522 = vst.msk [vmem:[#allocation5] sm:$0xff] %vm521, %v501
          %523 = vst.msk [vmem:[#allocation5 + $0x8] sm:$0xff] %vm521, %v502
          %524 = vst.msk [vmem:[#allocation5 + $0x10] sm:$0xff] %vm521, %v503
          %525 = vst.msk [vmem:[#allocation5 + $0x18] sm:$0xff] %vm521, %v504
          %526 = vst.msk [vmem:[#allocation5 + $0x20] sm:$0xff] %vm521, %v505
          %527 = vst.msk [vmem:[#allocation5 + $0x28] sm:$0xff] %vm521, %v506
          %528 = vst.msk [vmem:[#allocation5 + $0x30] sm:$0xff] %vm521, %v507
          %529 = vst.msk [vmem:[#allocation5 + $0x38] sm:$0xff] %vm521, %v508
          %530 = vst.msk [vmem:[#allocation5 + $0x40] sm:$0xff] %vm521, %v509
          %531 = vst.msk [vmem:[#allocation5 + $0x48] sm:$0xff] %vm521, %v510
          %532 = vst.msk [vmem:[#allocation5 + $0x50] sm:$0xff] %vm521, %v511
          %533 = vst.msk [vmem:[#allocation5 + $0x58] sm:$0xff] %vm521, %v512
          %534 = vst.msk [vmem:[#allocation5 + $0x60] sm:$0xff] %vm521, %v513
          %535 = vst.msk [vmem:[#allocation5 + $0x68] sm:$0xff] %vm521, %v514
          %536 = vst.msk [vmem:[#allocation5 + $0x70] sm:$0xff] %vm521, %v515
          %537 = vst.msk [vmem:[#allocation5 + $0x78] sm:$0xff] %vm521, %v516
          %538 = vst.msk [vmem:[#allocation5 + $0x80] sm:$0xff] %vm521, %v517
          %539 = vst.msk [vmem:[#allocation5 + $0x88] sm:$0xff] %vm521, %v518
          %540 = vst.msk [vmem:[#allocation5 + $0x90] sm:$0xff] %vm521, %v519
          %541 = vst.msk [vmem:[#allocation5 + $0x98] sm:$0xff] %vm521, %v520
          %s542 = sadd.s32 %s498, 4294967215
          %s543 = scalar_lea.vmem %s383, %s542
          %v544 = vld [vmem:[%s543] sm:$0xff]
          %v545 = vld [vmem:[%s543 + $0x8] sm:$0xff]
          %v546 = vld [vmem:[%s543 + $0x10] sm:$0xff]
          %v547 = vld [vmem:[%s543 + $0x18] sm:$0xff]
          %v548 = vld [vmem:[%s543 + $0x20] sm:$0xff]
          %v549 = vld [vmem:[%s543 + $0x28] sm:$0xff]
          %v550 = vld [vmem:[%s543 + $0x30] sm:$0xff]
          %v551 = vld [vmem:[%s543 + $0x38] sm:$0xff]
          %v552 = vld [vmem:[%s543 + $0x40] sm:$0xff]
          %v553 = vld [vmem:[%s543 + $0x48] sm:$0xff]
          %v554 = vld [vmem:[%s543 + $0x50] sm:$0xff]
          %v555 = vld [vmem:[%s543 + $0x58] sm:$0xff]
          %v556 = vld [vmem:[%s543 + $0x60] sm:$0xff]
          %v557 = vld [vmem:[%s543 + $0x68] sm:$0xff]
          %v558 = vld [vmem:[%s543 + $0x70] sm:$0xff]
          %v559 = vld [vmem:[%s543 + $0x78] sm:$0xff]
          %v560 = vld [vmem:[%s543 + $0x80] sm:$0xff]
          %v561 = vld [vmem:[%s543 + $0x88] sm:$0xff]
          %v562 = vld [vmem:[%s543 + $0x90] sm:$0xff]
          %v563 = vld [vmem:[%s543 + $0x98] sm:$0xff]
          %584 = vrot.lane.b32.xlu0 %v544, 4
          %v585 = vpop.permute.xlu0 %584
          %586 = vrot.lane.b32.xlu0 %v545, 4
          %v587 = vpop.permute.xlu0 %586
          %588 = vrot.lane.b32.xlu0 %v546, 4
          %v589 = vpop.permute.xlu0 %588
          %590 = vrot.lane.b32.xlu0 %v547, 4
          %v591 = vpop.permute.xlu0 %590
          %592 = vrot.lane.b32.xlu0 %v548, 4
          %v593 = vpop.permute.xlu0 %592
          %594 = vrot.lane.b32.xlu0 %v549, 4
          %v595 = vpop.permute.xlu0 %594
          %596 = vrot.lane.b32.xlu0 %v550, 4
          %v597 = vpop.permute.xlu0 %596
          %598 = vrot.lane.b32.xlu0 %v551, 4
          %v599 = vpop.permute.xlu0 %598
          %600 = vrot.lane.b32.xlu0 %v552, 4
          %v601 = vpop.permute.xlu0 %600
          %602 = vrot.lane.b32.xlu0 %v553, 4
          %v603 = vpop.permute.xlu0 %602
          %604 = vrot.lane.b32.xlu0 %v554, 4
          %v605 = vpop.permute.xlu0 %604
          %606 = vrot.lane.b32.xlu0 %v555, 4
          %v607 = vpop.permute.xlu0 %606
          %608 = vrot.lane.b32.xlu0 %v556, 4
          %v609 = vpop.permute.xlu0 %608
          %610 = vrot.lane.b32.xlu0 %v557, 4
          %v611 = vpop.permute.xlu0 %610
          %612 = vrot.lane.b32.xlu0 %v558, 4
          %v613 = vpop.permute.xlu0 %612
          %614 = vrot.lane.b32.xlu0 %v559, 4
          %v615 = vpop.permute.xlu0 %614
          %616 = vrot.lane.b32.xlu0 %v560, 4
          %v617 = vpop.permute.xlu0 %616
          %618 = vrot.lane.b32.xlu0 %v561, 4
          %v619 = vpop.permute.xlu0 %618
          %620 = vrot.lane.b32.xlu0 %v562, 4
          %v621 = vpop.permute.xlu0 %620
          %622 = vrot.lane.b32.xlu0 %v563, 4
          %v623 = vpop.permute.xlu0 %622
          %vm644 = vcmask 64544
          %645 = vst.msk [vmem:[#allocation5] sm:$0xff] %vm644, %v585
          %646 = vst.msk [vmem:[#allocation5 + $0x8] sm:$0xff] %vm644, %v587
          %647 = vst.msk [vmem:[#allocation5 + $0x10] sm:$0xff] %vm644, %v589
          %648 = vst.msk [vmem:[#allocation5 + $0x18] sm:$0xff] %vm644, %v591
          %649 = vst.msk [vmem:[#allocation5 + $0x20] sm:$0xff] %vm644, %v593
          %650 = vst.msk [vmem:[#allocation5 + $0x28] sm:$0xff] %vm644, %v595
          %651 = vst.msk [vmem:[#allocation5 + $0x30] sm:$0xff] %vm644, %v597
          %652 = vst.msk [vmem:[#allocation5 + $0x38] sm:$0xff] %vm644, %v599
          %653 = vst.msk [vmem:[#allocation5 + $0x40] sm:$0xff] %vm644, %v601
          %654 = vst.msk [vmem:[#allocation5 + $0x48] sm:$0xff] %vm644, %v603
          %655 = vst.msk [vmem:[#allocation5 + $0x50] sm:$0xff] %vm644, %v605
          %656 = vst.msk [vmem:[#allocation5 + $0x58] sm:$0xff] %vm644, %v607
          %657 = vst.msk [vmem:[#allocation5 + $0x60] sm:$0xff] %vm644, %v609
          %658 = vst.msk [vmem:[#allocation5 + $0x68] sm:$0xff] %vm644, %v611
          %659 = vst.msk [vmem:[#allocation5 + $0x70] sm:$0xff] %vm644, %v613
          %660 = vst.msk [vmem:[#allocation5 + $0x78] sm:$0xff] %vm644, %v615
          %661 = vst.msk [vmem:[#allocation5 + $0x80] sm:$0xff] %vm644, %v617
          %662 = vst.msk [vmem:[#allocation5 + $0x88] sm:$0xff] %vm644, %v619
          %663 = vst.msk [vmem:[#allocation5 + $0x90] sm:$0xff] %vm644, %v621
          %664 = vst.msk [vmem:[#allocation5 + $0x98] sm:$0xff] %vm644, %v623
          %s665 = sadd.s32 %s498, 4294967216
          %s666 = scalar_lea.vmem %s383, %s665
          %v667 = vld [vmem:[%s666] sm:$0xff]
          %v668 = vld [vmem:[%s666 + $0x8] sm:$0xff]
          %v669 = vld [vmem:[%s666 + $0x10] sm:$0xff]
          %v670 = vld [vmem:[%s666 + $0x18] sm:$0xff]
          %v671 = vld [vmem:[%s666 + $0x20] sm:$0xff]
          %v672 = vld [vmem:[%s666 + $0x28] sm:$0xff]
          %v673 = vld [vmem:[%s666 + $0x30] sm:$0xff]
          %v674 = vld [vmem:[%s666 + $0x38] sm:$0xff]
          %v675 = vld [vmem:[%s666 + $0x40] sm:$0xff]
          %v676 = vld [vmem:[%s666 + $0x48] sm:$0xff]
          %v677 = vld [vmem:[%s666 + $0x50] sm:$0xff]
          %v678 = vld [vmem:[%s666 + $0x58] sm:$0xff]
          %v679 = vld [vmem:[%s666 + $0x60] sm:$0xff]
          %v680 = vld [vmem:[%s666 + $0x68] sm:$0xff]
          %v681 = vld [vmem:[%s666 + $0x70] sm:$0xff]
          %v682 = vld [vmem:[%s666 + $0x78] sm:$0xff]
          %v683 = vld [vmem:[%s666 + $0x80] sm:$0xff]
          %v684 = vld [vmem:[%s666 + $0x88] sm:$0xff]
          %v685 = vld [vmem:[%s666 + $0x90] sm:$0xff]
          %v686 = vld [vmem:[%s666 + $0x98] sm:$0xff]
          %707 = vrot.lane.b32.xlu0 %v667, 8
          %v708 = vpop.permute.xlu0 %707
          %709 = vrot.lane.b32.xlu0 %v668, 8
          %v710 = vpop.permute.xlu0 %709
          %711 = vrot.lane.b32.xlu0 %v669, 8
          %v712 = vpop.permute.xlu0 %711
          %713 = vrot.lane.b32.xlu0 %v670, 8
          %v714 = vpop.permute.xlu0 %713
          %715 = vrot.lane.b32.xlu0 %v671, 8
          %v716 = vpop.permute.xlu0 %715
          %717 = vrot.lane.b32.xlu0 %v672, 8
          %v718 = vpop.permute.xlu0 %717
          %719 = vrot.lane.b32.xlu0 %v673, 8
          %v720 = vpop.permute.xlu0 %719
          %721 = vrot.lane.b32.xlu0 %v674, 8
          %v722 = vpop.permute.xlu0 %721
          %723 = vrot.lane.b32.xlu0 %v675, 8
          %v724 = vpop.permute.xlu0 %723
          %725 = vrot.lane.b32.xlu0 %v676, 8
          %v726 = vpop.permute.xlu0 %725
          %727 = vrot.lane.b32.xlu0 %v677, 8
          %v728 = vpop.permute.xlu0 %727
          %729 = vrot.lane.b32.xlu0 %v678, 8
          %v730 = vpop.permute.xlu0 %729
          %731 = vrot.lane.b32.xlu0 %v679, 8
          %v732 = vpop.permute.xlu0 %731
          %733 = vrot.lane.b32.xlu0 %v680, 8
          %v734 = vpop.permute.xlu0 %733
          %735 = vrot.lane.b32.xlu0 %v681, 8
          %v736 = vpop.permute.xlu0 %735
          %737 = vrot.lane.b32.xlu0 %v682, 8
          %v738 = vpop.permute.xlu0 %737
          %739 = vrot.lane.b32.xlu0 %v683, 8
          %v740 = vpop.permute.xlu0 %739
          %741 = vrot.lane.b32.xlu0 %v684, 8
          %v742 = vpop.permute.xlu0 %741
          %743 = vrot.lane.b32.xlu0 %v685, 8
          %v744 = vpop.permute.xlu0 %743
          %745 = vrot.lane.b32.xlu0 %v686, 8
          %v746 = vpop.permute.xlu0 %745
          %vm767 = vcmask 97344
          %768 = vst.msk [vmem:[#allocation5] sm:$0xff] %vm767, %v708
          %769 = vst.msk [vmem:[#allocation5 + $0x8] sm:$0xff] %vm767, %v710
          %770 = vst.msk [vmem:[#allocation5 + $0x10] sm:$0xff] %vm767, %v712
          %771 = vst.msk [vmem:[#allocation5 + $0x18] sm:$0xff] %vm767, %v714
          %772 = vst.msk [vmem:[#allocation5 + $0x20] sm:$0xff] %vm767, %v716
          %773 = vst.msk [vmem:[#allocation5 + $0x28] sm:$0xff] %vm767, %v718
          %774 = vst.msk [vmem:[#allocation5 + $0x30] sm:$0xff] %vm767, %v720
          %775 = vst.msk [vmem:[#allocation5 + $0x38] sm:$0xff] %vm767, %v722
          %776 = vst.msk [vmem:[#allocation5 + $0x40] sm:$0xff] %vm767, %v724
          %777 = vst.msk [vmem:[#allocation5 + $0x48] sm:$0xff] %vm767, %v726
          %778 = vst.msk [vmem:[#allocation5 + $0x50] sm:$0xff] %vm767, %v728
          %779 = vst.msk [vmem:[#allocation5 + $0x58] sm:$0xff] %vm767, %v730
          %780 = vst.msk [vmem:[#allocation5 + $0x60] sm:$0xff] %vm767, %v732
          %781 = vst.msk [vmem:[#allocation5 + $0x68] sm:$0xff] %vm767, %v734
          %782 = vst.msk [vmem:[#allocation5 + $0x70] sm:$0xff] %vm767, %v736
          %783 = vst.msk [vmem:[#allocation5 + $0x78] sm:$0xff] %vm767, %v738
          %784 = vst.msk [vmem:[#allocation5 + $0x80] sm:$0xff] %vm767, %v740
          %785 = vst.msk [vmem:[#allocation5 + $0x88] sm:$0xff] %vm767, %v742
          %786 = vst.msk [vmem:[#allocation5 + $0x90] sm:$0xff] %vm767, %v744
          %787 = vst.msk [vmem:[#allocation5 + $0x98] sm:$0xff] %vm767, %v746
          %s788 = sadd.s32 %s498, 4294967217
          %s789 = scalar_lea.vmem %s383, %s788
          %v790 = vld [vmem:[%s789] sm:$0xff]
          %v791 = vld [vmem:[%s789 + $0x8] sm:$0xff]
          %v792 = vld [vmem:[%s789 + $0x10] sm:$0xff]
          %v793 = vld [vmem:[%s789 + $0x18] sm:$0xff]
          %v794 = vld [vmem:[%s789 + $0x20] sm:$0xff]
          %v795 = vld [vmem:[%s789 + $0x28] sm:$0xff]
          %v796 = vld [vmem:[%s789 + $0x30] sm:$0xff]
          %v797 = vld [vmem:[%s789 + $0x38] sm:$0xff]
          %v798 = vld [vmem:[%s789 + $0x40] sm:$0xff]
          %v799 = vld [vmem:[%s789 + $0x48] sm:$0xff]
          %v800 = vld [vmem:[%s789 + $0x50] sm:$0xff]
          %v801 = vld [vmem:[%s789 + $0x58] sm:$0xff]
          %v802 = vld [vmem:[%s789 + $0x60] sm:$0xff]
          %v803 = vld [vmem:[%s789 + $0x68] sm:$0xff]
          %v804 = vld [vmem:[%s789 + $0x70] sm:$0xff]
          %v805 = vld [vmem:[%s789 + $0x78] sm:$0xff]
          %v806 = vld [vmem:[%s789 + $0x80] sm:$0xff]
          %v807 = vld [vmem:[%s789 + $0x88] sm:$0xff]
          %v808 = vld [vmem:[%s789 + $0x90] sm:$0xff]
          %v809 = vld [vmem:[%s789 + $0x98] sm:$0xff]
          %830 = vrot.lane.b32.xlu0 %v790, 12
          %v831 = vpop.permute.xlu0 %830
          %832 = vrot.lane.b32.xlu0 %v791, 12
          %v833 = vpop.permute.xlu0 %832
          %834 = vrot.lane.b32.xlu0 %v792, 12
          %v835 = vpop.permute.xlu0 %834
          %836 = vrot.lane.b32.xlu0 %v793, 12
          %v837 = vpop.permute.xlu0 %836
          %838 = vrot.lane.b32.xlu0 %v794, 12
          %v839 = vpop.permute.xlu0 %838
          %840 = vrot.lane.b32.xlu0 %v795, 12
          %v841 = vpop.permute.xlu0 %840
          %842 = vrot.lane.b32.xlu0 %v796, 12
          %v843 = vpop.permute.xlu0 %842
          %844 = vrot.lane.b32.xlu0 %v797, 12
          %v845 = vpop.permute.xlu0 %844
          %846 = vrot.lane.b32.xlu0 %v798, 12
          %v847 = vpop.permute.xlu0 %846
          %848 = vrot.lane.b32.xlu0 %v799, 12
          %v849 = vpop.permute.xlu0 %848
          %850 = vrot.lane.b32.xlu0 %v800, 12
          %v851 = vpop.permute.xlu0 %850
          %852 = vrot.lane.b32.xlu0 %v801, 12
          %v853 = vpop.permute.xlu0 %852
          %854 = vrot.lane.b32.xlu0 %v802, 12
          %v855 = vpop.permute.xlu0 %854
          %856 = vrot.lane.b32.xlu0 %v803, 12
          %v857 = vpop.permute.xlu0 %856
          %858 = vrot.lane.b32.xlu0 %v804, 12
          %v859 = vpop.permute.xlu0 %858
          %860 = vrot.lane.b32.xlu0 %v805, 12
          %v861 = vpop.permute.xlu0 %860
          %862 = vrot.lane.b32.xlu0 %v806, 12
          %v863 = vpop.permute.xlu0 %862
          %864 = vrot.lane.b32.xlu0 %v807, 12
          %v865 = vpop.permute.xlu0 %864
          %866 = vrot.lane.b32.xlu0 %v808, 12
          %v867 = vpop.permute.xlu0 %866
          %868 = vrot.lane.b32.xlu0 %v809, 12
          %v869 = vpop.permute.xlu0 %868
          %vm890 = vcmask 130144
          %891 = vst.msk [vmem:[#allocation5] sm:$0xff] %vm890, %v831
          %892 = vst.msk [vmem:[#allocation5 + $0x8] sm:$0xff] %vm890, %v833
          %893 = vst.msk [vmem:[#allocation5 + $0x10] sm:$0xff] %vm890, %v835
          %894 = vst.msk [vmem:[#allocation5 + $0x18] sm:$0xff] %vm890, %v837
          %895 = vst.msk [vmem:[#allocation5 + $0x20] sm:$0xff] %vm890, %v839
          %896 = vst.msk [vmem:[#allocation5 + $0x28] sm:$0xff] %vm890, %v841
          %897 = vst.msk [vmem:[#allocation5 + $0x30] sm:$0xff] %vm890, %v843
          %898 = vst.msk [vmem:[#allocation5 + $0x38] sm:$0xff] %vm890, %v845
          %899 = vst.msk [vmem:[#allocation5 + $0x40] sm:$0xff] %vm890, %v847
          %900 = vst.msk [vmem:[#allocation5 + $0x48] sm:$0xff] %vm890, %v849
          %901 = vst.msk [vmem:[#allocation5 + $0x50] sm:$0xff] %vm890, %v851
          %902 = vst.msk [vmem:[#allocation5 + $0x58] sm:$0xff] %vm890, %v853
          %903 = vst.msk [vmem:[#allocation5 + $0x60] sm:$0xff] %vm890, %v855
          %904 = vst.msk [vmem:[#allocation5 + $0x68] sm:$0xff] %vm890, %v857
          %905 = vst.msk [vmem:[#allocation5 + $0x70] sm:$0xff] %vm890, %v859
          %906 = vst.msk [vmem:[#allocation5 + $0x78] sm:$0xff] %vm890, %v861
          %907 = vst.msk [vmem:[#allocation5 + $0x80] sm:$0xff] %vm890, %v863
          %908 = vst.msk [vmem:[#allocation5 + $0x88] sm:$0xff] %vm890, %v865
          %909 = vst.msk [vmem:[#allocation5 + $0x90] sm:$0xff] %vm890, %v867
          %910 = vst.msk [vmem:[#allocation5 + $0x98] sm:$0xff] %vm890, %v869
          %s911 = sadd.s32 %s498, 4294967218
          %s912 = scalar_lea.vmem %s383, %s911
          %v913 = vld [vmem:[%s912] sm:$0xff]
          %v914 = vld [vmem:[%s912 + $0x8] sm:$0xff]
          %v915 = vld [vmem:[%s912 + $0x10] sm:$0xff]
          %v916 = vld [vmem:[%s912 + $0x18] sm:$0xff]
          %v917 = vld [vmem:[%s912 + $0x20] sm:$0xff]
          %v918 = vld [vmem:[%s912 + $0x28] sm:$0xff]
          %v919 = vld [vmem:[%s912 + $0x30] sm:$0xff]
          %v920 = vld [vmem:[%s912 + $0x38] sm:$0xff]
          %v921 = vld [vmem:[%s912 + $0x40] sm:$0xff]
          %v922 = vld [vmem:[%s912 + $0x48] sm:$0xff]
          %v923 = vld [vmem:[%s912 + $0x50] sm:$0xff]
          %v924 = vld [vmem:[%s912 + $0x58] sm:$0xff]
          %v925 = vld [vmem:[%s912 + $0x60] sm:$0xff]
          %v926 = vld [vmem:[%s912 + $0x68] sm:$0xff]
          %v927 = vld [vmem:[%s912 + $0x70] sm:$0xff]
          %v928 = vld [vmem:[%s912 + $0x78] sm:$0xff]
          %v929 = vld [vmem:[%s912 + $0x80] sm:$0xff]
          %v930 = vld [vmem:[%s912 + $0x88] sm:$0xff]
          %v931 = vld [vmem:[%s912 + $0x90] sm:$0xff]
          %v932 = vld [vmem:[%s912 + $0x98] sm:$0xff]
          %953 = vrot.lane.b32.xlu0 %v913, 16
          %v954 = vpop.permute.xlu0 %953
          %955 = vrot.lane.b32.xlu0 %v914, 16
          %v956 = vpop.permute.xlu0 %955
          %957 = vrot.lane.b32.xlu0 %v915, 16
          %v958 = vpop.permute.xlu0 %957
          %959 = vrot.lane.b32.xlu0 %v916, 16
          %v960 = vpop.permute.xlu0 %959
          %961 = vrot.lane.b32.xlu0 %v917, 16
          %v962 = vpop.permute.xlu0 %961
          %963 = vrot.lane.b32.xlu0 %v918, 16
          %v964 = vpop.permute.xlu0 %963
          %965 = vrot.lane.b32.xlu0 %v919, 16
          %v966 = vpop.permute.xlu0 %965
          %967 = vrot.lane.b32.xlu0 %v920, 16
          %v968 = vpop.permute.xlu0 %967
          %969 = vrot.lane.b32.xlu0 %v921, 16
          %v970 = vpop.permute.xlu0 %969
          %971 = vrot.lane.b32.xlu0 %v922, 16
          %v972 = vpop.permute.xlu0 %971
          %973 = vrot.lane.b32.xlu0 %v923, 16
          %v974 = vpop.permute.xlu0 %973
          %975 = vrot.lane.b32.xlu0 %v924, 16
          %v976 = vpop.permute.xlu0 %975
          %977 = vrot.lane.b32.xlu0 %v925, 16
          %v978 = vpop.permute.xlu0 %977
          %979 = vrot.lane.b32.xlu0 %v926, 16
          %v980 = vpop.permute.xlu0 %979
          %981 = vrot.lane.b32.xlu0 %v927, 16
          %v982 = vpop.permute.xlu0 %981
          %983 = vrot.lane.b32.xlu0 %v928, 16
          %v984 = vpop.permute.xlu0 %983
          %985 = vrot.lane.b32.xlu0 %v929, 16
          %v986 = vpop.permute.xlu0 %985
          %987 = vrot.lane.b32.xlu0 %v930, 16
          %v988 = vpop.permute.xlu0 %987
          %989 = vrot.lane.b32.xlu0 %v931, 16
          %v990 = vpop.permute.xlu0 %989
          %991 = vrot.lane.b32.xlu0 %v932, 16
          %v992 = vpop.permute.xlu0 %991
          %vm1013 = vcmask 162944
          %1014 = vst.msk [vmem:[#allocation5] sm:$0xff] %vm1013, %v954
          %1015 = vst.msk [vmem:[#allocation5 + $0x8] sm:$0xff] %vm1013, %v956
          %1016 = vst.msk [vmem:[#allocation5 + $0x10] sm:$0xff] %vm1013, %v958
          %1017 = vst.msk [vmem:[#allocation5 + $0x18] sm:$0xff] %vm1013, %v960
          %1018 = vst.msk [vmem:[#allocation5 + $0x20] sm:$0xff] %vm1013, %v962
          %1019 = vst.msk [vmem:[#allocation5 + $0x28] sm:$0xff] %vm1013, %v964
          %1020 = vst.msk [vmem:[#allocation5 + $0x30] sm:$0xff] %vm1013, %v966
          %1021 = vst.msk [vmem:[#allocation5 + $0x38] sm:$0xff] %vm1013, %v968
          %1022 = vst.msk [vmem:[#allocation5 + $0x40] sm:$0xff] %vm1013, %v970
          %1023 = vst.msk [vmem:[#allocation5 + $0x48] sm:$0xff] %vm1013, %v972
          %1024 = vst.msk [vmem:[#allocation5 + $0x50] sm:$0xff] %vm1013, %v974
          %1025 = vst.msk [vmem:[#allocation5 + $0x58] sm:$0xff] %vm1013, %v976
          %1026 = vst.msk [vmem:[#allocation5 + $0x60] sm:$0xff] %vm1013, %v978
          %1027 = vst.msk [vmem:[#allocation5 + $0x68] sm:$0xff] %vm1013, %v980
          %1028 = vst.msk [vmem:[#allocation5 + $0x70] sm:$0xff] %vm1013, %v982
          %1029 = vst.msk [vmem:[#allocation5 + $0x78] sm:$0xff] %vm1013, %v984
          %1030 = vst.msk [vmem:[#allocation5 + $0x80] sm:$0xff] %vm1013, %v986
          %1031 = vst.msk [vmem:[#allocation5 + $0x88] sm:$0xff] %vm1013, %v988
          %1032 = vst.msk [vmem:[#allocation5 + $0x90] sm:$0xff] %vm1013, %v990
          %1033 = vst.msk [vmem:[#allocation5 + $0x98] sm:$0xff] %vm1013, %v992
          %s1034 = sadd.s32 %s498, 4294967254
          %s1035 = scalar_lea.vmem %s383, %s1034
          %v1036 = vld [vmem:[%s1035] sm:$0xff]
          %v1037 = vld [vmem:[%s1035 + $0x8] sm:$0xff]
          %v1038 = vld [vmem:[%s1035 + $0x10] sm:$0xff]
          %v1039 = vld [vmem:[%s1035 + $0x18] sm:$0xff]
          %v1040 = vld [vmem:[%s1035 + $0x20] sm:$0xff]
          %v1041 = vld [vmem:[%s1035 + $0x28] sm:$0xff]
          %v1042 = vld [vmem:[%s1035 + $0x30] sm:$0xff]
          %v1043 = vld [vmem:[%s1035 + $0x38] sm:$0xff]
          %v1044 = vld [vmem:[%s1035 + $0x40] sm:$0xff]
          %v1045 = vld [vmem:[%s1035 + $0x48] sm:$0xff]
          %v1046 = vld [vmem:[%s1035 + $0x50] sm:$0xff]
          %v1047 = vld [vmem:[%s1035 + $0x58] sm:$0xff]
          %v1048 = vld [vmem:[%s1035 + $0x60] sm:$0xff]
          %v1049 = vld [vmem:[%s1035 + $0x68] sm:$0xff]
          %v1050 = vld [vmem:[%s1035 + $0x70] sm:$0xff]
          %v1051 = vld [vmem:[%s1035 + $0x78] sm:$0xff]
          %v1052 = vld [vmem:[%s1035 + $0x80] sm:$0xff]
          %v1053 = vld [vmem:[%s1035 + $0x88] sm:$0xff]
          %v1054 = vld [vmem:[%s1035 + $0x90] sm:$0xff]
          %v1055 = vld [vmem:[%s1035 + $0x98] sm:$0xff]
          %1076 = vrot.lane.b32.xlu0 %v1036, 20
          %v1077 = vpop.permute.xlu0 %1076
          %1078 = vrot.lane.b32.xlu0 %v1037, 20
          %v1079 = vpop.permute.xlu0 %1078
          %1080 = vrot.lane.b32.xlu0 %v1038, 20
          %v1081 = vpop.permute.xlu0 %1080
          %1082 = vrot.lane.b32.xlu0 %v1039, 20
          %v1083 = vpop.permute.xlu0 %1082
          %1084 = vrot.lane.b32.xlu0 %v1040, 20
          %v1085 = vpop.permute.xlu0 %1084
          %1086 = vrot.lane.b32.xlu0 %v1041, 20
          %v1087 = vpop.permute.xlu0 %1086
          %1088 = vrot.lane.b32.xlu0 %v1042, 20
          %v1089 = vpop.permute.xlu0 %1088
          %1090 = vrot.lane.b32.xlu0 %v1043, 20
          %v1091 = vpop.permute.xlu0 %1090
          %1092 = vrot.lane.b32.xlu0 %v1044, 20
          %v1093 = vpop.permute.xlu0 %1092
          %1094 = vrot.lane.b32.xlu0 %v1045, 20
          %v1095 = vpop.permute.xlu0 %1094
          %1096 = vrot.lane.b32.xlu0 %v1046, 20
          %v1097 = vpop.permute.xlu0 %1096
          %1098 = vrot.lane.b32.xlu0 %v1047, 20
          %v1099 = vpop.permute.xlu0 %1098
          %1100 = vrot.lane.b32.xlu0 %v1048, 20
          %v1101 = vpop.permute.xlu0 %1100
          %1102 = vrot.lane.b32.xlu0 %v1049, 20
          %v1103 = vpop.permute.xlu0 %1102
          %1104 = vrot.lane.b32.xlu0 %v1050, 20
          %v1105 = vpop.permute.xlu0 %1104
          %1106 = vrot.lane.b32.xlu0 %v1051, 20
          %v1107 = vpop.permute.xlu0 %1106
          %1108 = vrot.lane.b32.xlu0 %v1052, 20
          %v1109 = vpop.permute.xlu0 %1108
          %1110 = vrot.lane.b32.xlu0 %v1053, 20
          %v1111 = vpop.permute.xlu0 %1110
          %1112 = vrot.lane.b32.xlu0 %v1054, 20
          %v1113 = vpop.permute.xlu0 %1112
          %1114 = vrot.lane.b32.xlu0 %v1055, 20
          %v1115 = vpop.permute.xlu0 %1114
          %vm1136 = vcmask 195744
          %1137 = vst.msk [vmem:[#allocation5] sm:$0xff] %vm1136, %v1077
          %1138 = vst.msk [vmem:[#allocation5 + $0x8] sm:$0xff] %vm1136, %v1079
          %1139 = vst.msk [vmem:[#allocation5 + $0x10] sm:$0xff] %vm1136, %v1081
          %1140 = vst.msk [vmem:[#allocation5 + $0x18] sm:$0xff] %vm1136, %v1083
          %1141 = vst.msk [vmem:[#allocation5 + $0x20] sm:$0xff] %vm1136, %v1085
          %1142 = vst.msk [vmem:[#allocation5 + $0x28] sm:$0xff] %vm1136, %v1087
          %1143 = vst.msk [vmem:[#allocation5 + $0x30] sm:$0xff] %vm1136, %v1089
          %1144 = vst.msk [vmem:[#allocation5 + $0x38] sm:$0xff] %vm1136, %v1091
          %1145 = vst.msk [vmem:[#allocation5 + $0x40] sm:$0xff] %vm1136, %v1093
          %1146 = vst.msk [vmem:[#allocation5 + $0x48] sm:$0xff] %vm1136, %v1095
          %1147 = vst.msk [vmem:[#allocation5 + $0x50] sm:$0xff] %vm1136, %v1097
          %1148 = vst.msk [vmem:[#allocation5 + $0x58] sm:$0xff] %vm1136, %v1099
          %1149 = vst.msk [vmem:[#allocation5 + $0x60] sm:$0xff] %vm1136, %v1101
          %1150 = vst.msk [vmem:[#allocation5 + $0x68] sm:$0xff] %vm1136, %v1103
          %1151 = vst.msk [vmem:[#allocation5 + $0x70] sm:$0xff] %vm1136, %v1105
          %1152 = vst.msk [vmem:[#allocation5 + $0x78] sm:$0xff] %vm1136, %v1107
          %1153 = vst.msk [vmem:[#allocation5 + $0x80] sm:$0xff] %vm1136, %v1109
          %1154 = vst.msk [vmem:[#allocation5 + $0x88] sm:$0xff] %vm1136, %v1111
          %1155 = vst.msk [vmem:[#allocation5 + $0x90] sm:$0xff] %vm1136, %v1113
          %1156 = vst.msk [vmem:[#allocation5 + $0x98] sm:$0xff] %vm1136, %v1115
          %s1157 = sadd.s32 %s498, 4294967255
          %s1158 = scalar_lea.vmem %s383, %s1157
          %v1159 = vld [vmem:[%s1158] sm:$0xff]
          %v1160 = vld [vmem:[%s1158 + $0x8] sm:$0xff]
          %v1161 = vld [vmem:[%s1158 + $0x10] sm:$0xff]
          %v1162 = vld [vmem:[%s1158 + $0x18] sm:$0xff]
          %v1163 = vld [vmem:[%s1158 + $0x20] sm:$0xff]
          %v1164 = vld [vmem:[%s1158 + $0x28] sm:$0xff]
          %v1165 = vld [vmem:[%s1158 + $0x30] sm:$0xff]
          %v1166 = vld [vmem:[%s1158 + $0x38] sm:$0xff]
          %v1167 = vld [vmem:[%s1158 + $0x40] sm:$0xff]
          %v1168 = vld [vmem:[%s1158 + $0x48] sm:$0xff]
          %v1169 = vld [vmem:[%s1158 + $0x50] sm:$0xff]
          %v1170 = vld [vmem:[%s1158 + $0x58] sm:$0xff]
          %v1171 = vld [vmem:[%s1158 + $0x60] sm:$0xff]
          %v1172 = vld [vmem:[%s1158 + $0x68] sm:$0xff]
          %v1173 = vld [vmem:[%s1158 + $0x70] sm:$0xff]
          %v1174 = vld [vmem:[%s1158 + $0x78] sm:$0xff]
          %v1175 = vld [vmem:[%s1158 + $0x80] sm:$0xff]
          %v1176 = vld [vmem:[%s1158 + $0x88] sm:$0xff]
          %v1177 = vld [vmem:[%s1158 + $0x90] sm:$0xff]
          %v1178 = vld [vmem:[%s1158 + $0x98] sm:$0xff]
          %1199 = vrot.lane.b32.xlu0 %v1159, 24
          %v1200 = vpop.permute.xlu0 %1199
          %1201 = vrot.lane.b32.xlu0 %v1160, 24
          %v1202 = vpop.permute.xlu0 %1201
          %1203 = vrot.lane.b32.xlu0 %v1161, 24
          %v1204 = vpop.permute.xlu0 %1203
          %1205 = vrot.lane.b32.xlu0 %v1162, 24
          %v1206 = vpop.permute.xlu0 %1205
          %1207 = vrot.lane.b32.xlu0 %v1163, 24
          %v1208 = vpop.permute.xlu0 %1207
          %1209 = vrot.lane.b32.xlu0 %v1164, 24
          %v1210 = vpop.permute.xlu0 %1209
          %1211 = vrot.lane.b32.xlu0 %v1165, 24
          %v1212 = vpop.permute.xlu0 %1211
          %1213 = vrot.lane.b32.xlu0 %v1166, 24
          %v1214 = vpop.permute.xlu0 %1213
          %1215 = vrot.lane.b32.xlu0 %v1167, 24
          %v1216 = vpop.permute.xlu0 %1215
          %1217 = vrot.lane.b32.xlu0 %v1168, 24
          %v1218 = vpop.permute.xlu0 %1217
          %1219 = vrot.lane.b32.xlu0 %v1169, 24
          %v1220 = vpop.permute.xlu0 %1219
          %1221 = vrot.lane.b32.xlu0 %v1170, 24
          %v1222 = vpop.permute.xlu0 %1221
          %1223 = vrot.lane.b32.xlu0 %v1171, 24
          %v1224 = vpop.permute.xlu0 %1223
          %1225 = vrot.lane.b32.xlu0 %v1172, 24
          %v1226 = vpop.permute.xlu0 %1225
          %1227 = vrot.lane.b32.xlu0 %v1173, 24
          %v1228 = vpop.permute.xlu0 %1227
          %1229 = vrot.lane.b32.xlu0 %v1174, 24
          %v1230 = vpop.permute.xlu0 %1229
          %1231 = vrot.lane.b32.xlu0 %v1175, 24
          %v1232 = vpop.permute.xlu0 %1231
          %1233 = vrot.lane.b32.xlu0 %v1176, 24
          %v1234 = vpop.permute.xlu0 %1233
          %1235 = vrot.lane.b32.xlu0 %v1177, 24
          %v1236 = vpop.permute.xlu0 %1235
          %1237 = vrot.lane.b32.xlu0 %v1178, 24
          %v1238 = vpop.permute.xlu0 %1237
          %vm1259 = vcmask 228544
          %1260 = vst.msk [vmem:[#allocation5] sm:$0xff] %vm1259, %v1200
          %1261 = vst.msk [vmem:[#allocation5 + $0x8] sm:$0xff] %vm1259, %v1202
          %1262 = vst.msk [vmem:[#allocation5 + $0x10] sm:$0xff] %vm1259, %v1204
          %1263 = vst.msk [vmem:[#allocation5 + $0x18] sm:$0xff] %vm1259, %v1206
          %1264 = vst.msk [vmem:[#allocation5 + $0x20] sm:$0xff] %vm1259, %v1208
          %1265 = vst.msk [vmem:[#allocation5 + $0x28] sm:$0xff] %vm1259, %v1210
          %1266 = vst.msk [vmem:[#allocation5 + $0x30] sm:$0xff] %vm1259, %v1212
          %1267 = vst.msk [vmem:[#allocation5 + $0x38] sm:$0xff] %vm1259, %v1214
          %1268 = vst.msk [vmem:[#allocation5 + $0x40] sm:$0xff] %vm1259, %v1216
          %1269 = vst.msk [vmem:[#allocation5 + $0x48] sm:$0xff] %vm1259, %v1218
          %1270 = vst.msk [vmem:[#allocation5 + $0x50] sm:$0xff] %vm1259, %v1220
          %1271 = vst.msk [vmem:[#allocation5 + $0x58] sm:$0xff] %vm1259, %v1222
          %1272 = vst.msk [vmem:[#allocation5 + $0x60] sm:$0xff] %vm1259, %v1224
          %1273 = vst.msk [vmem:[#allocation5 + $0x68] sm:$0xff] %vm1259, %v1226
          %1274 = vst.msk [vmem:[#allocation5 + $0x70] sm:$0xff] %vm1259, %v1228
          %1275 = vst.msk [vmem:[#allocation5 + $0x78] sm:$0xff] %vm1259, %v1230
          %1276 = vst.msk [vmem:[#allocation5 + $0x80] sm:$0xff] %vm1259, %v1232
          %1277 = vst.msk [vmem:[#allocation5 + $0x88] sm:$0xff] %vm1259, %v1234
          %1278 = vst.msk [vmem:[#allocation5 + $0x90] sm:$0xff] %vm1259, %v1236
          %1279 = vst.msk [vmem:[#allocation5 + $0x98] sm:$0xff] %vm1259, %v1238
          %s1280 = sadd.s32 %s498, 4294967256
          %s1281 = scalar_lea.vmem %s383, %s1280
          %v1282 = vld [vmem:[%s1281] sm:$0xff]
          %v1283 = vld [vmem:[%s1281 + $0x8] sm:$0xff]
          %v1284 = vld [vmem:[%s1281 + $0x10] sm:$0xff]
          %v1285 = vld [vmem:[%s1281 + $0x18] sm:$0xff]
          %v1286 = vld [vmem:[%s1281 + $0x20] sm:$0xff]
          %v1287 = vld [vmem:[%s1281 + $0x28] sm:$0xff]
          %v1288 = vld [vmem:[%s1281 + $0x30] sm:$0xff]
          %v1289 = vld [vmem:[%s1281 + $0x38] sm:$0xff]
          %v1290 = vld [vmem:[%s1281 + $0x40] sm:$0xff]
          %v1291 = vld [vmem:[%s1281 + $0x48] sm:$0xff]
          %v1292 = vld [vmem:[%s1281 + $0x50] sm:$0xff]
          %v1293 = vld [vmem:[%s1281 + $0x58] sm:$0xff]
          %v1294 = vld [vmem:[%s1281 + $0x60] sm:$0xff]
          %v1295 = vld [vmem:[%s1281 + $0x68] sm:$0xff]
          %v1296 = vld [vmem:[%s1281 + $0x70] sm:$0xff]
          %v1297 = vld [vmem:[%s1281 + $0x78] sm:$0xff]
          %v1298 = vld [vmem:[%s1281 + $0x80] sm:$0xff]
          %v1299 = vld [vmem:[%s1281 + $0x88] sm:$0xff]
          %v1300 = vld [vmem:[%s1281 + $0x90] sm:$0xff]
          %v1301 = vld [vmem:[%s1281 + $0x98] sm:$0xff]
          %1322 = vrot.lane.b32.xlu0 %v1282, 28
          %v1323 = vpop.permute.xlu0 %1322
          %1324 = vrot.lane.b32.xlu0 %v1283, 28
          %v1325 = vpop.permute.xlu0 %1324
          %1326 = vrot.lane.b32.xlu0 %v1284, 28
          %v1327 = vpop.permute.xlu0 %1326
          %1328 = vrot.lane.b32.xlu0 %v1285, 28
          %v1329 = vpop.permute.xlu0 %1328
          %1330 = vrot.lane.b32.xlu0 %v1286, 28
          %v1331 = vpop.permute.xlu0 %1330
          %1332 = vrot.lane.b32.xlu0 %v1287, 28
          %v1333 = vpop.permute.xlu0 %1332
          %1334 = vrot.lane.b32.xlu0 %v1288, 28
          %v1335 = vpop.permute.xlu0 %1334
          %1336 = vrot.lane.b32.xlu0 %v1289, 28
          %v1337 = vpop.permute.xlu0 %1336
          %1338 = vrot.lane.b32.xlu0 %v1290, 28
          %v1339 = vpop.permute.xlu0 %1338
          %1340 = vrot.lane.b32.xlu0 %v1291, 28
          %v1341 = vpop.permute.xlu0 %1340
          %1342 = vrot.lane.b32.xlu0 %v1292, 28
          %v1343 = vpop.permute.xlu0 %1342
          %1344 = vrot.lane.b32.xlu0 %v1293, 28
          %v1345 = vpop.permute.xlu0 %1344
          %1346 = vrot.lane.b32.xlu0 %v1294, 28
          %v1347 = vpop.permute.xlu0 %1346
          %1348 = vrot.lane.b32.xlu0 %v1295, 28
          %v1349 = vpop.permute.xlu0 %1348
          %1350 = vrot.lane.b32.xlu0 %v1296, 28
          %v1351 = vpop.permute.xlu0 %1350
          %1352 = vrot.lane.b32.xlu0 %v1297, 28
          %v1353 = vpop.permute.xlu0 %1352
          %1354 = vrot.lane.b32.xlu0 %v1298, 28
          %v1355 = vpop.permute.xlu0 %1354
          %1356 = vrot.lane.b32.xlu0 %v1299, 28
          %v1357 = vpop.permute.xlu0 %1356
          %1358 = vrot.lane.b32.xlu0 %v1300, 28
          %v1359 = vpop.permute.xlu0 %1358
          %1360 = vrot.lane.b32.xlu0 %v1301, 28
          %v1361 = vpop.permute.xlu0 %1360
          %vm1382 = vcmask 261344
          %1383 = vst.msk [vmem:[#allocation5] sm:$0xff] %vm1382, %v1323
          %1384 = vst.msk [vmem:[#allocation5 + $0x8] sm:$0xff] %vm1382, %v1325
          %1385 = vst.msk [vmem:[#allocation5 + $0x10] sm:$0xff] %vm1382, %v1327
          %1386 = vst.msk [vmem:[#allocation5 + $0x18] sm:$0xff] %vm1382, %v1329
          %1387 = vst.msk [vmem:[#allocation5 + $0x20] sm:$0xff] %vm1382, %v1331
          %1388 = vst.msk [vmem:[#allocation5 + $0x28] sm:$0xff] %vm1382, %v1333
          %1389 = vst.msk [vmem:[#allocation5 + $0x30] sm:$0xff] %vm1382, %v1335
          %1390 = vst.msk [vmem:[#allocation5 + $0x38] sm:$0xff] %vm1382, %v1337
          %1391 = vst.msk [vmem:[#allocation5 + $0x40] sm:$0xff] %vm1382, %v1339
          %1392 = vst.msk [vmem:[#allocation5 + $0x48] sm:$0xff] %vm1382, %v1341
          %1393 = vst.msk [vmem:[#allocation5 + $0x50] sm:$0xff] %vm1382, %v1343
          %1394 = vst.msk [vmem:[#allocation5 + $0x58] sm:$0xff] %vm1382, %v1345
          %1395 = vst.msk [vmem:[#allocation5 + $0x60] sm:$0xff] %vm1382, %v1347
          %1396 = vst.msk [vmem:[#allocation5 + $0x68] sm:$0xff] %vm1382, %v1349
          %1397 = vst.msk [vmem:[#allocation5 + $0x70] sm:$0xff] %vm1382, %v1351
          %1398 = vst.msk [vmem:[#allocation5 + $0x78] sm:$0xff] %vm1382, %v1353
          %1399 = vst.msk [vmem:[#allocation5 + $0x80] sm:$0xff] %vm1382, %v1355
          %1400 = vst.msk [vmem:[#allocation5 + $0x88] sm:$0xff] %vm1382, %v1357
          %1401 = vst.msk [vmem:[#allocation5 + $0x90] sm:$0xff] %vm1382, %v1359
          %1402 = vst.msk [vmem:[#allocation5 + $0x98] sm:$0xff] %vm1382, %v1361
          %s1403 = sadd.s32 %s498, 4294967257
          %s1404 = scalar_lea.vmem %s383, %s1403
          %v1405 = vld [vmem:[%s1404] sm:$0xff]
          %v1406 = vld [vmem:[%s1404 + $0x8] sm:$0xff]
          %v1407 = vld [vmem:[%s1404 + $0x10] sm:$0xff]
          %v1408 = vld [vmem:[%s1404 + $0x18] sm:$0xff]
          %v1409 = vld [vmem:[%s1404 + $0x20] sm:$0xff]
          %v1410 = vld [vmem:[%s1404 + $0x28] sm:$0xff]
          %v1411 = vld [vmem:[%s1404 + $0x30] sm:$0xff]
          %v1412 = vld [vmem:[%s1404 + $0x38] sm:$0xff]
          %v1413 = vld [vmem:[%s1404 + $0x40] sm:$0xff]
          %v1414 = vld [vmem:[%s1404 + $0x48] sm:$0xff]
          %v1415 = vld [vmem:[%s1404 + $0x50] sm:$0xff]
          %v1416 = vld [vmem:[%s1404 + $0x58] sm:$0xff]
          %v1417 = vld [vmem:[%s1404 + $0x60] sm:$0xff]
          %v1418 = vld [vmem:[%s1404 + $0x68] sm:$0xff]
          %v1419 = vld [vmem:[%s1404 + $0x70] sm:$0xff]
          %v1420 = vld [vmem:[%s1404 + $0x78] sm:$0xff]
          %v1421 = vld [vmem:[%s1404 + $0x80] sm:$0xff]
          %v1422 = vld [vmem:[%s1404 + $0x88] sm:$0xff]
          %v1423 = vld [vmem:[%s1404 + $0x90] sm:$0xff]
          %v1424 = vld [vmem:[%s1404 + $0x98] sm:$0xff]
          %1445 = vrot.lane.b32.xlu0 %v1405, 32
          %v1446 = vpop.permute.xlu0 %1445
          %1447 = vrot.lane.b32.xlu0 %v1406, 32
          %v1448 = vpop.permute.xlu0 %1447
          %1449 = vrot.lane.b32.xlu0 %v1407, 32
          %v1450 = vpop.permute.xlu0 %1449
          %1451 = vrot.lane.b32.xlu0 %v1408, 32
          %v1452 = vpop.permute.xlu0 %1451
          %1453 = vrot.lane.b32.xlu0 %v1409, 32
          %v1454 = vpop.permute.xlu0 %1453
          %1455 = vrot.lane.b32.xlu0 %v1410, 32
          %v1456 = vpop.permute.xlu0 %1455
          %1457 = vrot.lane.b32.xlu0 %v1411, 32
          %v1458 = vpop.permute.xlu0 %1457
          %1459 = vrot.lane.b32.xlu0 %v1412, 32
          %v1460 = vpop.permute.xlu0 %1459
          %1461 = vrot.lane.b32.xlu0 %v1413, 32
          %v1462 = vpop.permute.xlu0 %1461
          %1463 = vrot.lane.b32.xlu0 %v1414, 32
          %v1464 = vpop.permute.xlu0 %1463
          %1465 = vrot.lane.b32.xlu0 %v1415, 32
          %v1466 = vpop.permute.xlu0 %1465
          %1467 = vrot.lane.b32.xlu0 %v1416, 32
          %v1468 = vpop.permute.xlu0 %1467
          %1469 = vrot.lane.b32.xlu0 %v1417, 32
          %v1470 = vpop.permute.xlu0 %1469
          %1471 = vrot.lane.b32.xlu0 %v1418, 32
          %v1472 = vpop.permute.xlu0 %1471
          %1473 = vrot.lane.b32.xlu0 %v1419, 32
          %v1474 = vpop.permute.xlu0 %1473
          %1475 = vrot.lane.b32.xlu0 %v1420, 32
          %v1476 = vpop.permute.xlu0 %1475
          %1477 = vrot.lane.b32.xlu0 %v1421, 32
          %v1478 = vpop.permute.xlu0 %1477
          %1479 = vrot.lane.b32.xlu0 %v1422, 32
          %v1480 = vpop.permute.xlu0 %1479
          %1481 = vrot.lane.b32.xlu0 %v1423, 32
          %v1482 = vpop.permute.xlu0 %1481
          %1483 = vrot.lane.b32.xlu0 %v1424, 32
          %v1484 = vpop.permute.xlu0 %1483
          %vm1505 = vcmask 294144
          %1506 = vst.msk [vmem:[#allocation5] sm:$0xff] %vm1505, %v1446
          %1507 = vst.msk [vmem:[#allocation5 + $0x8] sm:$0xff] %vm1505, %v1448
          %1508 = vst.msk [vmem:[#allocation5 + $0x10] sm:$0xff] %vm1505, %v1450
          %1509 = vst.msk [vmem:[#allocation5 + $0x18] sm:$0xff] %vm1505, %v1452
          %1510 = vst.msk [vmem:[#allocation5 + $0x20] sm:$0xff] %vm1505, %v1454
          %1511 = vst.msk [vmem:[#allocation5 + $0x28] sm:$0xff] %vm1505, %v1456
          %1512 = vst.msk [vmem:[#allocation5 + $0x30] sm:$0xff] %vm1505, %v1458
          %1513 = vst.msk [vmem:[#allocation5 + $0x38] sm:$0xff] %vm1505, %v1460
          %1514 = vst.msk [vmem:[#allocation5 + $0x40] sm:$0xff] %vm1505, %v1462
          %1515 = vst.msk [vmem:[#allocation5 + $0x48] sm:$0xff] %vm1505, %v1464
          %1516 = vst.msk [vmem:[#allocation5 + $0x50] sm:$0xff] %vm1505, %v1466
          %1517 = vst.msk [vmem:[#allocation5 + $0x58] sm:$0xff] %vm1505, %v1468
          %1518 = vst.msk [vmem:[#allocation5 + $0x60] sm:$0xff] %vm1505, %v1470
          %1519 = vst.msk [vmem:[#allocation5 + $0x68] sm:$0xff] %vm1505, %v1472
          %1520 = vst.msk [vmem:[#allocation5 + $0x70] sm:$0xff] %vm1505, %v1474
          %1521 = vst.msk [vmem:[#allocation5 + $0x78] sm:$0xff] %vm1505, %v1476
          %1522 = vst.msk [vmem:[#allocation5 + $0x80] sm:$0xff] %vm1505, %v1478
          %1523 = vst.msk [vmem:[#allocation5 + $0x88] sm:$0xff] %vm1505, %v1480
          %1524 = vst.msk [vmem:[#allocation5 + $0x90] sm:$0xff] %vm1505, %v1482
          %1525 = vst.msk [vmem:[#allocation5 + $0x98] sm:$0xff] %vm1505, %v1484
          %s1526 = sadd.s32 %s498, 4294967258
          %s1527 = scalar_lea.vmem %s383, %s1526
          %v1528 = vld [vmem:[%s1527] sm:$0xff]
          %v1529 = vld [vmem:[%s1527 + $0x8] sm:$0xff]
          %v1530 = vld [vmem:[%s1527 + $0x10] sm:$0xff]
          %v1531 = vld [vmem:[%s1527 + $0x18] sm:$0xff]
          %v1532 = vld [vmem:[%s1527 + $0x20] sm:$0xff]
          %v1533 = vld [vmem:[%s1527 + $0x28] sm:$0xff]
          %v1534 = vld [vmem:[%s1527 + $0x30] sm:$0xff]
          %v1535 = vld [vmem:[%s1527 + $0x38] sm:$0xff]
          %v1536 = vld [vmem:[%s1527 + $0x40] sm:$0xff]
          %v1537 = vld [vmem:[%s1527 + $0x48] sm:$0xff]
          %v1538 = vld [vmem:[%s1527 + $0x50] sm:$0xff]
          %v1539 = vld [vmem:[%s1527 + $0x58] sm:$0xff]
          %v1540 = vld [vmem:[%s1527 + $0x60] sm:$0xff]
          %v1541 = vld [vmem:[%s1527 + $0x68] sm:$0xff]
          %v1542 = vld [vmem:[%s1527 + $0x70] sm:$0xff]
          %v1543 = vld [vmem:[%s1527 + $0x78] sm:$0xff]
          %v1544 = vld [vmem:[%s1527 + $0x80] sm:$0xff]
          %v1545 = vld [vmem:[%s1527 + $0x88] sm:$0xff]
          %v1546 = vld [vmem:[%s1527 + $0x90] sm:$0xff]
          %v1547 = vld [vmem:[%s1527 + $0x98] sm:$0xff]
          %1568 = vrot.lane.b32.xlu0 %v1528, 36
          %v1569 = vpop.permute.xlu0 %1568
          %1570 = vrot.lane.b32.xlu0 %v1529, 36
          %v1571 = vpop.permute.xlu0 %1570
          %1572 = vrot.lane.b32.xlu0 %v1530, 36
          %v1573 = vpop.permute.xlu0 %1572
          %1574 = vrot.lane.b32.xlu0 %v1531, 36
          %v1575 = vpop.permute.xlu0 %1574
          %1576 = vrot.lane.b32.xlu0 %v1532, 36
          %v1577 = vpop.permute.xlu0 %1576
          %1578 = vrot.lane.b32.xlu0 %v1533, 36
          %v1579 = vpop.permute.xlu0 %1578
          %1580 = vrot.lane.b32.xlu0 %v1534, 36
          %v1581 = vpop.permute.xlu0 %1580
          %1582 = vrot.lane.b32.xlu0 %v1535, 36
          %v1583 = vpop.permute.xlu0 %1582
          %1584 = vrot.lane.b32.xlu0 %v1536, 36
          %v1585 = vpop.permute.xlu0 %1584
          %1586 = vrot.lane.b32.xlu0 %v1537, 36
          %v1587 = vpop.permute.xlu0 %1586
          %1588 = vrot.lane.b32.xlu0 %v1538, 36
          %v1589 = vpop.permute.xlu0 %1588
          %1590 = vrot.lane.b32.xlu0 %v1539, 36
          %v1591 = vpop.permute.xlu0 %1590
          %1592 = vrot.lane.b32.xlu0 %v1540, 36
          %v1593 = vpop.permute.xlu0 %1592
          %1594 = vrot.lane.b32.xlu0 %v1541, 36
          %v1595 = vpop.permute.xlu0 %1594
          %1596 = vrot.lane.b32.xlu0 %v1542, 36
          %v1597 = vpop.permute.xlu0 %1596
          %1598 = vrot.lane.b32.xlu0 %v1543, 36
          %v1599 = vpop.permute.xlu0 %1598
          %1600 = vrot.lane.b32.xlu0 %v1544, 36
          %v1601 = vpop.permute.xlu0 %1600
          %1602 = vrot.lane.b32.xlu0 %v1545, 36
          %v1603 = vpop.permute.xlu0 %1602
          %1604 = vrot.lane.b32.xlu0 %v1546, 36
          %v1605 = vpop.permute.xlu0 %1604
          %1606 = vrot.lane.b32.xlu0 %v1547, 36
          %v1607 = vpop.permute.xlu0 %1606
          %vm1628 = vcmask 326944
          %1629 = vst.msk [vmem:[#allocation5] sm:$0xff] %vm1628, %v1569
          %1630 = vst.msk [vmem:[#allocation5 + $0x8] sm:$0xff] %vm1628, %v1571
          %1631 = vst.msk [vmem:[#allocation5 + $0x10] sm:$0xff] %vm1628, %v1573
          %1632 = vst.msk [vmem:[#allocation5 + $0x18] sm:$0xff] %vm1628, %v1575
          %1633 = vst.msk [vmem:[#allocation5 + $0x20] sm:$0xff] %vm1628, %v1577
          %1634 = vst.msk [vmem:[#allocation5 + $0x28] sm:$0xff] %vm1628, %v1579
          %1635 = vst.msk [vmem:[#allocation5 + $0x30] sm:$0xff] %vm1628, %v1581
          %1636 = vst.msk [vmem:[#allocation5 + $0x38] sm:$0xff] %vm1628, %v1583
          %1637 = vst.msk [vmem:[#allocation5 + $0x40] sm:$0xff] %vm1628, %v1585
          %1638 = vst.msk [vmem:[#allocation5 + $0x48] sm:$0xff] %vm1628, %v1587
          %1639 = vst.msk [vmem:[#allocation5 + $0x50] sm:$0xff] %vm1628, %v1589
          %1640 = vst.msk [vmem:[#allocation5 + $0x58] sm:$0xff] %vm1628, %v1591
          %1641 = vst.msk [vmem:[#allocation5 + $0x60] sm:$0xff] %vm1628, %v1593
          %1642 = vst.msk [vmem:[#allocation5 + $0x68] sm:$0xff] %vm1628, %v1595
          %1643 = vst.msk [vmem:[#allocation5 + $0x70] sm:$0xff] %vm1628, %v1597
          %1644 = vst.msk [vmem:[#allocation5 + $0x78] sm:$0xff] %vm1628, %v1599
          %1645 = vst.msk [vmem:[#allocation5 + $0x80] sm:$0xff] %vm1628, %v1601
          %1646 = vst.msk [vmem:[#allocation5 + $0x88] sm:$0xff] %vm1628, %v1603
          %1647 = vst.msk [vmem:[#allocation5 + $0x90] sm:$0xff] %vm1628, %v1605
          %1648 = vst.msk [vmem:[#allocation5 + $0x98] sm:$0xff] %vm1628, %v1607
          %s1649 = sadd.s32 %s498, 4294967294
          %s1650 = scalar_lea.vmem %s383, %s1649
          %v1651 = vld [vmem:[%s1650] sm:$0xff]
          %v1652 = vld [vmem:[%s1650 + $0x8] sm:$0xff]
          %v1653 = vld [vmem:[%s1650 + $0x10] sm:$0xff]
          %v1654 = vld [vmem:[%s1650 + $0x18] sm:$0xff]
          %v1655 = vld [vmem:[%s1650 + $0x20] sm:$0xff]
          %v1656 = vld [vmem:[%s1650 + $0x28] sm:$0xff]
          %v1657 = vld [vmem:[%s1650 + $0x30] sm:$0xff]
          %v1658 = vld [vmem:[%s1650 + $0x38] sm:$0xff]
          %v1659 = vld [vmem:[%s1650 + $0x40] sm:$0xff]
          %v1660 = vld [vmem:[%s1650 + $0x48] sm:$0xff]
          %v1661 = vld [vmem:[%s1650 + $0x50] sm:$0xff]
          %v1662 = vld [vmem:[%s1650 + $0x58] sm:$0xff]
          %v1663 = vld [vmem:[%s1650 + $0x60] sm:$0xff]
          %v1664 = vld [vmem:[%s1650 + $0x68] sm:$0xff]
          %v1665 = vld [vmem:[%s1650 + $0x70] sm:$0xff]
          %v1666 = vld [vmem:[%s1650 + $0x78] sm:$0xff]
          %v1667 = vld [vmem:[%s1650 + $0x80] sm:$0xff]
          %v1668 = vld [vmem:[%s1650 + $0x88] sm:$0xff]
          %v1669 = vld [vmem:[%s1650 + $0x90] sm:$0xff]
          %v1670 = vld [vmem:[%s1650 + $0x98] sm:$0xff]
          %1691 = vrot.lane.b32.xlu0 %v1651, 40
          %v1692 = vpop.permute.xlu0 %1691
          %1693 = vrot.lane.b32.xlu0 %v1652, 40
          %v1694 = vpop.permute.xlu0 %1693
          %1695 = vrot.lane.b32.xlu0 %v1653, 40
          %v1696 = vpop.permute.xlu0 %1695
          %1697 = vrot.lane.b32.xlu0 %v1654, 40
          %v1698 = vpop.permute.xlu0 %1697
          %1699 = vrot.lane.b32.xlu0 %v1655, 40
          %v1700 = vpop.permute.xlu0 %1699
          %1701 = vrot.lane.b32.xlu0 %v1656, 40
          %v1702 = vpop.permute.xlu0 %1701
          %1703 = vrot.lane.b32.xlu0 %v1657, 40
          %v1704 = vpop.permute.xlu0 %1703
          %1705 = vrot.lane.b32.xlu0 %v1658, 40
          %v1706 = vpop.permute.xlu0 %1705
          %1707 = vrot.lane.b32.xlu0 %v1659, 40
          %v1708 = vpop.permute.xlu0 %1707
          %1709 = vrot.lane.b32.xlu0 %v1660, 40
          %v1710 = vpop.permute.xlu0 %1709
          %1711 = vrot.lane.b32.xlu0 %v1661, 40
          %v1712 = vpop.permute.xlu0 %1711
          %1713 = vrot.lane.b32.xlu0 %v1662, 40
          %v1714 = vpop.permute.xlu0 %1713
          %1715 = vrot.lane.b32.xlu0 %v1663, 40
          %v1716 = vpop.permute.xlu0 %1715
          %1717 = vrot.lane.b32.xlu0 %v1664, 40
          %v1718 = vpop.permute.xlu0 %1717
          %1719 = vrot.lane.b32.xlu0 %v1665, 40
          %v1720 = vpop.permute.xlu0 %1719
          %1721 = vrot.lane.b32.xlu0 %v1666, 40
          %v1722 = vpop.permute.xlu0 %1721
          %1723 = vrot.lane.b32.xlu0 %v1667, 40
          %v1724 = vpop.permute.xlu0 %1723
          %1725 = vrot.lane.b32.xlu0 %v1668, 40
          %v1726 = vpop.permute.xlu0 %1725
          %1727 = vrot.lane.b32.xlu0 %v1669, 40
          %v1728 = vpop.permute.xlu0 %1727
          %1729 = vrot.lane.b32.xlu0 %v1670, 40
          %v1730 = vpop.permute.xlu0 %1729
          %vm1751 = vcmask 359744
          %1752 = vst.msk [vmem:[#allocation5] sm:$0xff] %vm1751, %v1692
          %1753 = vst.msk [vmem:[#allocation5 + $0x8] sm:$0xff] %vm1751, %v1694
          %1754 = vst.msk [vmem:[#allocation5 + $0x10] sm:$0xff] %vm1751, %v1696
          %1755 = vst.msk [vmem:[#allocation5 + $0x18] sm:$0xff] %vm1751, %v1698
          %1756 = vst.msk [vmem:[#allocation5 + $0x20] sm:$0xff] %vm1751, %v1700
          %1757 = vst.msk [vmem:[#allocation5 + $0x28] sm:$0xff] %vm1751, %v1702
          %1758 = vst.msk [vmem:[#allocation5 + $0x30] sm:$0xff] %vm1751, %v1704
          %1759 = vst.msk [vmem:[#allocation5 + $0x38] sm:$0xff] %vm1751, %v1706
          %1760 = vst.msk [vmem:[#allocation5 + $0x40] sm:$0xff] %vm1751, %v1708
          %1761 = vst.msk [vmem:[#allocation5 + $0x48] sm:$0xff] %vm1751, %v1710
          %1762 = vst.msk [vmem:[#allocation5 + $0x50] sm:$0xff] %vm1751, %v1712
          %1763 = vst.msk [vmem:[#allocation5 + $0x58] sm:$0xff] %vm1751, %v1714
          %1764 = vst.msk [vmem:[#allocation5 + $0x60] sm:$0xff] %vm1751, %v1716
          %1765 = vst.msk [vmem:[#allocation5 + $0x68] sm:$0xff] %vm1751, %v1718
          %1766 = vst.msk [vmem:[#allocation5 + $0x70] sm:$0xff] %vm1751, %v1720
          %1767 = vst.msk [vmem:[#allocation5 + $0x78] sm:$0xff] %vm1751, %v1722
          %1768 = vst.msk [vmem:[#allocation5 + $0x80] sm:$0xff] %vm1751, %v1724
          %1769 = vst.msk [vmem:[#allocation5 + $0x88] sm:$0xff] %vm1751, %v1726
          %1770 = vst.msk [vmem:[#allocation5 + $0x90] sm:$0xff] %vm1751, %v1728
          %1771 = vst.msk [vmem:[#allocation5 + $0x98] sm:$0xff] %vm1751, %v1730
          %s1772 = sadd.s32 %s498, 4294967295
          %s1773 = scalar_lea.vmem %s383, %s1772
          %v1774 = vld [vmem:[%s1773] sm:$0xff]
          %v1775 = vld [vmem:[%s1773 + $0x8] sm:$0xff]
          %v1776 = vld [vmem:[%s1773 + $0x10] sm:$0xff]
          %v1777 = vld [vmem:[%s1773 + $0x18] sm:$0xff]
          %v1778 = vld [vmem:[%s1773 + $0x20] sm:$0xff]
          %v1779 = vld [vmem:[%s1773 + $0x28] sm:$0xff]
          %v1780 = vld [vmem:[%s1773 + $0x30] sm:$0xff]
          %v1781 = vld [vmem:[%s1773 + $0x38] sm:$0xff]
          %v1782 = vld [vmem:[%s1773 + $0x40] sm:$0xff]
          %v1783 = vld [vmem:[%s1773 + $0x48] sm:$0xff]
          %v1784 = vld [vmem:[%s1773 + $0x50] sm:$0xff]
          %v1785 = vld [vmem:[%s1773 + $0x58] sm:$0xff]
          %v1786 = vld [vmem:[%s1773 + $0x60] sm:$0xff]
          %v1787 = vld [vmem:[%s1773 + $0x68] sm:$0xff]
          %v1788 = vld [vmem:[%s1773 + $0x70] sm:$0xff]
          %v1789 = vld [vmem:[%s1773 + $0x78] sm:$0xff]
          %v1790 = vld [vmem:[%s1773 + $0x80] sm:$0xff]
          %v1791 = vld [vmem:[%s1773 + $0x88] sm:$0xff]
          %v1792 = vld [vmem:[%s1773 + $0x90] sm:$0xff]
          %v1793 = vld [vmem:[%s1773 + $0x98] sm:$0xff]
          %1814 = vrot.lane.b32.xlu0 %v1774, 44
          %v1815 = vpop.permute.xlu0 %1814
          %1816 = vrot.lane.b32.xlu0 %v1775, 44
          %v1817 = vpop.permute.xlu0 %1816
          %1818 = vrot.lane.b32.xlu0 %v1776, 44
          %v1819 = vpop.permute.xlu0 %1818
          %1820 = vrot.lane.b32.xlu0 %v1777, 44
          %v1821 = vpop.permute.xlu0 %1820
          %1822 = vrot.lane.b32.xlu0 %v1778, 44
          %v1823 = vpop.permute.xlu0 %1822
          %1824 = vrot.lane.b32.xlu0 %v1779, 44
          %v1825 = vpop.permute.xlu0 %1824
          %1826 = vrot.lane.b32.xlu0 %v1780, 44
          %v1827 = vpop.permute.xlu0 %1826
          %1828 = vrot.lane.b32.xlu0 %v1781, 44
          %v1829 = vpop.permute.xlu0 %1828
          %1830 = vrot.lane.b32.xlu0 %v1782, 44
          %v1831 = vpop.permute.xlu0 %1830
          %1832 = vrot.lane.b32.xlu0 %v1783, 44
          %v1833 = vpop.permute.xlu0 %1832
          %1834 = vrot.lane.b32.xlu0 %v1784, 44
          %v1835 = vpop.permute.xlu0 %1834
          %1836 = vrot.lane.b32.xlu0 %v1785, 44
          %v1837 = vpop.permute.xlu0 %1836
          %1838 = vrot.lane.b32.xlu0 %v1786, 44
          %v1839 = vpop.permute.xlu0 %1838
          %1840 = vrot.lane.b32.xlu0 %v1787, 44
          %v1841 = vpop.permute.xlu0 %1840
          %1842 = vrot.lane.b32.xlu0 %v1788, 44
          %v1843 = vpop.permute.xlu0 %1842
          %1844 = vrot.lane.b32.xlu0 %v1789, 44
          %v1845 = vpop.permute.xlu0 %1844
          %1846 = vrot.lane.b32.xlu0 %v1790, 44
          %v1847 = vpop.permute.xlu0 %1846
          %1848 = vrot.lane.b32.xlu0 %v1791, 44
          %v1849 = vpop.permute.xlu0 %1848
          %1850 = vrot.lane.b32.xlu0 %v1792, 44
          %v1851 = vpop.permute.xlu0 %1850
          %1852 = vrot.lane.b32.xlu0 %v1793, 44
          %v1853 = vpop.permute.xlu0 %1852
          %vm1874 = vcmask 392544
          %1875 = vst.msk [vmem:[#allocation5] sm:$0xff] %vm1874, %v1815
          %1876 = vst.msk [vmem:[#allocation5 + $0x8] sm:$0xff] %vm1874, %v1817
          %1877 = vst.msk [vmem:[#allocation5 + $0x10] sm:$0xff] %vm1874, %v1819
          %1878 = vst.msk [vmem:[#allocation5 + $0x18] sm:$0xff] %vm1874, %v1821
          %1879 = vst.msk [vmem:[#allocation5 + $0x20] sm:$0xff] %vm1874, %v1823
          %1880 = vst.msk [vmem:[#allocation5 + $0x28] sm:$0xff] %vm1874, %v1825
          %1881 = vst.msk [vmem:[#allocation5 + $0x30] sm:$0xff] %vm1874, %v1827
          %1882 = vst.msk [vmem:[#allocation5 + $0x38] sm:$0xff] %vm1874, %v1829
          %1883 = vst.msk [vmem:[#allocation5 + $0x40] sm:$0xff] %vm1874, %v1831
          %1884 = vst.msk [vmem:[#allocation5 + $0x48] sm:$0xff] %vm1874, %v1833
          %1885 = vst.msk [vmem:[#allocation5 + $0x50] sm:$0xff] %vm1874, %v1835
          %1886 = vst.msk [vmem:[#allocation5 + $0x58] sm:$0xff] %vm1874, %v1837
          %1887 = vst.msk [vmem:[#allocation5 + $0x60] sm:$0xff] %vm1874, %v1839
          %1888 = vst.msk [vmem:[#allocation5 + $0x68] sm:$0xff] %vm1874, %v1841
          %1889 = vst.msk [vmem:[#allocation5 + $0x70] sm:$0xff] %vm1874, %v1843
          %1890 = vst.msk [vmem:[#allocation5 + $0x78] sm:$0xff] %vm1874, %v1845
          %1891 = vst.msk [vmem:[#allocation5 + $0x80] sm:$0xff] %vm1874, %v1847
          %1892 = vst.msk [vmem:[#allocation5 + $0x88] sm:$0xff] %vm1874, %v1849
          %1893 = vst.msk [vmem:[#allocation5 + $0x90] sm:$0xff] %vm1874, %v1851
          %1894 = vst.msk [vmem:[#allocation5 + $0x98] sm:$0xff] %vm1874, %v1853
          %s1895 = scalar_lea.vmem %s383, %s498
          %v1896 = vld [vmem:[%s1895] sm:$0xff]
          %v1897 = vld [vmem:[%s1895 + $0x8] sm:$0xff]
          %v1898 = vld [vmem:[%s1895 + $0x10] sm:$0xff]
          %v1899 = vld [vmem:[%s1895 + $0x18] sm:$0xff]
          %v1900 = vld [vmem:[%s1895 + $0x20] sm:$0xff]
          %v1901 = vld [vmem:[%s1895 + $0x28] sm:$0xff]
          %v1902 = vld [vmem:[%s1895 + $0x30] sm:$0xff]
          %v1903 = vld [vmem:[%s1895 + $0x38] sm:$0xff]
          %v1904 = vld [vmem:[%s1895 + $0x40] sm:$0xff]
          %v1905 = vld [vmem:[%s1895 + $0x48] sm:$0xff]
          %v1906 = vld [vmem:[%s1895 + $0x50] sm:$0xff]
          %v1907 = vld [vmem:[%s1895 + $0x58] sm:$0xff]
          %v1908 = vld [vmem:[%s1895 + $0x60] sm:$0xff]
          %v1909 = vld [vmem:[%s1895 + $0x68] sm:$0xff]
          %v1910 = vld [vmem:[%s1895 + $0x70] sm:$0xff]
          %v1911 = vld [vmem:[%s1895 + $0x78] sm:$0xff]
          %v1912 = vld [vmem:[%s1895 + $0x80] sm:$0xff]
          %v1913 = vld [vmem:[%s1895 + $0x88] sm:$0xff]
          %v1914 = vld [vmem:[%s1895 + $0x90] sm:$0xff]
          %v1915 = vld [vmem:[%s1895 + $0x98] sm:$0xff]
          %1936 = vrot.lane.b32.xlu0 %v1896, 48
          %v1937 = vpop.permute.xlu0 %1936
          %1938 = vrot.lane.b32.xlu0 %v1897, 48
          %v1939 = vpop.permute.xlu0 %1938
          %1940 = vrot.lane.b32.xlu0 %v1898, 48
          %v1941 = vpop.permute.xlu0 %1940
          %1942 = vrot.lane.b32.xlu0 %v1899, 48
          %v1943 = vpop.permute.xlu0 %1942
          %1944 = vrot.lane.b32.xlu0 %v1900, 48
          %v1945 = vpop.permute.xlu0 %1944
          %1946 = vrot.lane.b32.xlu0 %v1901, 48
          %v1947 = vpop.permute.xlu0 %1946
          %1948 = vrot.lane.b32.xlu0 %v1902, 48
          %v1949 = vpop.permute.xlu0 %1948
          %1950 = vrot.lane.b32.xlu0 %v1903, 48
          %v1951 = vpop.permute.xlu0 %1950
          %1952 = vrot.lane.b32.xlu0 %v1904, 48
          %v1953 = vpop.permute.xlu0 %1952
          %1954 = vrot.lane.b32.xlu0 %v1905, 48
          %v1955 = vpop.permute.xlu0 %1954
          %1956 = vrot.lane.b32.xlu0 %v1906, 48
          %v1957 = vpop.permute.xlu0 %1956
          %1958 = vrot.lane.b32.xlu0 %v1907, 48
          %v1959 = vpop.permute.xlu0 %1958
          %1960 = vrot.lane.b32.xlu0 %v1908, 48
          %v1961 = vpop.permute.xlu0 %1960
          %1962 = vrot.lane.b32.xlu0 %v1909, 48
          %v1963 = vpop.permute.xlu0 %1962
          %1964 = vrot.lane.b32.xlu0 %v1910, 48
          %v1965 = vpop.permute.xlu0 %1964
          %1966 = vrot.lane.b32.xlu0 %v1911, 48
          %v1967 = vpop.permute.xlu0 %1966
          %1968 = vrot.lane.b32.xlu0 %v1912, 48
          %v1969 = vpop.permute.xlu0 %1968
          %1970 = vrot.lane.b32.xlu0 %v1913, 48
          %v1971 = vpop.permute.xlu0 %1970
          %1972 = vrot.lane.b32.xlu0 %v1914, 48
          %v1973 = vpop.permute.xlu0 %1972
          %1974 = vrot.lane.b32.xlu0 %v1915, 48
          %v1975 = vpop.permute.xlu0 %1974
          %vm1996 = vcmask 425344
          %1997 = vst.msk [vmem:[#allocation5] sm:$0xff] %vm1996, %v1937
          %1998 = vst.msk [vmem:[#allocation5 + $0x8] sm:$0xff] %vm1996, %v1939
          %1999 = vst.msk [vmem:[#allocation5 + $0x10] sm:$0xff] %vm1996, %v1941
          %2000 = vst.msk [vmem:[#allocation5 + $0x18] sm:$0xff] %vm1996, %v1943
          %2001 = vst.msk [vmem:[#allocation5 + $0x20] sm:$0xff] %vm1996, %v1945
          %2002 = vst.msk [vmem:[#allocation5 + $0x28] sm:$0xff] %vm1996, %v1947
          %2003 = vst.msk [vmem:[#allocation5 + $0x30] sm:$0xff] %vm1996, %v1949
          %2004 = vst.msk [vmem:[#allocation5 + $0x38] sm:$0xff] %vm1996, %v1951
          %2005 = vst.msk [vmem:[#allocation5 + $0x40] sm:$0xff] %vm1996, %v1953
          %2006 = vst.msk [vmem:[#allocation5 + $0x48] sm:$0xff] %vm1996, %v1955
          %2007 = vst.msk [vmem:[#allocation5 + $0x50] sm:$0xff] %vm1996, %v1957
          %2008 = vst.msk [vmem:[#allocation5 + $0x58] sm:$0xff] %vm1996, %v1959
          %2009 = vst.msk [vmem:[#allocation5 + $0x60] sm:$0xff] %vm1996, %v1961
          %2010 = vst.msk [vmem:[#allocation5 + $0x68] sm:$0xff] %vm1996, %v1963
          %2011 = vst.msk [vmem:[#allocation5 + $0x70] sm:$0xff] %vm1996, %v1965
          %2012 = vst.msk [vmem:[#allocation5 + $0x78] sm:$0xff] %vm1996, %v1967
          %2013 = vst.msk [vmem:[#allocation5 + $0x80] sm:$0xff] %vm1996, %v1969
          %2014 = vst.msk [vmem:[#allocation5 + $0x88] sm:$0xff] %vm1996, %v1971
          %2015 = vst.msk [vmem:[#allocation5 + $0x90] sm:$0xff] %vm1996, %v1973
          %2016 = vst.msk [vmem:[#allocation5 + $0x98] sm:$0xff] %vm1996, %v1975
          %s2017 = sadd.s32 %s498, 1
          %s2018 = scalar_lea.vmem %s383, %s2017
          %v2019 = vld [vmem:[%s2018] sm:$0xff]
          %v2020 = vld [vmem:[%s2018 + $0x8] sm:$0xff]
          %v2021 = vld [vmem:[%s2018 + $0x10] sm:$0xff]
          %v2022 = vld [vmem:[%s2018 + $0x18] sm:$0xff]
          %v2023 = vld [vmem:[%s2018 + $0x20] sm:$0xff]
          %v2024 = vld [vmem:[%s2018 + $0x28] sm:$0xff]
          %v2025 = vld [vmem:[%s2018 + $0x30] sm:$0xff]
          %v2026 = vld [vmem:[%s2018 + $0x38] sm:$0xff]
          %v2027 = vld [vmem:[%s2018 + $0x40] sm:$0xff]
          %v2028 = vld [vmem:[%s2018 + $0x48] sm:$0xff]
          %v2029 = vld [vmem:[%s2018 + $0x50] sm:$0xff]
          %v2030 = vld [vmem:[%s2018 + $0x58] sm:$0xff]
          %v2031 = vld [vmem:[%s2018 + $0x60] sm:$0xff]
          %v2032 = vld [vmem:[%s2018 + $0x68] sm:$0xff]
          %v2033 = vld [vmem:[%s2018 + $0x70] sm:$0xff]
          %v2034 = vld [vmem:[%s2018 + $0x78] sm:$0xff]
          %v2035 = vld [vmem:[%s2018 + $0x80] sm:$0xff]
          %v2036 = vld [vmem:[%s2018 + $0x88] sm:$0xff]
          %v2037 = vld [vmem:[%s2018 + $0x90] sm:$0xff]
          %v2038 = vld [vmem:[%s2018 + $0x98] sm:$0xff]
          %2059 = vrot.lane.b32.xlu0 %v2019, 52
          %v2060 = vpop.permute.xlu0 %2059
          %2061 = vrot.lane.b32.xlu0 %v2020, 52
          %v2062 = vpop.permute.xlu0 %2061
          %2063 = vrot.lane.b32.xlu0 %v2021, 52
          %v2064 = vpop.permute.xlu0 %2063
          %2065 = vrot.lane.b32.xlu0 %v2022, 52
          %v2066 = vpop.permute.xlu0 %2065
          %2067 = vrot.lane.b32.xlu0 %v2023, 52
          %v2068 = vpop.permute.xlu0 %2067
          %2069 = vrot.lane.b32.xlu0 %v2024, 52
          %v2070 = vpop.permute.xlu0 %2069
          %2071 = vrot.lane.b32.xlu0 %v2025, 52
          %v2072 = vpop.permute.xlu0 %2071
          %2073 = vrot.lane.b32.xlu0 %v2026, 52
          %v2074 = vpop.permute.xlu0 %2073
          %2075 = vrot.lane.b32.xlu0 %v2027, 52
          %v2076 = vpop.permute.xlu0 %2075
          %2077 = vrot.lane.b32.xlu0 %v2028, 52
          %v2078 = vpop.permute.xlu0 %2077
          %2079 = vrot.lane.b32.xlu0 %v2029, 52
          %v2080 = vpop.permute.xlu0 %2079
          %2081 = vrot.lane.b32.xlu0 %v2030, 52
          %v2082 = vpop.permute.xlu0 %2081
          %2083 = vrot.lane.b32.xlu0 %v2031, 52
          %v2084 = vpop.permute.xlu0 %2083
          %2085 = vrot.lane.b32.xlu0 %v2032, 52
          %v2086 = vpop.permute.xlu0 %2085
          %2087 = vrot.lane.b32.xlu0 %v2033, 52
          %v2088 = vpop.permute.xlu0 %2087
          %2089 = vrot.lane.b32.xlu0 %v2034, 52
          %v2090 = vpop.permute.xlu0 %2089
          %2091 = vrot.lane.b32.xlu0 %v2035, 52
          %v2092 = vpop.permute.xlu0 %2091
          %2093 = vrot.lane.b32.xlu0 %v2036, 52
          %v2094 = vpop.permute.xlu0 %2093
          %2095 = vrot.lane.b32.xlu0 %v2037, 52
          %v2096 = vpop.permute.xlu0 %2095
          %2097 = vrot.lane.b32.xlu0 %v2038, 52
          %v2098 = vpop.permute.xlu0 %2097
          %vm2119 = vcmask 458144
          %2120 = vst.msk [vmem:[#allocation5] sm:$0xff] %vm2119, %v2060
          %2121 = vst.msk [vmem:[#allocation5 + $0x8] sm:$0xff] %vm2119, %v2062
          %2122 = vst.msk [vmem:[#allocation5 + $0x10] sm:$0xff] %vm2119, %v2064
          %2123 = vst.msk [vmem:[#allocation5 + $0x18] sm:$0xff] %vm2119, %v2066
          %2124 = vst.msk [vmem:[#allocation5 + $0x20] sm:$0xff] %vm2119, %v2068
          %2125 = vst.msk [vmem:[#allocation5 + $0x28] sm:$0xff] %vm2119, %v2070
          %2126 = vst.msk [vmem:[#allocation5 + $0x30] sm:$0xff] %vm2119, %v2072
          %2127 = vst.msk [vmem:[#allocation5 + $0x38] sm:$0xff] %vm2119, %v2074
          %2128 = vst.msk [vmem:[#allocation5 + $0x40] sm:$0xff] %vm2119, %v2076
          %2129 = vst.msk [vmem:[#allocation5 + $0x48] sm:$0xff] %vm2119, %v2078
          %2130 = vst.msk [vmem:[#allocation5 + $0x50] sm:$0xff] %vm2119, %v2080
          %2131 = vst.msk [vmem:[#allocation5 + $0x58] sm:$0xff] %vm2119, %v2082
          %2132 = vst.msk [vmem:[#allocation5 + $0x60] sm:$0xff] %vm2119, %v2084
          %2133 = vst.msk [vmem:[#allocation5 + $0x68] sm:$0xff] %vm2119, %v2086
          %2134 = vst.msk [vmem:[#allocation5 + $0x70] sm:$0xff] %vm2119, %v2088
          %2135 = vst.msk [vmem:[#allocation5 + $0x78] sm:$0xff] %vm2119, %v2090
          %2136 = vst.msk [vmem:[#allocation5 + $0x80] sm:$0xff] %vm2119, %v2092
          %2137 = vst.msk [vmem:[#allocation5 + $0x88] sm:$0xff] %vm2119, %v2094
          %2138 = vst.msk [vmem:[#allocation5 + $0x90] sm:$0xff] %vm2119, %v2096
          %2139 = vst.msk [vmem:[#allocation5 + $0x98] sm:$0xff] %vm2119, %v2098
          %s2140 = sadd.s32 %s498, 2
          %s2141 = scalar_lea.vmem %s383, %s2140
          %v2142 = vld [vmem:[%s2141] sm:$0xff]
          %v2143 = vld [vmem:[%s2141 + $0x8] sm:$0xff]
          %v2144 = vld [vmem:[%s2141 + $0x10] sm:$0xff]
          %v2145 = vld [vmem:[%s2141 + $0x18] sm:$0xff]
          %v2146 = vld [vmem:[%s2141 + $0x20] sm:$0xff]
          %v2147 = vld [vmem:[%s2141 + $0x28] sm:$0xff]
          %v2148 = vld [vmem:[%s2141 + $0x30] sm:$0xff]
          %v2149 = vld [vmem:[%s2141 + $0x38] sm:$0xff]
          %v2150 = vld [vmem:[%s2141 + $0x40] sm:$0xff]
          %v2151 = vld [vmem:[%s2141 + $0x48] sm:$0xff]
          %v2152 = vld [vmem:[%s2141 + $0x50] sm:$0xff]
          %v2153 = vld [vmem:[%s2141 + $0x58] sm:$0xff]
          %v2154 = vld [vmem:[%s2141 + $0x60] sm:$0xff]
          %v2155 = vld [vmem:[%s2141 + $0x68] sm:$0xff]
          %v2156 = vld [vmem:[%s2141 + $0x70] sm:$0xff]
          %v2157 = vld [vmem:[%s2141 + $0x78] sm:$0xff]
          %v2158 = vld [vmem:[%s2141 + $0x80] sm:$0xff]
          %v2159 = vld [vmem:[%s2141 + $0x88] sm:$0xff]
          %v2160 = vld [vmem:[%s2141 + $0x90] sm:$0xff]
          %v2161 = vld [vmem:[%s2141 + $0x98] sm:$0xff]
          %2182 = vrot.lane.b32.xlu0 %v2142, 56
          %v2183 = vpop.permute.xlu0 %2182
          %2184 = vrot.lane.b32.xlu0 %v2143, 56
          %v2185 = vpop.permute.xlu0 %2184
          %2186 = vrot.lane.b32.xlu0 %v2144, 56
          %v2187 = vpop.permute.xlu0 %2186
          %2188 = vrot.lane.b32.xlu0 %v2145, 56
          %v2189 = vpop.permute.xlu0 %2188
          %2190 = vrot.lane.b32.xlu0 %v2146, 56
          %v2191 = vpop.permute.xlu0 %2190
          %2192 = vrot.lane.b32.xlu0 %v2147, 56
          %v2193 = vpop.permute.xlu0 %2192
          %2194 = vrot.lane.b32.xlu0 %v2148, 56
          %v2195 = vpop.permute.xlu0 %2194
          %2196 = vrot.lane.b32.xlu0 %v2149, 56
          %v2197 = vpop.permute.xlu0 %2196
          %2198 = vrot.lane.b32.xlu0 %v2150, 56
          %v2199 = vpop.permute.xlu0 %2198
          %2200 = vrot.lane.b32.xlu0 %v2151, 56
          %v2201 = vpop.permute.xlu0 %2200
          %2202 = vrot.lane.b32.xlu0 %v2152, 56
          %v2203 = vpop.permute.xlu0 %2202
          %2204 = vrot.lane.b32.xlu0 %v2153, 56
          %v2205 = vpop.permute.xlu0 %2204
          %2206 = vrot.lane.b32.xlu0 %v2154, 56
          %v2207 = vpop.permute.xlu0 %2206
          %2208 = vrot.lane.b32.xlu0 %v2155, 56
          %v2209 = vpop.permute.xlu0 %2208
          %2210 = vrot.lane.b32.xlu0 %v2156, 56
          %v2211 = vpop.permute.xlu0 %2210
          %2212 = vrot.lane.b32.xlu0 %v2157, 56
          %v2213 = vpop.permute.xlu0 %2212
          %2214 = vrot.lane.b32.xlu0 %v2158, 56
          %v2215 = vpop.permute.xlu0 %2214
          %2216 = vrot.lane.b32.xlu0 %v2159, 56
          %v2217 = vpop.permute.xlu0 %2216
          %2218 = vrot.lane.b32.xlu0 %v2160, 56
          %v2219 = vpop.permute.xlu0 %2218
          %2220 = vrot.lane.b32.xlu0 %v2161, 56
          %v2221 = vpop.permute.xlu0 %2220
          %vm2242 = vcmask 490944
          %2243 = vst.msk [vmem:[#allocation5] sm:$0xff] %vm2242, %v2183
          %2244 = vst.msk [vmem:[#allocation5 + $0x8] sm:$0xff] %vm2242, %v2185
          %2245 = vst.msk [vmem:[#allocation5 + $0x10] sm:$0xff] %vm2242, %v2187
          %2246 = vst.msk [vmem:[#allocation5 + $0x18] sm:$0xff] %vm2242, %v2189
          %2247 = vst.msk [vmem:[#allocation5 + $0x20] sm:$0xff] %vm2242, %v2191
          %2248 = vst.msk [vmem:[#allocation5 + $0x28] sm:$0xff] %vm2242, %v2193
          %2249 = vst.msk [vmem:[#allocation5 + $0x30] sm:$0xff] %vm2242, %v2195
          %2250 = vst.msk [vmem:[#allocation5 + $0x38] sm:$0xff] %vm2242, %v2197
          %2251 = vst.msk [vmem:[#allocation5 + $0x40] sm:$0xff] %vm2242, %v2199
          %2252 = vst.msk [vmem:[#allocation5 + $0x48] sm:$0xff] %vm2242, %v2201
          %2253 = vst.msk [vmem:[#allocation5 + $0x50] sm:$0xff] %vm2242, %v2203
          %2254 = vst.msk [vmem:[#allocation5 + $0x58] sm:$0xff] %vm2242, %v2205
          %2255 = vst.msk [vmem:[#allocation5 + $0x60] sm:$0xff] %vm2242, %v2207
          %2256 = vst.msk [vmem:[#allocation5 + $0x68] sm:$0xff] %vm2242, %v2209
          %2257 = vst.msk [vmem:[#allocation5 + $0x70] sm:$0xff] %vm2242, %v2211
          %2258 = vst.msk [vmem:[#allocation5 + $0x78] sm:$0xff] %vm2242, %v2213
          %2259 = vst.msk [vmem:[#allocation5 + $0x80] sm:$0xff] %vm2242, %v2215
          %2260 = vst.msk [vmem:[#allocation5 + $0x88] sm:$0xff] %vm2242, %v2217
          %2261 = vst.msk [vmem:[#allocation5 + $0x90] sm:$0xff] %vm2242, %v2219
          %2262 = vst.msk [vmem:[#allocation5 + $0x98] sm:$0xff] %vm2242, %v2221
          %s2263 = sadd.s32 %s498, 38
          %s2264 = scalar_lea.vmem %s383, %s2263
          %v2265 = vld [vmem:[%s2264] sm:$0xff]
          %v2266 = vld [vmem:[%s2264 + $0x8] sm:$0xff]
          %v2267 = vld [vmem:[%s2264 + $0x10] sm:$0xff]
          %v2268 = vld [vmem:[%s2264 + $0x18] sm:$0xff]
          %v2269 = vld [vmem:[%s2264 + $0x20] sm:$0xff]
          %v2270 = vld [vmem:[%s2264 + $0x28] sm:$0xff]
          %v2271 = vld [vmem:[%s2264 + $0x30] sm:$0xff]
          %v2272 = vld [vmem:[%s2264 + $0x38] sm:$0xff]
          %v2273 = vld [vmem:[%s2264 + $0x40] sm:$0xff]
          %v2274 = vld [vmem:[%s2264 + $0x48] sm:$0xff]
          %v2275 = vld [vmem:[%s2264 + $0x50] sm:$0xff]
          %v2276 = vld [vmem:[%s2264 + $0x58] sm:$0xff]
          %v2277 = vld [vmem:[%s2264 + $0x60] sm:$0xff]
          %v2278 = vld [vmem:[%s2264 + $0x68] sm:$0xff]
          %v2279 = vld [vmem:[%s2264 + $0x70] sm:$0xff]
          %v2280 = vld [vmem:[%s2264 + $0x78] sm:$0xff]
          %v2281 = vld [vmem:[%s2264 + $0x80] sm:$0xff]
          %v2282 = vld [vmem:[%s2264 + $0x88] sm:$0xff]
          %v2283 = vld [vmem:[%s2264 + $0x90] sm:$0xff]
          %v2284 = vld [vmem:[%s2264 + $0x98] sm:$0xff]
          %2305 = vrot.lane.b32.xlu0 %v2265, 60
          %v2306 = vpop.permute.xlu0 %2305
          %2307 = vrot.lane.b32.xlu0 %v2266, 60
          %v2308 = vpop.permute.xlu0 %2307
          %2309 = vrot.lane.b32.xlu0 %v2267, 60
          %v2310 = vpop.permute.xlu0 %2309
          %2311 = vrot.lane.b32.xlu0 %v2268, 60
          %v2312 = vpop.permute.xlu0 %2311
          %2313 = vrot.lane.b32.xlu0 %v2269, 60
          %v2314 = vpop.permute.xlu0 %2313
          %2315 = vrot.lane.b32.xlu0 %v2270, 60
          %v2316 = vpop.permute.xlu0 %2315
          %2317 = vrot.lane.b32.xlu0 %v2271, 60
          %v2318 = vpop.permute.xlu0 %2317
          %2319 = vrot.lane.b32.xlu0 %v2272, 60
          %v2320 = vpop.permute.xlu0 %2319
          %2321 = vrot.lane.b32.xlu0 %v2273, 60
          %v2322 = vpop.permute.xlu0 %2321
          %2323 = vrot.lane.b32.xlu0 %v2274, 60
          %v2324 = vpop.permute.xlu0 %2323
          %2325 = vrot.lane.b32.xlu0 %v2275, 60
          %v2326 = vpop.permute.xlu0 %2325
          %2327 = vrot.lane.b32.xlu0 %v2276, 60
          %v2328 = vpop.permute.xlu0 %2327
          %2329 = vrot.lane.b32.xlu0 %v2277, 60
          %v2330 = vpop.permute.xlu0 %2329
          %2331 = vrot.lane.b32.xlu0 %v2278, 60
          %v2332 = vpop.permute.xlu0 %2331
          %2333 = vrot.lane.b32.xlu0 %v2279, 60
          %v2334 = vpop.permute.xlu0 %2333
          %2335 = vrot.lane.b32.xlu0 %v2280, 60
          %v2336 = vpop.permute.xlu0 %2335
          %2337 = vrot.lane.b32.xlu0 %v2281, 60
          %v2338 = vpop.permute.xlu0 %2337
          %2339 = vrot.lane.b32.xlu0 %v2282, 60
          %v2340 = vpop.permute.xlu0 %2339
          %2341 = vrot.lane.b32.xlu0 %v2283, 60
          %v2342 = vpop.permute.xlu0 %2341
          %2343 = vrot.lane.b32.xlu0 %v2284, 60
          %v2344 = vpop.permute.xlu0 %2343
          %vm2365 = vcmask 523744
          %2366 = vst.msk [vmem:[#allocation5] sm:$0xff] %vm2365, %v2306
          %2367 = vst.msk [vmem:[#allocation5 + $0x8] sm:$0xff] %vm2365, %v2308
          %2368 = vst.msk [vmem:[#allocation5 + $0x10] sm:$0xff] %vm2365, %v2310
          %2369 = vst.msk [vmem:[#allocation5 + $0x18] sm:$0xff] %vm2365, %v2312
          %2370 = vst.msk [vmem:[#allocation5 + $0x20] sm:$0xff] %vm2365, %v2314
          %2371 = vst.msk [vmem:[#allocation5 + $0x28] sm:$0xff] %vm2365, %v2316
          %2372 = vst.msk [vmem:[#allocation5 + $0x30] sm:$0xff] %vm2365, %v2318
          %2373 = vst.msk [vmem:[#allocation5 + $0x38] sm:$0xff] %vm2365, %v2320
          %2374 = vst.msk [vmem:[#allocation5 + $0x40] sm:$0xff] %vm2365, %v2322
          %2375 = vst.msk [vmem:[#allocation5 + $0x48] sm:$0xff] %vm2365, %v2324
          %2376 = vst.msk [vmem:[#allocation5 + $0x50] sm:$0xff] %vm2365, %v2326
          %2377 = vst.msk [vmem:[#allocation5 + $0x58] sm:$0xff] %vm2365, %v2328
          %2378 = vst.msk [vmem:[#allocation5 + $0x60] sm:$0xff] %vm2365, %v2330
          %2379 = vst.msk [vmem:[#allocation5 + $0x68] sm:$0xff] %vm2365, %v2332
          %2380 = vst.msk [vmem:[#allocation5 + $0x70] sm:$0xff] %vm2365, %v2334
          %2381 = vst.msk [vmem:[#allocation5 + $0x78] sm:$0xff] %vm2365, %v2336
          %2382 = vst.msk [vmem:[#allocation5 + $0x80] sm:$0xff] %vm2365, %v2338
          %2383 = vst.msk [vmem:[#allocation5 + $0x88] sm:$0xff] %vm2365, %v2340
          %2384 = vst.msk [vmem:[#allocation5 + $0x90] sm:$0xff] %vm2365, %v2342
          %2385 = vst.msk [vmem:[#allocation5 + $0x98] sm:$0xff] %vm2365, %v2344
          %s2386 = sadd.s32 %s498, 39
          %s2387 = scalar_lea.vmem %s383, %s2386
          %v2388 = vld [vmem:[%s2387] sm:$0xff]
          %v2389 = vld [vmem:[%s2387 + $0x8] sm:$0xff]
          %v2390 = vld [vmem:[%s2387 + $0x10] sm:$0xff]
          %v2391 = vld [vmem:[%s2387 + $0x18] sm:$0xff]
          %v2392 = vld [vmem:[%s2387 + $0x20] sm:$0xff]
          %v2393 = vld [vmem:[%s2387 + $0x28] sm:$0xff]
          %v2394 = vld [vmem:[%s2387 + $0x30] sm:$0xff]
          %v2395 = vld [vmem:[%s2387 + $0x38] sm:$0xff]
          %v2396 = vld [vmem:[%s2387 + $0x40] sm:$0xff]
          %v2397 = vld [vmem:[%s2387 + $0x48] sm:$0xff]
          %v2398 = vld [vmem:[%s2387 + $0x50] sm:$0xff]
          %v2399 = vld [vmem:[%s2387 + $0x58] sm:$0xff]
          %v2400 = vld [vmem:[%s2387 + $0x60] sm:$0xff]
          %v2401 = vld [vmem:[%s2387 + $0x68] sm:$0xff]
          %v2402 = vld [vmem:[%s2387 + $0x70] sm:$0xff]
          %v2403 = vld [vmem:[%s2387 + $0x78] sm:$0xff]
          %v2404 = vld [vmem:[%s2387 + $0x80] sm:$0xff]
          %v2405 = vld [vmem:[%s2387 + $0x88] sm:$0xff]
          %v2406 = vld [vmem:[%s2387 + $0x90] sm:$0xff]
          %v2407 = vld [vmem:[%s2387 + $0x98] sm:$0xff]
          %2428 = vrot.lane.b32.xlu0 %v2388, 64
          %v2429 = vpop.permute.xlu0 %2428
          %2430 = vrot.lane.b32.xlu0 %v2389, 64
          %v2431 = vpop.permute.xlu0 %2430
          %2432 = vrot.lane.b32.xlu0 %v2390, 64
          %v2433 = vpop.permute.xlu0 %2432
          %2434 = vrot.lane.b32.xlu0 %v2391, 64
          %v2435 = vpop.permute.xlu0 %2434
          %2436 = vrot.lane.b32.xlu0 %v2392, 64
          %v2437 = vpop.permute.xlu0 %2436
          %2438 = vrot.lane.b32.xlu0 %v2393, 64
          %v2439 = vpop.permute.xlu0 %2438
          %2440 = vrot.lane.b32.xlu0 %v2394, 64
          %v2441 = vpop.permute.xlu0 %2440
          %2442 = vrot.lane.b32.xlu0 %v2395, 64
          %v2443 = vpop.permute.xlu0 %2442
          %2444 = vrot.lane.b32.xlu0 %v2396, 64
          %v2445 = vpop.permute.xlu0 %2444
          %2446 = vrot.lane.b32.xlu0 %v2397, 64
          %v2447 = vpop.permute.xlu0 %2446
          %2448 = vrot.lane.b32.xlu0 %v2398, 64
          %v2449 = vpop.permute.xlu0 %2448
          %2450 = vrot.lane.b32.xlu0 %v2399, 64
          %v2451 = vpop.permute.xlu0 %2450
          %2452 = vrot.lane.b32.xlu0 %v2400, 64
          %v2453 = vpop.permute.xlu0 %2452
          %2454 = vrot.lane.b32.xlu0 %v2401, 64
          %v2455 = vpop.permute.xlu0 %2454
          %2456 = vrot.lane.b32.xlu0 %v2402, 64
          %v2457 = vpop.permute.xlu0 %2456
          %2458 = vrot.lane.b32.xlu0 %v2403, 64
          %v2459 = vpop.permute.xlu0 %2458
          %2460 = vrot.lane.b32.xlu0 %v2404, 64
          %v2461 = vpop.permute.xlu0 %2460
          %2462 = vrot.lane.b32.xlu0 %v2405, 64
          %v2463 = vpop.permute.xlu0 %2462
          %2464 = vrot.lane.b32.xlu0 %v2406, 64
          %v2465 = vpop.permute.xlu0 %2464
          %2466 = vrot.lane.b32.xlu0 %v2407, 64
          %v2467 = vpop.permute.xlu0 %2466
          %vm2488 = vcmask 556544
          %2489 = vst.msk [vmem:[#allocation5] sm:$0xff] %vm2488, %v2429
          %2490 = vst.msk [vmem:[#allocation5 + $0x8] sm:$0xff] %vm2488, %v2431
          %2491 = vst.msk [vmem:[#allocation5 + $0x10] sm:$0xff] %vm2488, %v2433
          %2492 = vst.msk [vmem:[#allocation5 + $0x18] sm:$0xff] %vm2488, %v2435
          %2493 = vst.msk [vmem:[#allocation5 + $0x20] sm:$0xff] %vm2488, %v2437
          %2494 = vst.msk [vmem:[#allocation5 + $0x28] sm:$0xff] %vm2488, %v2439
          %2495 = vst.msk [vmem:[#allocation5 + $0x30] sm:$0xff] %vm2488, %v2441
          %2496 = vst.msk [vmem:[#allocation5 + $0x38] sm:$0xff] %vm2488, %v2443
          %2497 = vst.msk [vmem:[#allocation5 + $0x40] sm:$0xff] %vm2488, %v2445
          %2498 = vst.msk [vmem:[#allocation5 + $0x48] sm:$0xff] %vm2488, %v2447
          %2499 = vst.msk [vmem:[#allocation5 + $0x50] sm:$0xff] %vm2488, %v2449
          %2500 = vst.msk [vmem:[#allocation5 + $0x58] sm:$0xff] %vm2488, %v2451
          %2501 = vst.msk [vmem:[#allocation5 + $0x60] sm:$0xff] %vm2488, %v2453
          %2502 = vst.msk [vmem:[#allocation5 + $0x68] sm:$0xff] %vm2488, %v2455
          %2503 = vst.msk [vmem:[#allocation5 + $0x70] sm:$0xff] %vm2488, %v2457
          %2504 = vst.msk [vmem:[#allocation5 + $0x78] sm:$0xff] %vm2488, %v2459
          %2505 = vst.msk [vmem:[#allocation5 + $0x80] sm:$0xff] %vm2488, %v2461
          %2506 = vst.msk [vmem:[#allocation5 + $0x88] sm:$0xff] %vm2488, %v2463
          %2507 = vst.msk [vmem:[#allocation5 + $0x90] sm:$0xff] %vm2488, %v2465
          %2508 = vst.msk [vmem:[#allocation5 + $0x98] sm:$0xff] %vm2488, %v2467
          %s2509 = sadd.s32 %s498, 40
          %s2510 = scalar_lea.vmem %s383, %s2509
          %v2511 = vld [vmem:[%s2510] sm:$0xff]
          %v2512 = vld [vmem:[%s2510 + $0x8] sm:$0xff]
          %v2513 = vld [vmem:[%s2510 + $0x10] sm:$0xff]
          %v2514 = vld [vmem:[%s2510 + $0x18] sm:$0xff]
          %v2515 = vld [vmem:[%s2510 + $0x20] sm:$0xff]
          %v2516 = vld [vmem:[%s2510 + $0x28] sm:$0xff]
          %v2517 = vld [vmem:[%s2510 + $0x30] sm:$0xff]
          %v2518 = vld [vmem:[%s2510 + $0x38] sm:$0xff]
          %v2519 = vld [vmem:[%s2510 + $0x40] sm:$0xff]
          %v2520 = vld [vmem:[%s2510 + $0x48] sm:$0xff]
          %v2521 = vld [vmem:[%s2510 + $0x50] sm:$0xff]
          %v2522 = vld [vmem:[%s2510 + $0x58] sm:$0xff]
          %v2523 = vld [vmem:[%s2510 + $0x60] sm:$0xff]
          %v2524 = vld [vmem:[%s2510 + $0x68] sm:$0xff]
          %v2525 = vld [vmem:[%s2510 + $0x70] sm:$0xff]
          %v2526 = vld [vmem:[%s2510 + $0x78] sm:$0xff]
          %v2527 = vld [vmem:[%s2510 + $0x80] sm:$0xff]
          %v2528 = vld [vmem:[%s2510 + $0x88] sm:$0xff]
          %v2529 = vld [vmem:[%s2510 + $0x90] sm:$0xff]
          %v2530 = vld [vmem:[%s2510 + $0x98] sm:$0xff]
          %2551 = vrot.lane.b32.xlu0 %v2511, 68
          %v2552 = vpop.permute.xlu0 %2551
          %2553 = vrot.lane.b32.xlu0 %v2512, 68
          %v2554 = vpop.permute.xlu0 %2553
          %2555 = vrot.lane.b32.xlu0 %v2513, 68
          %v2556 = vpop.permute.xlu0 %2555
          %2557 = vrot.lane.b32.xlu0 %v2514, 68
          %v2558 = vpop.permute.xlu0 %2557
          %2559 = vrot.lane.b32.xlu0 %v2515, 68
          %v2560 = vpop.permute.xlu0 %2559
          %2561 = vrot.lane.b32.xlu0 %v2516, 68
          %v2562 = vpop.permute.xlu0 %2561
          %2563 = vrot.lane.b32.xlu0 %v2517, 68
          %v2564 = vpop.permute.xlu0 %2563
          %2565 = vrot.lane.b32.xlu0 %v2518, 68
          %v2566 = vpop.permute.xlu0 %2565
          %2567 = vrot.lane.b32.xlu0 %v2519, 68
          %v2568 = vpop.permute.xlu0 %2567
          %2569 = vrot.lane.b32.xlu0 %v2520, 68
          %v2570 = vpop.permute.xlu0 %2569
          %2571 = vrot.lane.b32.xlu0 %v2521, 68
          %v2572 = vpop.permute.xlu0 %2571
          %2573 = vrot.lane.b32.xlu0 %v2522, 68
          %v2574 = vpop.permute.xlu0 %2573
          %2575 = vrot.lane.b32.xlu0 %v2523, 68
          %v2576 = vpop.permute.xlu0 %2575
          %2577 = vrot.lane.b32.xlu0 %v2524, 68
          %v2578 = vpop.permute.xlu0 %2577
          %2579 = vrot.lane.b32.xlu0 %v2525, 68
          %v2580 = vpop.permute.xlu0 %2579
          %2581 = vrot.lane.b32.xlu0 %v2526, 68
          %v2582 = vpop.permute.xlu0 %2581
          %2583 = vrot.lane.b32.xlu0 %v2527, 68
          %v2584 = vpop.permute.xlu0 %2583
          %2585 = vrot.lane.b32.xlu0 %v2528, 68
          %v2586 = vpop.permute.xlu0 %2585
          %2587 = vrot.lane.b32.xlu0 %v2529, 68
          %v2588 = vpop.permute.xlu0 %2587
          %2589 = vrot.lane.b32.xlu0 %v2530, 68
          %v2590 = vpop.permute.xlu0 %2589
          %vm2611 = vcmask 589344
          %2612 = vst.msk [vmem:[#allocation5] sm:$0xff] %vm2611, %v2552
          %2613 = vst.msk [vmem:[#allocation5 + $0x8] sm:$0xff] %vm2611, %v2554
          %2614 = vst.msk [vmem:[#allocation5 + $0x10] sm:$0xff] %vm2611, %v2556
          %2615 = vst.msk [vmem:[#allocation5 + $0x18] sm:$0xff] %vm2611, %v2558
          %2616 = vst.msk [vmem:[#allocation5 + $0x20] sm:$0xff] %vm2611, %v2560
          %2617 = vst.msk [vmem:[#allocation5 + $0x28] sm:$0xff] %vm2611, %v2562
          %2618 = vst.msk [vmem:[#allocation5 + $0x30] sm:$0xff] %vm2611, %v2564
          %2619 = vst.msk [vmem:[#allocation5 + $0x38] sm:$0xff] %vm2611, %v2566
          %2620 = vst.msk [vmem:[#allocation5 + $0x40] sm:$0xff] %vm2611, %v2568
          %2621 = vst.msk [vmem:[#allocation5 + $0x48] sm:$0xff] %vm2611, %v2570
          %2622 = vst.msk [vmem:[#allocation5 + $0x50] sm:$0xff] %vm2611, %v2572
          %2623 = vst.msk [vmem:[#allocation5 + $0x58] sm:$0xff] %vm2611, %v2574
          %2624 = vst.msk [vmem:[#allocation5 + $0x60] sm:$0xff] %vm2611, %v2576
          %2625 = vst.msk [vmem:[#allocation5 + $0x68] sm:$0xff] %vm2611, %v2578
          %2626 = vst.msk [vmem:[#allocation5 + $0x70] sm:$0xff] %vm2611, %v2580
          %2627 = vst.msk [vmem:[#allocation5 + $0x78] sm:$0xff] %vm2611, %v2582
          %2628 = vst.msk [vmem:[#allocation5 + $0x80] sm:$0xff] %vm2611, %v2584
          %2629 = vst.msk [vmem:[#allocation5 + $0x88] sm:$0xff] %vm2611, %v2586
          %2630 = vst.msk [vmem:[#allocation5 + $0x90] sm:$0xff] %vm2611, %v2588
          %2631 = vst.msk [vmem:[#allocation5 + $0x98] sm:$0xff] %vm2611, %v2590
          %s2632 = sadd.s32 %s498, 41
          %s2633 = scalar_lea.vmem %s383, %s2632
          %v2634 = vld [vmem:[%s2633] sm:$0xff]
          %v2635 = vld [vmem:[%s2633 + $0x8] sm:$0xff]
          %v2636 = vld [vmem:[%s2633 + $0x10] sm:$0xff]
          %v2637 = vld [vmem:[%s2633 + $0x18] sm:$0xff]
          %v2638 = vld [vmem:[%s2633 + $0x20] sm:$0xff]
          %v2639 = vld [vmem:[%s2633 + $0x28] sm:$0xff]
          %v2640 = vld [vmem:[%s2633 + $0x30] sm:$0xff]
          %v2641 = vld [vmem:[%s2633 + $0x38] sm:$0xff]
          %v2642 = vld [vmem:[%s2633 + $0x40] sm:$0xff]
          %v2643 = vld [vmem:[%s2633 + $0x48] sm:$0xff]
          %v2644 = vld [vmem:[%s2633 + $0x50] sm:$0xff]
          %v2645 = vld [vmem:[%s2633 + $0x58] sm:$0xff]
          %v2646 = vld [vmem:[%s2633 + $0x60] sm:$0xff]
          %v2647 = vld [vmem:[%s2633 + $0x68] sm:$0xff]
          %v2648 = vld [vmem:[%s2633 + $0x70] sm:$0xff]
          %v2649 = vld [vmem:[%s2633 + $0x78] sm:$0xff]
          %v2650 = vld [vmem:[%s2633 + $0x80] sm:$0xff]
          %v2651 = vld [vmem:[%s2633 + $0x88] sm:$0xff]
          %v2652 = vld [vmem:[%s2633 + $0x90] sm:$0xff]
          %v2653 = vld [vmem:[%s2633 + $0x98] sm:$0xff]
          %2674 = vrot.lane.b32.xlu0 %v2634, 72
          %v2675 = vpop.permute.xlu0 %2674
          %2676 = vrot.lane.b32.xlu0 %v2635, 72
          %v2677 = vpop.permute.xlu0 %2676
          %2678 = vrot.lane.b32.xlu0 %v2636, 72
          %v2679 = vpop.permute.xlu0 %2678
          %2680 = vrot.lane.b32.xlu0 %v2637, 72
          %v2681 = vpop.permute.xlu0 %2680
          %2682 = vrot.lane.b32.xlu0 %v2638, 72
          %v2683 = vpop.permute.xlu0 %2682
          %2684 = vrot.lane.b32.xlu0 %v2639, 72
          %v2685 = vpop.permute.xlu0 %2684
          %2686 = vrot.lane.b32.xlu0 %v2640, 72
          %v2687 = vpop.permute.xlu0 %2686
          %2688 = vrot.lane.b32.xlu0 %v2641, 72
          %v2689 = vpop.permute.xlu0 %2688
          %2690 = vrot.lane.b32.xlu0 %v2642, 72
          %v2691 = vpop.permute.xlu0 %2690
          %2692 = vrot.lane.b32.xlu0 %v2643, 72
          %v2693 = vpop.permute.xlu0 %2692
          %2694 = vrot.lane.b32.xlu0 %v2644, 72
          %v2695 = vpop.permute.xlu0 %2694
          %2696 = vrot.lane.b32.xlu0 %v2645, 72
          %v2697 = vpop.permute.xlu0 %2696
          %2698 = vrot.lane.b32.xlu0 %v2646, 72
          %v2699 = vpop.permute.xlu0 %2698
          %2700 = vrot.lane.b32.xlu0 %v2647, 72
          %v2701 = vpop.permute.xlu0 %2700
          %2702 = vrot.lane.b32.xlu0 %v2648, 72
          %v2703 = vpop.permute.xlu0 %2702
          %2704 = vrot.lane.b32.xlu0 %v2649, 72
          %v2705 = vpop.permute.xlu0 %2704
          %2706 = vrot.lane.b32.xlu0 %v2650, 72
          %v2707 = vpop.permute.xlu0 %2706
          %2708 = vrot.lane.b32.xlu0 %v2651, 72
          %v2709 = vpop.permute.xlu0 %2708
          %2710 = vrot.lane.b32.xlu0 %v2652, 72
          %v2711 = vpop.permute.xlu0 %2710
          %2712 = vrot.lane.b32.xlu0 %v2653, 72
          %v2713 = vpop.permute.xlu0 %2712
          %vm2734 = vcmask 622144
          %2735 = vst.msk [vmem:[#allocation5] sm:$0xff] %vm2734, %v2675
          %2736 = vst.msk [vmem:[#allocation5 + $0x8] sm:$0xff] %vm2734, %v2677
          %2737 = vst.msk [vmem:[#allocation5 + $0x10] sm:$0xff] %vm2734, %v2679
          %2738 = vst.msk [vmem:[#allocation5 + $0x18] sm:$0xff] %vm2734, %v2681
          %2739 = vst.msk [vmem:[#allocation5 + $0x20] sm:$0xff] %vm2734, %v2683
          %2740 = vst.msk [vmem:[#allocation5 + $0x28] sm:$0xff] %vm2734, %v2685
          %2741 = vst.msk [vmem:[#allocation5 + $0x30] sm:$0xff] %vm2734, %v2687
          %2742 = vst.msk [vmem:[#allocation5 + $0x38] sm:$0xff] %vm2734, %v2689
          %2743 = vst.msk [vmem:[#allocation5 + $0x40] sm:$0xff] %vm2734, %v2691
          %2744 = vst.msk [vmem:[#allocation5 + $0x48] sm:$0xff] %vm2734, %v2693
          %2745 = vst.msk [vmem:[#allocation5 + $0x50] sm:$0xff] %vm2734, %v2695
          %2746 = vst.msk [vmem:[#allocation5 + $0x58] sm:$0xff] %vm2734, %v2697
          %2747 = vst.msk [vmem:[#allocation5 + $0x60] sm:$0xff] %vm2734, %v2699
          %2748 = vst.msk [vmem:[#allocation5 + $0x68] sm:$0xff] %vm2734, %v2701
          %2749 = vst.msk [vmem:[#allocation5 + $0x70] sm:$0xff] %vm2734, %v2703
          %2750 = vst.msk [vmem:[#allocation5 + $0x78] sm:$0xff] %vm2734, %v2705
          %2751 = vst.msk [vmem:[#allocation5 + $0x80] sm:$0xff] %vm2734, %v2707
          %2752 = vst.msk [vmem:[#allocation5 + $0x88] sm:$0xff] %vm2734, %v2709
          %2753 = vst.msk [vmem:[#allocation5 + $0x90] sm:$0xff] %vm2734, %v2711
          %2754 = vst.msk [vmem:[#allocation5 + $0x98] sm:$0xff] %vm2734, %v2713
          %s2755 = sadd.s32 %s498, 42
          %s2756 = scalar_lea.vmem %s383, %s2755
          %v2757 = vld [vmem:[%s2756] sm:$0xff]
          %v2758 = vld [vmem:[%s2756 + $0x8] sm:$0xff]
          %v2759 = vld [vmem:[%s2756 + $0x10] sm:$0xff]
          %v2760 = vld [vmem:[%s2756 + $0x18] sm:$0xff]
          %v2761 = vld [vmem:[%s2756 + $0x20] sm:$0xff]
          %v2762 = vld [vmem:[%s2756 + $0x28] sm:$0xff]
          %v2763 = vld [vmem:[%s2756 + $0x30] sm:$0xff]
          %v2764 = vld [vmem:[%s2756 + $0x38] sm:$0xff]
          %v2765 = vld [vmem:[%s2756 + $0x40] sm:$0xff]
          %v2766 = vld [vmem:[%s2756 + $0x48] sm:$0xff]
          %v2767 = vld [vmem:[%s2756 + $0x50] sm:$0xff]
          %v2768 = vld [vmem:[%s2756 + $0x58] sm:$0xff]
          %v2769 = vld [vmem:[%s2756 + $0x60] sm:$0xff]
          %v2770 = vld [vmem:[%s2756 + $0x68] sm:$0xff]
          %v2771 = vld [vmem:[%s2756 + $0x70] sm:$0xff]
          %v2772 = vld [vmem:[%s2756 + $0x78] sm:$0xff]
          %v2773 = vld [vmem:[%s2756 + $0x80] sm:$0xff]
          %v2774 = vld [vmem:[%s2756 + $0x88] sm:$0xff]
          %v2775 = vld [vmem:[%s2756 + $0x90] sm:$0xff]
          %v2776 = vld [vmem:[%s2756 + $0x98] sm:$0xff]
          %2797 = vrot.lane.b32.xlu0 %v2757, 76
          %v2798 = vpop.permute.xlu0 %2797
          %2799 = vrot.lane.b32.xlu0 %v2758, 76
          %v2800 = vpop.permute.xlu0 %2799
          %2801 = vrot.lane.b32.xlu0 %v2759, 76
          %v2802 = vpop.permute.xlu0 %2801
          %2803 = vrot.lane.b32.xlu0 %v2760, 76
          %v2804 = vpop.permute.xlu0 %2803
          %2805 = vrot.lane.b32.xlu0 %v2761, 76
          %v2806 = vpop.permute.xlu0 %2805
          %2807 = vrot.lane.b32.xlu0 %v2762, 76
          %v2808 = vpop.permute.xlu0 %2807
          %2809 = vrot.lane.b32.xlu0 %v2763, 76
          %v2810 = vpop.permute.xlu0 %2809
          %2811 = vrot.lane.b32.xlu0 %v2764, 76
          %v2812 = vpop.permute.xlu0 %2811
          %2813 = vrot.lane.b32.xlu0 %v2765, 76
          %v2814 = vpop.permute.xlu0 %2813
          %2815 = vrot.lane.b32.xlu0 %v2766, 76
          %v2816 = vpop.permute.xlu0 %2815
          %2817 = vrot.lane.b32.xlu0 %v2767, 76
          %v2818 = vpop.permute.xlu0 %2817
          %2819 = vrot.lane.b32.xlu0 %v2768, 76
          %v2820 = vpop.permute.xlu0 %2819
          %2821 = vrot.lane.b32.xlu0 %v2769, 76
          %v2822 = vpop.permute.xlu0 %2821
          %2823 = vrot.lane.b32.xlu0 %v2770, 76
          %v2824 = vpop.permute.xlu0 %2823
          %2825 = vrot.lane.b32.xlu0 %v2771, 76
          %v2826 = vpop.permute.xlu0 %2825
          %2827 = vrot.lane.b32.xlu0 %v2772, 76
          %v2828 = vpop.permute.xlu0 %2827
          %2829 = vrot.lane.b32.xlu0 %v2773, 76
          %v2830 = vpop.permute.xlu0 %2829
          %2831 = vrot.lane.b32.xlu0 %v2774, 76
          %v2832 = vpop.permute.xlu0 %2831
          %2833 = vrot.lane.b32.xlu0 %v2775, 76
          %v2834 = vpop.permute.xlu0 %2833
          %2835 = vrot.lane.b32.xlu0 %v2776, 76
          %v2836 = vpop.permute.xlu0 %2835
          %vm2857 = vcmask 654944
          %2858 = vst.msk [vmem:[#allocation5] sm:$0xff] %vm2857, %v2798
          %2859 = vst.msk [vmem:[#allocation5 + $0x8] sm:$0xff] %vm2857, %v2800
          %2860 = vst.msk [vmem:[#allocation5 + $0x10] sm:$0xff] %vm2857, %v2802
          %2861 = vst.msk [vmem:[#allocation5 + $0x18] sm:$0xff] %vm2857, %v2804
          %2862 = vst.msk [vmem:[#allocation5 + $0x20] sm:$0xff] %vm2857, %v2806
          %2863 = vst.msk [vmem:[#allocation5 + $0x28] sm:$0xff] %vm2857, %v2808
          %2864 = vst.msk [vmem:[#allocation5 + $0x30] sm:$0xff] %vm2857, %v2810
          %2865 = vst.msk [vmem:[#allocation5 + $0x38] sm:$0xff] %vm2857, %v2812
          %2866 = vst.msk [vmem:[#allocation5 + $0x40] sm:$0xff] %vm2857, %v2814
          %2867 = vst.msk [vmem:[#allocation5 + $0x48] sm:$0xff] %vm2857, %v2816
          %2868 = vst.msk [vmem:[#allocation5 + $0x50] sm:$0xff] %vm2857, %v2818
          %2869 = vst.msk [vmem:[#allocation5 + $0x58] sm:$0xff] %vm2857, %v2820
          %2870 = vst.msk [vmem:[#allocation5 + $0x60] sm:$0xff] %vm2857, %v2822
          %2871 = vst.msk [vmem:[#allocation5 + $0x68] sm:$0xff] %vm2857, %v2824
          %2872 = vst.msk [vmem:[#allocation5 + $0x70] sm:$0xff] %vm2857, %v2826
          %2873 = vst.msk [vmem:[#allocation5 + $0x78] sm:$0xff] %vm2857, %v2828
          %2874 = vst.msk [vmem:[#allocation5 + $0x80] sm:$0xff] %vm2857, %v2830
          %2875 = vst.msk [vmem:[#allocation5 + $0x88] sm:$0xff] %vm2857, %v2832
          %2876 = vst.msk [vmem:[#allocation5 + $0x90] sm:$0xff] %vm2857, %v2834
          %2877 = vst.msk [vmem:[#allocation5 + $0x98] sm:$0xff] %vm2857, %v2836
          %s2878 = sadd.s32 %s498, 78
          %s2879 = scalar_lea.vmem %s383, %s2878
          %v2880 = vld [vmem:[%s2879] sm:$0xff]
          %v2881 = vld [vmem:[%s2879 + $0x8] sm:$0xff]
          %v2882 = vld [vmem:[%s2879 + $0x10] sm:$0xff]
          %v2883 = vld [vmem:[%s2879 + $0x18] sm:$0xff]
          %v2884 = vld [vmem:[%s2879 + $0x20] sm:$0xff]
          %v2885 = vld [vmem:[%s2879 + $0x28] sm:$0xff]
          %v2886 = vld [vmem:[%s2879 + $0x30] sm:$0xff]
          %v2887 = vld [vmem:[%s2879 + $0x38] sm:$0xff]
          %v2888 = vld [vmem:[%s2879 + $0x40] sm:$0xff]
          %v2889 = vld [vmem:[%s2879 + $0x48] sm:$0xff]
          %v2890 = vld [vmem:[%s2879 + $0x50] sm:$0xff]
          %v2891 = vld [vmem:[%s2879 + $0x58] sm:$0xff]
          %v2892 = vld [vmem:[%s2879 + $0x60] sm:$0xff]
          %v2893 = vld [vmem:[%s2879 + $0x68] sm:$0xff]
          %v2894 = vld [vmem:[%s2879 + $0x70] sm:$0xff]
          %v2895 = vld [vmem:[%s2879 + $0x78] sm:$0xff]
          %v2896 = vld [vmem:[%s2879 + $0x80] sm:$0xff]
          %v2897 = vld [vmem:[%s2879 + $0x88] sm:$0xff]
          %v2898 = vld [vmem:[%s2879 + $0x90] sm:$0xff]
          %v2899 = vld [vmem:[%s2879 + $0x98] sm:$0xff]
          %2920 = vrot.lane.b32.xlu0 %v2880, 80
          %v2921 = vpop.permute.xlu0 %2920
          %2922 = vrot.lane.b32.xlu0 %v2881, 80
          %v2923 = vpop.permute.xlu0 %2922
          %2924 = vrot.lane.b32.xlu0 %v2882, 80
          %v2925 = vpop.permute.xlu0 %2924
          %2926 = vrot.lane.b32.xlu0 %v2883, 80
          %v2927 = vpop.permute.xlu0 %2926
          %2928 = vrot.lane.b32.xlu0 %v2884, 80
          %v2929 = vpop.permute.xlu0 %2928
          %2930 = vrot.lane.b32.xlu0 %v2885, 80
          %v2931 = vpop.permute.xlu0 %2930
          %2932 = vrot.lane.b32.xlu0 %v2886, 80
          %v2933 = vpop.permute.xlu0 %2932
          %2934 = vrot.lane.b32.xlu0 %v2887, 80
          %v2935 = vpop.permute.xlu0 %2934
          %2936 = vrot.lane.b32.xlu0 %v2888, 80
          %v2937 = vpop.permute.xlu0 %2936
          %2938 = vrot.lane.b32.xlu0 %v2889, 80
          %v2939 = vpop.permute.xlu0 %2938
          %2940 = vrot.lane.b32.xlu0 %v2890, 80
          %v2941 = vpop.permute.xlu0 %2940
          %2942 = vrot.lane.b32.xlu0 %v2891, 80
          %v2943 = vpop.permute.xlu0 %2942
          %2944 = vrot.lane.b32.xlu0 %v2892, 80
          %v2945 = vpop.permute.xlu0 %2944
          %2946 = vrot.lane.b32.xlu0 %v2893, 80
          %v2947 = vpop.permute.xlu0 %2946
          %2948 = vrot.lane.b32.xlu0 %v2894, 80
          %v2949 = vpop.permute.xlu0 %2948
          %2950 = vrot.lane.b32.xlu0 %v2895, 80
          %v2951 = vpop.permute.xlu0 %2950
          %2952 = vrot.lane.b32.xlu0 %v2896, 80
          %v2953 = vpop.permute.xlu0 %2952
          %2954 = vrot.lane.b32.xlu0 %v2897, 80
          %v2955 = vpop.permute.xlu0 %2954
          %2956 = vrot.lane.b32.xlu0 %v2898, 80
          %v2957 = vpop.permute.xlu0 %2956
          %2958 = vrot.lane.b32.xlu0 %v2899, 80
          %v2959 = vpop.permute.xlu0 %2958
          %vm2980 = vcmask 687744
          %2981 = vst.msk [vmem:[#allocation5] sm:$0xff] %vm2980, %v2921
          %2982 = vst.msk [vmem:[#allocation5 + $0x8] sm:$0xff] %vm2980, %v2923
          %2983 = vst.msk [vmem:[#allocation5 + $0x10] sm:$0xff] %vm2980, %v2925
          %2984 = vst.msk [vmem:[#allocation5 + $0x18] sm:$0xff] %vm2980, %v2927
          %2985 = vst.msk [vmem:[#allocation5 + $0x20] sm:$0xff] %vm2980, %v2929
          %2986 = vst.msk [vmem:[#allocation5 + $0x28] sm:$0xff] %vm2980, %v2931
          %2987 = vst.msk [vmem:[#allocation5 + $0x30] sm:$0xff] %vm2980, %v2933
          %2988 = vst.msk [vmem:[#allocation5 + $0x38] sm:$0xff] %vm2980, %v2935
          %2989 = vst.msk [vmem:[#allocation5 + $0x40] sm:$0xff] %vm2980, %v2937
          %2990 = vst.msk [vmem:[#allocation5 + $0x48] sm:$0xff] %vm2980, %v2939
          %2991 = vst.msk [vmem:[#allocation5 + $0x50] sm:$0xff] %vm2980, %v2941
          %2992 = vst.msk [vmem:[#allocation5 + $0x58] sm:$0xff] %vm2980, %v2943
          %2993 = vst.msk [vmem:[#allocation5 + $0x60] sm:$0xff] %vm2980, %v2945
          %2994 = vst.msk [vmem:[#allocation5 + $0x68] sm:$0xff] %vm2980, %v2947
          %2995 = vst.msk [vmem:[#allocation5 + $0x70] sm:$0xff] %vm2980, %v2949
          %2996 = vst.msk [vmem:[#allocation5 + $0x78] sm:$0xff] %vm2980, %v2951
          %2997 = vst.msk [vmem:[#allocation5 + $0x80] sm:$0xff] %vm2980, %v2953
          %2998 = vst.msk [vmem:[#allocation5 + $0x88] sm:$0xff] %vm2980, %v2955
          %2999 = vst.msk [vmem:[#allocation5 + $0x90] sm:$0xff] %vm2980, %v2957
          %3000 = vst.msk [vmem:[#allocation5 + $0x98] sm:$0xff] %vm2980, %v2959
          %s3001 = sadd.s32 %s498, 79
          %s3002 = scalar_lea.vmem %s383, %s3001
          %v3003 = vld [vmem:[%s3002] sm:$0xff]
          %v3004 = vld [vmem:[%s3002 + $0x8] sm:$0xff]
          %v3005 = vld [vmem:[%s3002 + $0x10] sm:$0xff]
          %v3006 = vld [vmem:[%s3002 + $0x18] sm:$0xff]
          %v3007 = vld [vmem:[%s3002 + $0x20] sm:$0xff]
          %v3008 = vld [vmem:[%s3002 + $0x28] sm:$0xff]
          %v3009 = vld [vmem:[%s3002 + $0x30] sm:$0xff]
          %v3010 = vld [vmem:[%s3002 + $0x38] sm:$0xff]
          %v3011 = vld [vmem:[%s3002 + $0x40] sm:$0xff]
          %v3012 = vld [vmem:[%s3002 + $0x48] sm:$0xff]
          %v3013 = vld [vmem:[%s3002 + $0x50] sm:$0xff]
          %v3014 = vld [vmem:[%s3002 + $0x58] sm:$0xff]
          %v3015 = vld [vmem:[%s3002 + $0x60] sm:$0xff]
          %v3016 = vld [vmem:[%s3002 + $0x68] sm:$0xff]
          %v3017 = vld [vmem:[%s3002 + $0x70] sm:$0xff]
          %v3018 = vld [vmem:[%s3002 + $0x78] sm:$0xff]
          %v3019 = vld [vmem:[%s3002 + $0x80] sm:$0xff]
          %v3020 = vld [vmem:[%s3002 + $0x88] sm:$0xff]
          %v3021 = vld [vmem:[%s3002 + $0x90] sm:$0xff]
          %v3022 = vld [vmem:[%s3002 + $0x98] sm:$0xff]
          %3043 = vrot.lane.b32.xlu0 %v3003, 84
          %v3044 = vpop.permute.xlu0 %3043
          %3045 = vrot.lane.b32.xlu0 %v3004, 84
          %v3046 = vpop.permute.xlu0 %3045
          %3047 = vrot.lane.b32.xlu0 %v3005, 84
          %v3048 = vpop.permute.xlu0 %3047
          %3049 = vrot.lane.b32.xlu0 %v3006, 84
          %v3050 = vpop.permute.xlu0 %3049
          %3051 = vrot.lane.b32.xlu0 %v3007, 84
          %v3052 = vpop.permute.xlu0 %3051
          %3053 = vrot.lane.b32.xlu0 %v3008, 84
          %v3054 = vpop.permute.xlu0 %3053
          %3055 = vrot.lane.b32.xlu0 %v3009, 84
          %v3056 = vpop.permute.xlu0 %3055
          %3057 = vrot.lane.b32.xlu0 %v3010, 84
          %v3058 = vpop.permute.xlu0 %3057
          %3059 = vrot.lane.b32.xlu0 %v3011, 84
          %v3060 = vpop.permute.xlu0 %3059
          %3061 = vrot.lane.b32.xlu0 %v3012, 84
          %v3062 = vpop.permute.xlu0 %3061
          %3063 = vrot.lane.b32.xlu0 %v3013, 84
          %v3064 = vpop.permute.xlu0 %3063
          %3065 = vrot.lane.b32.xlu0 %v3014, 84
          %v3066 = vpop.permute.xlu0 %3065
          %3067 = vrot.lane.b32.xlu0 %v3015, 84
          %v3068 = vpop.permute.xlu0 %3067
          %3069 = vrot.lane.b32.xlu0 %v3016, 84
          %v3070 = vpop.permute.xlu0 %3069
          %3071 = vrot.lane.b32.xlu0 %v3017, 84
          %v3072 = vpop.permute.xlu0 %3071
          %3073 = vrot.lane.b32.xlu0 %v3018, 84
          %v3074 = vpop.permute.xlu0 %3073
          %3075 = vrot.lane.b32.xlu0 %v3019, 84
          %v3076 = vpop.permute.xlu0 %3075
          %3077 = vrot.lane.b32.xlu0 %v3020, 84
          %v3078 = vpop.permute.xlu0 %3077
          %3079 = vrot.lane.b32.xlu0 %v3021, 84
          %v3080 = vpop.permute.xlu0 %3079
          %3081 = vrot.lane.b32.xlu0 %v3022, 84
          %v3082 = vpop.permute.xlu0 %3081
          %vm3103 = vcmask 720544
          %3104 = vst.msk [vmem:[#allocation5] sm:$0xff] %vm3103, %v3044
          %3105 = vst.msk [vmem:[#allocation5 + $0x8] sm:$0xff] %vm3103, %v3046
          %3106 = vst.msk [vmem:[#allocation5 + $0x10] sm:$0xff] %vm3103, %v3048
          %3107 = vst.msk [vmem:[#allocation5 + $0x18] sm:$0xff] %vm3103, %v3050
          %3108 = vst.msk [vmem:[#allocation5 + $0x20] sm:$0xff] %vm3103, %v3052
          %3109 = vst.msk [vmem:[#allocation5 + $0x28] sm:$0xff] %vm3103, %v3054
          %3110 = vst.msk [vmem:[#allocation5 + $0x30] sm:$0xff] %vm3103, %v3056
          %3111 = vst.msk [vmem:[#allocation5 + $0x38] sm:$0xff] %vm3103, %v3058
          %3112 = vst.msk [vmem:[#allocation5 + $0x40] sm:$0xff] %vm3103, %v3060
          %3113 = vst.msk [vmem:[#allocation5 + $0x48] sm:$0xff] %vm3103, %v3062
          %3114 = vst.msk [vmem:[#allocation5 + $0x50] sm:$0xff] %vm3103, %v3064
          %3115 = vst.msk [vmem:[#allocation5 + $0x58] sm:$0xff] %vm3103, %v3066
          %3116 = vst.msk [vmem:[#allocation5 + $0x60] sm:$0xff] %vm3103, %v3068
          %3117 = vst.msk [vmem:[#allocation5 + $0x68] sm:$0xff] %vm3103, %v3070
          %3118 = vst.msk [vmem:[#allocation5 + $0x70] sm:$0xff] %vm3103, %v3072
          %3119 = vst.msk [vmem:[#allocation5 + $0x78] sm:$0xff] %vm3103, %v3074
          %3120 = vst.msk [vmem:[#allocation5 + $0x80] sm:$0xff] %vm3103, %v3076
          %3121 = vst.msk [vmem:[#allocation5 + $0x88] sm:$0xff] %vm3103, %v3078
          %3122 = vst.msk [vmem:[#allocation5 + $0x90] sm:$0xff] %vm3103, %v3080
          %3123 = vst.msk [vmem:[#allocation5 + $0x98] sm:$0xff] %vm3103, %v3082
          %s3124 = sadd.s32 %s498, 80
          %s3125 = scalar_lea.vmem %s383, %s3124
          %v3126 = vld [vmem:[%s3125] sm:$0xff]
          %v3127 = vld [vmem:[%s3125 + $0x8] sm:$0xff]
          %v3128 = vld [vmem:[%s3125 + $0x10] sm:$0xff]
          %v3129 = vld [vmem:[%s3125 + $0x18] sm:$0xff]
          %v3130 = vld [vmem:[%s3125 + $0x20] sm:$0xff]
          %v3131 = vld [vmem:[%s3125 + $0x28] sm:$0xff]
          %v3132 = vld [vmem:[%s3125 + $0x30] sm:$0xff]
          %v3133 = vld [vmem:[%s3125 + $0x38] sm:$0xff]
          %v3134 = vld [vmem:[%s3125 + $0x40] sm:$0xff]
          %v3135 = vld [vmem:[%s3125 + $0x48] sm:$0xff]
          %v3136 = vld [vmem:[%s3125 + $0x50] sm:$0xff]
          %v3137 = vld [vmem:[%s3125 + $0x58] sm:$0xff]
          %v3138 = vld [vmem:[%s3125 + $0x60] sm:$0xff]
          %v3139 = vld [vmem:[%s3125 + $0x68] sm:$0xff]
          %v3140 = vld [vmem:[%s3125 + $0x70] sm:$0xff]
          %v3141 = vld [vmem:[%s3125 + $0x78] sm:$0xff]
          %v3142 = vld [vmem:[%s3125 + $0x80] sm:$0xff]
          %v3143 = vld [vmem:[%s3125 + $0x88] sm:$0xff]
          %v3144 = vld [vmem:[%s3125 + $0x90] sm:$0xff]
          %v3145 = vld [vmem:[%s3125 + $0x98] sm:$0xff]
          %3166 = vrot.lane.b32.xlu0 %v3126, 88
          %v3167 = vpop.permute.xlu0 %3166
          %3168 = vrot.lane.b32.xlu0 %v3127, 88
          %v3169 = vpop.permute.xlu0 %3168
          %3170 = vrot.lane.b32.xlu0 %v3128, 88
          %v3171 = vpop.permute.xlu0 %3170
          %3172 = vrot.lane.b32.xlu0 %v3129, 88
          %v3173 = vpop.permute.xlu0 %3172
          %3174 = vrot.lane.b32.xlu0 %v3130, 88
          %v3175 = vpop.permute.xlu0 %3174
          %3176 = vrot.lane.b32.xlu0 %v3131, 88
          %v3177 = vpop.permute.xlu0 %3176
          %3178 = vrot.lane.b32.xlu0 %v3132, 88
          %v3179 = vpop.permute.xlu0 %3178
          %3180 = vrot.lane.b32.xlu0 %v3133, 88
          %v3181 = vpop.permute.xlu0 %3180
          %3182 = vrot.lane.b32.xlu0 %v3134, 88
          %v3183 = vpop.permute.xlu0 %3182
          %3184 = vrot.lane.b32.xlu0 %v3135, 88
          %v3185 = vpop.permute.xlu0 %3184
          %3186 = vrot.lane.b32.xlu0 %v3136, 88
          %v3187 = vpop.permute.xlu0 %3186
          %3188 = vrot.lane.b32.xlu0 %v3137, 88
          %v3189 = vpop.permute.xlu0 %3188
          %3190 = vrot.lane.b32.xlu0 %v3138, 88
          %v3191 = vpop.permute.xlu0 %3190
          %3192 = vrot.lane.b32.xlu0 %v3139, 88
          %v3193 = vpop.permute.xlu0 %3192
          %3194 = vrot.lane.b32.xlu0 %v3140, 88
          %v3195 = vpop.permute.xlu0 %3194
          %3196 = vrot.lane.b32.xlu0 %v3141, 88
          %v3197 = vpop.permute.xlu0 %3196
          %3198 = vrot.lane.b32.xlu0 %v3142, 88
          %v3199 = vpop.permute.xlu0 %3198
          %3200 = vrot.lane.b32.xlu0 %v3143, 88
          %v3201 = vpop.permute.xlu0 %3200
          %3202 = vrot.lane.b32.xlu0 %v3144, 88
          %v3203 = vpop.permute.xlu0 %3202
          %3204 = vrot.lane.b32.xlu0 %v3145, 88
          %v3205 = vpop.permute.xlu0 %3204
          %vm3226 = vcmask 753344
          %3227 = vst.msk [vmem:[#allocation5] sm:$0xff] %vm3226, %v3167
          %3228 = vst.msk [vmem:[#allocation5 + $0x8] sm:$0xff] %vm3226, %v3169
          %3229 = vst.msk [vmem:[#allocation5 + $0x10] sm:$0xff] %vm3226, %v3171
          %3230 = vst.msk [vmem:[#allocation5 + $0x18] sm:$0xff] %vm3226, %v3173
          %3231 = vst.msk [vmem:[#allocation5 + $0x20] sm:$0xff] %vm3226, %v3175
          %3232 = vst.msk [vmem:[#allocation5 + $0x28] sm:$0xff] %vm3226, %v3177
          %3233 = vst.msk [vmem:[#allocation5 + $0x30] sm:$0xff] %vm3226, %v3179
          %3234 = vst.msk [vmem:[#allocation5 + $0x38] sm:$0xff] %vm3226, %v3181
          %3235 = vst.msk [vmem:[#allocation5 + $0x40] sm:$0xff] %vm3226, %v3183
          %3236 = vst.msk [vmem:[#allocation5 + $0x48] sm:$0xff] %vm3226, %v3185
          %3237 = vst.msk [vmem:[#allocation5 + $0x50] sm:$0xff] %vm3226, %v3187
          %3238 = vst.msk [vmem:[#allocation5 + $0x58] sm:$0xff] %vm3226, %v3189
          %3239 = vst.msk [vmem:[#allocation5 + $0x60] sm:$0xff] %vm3226, %v3191
          %3240 = vst.msk [vmem:[#allocation5 + $0x68] sm:$0xff] %vm3226, %v3193
          %3241 = vst.msk [vmem:[#allocation5 + $0x70] sm:$0xff] %vm3226, %v3195
          %3242 = vst.msk [vmem:[#allocation5 + $0x78] sm:$0xff] %vm3226, %v3197
          %3243 = vst.msk [vmem:[#allocation5 + $0x80] sm:$0xff] %vm3226, %v3199
          %3244 = vst.msk [vmem:[#allocation5 + $0x88] sm:$0xff] %vm3226, %v3201
          %3245 = vst.msk [vmem:[#allocation5 + $0x90] sm:$0xff] %vm3226, %v3203
          %3246 = vst.msk [vmem:[#allocation5 + $0x98] sm:$0xff] %vm3226, %v3205
          %s3247 = sadd.s32 %s498, 81
          %s3248 = scalar_lea.vmem %s383, %s3247
          %v3249 = vld [vmem:[%s3248] sm:$0xff]
          %v3250 = vld [vmem:[%s3248 + $0x8] sm:$0xff]
          %v3251 = vld [vmem:[%s3248 + $0x10] sm:$0xff]
          %v3252 = vld [vmem:[%s3248 + $0x18] sm:$0xff]
          %v3253 = vld [vmem:[%s3248 + $0x20] sm:$0xff]
          %v3254 = vld [vmem:[%s3248 + $0x28] sm:$0xff]
          %v3255 = vld [vmem:[%s3248 + $0x30] sm:$0xff]
          %v3256 = vld [vmem:[%s3248 + $0x38] sm:$0xff]
          %v3257 = vld [vmem:[%s3248 + $0x40] sm:$0xff]
          %v3258 = vld [vmem:[%s3248 + $0x48] sm:$0xff]
          %v3259 = vld [vmem:[%s3248 + $0x50] sm:$0xff]
          %v3260 = vld [vmem:[%s3248 + $0x58] sm:$0xff]
          %v3261 = vld [vmem:[%s3248 + $0x60] sm:$0xff]
          %v3262 = vld [vmem:[%s3248 + $0x68] sm:$0xff]
          %v3263 = vld [vmem:[%s3248 + $0x70] sm:$0xff]
          %v3264 = vld [vmem:[%s3248 + $0x78] sm:$0xff]
          %v3265 = vld [vmem:[%s3248 + $0x80] sm:$0xff]
          %v3266 = vld [vmem:[%s3248 + $0x88] sm:$0xff]
          %v3267 = vld [vmem:[%s3248 + $0x90] sm:$0xff]
          %v3268 = vld [vmem:[%s3248 + $0x98] sm:$0xff]
          %3289 = vrot.lane.b32.xlu0 %v3249, 92
          %v3290 = vpop.permute.xlu0 %3289
          %3291 = vrot.lane.b32.xlu0 %v3250, 92
          %v3292 = vpop.permute.xlu0 %3291
          %3293 = vrot.lane.b32.xlu0 %v3251, 92
          %v3294 = vpop.permute.xlu0 %3293
          %3295 = vrot.lane.b32.xlu0 %v3252, 92
          %v3296 = vpop.permute.xlu0 %3295
          %3297 = vrot.lane.b32.xlu0 %v3253, 92
          %v3298 = vpop.permute.xlu0 %3297
          %3299 = vrot.lane.b32.xlu0 %v3254, 92
          %v3300 = vpop.permute.xlu0 %3299
          %3301 = vrot.lane.b32.xlu0 %v3255, 92
          %v3302 = vpop.permute.xlu0 %3301
          %3303 = vrot.lane.b32.xlu0 %v3256, 92
          %v3304 = vpop.permute.xlu0 %3303
          %3305 = vrot.lane.b32.xlu0 %v3257, 92
          %v3306 = vpop.permute.xlu0 %3305
          %3307 = vrot.lane.b32.xlu0 %v3258, 92
          %v3308 = vpop.permute.xlu0 %3307
          %3309 = vrot.lane.b32.xlu0 %v3259, 92
          %v3310 = vpop.permute.xlu0 %3309
          %3311 = vrot.lane.b32.xlu0 %v3260, 92
          %v3312 = vpop.permute.xlu0 %3311
          %3313 = vrot.lane.b32.xlu0 %v3261, 92
          %v3314 = vpop.permute.xlu0 %3313
          %3315 = vrot.lane.b32.xlu0 %v3262, 92
          %v3316 = vpop.permute.xlu0 %3315
          %3317 = vrot.lane.b32.xlu0 %v3263, 92
          %v3318 = vpop.permute.xlu0 %3317
          %3319 = vrot.lane.b32.xlu0 %v3264, 92
          %v3320 = vpop.permute.xlu0 %3319
          %3321 = vrot.lane.b32.xlu0 %v3265, 92
          %v3322 = vpop.permute.xlu0 %3321
          %3323 = vrot.lane.b32.xlu0 %v3266, 92
          %v3324 = vpop.permute.xlu0 %3323
          %3325 = vrot.lane.b32.xlu0 %v3267, 92
          %v3326 = vpop.permute.xlu0 %3325
          %3327 = vrot.lane.b32.xlu0 %v3268, 92
          %v3328 = vpop.permute.xlu0 %3327
          %vm3349 = vcmask 786144
          %3350 = vst.msk [vmem:[#allocation5] sm:$0xff] %vm3349, %v3290
          %3351 = vst.msk [vmem:[#allocation5 + $0x8] sm:$0xff] %vm3349, %v3292
          %3352 = vst.msk [vmem:[#allocation5 + $0x10] sm:$0xff] %vm3349, %v3294
          %3353 = vst.msk [vmem:[#allocation5 + $0x18] sm:$0xff] %vm3349, %v3296
          %3354 = vst.msk [vmem:[#allocation5 + $0x20] sm:$0xff] %vm3349, %v3298
          %3355 = vst.msk [vmem:[#allocation5 + $0x28] sm:$0xff] %vm3349, %v3300
          %3356 = vst.msk [vmem:[#allocation5 + $0x30] sm:$0xff] %vm3349, %v3302
          %3357 = vst.msk [vmem:[#allocation5 + $0x38] sm:$0xff] %vm3349, %v3304
          %3358 = vst.msk [vmem:[#allocation5 + $0x40] sm:$0xff] %vm3349, %v3306
          %3359 = vst.msk [vmem:[#allocation5 + $0x48] sm:$0xff] %vm3349, %v3308
          %3360 = vst.msk [vmem:[#allocation5 + $0x50] sm:$0xff] %vm3349, %v3310
          %3361 = vst.msk [vmem:[#allocation5 + $0x58] sm:$0xff] %vm3349, %v3312
          %3362 = vst.msk [vmem:[#allocation5 + $0x60] sm:$0xff] %vm3349, %v3314
          %3363 = vst.msk [vmem:[#allocation5 + $0x68] sm:$0xff] %vm3349, %v3316
          %3364 = vst.msk [vmem:[#allocation5 + $0x70] sm:$0xff] %vm3349, %v3318
          %3365 = vst.msk [vmem:[#allocation5 + $0x78] sm:$0xff] %vm3349, %v3320
          %3366 = vst.msk [vmem:[#allocation5 + $0x80] sm:$0xff] %vm3349, %v3322
          %3367 = vst.msk [vmem:[#allocation5 + $0x88] sm:$0xff] %vm3349, %v3324
          %3368 = vst.msk [vmem:[#allocation5 + $0x90] sm:$0xff] %vm3349, %v3326
          %3369 = vst.msk [vmem:[#allocation5 + $0x98] sm:$0xff] %vm3349, %v3328
          %s3370 = sadd.s32 %s498, 82
          %s3371 = scalar_lea.vmem %s383, %s3370
          %v3372 = vld [vmem:[%s3371] sm:$0xff]
          %v3373 = vld [vmem:[%s3371 + $0x8] sm:$0xff]
          %v3374 = vld [vmem:[%s3371 + $0x10] sm:$0xff]
          %v3375 = vld [vmem:[%s3371 + $0x18] sm:$0xff]
          %v3376 = vld [vmem:[%s3371 + $0x20] sm:$0xff]
          %v3377 = vld [vmem:[%s3371 + $0x28] sm:$0xff]
          %v3378 = vld [vmem:[%s3371 + $0x30] sm:$0xff]
          %v3379 = vld [vmem:[%s3371 + $0x38] sm:$0xff]
          %v3380 = vld [vmem:[%s3371 + $0x40] sm:$0xff]
          %v3381 = vld [vmem:[%s3371 + $0x48] sm:$0xff]
          %v3382 = vld [vmem:[%s3371 + $0x50] sm:$0xff]
          %v3383 = vld [vmem:[%s3371 + $0x58] sm:$0xff]
          %v3384 = vld [vmem:[%s3371 + $0x60] sm:$0xff]
          %v3385 = vld [vmem:[%s3371 + $0x68] sm:$0xff]
          %v3386 = vld [vmem:[%s3371 + $0x70] sm:$0xff]
          %v3387 = vld [vmem:[%s3371 + $0x78] sm:$0xff]
          %v3388 = vld [vmem:[%s3371 + $0x80] sm:$0xff]
          %v3389 = vld [vmem:[%s3371 + $0x88] sm:$0xff]
          %v3390 = vld [vmem:[%s3371 + $0x90] sm:$0xff]
          %v3391 = vld [vmem:[%s3371 + $0x98] sm:$0xff]
          %3412 = vrot.lane.b32.xlu0 %v3372, 96
          %v3413 = vpop.permute.xlu0 %3412
          %3414 = vrot.lane.b32.xlu0 %v3373, 96
          %v3415 = vpop.permute.xlu0 %3414
          %3416 = vrot.lane.b32.xlu0 %v3374, 96
          %v3417 = vpop.permute.xlu0 %3416
          %3418 = vrot.lane.b32.xlu0 %v3375, 96
          %v3419 = vpop.permute.xlu0 %3418
          %3420 = vrot.lane.b32.xlu0 %v3376, 96
          %v3421 = vpop.permute.xlu0 %3420
          %3422 = vrot.lane.b32.xlu0 %v3377, 96
          %v3423 = vpop.permute.xlu0 %3422
          %3424 = vrot.lane.b32.xlu0 %v3378, 96
          %v3425 = vpop.permute.xlu0 %3424
          %3426 = vrot.lane.b32.xlu0 %v3379, 96
          %v3427 = vpop.permute.xlu0 %3426
          %3428 = vrot.lane.b32.xlu0 %v3380, 96
          %v3429 = vpop.permute.xlu0 %3428
          %3430 = vrot.lane.b32.xlu0 %v3381, 96
          %v3431 = vpop.permute.xlu0 %3430
          %3432 = vrot.lane.b32.xlu0 %v3382, 96
          %v3433 = vpop.permute.xlu0 %3432
          %3434 = vrot.lane.b32.xlu0 %v3383, 96
          %v3435 = vpop.permute.xlu0 %3434
          %3436 = vrot.lane.b32.xlu0 %v3384, 96
          %v3437 = vpop.permute.xlu0 %3436
          %3438 = vrot.lane.b32.xlu0 %v3385, 96
          %v3439 = vpop.permute.xlu0 %3438
          %3440 = vrot.lane.b32.xlu0 %v3386, 96
          %v3441 = vpop.permute.xlu0 %3440
          %3442 = vrot.lane.b32.xlu0 %v3387, 96
          %v3443 = vpop.permute.xlu0 %3442
          %3444 = vrot.lane.b32.xlu0 %v3388, 96
          %v3445 = vpop.permute.xlu0 %3444
          %3446 = vrot.lane.b32.xlu0 %v3389, 96
          %v3447 = vpop.permute.xlu0 %3446
          %3448 = vrot.lane.b32.xlu0 %v3390, 96
          %v3449 = vpop.permute.xlu0 %3448
          %3450 = vrot.lane.b32.xlu0 %v3391, 96
          %v3451 = vpop.permute.xlu0 %3450
          %vm3472 = vcmask 818944
          %3473 = vst.msk [vmem:[#allocation5] sm:$0xff] %vm3472, %v3413
          %3474 = vst.msk [vmem:[#allocation5 + $0x8] sm:$0xff] %vm3472, %v3415
          %3475 = vst.msk [vmem:[#allocation5 + $0x10] sm:$0xff] %vm3472, %v3417
          %3476 = vst.msk [vmem:[#allocation5 + $0x18] sm:$0xff] %vm3472, %v3419
          %3477 = vst.msk [vmem:[#allocation5 + $0x20] sm:$0xff] %vm3472, %v3421
          %3478 = vst.msk [vmem:[#allocation5 + $0x28] sm:$0xff] %vm3472, %v3423
          %3479 = vst.msk [vmem:[#allocation5 + $0x30] sm:$0xff] %vm3472, %v3425
          %3480 = vst.msk [vmem:[#allocation5 + $0x38] sm:$0xff] %vm3472, %v3427
          %3481 = vst.msk [vmem:[#allocation5 + $0x40] sm:$0xff] %vm3472, %v3429
          %3482 = vst.msk [vmem:[#allocation5 + $0x48] sm:$0xff] %vm3472, %v3431
          %3483 = vst.msk [vmem:[#allocation5 + $0x50] sm:$0xff] %vm3472, %v3433
          %3484 = vst.msk [vmem:[#allocation5 + $0x58] sm:$0xff] %vm3472, %v3435
          %3485 = vst.msk [vmem:[#allocation5 + $0x60] sm:$0xff] %vm3472, %v3437
          %3486 = vst.msk [vmem:[#allocation5 + $0x68] sm:$0xff] %vm3472, %v3439
          %3487 = vst.msk [vmem:[#allocation5 + $0x70] sm:$0xff] %vm3472, %v3441
          %3488 = vst.msk [vmem:[#allocation5 + $0x78] sm:$0xff] %vm3472, %v3443
          %3489 = vst.msk [vmem:[#allocation5 + $0x80] sm:$0xff] %vm3472, %v3445
          %3490 = vst.msk [vmem:[#allocation5 + $0x88] sm:$0xff] %vm3472, %v3447
          %3491 = vst.msk [vmem:[#allocation5 + $0x90] sm:$0xff] %vm3472, %v3449
          %3492 = vst.msk [vmem:[#allocation5 + $0x98] sm:$0xff] %vm3472, %v3451
          %v3493 = vld [vmem:[#allocation5] sm:$0xff]
          %v3494 = vld [vmem:[#allocation5 + $0x8] sm:$0xff]
          %v3495 = vld [vmem:[#allocation5 + $0x10] sm:$0xff]
          %v3496 = vld [vmem:[#allocation5 + $0x18] sm:$0xff]
          %v3497 = vld [vmem:[#allocation5 + $0x20] sm:$0xff]
          %v3498 = vld [vmem:[#allocation5 + $0x28] sm:$0xff]
          %v3499 = vld [vmem:[#allocation5 + $0x30] sm:$0xff]
          %v3500 = vld [vmem:[#allocation5 + $0x38] sm:$0xff]
          %v3501 = vld [vmem:[#allocation5 + $0x40] sm:$0xff]
          %v3502 = vld [vmem:[#allocation5 + $0x48] sm:$0xff]
          %v3503 = vld [vmem:[#allocation5 + $0x50] sm:$0xff]
          %v3504 = vld [vmem:[#allocation5 + $0x58] sm:$0xff]
          %v3505 = vld [vmem:[#allocation5 + $0x60] sm:$0xff]
          %v3506 = vld [vmem:[#allocation5 + $0x68] sm:$0xff]
          %v3507 = vld [vmem:[#allocation5 + $0x70] sm:$0xff]
          %v3508 = vld [vmem:[#allocation5 + $0x78] sm:$0xff]
          %v3509 = vld [vmem:[#allocation5 + $0x80] sm:$0xff]
          %v3510 = vld [vmem:[#allocation5 + $0x88] sm:$0xff]
          %v3511 = vld [vmem:[#allocation5 + $0x90] sm:$0xff]
          %v3512 = vld [vmem:[#allocation5 + $0x98] sm:$0xff]
          %v3513 = vpack.c.bf16 %v3494, %v3493
          %v3514 = vpack.c.bf16 %v3496, %v3495
          %v3515 = vpack.c.bf16 %v3498, %v3497
          %v3516 = vpack.c.bf16 %v3500, %v3499
          %v3517 = vpack.c.bf16 %v3502, %v3501
          %v3518 = vpack.c.bf16 %v3504, %v3503
          %v3519 = vpack.c.bf16 %v3506, %v3505
          %v3520 = vpack.c.bf16 %v3508, %v3507
          %v3521 = vpack.c.bf16 %v3510, %v3509
          %v3522 = vpack.c.bf16 %v3512, %v3511
          %v3523 = vld [vmem:[%s1] sm:$0xf]
          %v3524 = vld [vmem:[%s1 + $0x4] sm:$0xf]
          %v3525 = vld [vmem:[%s1 + $0x8] sm:$0xf]
          %v3526 = vld [vmem:[%s1 + $0xc] sm:$0xf]
          %v3527 = vld [vmem:[%s1 + $0x10] sm:$0xf]
          %v3528 = vld [vmem:[%s1 + $0x14] sm:$0xf]
          %v3529 = vld [vmem:[%s1 + $0x18] sm:$0xf]
          %v3530 = vld [vmem:[%s1 + $0x1c] sm:$0xf]
          %v3531 = vld [vmem:[%s1 + $0x20] sm:$0xf]
          %v3532 = vld [vmem:[%s1 + $0x24] sm:$0xf]
          %v3533 = vld [vmem:[%s1 + $0x28] sm:$0xf]
          %v3534 = vld [vmem:[%s1 + $0x2c] sm:$0xf]
          %v3535 = vld [vmem:[%s1 + $0x30] sm:$0x3]
          %v3536 = vld [vmem:[%s2] sm:$0x1]
          %v3538 = vperm.slane %v3536, 0
          %v3553 = vunpack.c.l.b16 %v3523
          %v3554 = vunpack.c.l.b16 %v3524
          %v3555 = vunpack.c.l.b16 %v3525
          %v3556 = vunpack.c.l.b16 %v3526
          %v3557 = vunpack.c.l.b16 %v3527
          %v3558 = vunpack.c.l.b16 %v3528
          %v3559 = vunpack.c.l.b16 %v3529
          %v3560 = vunpack.c.l.b16 %v3530
          %v3561 = vunpack.c.l.b16 %v3531
          %v3562 = vunpack.c.l.b16 %v3532
          %v3563 = vunpack.c.l.b16 %v3533
          %v3564 = vunpack.c.l.b16 %v3534
          %v3565 = vunpack.c.l.b16 %v3535
          %v3566 = vpack.c.b16 %v3554, %v3553
          %v3567 = vpack.c.b16 %v3556, %v3555
          %v3568 = vpack.c.b16 %v3558, %v3557
          %v3569 = vpack.c.b16 %v3560, %v3559
          %v3570 = vpack.c.b16 %v3562, %v3561
          %v3571 = vpack.c.b16 %v3564, %v3563
          %v3572 = vpack.c.b16 %v3565, %v3565
          %vm3579 = vcmask 818176
          %v3581 = vsel %vm3579, %v3513, 0
          %v3584 = vsel %vm3579, %v3514, 0
          %v3587 = vsel %vm3579, %v3515, 0
          %v3590 = vsel %vm3579, %v3516, 0
          %v3593 = vsel %vm3579, %v3517, 0
          %v3596 = vsel %vm3579, %v3518, 0
          %v3599 = vsel %vm3579, %v3519, 0
          %v3602 = vsel %vm3579, %v3520, 0
          %v3605 = vsel %vm3579, %v3521, 0
          %v3608 = vsel %vm3579, %v3522, 0
          %vm3610 = vcmask 1041408
          %v3612 = vsel %vm3610, %v3572, 0
          %3614 = vmatpush.bf16.msra.mxu0 0
          %3615 = vmatpush.bf16.msra.mxu0 %v3612
          %3616 = vmatpush.bf16.msra.mxu0 %v3571
          %3617 = vmatpush.bf16.msra.mxu0 %v3570
          %3618 = vmatpush.bf16.msra.mxu0 %v3569
          %3619 = vmatpush.bf16.msra.mxu0 %v3568
          %3620 = vmatpush.bf16.msra.mxu0 %v3567
          %3621 = vmatpush.bf16.msra.mxu0 %v3566
          %3622 = vmatmul.bf16.gmra.mxu0 %v3581
          %v3623 = vpop.f32.mrf.mxu0
          %v3624 = vadd.f32 %v3538, %v3623
          %v3625 = vpop.f32.mrf.mxu0
          %v3626 = vadd.f32 %v3538, %v3625
          %3627 = vmatmul.bf16.gmra.mxu0 %v3584
          %v3628 = vpop.f32.mrf.mxu0
          %v3629 = vadd.f32 %v3538, %v3628
          %v3630 = vpop.f32.mrf.mxu0
          %v3631 = vadd.f32 %v3538, %v3630
          %3632 = vmatmul.bf16.gmra.mxu0 %v3587
          %v3633 = vpop.f32.mrf.mxu0
          %v3634 = vadd.f32 %v3538, %v3633
          %v3635 = vpop.f32.mrf.mxu0
          %v3636 = vadd.f32 %v3538, %v3635
          %3637 = vmatmul.bf16.gmra.mxu0 %v3590
          %v3638 = vpop.f32.mrf.mxu0
          %v3639 = vadd.f32 %v3538, %v3638
          %v3640 = vpop.f32.mrf.mxu0
          %v3641 = vadd.f32 %v3538, %v3640
          %3642 = vmatmul.bf16.gmra.mxu0 %v3593
          %v3643 = vpop.f32.mrf.mxu0
          %v3644 = vadd.f32 %v3538, %v3643
          %v3645 = vpop.f32.mrf.mxu0
          %v3646 = vadd.f32 %v3538, %v3645
          %3647 = vmatmul.bf16.gmra.mxu0 %v3596
          %v3648 = vpop.f32.mrf.mxu0
          %v3649 = vadd.f32 %v3538, %v3648
          %v3650 = vpop.f32.mrf.mxu0
          %v3651 = vadd.f32 %v3538, %v3650
          %3652 = vmatmul.bf16.gmra.mxu0 %v3599
          %v3653 = vpop.f32.mrf.mxu0
          %v3654 = vadd.f32 %v3538, %v3653
          %v3655 = vpop.f32.mrf.mxu0
          %v3656 = vadd.f32 %v3538, %v3655
          %3657 = vmatmul.bf16.gmra.mxu0 %v3602
          %v3658 = vpop.f32.mrf.mxu0
          %v3659 = vadd.f32 %v3538, %v3658
          %v3660 = vpop.f32.mrf.mxu0
          %v3661 = vadd.f32 %v3538, %v3660
          %3662 = vmatmul.bf16.gmra.mxu0 %v3605
          %v3663 = vpop.f32.mrf.mxu0
          %v3664 = vadd.f32 %v3538, %v3663
          %v3665 = vpop.f32.mrf.mxu0
          %v3666 = vadd.f32 %v3538, %v3665
          %3667 = vmatmul.bf16.gmra.mxu0 %v3608
          %v3668 = vpop.f32.mrf.mxu0
          %v3669 = vadd.f32 %v3538, %v3668
          %v3670 = vpop.f32.mrf.mxu0
          %v3671 = vadd.f32 %v3538, %v3670
          %3672 = vdwg.mxu0
          %3673 = vst.msk [vmem:[#allocation6] sm:$0xff] %vm385, %v3624
          %3674 = vst.msk [vmem:[#allocation6 + $0x8] sm:$0xff] %vm385, %v3626
          %3675 = vst.msk [vmem:[#allocation6 + $0x10] sm:$0xff] %vm385, %v3629
          %3676 = vst.msk [vmem:[#allocation6 + $0x18] sm:$0xff] %vm385, %v3631
          %3677 = vst.msk [vmem:[#allocation6 + $0x20] sm:$0xff] %vm385, %v3634
          %3678 = vst.msk [vmem:[#allocation6 + $0x28] sm:$0xff] %vm385, %v3636
          %3679 = vst.msk [vmem:[#allocation6 + $0x30] sm:$0xff] %vm385, %v3639
          %3680 = vst.msk [vmem:[#allocation6 + $0x38] sm:$0xff] %vm385, %v3641
          %3681 = vst.msk [vmem:[#allocation6 + $0x40] sm:$0xff] %vm385, %v3644
          %3682 = vst.msk [vmem:[#allocation6 + $0x48] sm:$0xff] %vm385, %v3646
          %3683 = vst.msk [vmem:[#allocation6 + $0x50] sm:$0xff] %vm385, %v3649
          %3684 = vst.msk [vmem:[#allocation6 + $0x58] sm:$0xff] %vm385, %v3651
          %3685 = vst.msk [vmem:[#allocation6 + $0x60] sm:$0xff] %vm385, %v3654
          %3686 = vst.msk [vmem:[#allocation6 + $0x68] sm:$0xff] %vm385, %v3656
          %3687 = vst.msk [vmem:[#allocation6 + $0x70] sm:$0xff] %vm385, %v3659
          %3688 = vst.msk [vmem:[#allocation6 + $0x78] sm:$0xff] %vm385, %v3661
          %3689 = vst.msk [vmem:[#allocation6 + $0x80] sm:$0xff] %vm385, %v3664
          %3690 = vst.msk [vmem:[#allocation6 + $0x88] sm:$0xff] %vm385, %v3666
          %3691 = vst.msk [vmem:[#allocation6 + $0x90] sm:$0xff] %vm385, %v3669
          %3692 = vst.msk [vmem:[#allocation6 + $0x98] sm:$0xff] %vm385, %v3671
          %s3693 = scalar_lea.vmem [#allocation6], 8
          %v3694 = vld [vmem:[%s3693] ss:$2 sm:$0xff]
          %s3695 = scalar_lea.vmem [#allocation6], 24
          %v3696 = vld [vmem:[%s3695] ss:$2 sm:$0xff]
          %s3697 = scalar_lea.vmem [#allocation6], 9
          %v3698 = vld [vmem:[%s3697] ss:$2 sm:$0xff]
          %s3699 = scalar_lea.vmem [#allocation6], 25
          %v3700 = vld [vmem:[%s3699] ss:$2 sm:$0xff]
          %s3701 = scalar_lea.vmem [#allocation6], 48
          %v3702 = vld [vmem:[%s3701] ss:$2 sm:$0xff]
          %s3703 = scalar_lea.vmem [#allocation6], 64
          %v3704 = vld [vmem:[%s3703] ss:$2 sm:$0xff]
          %s3705 = scalar_lea.vmem [#allocation6], 49
          %v3706 = vld [vmem:[%s3705] ss:$2 sm:$0xff]
          %s3707 = scalar_lea.vmem [#allocation6], 65
          %v3708 = vld [vmem:[%s3707] ss:$2 sm:$0xff]
          %v3709 = vmax.f32 %v3694, %v3698
          %v3710 = vmax.f32 %v3696, %v3700
          %v3711 = vmax.f32 %v3702, %v3706
          %v3712 = vmax.f32 %v3704, %v3708
          %v3713 = vmax.f32 %v3709, %v3711
          %v3714 = vmax.f32 %v3710, %v3712
          %s3715 = smul.u32 %s491, 2
          %s3716 = sadd.s32 %s3715, 4
          %s3717 = smul.u32 %s3716, 24
          %s3718 = sadd.s32 %s3717, 8
          %s3719 = scalar_lea.vmem [#allocation2], %s3718
          %3720 = vst.msk [vmem:[%s3719] sm:$0xff] %vm385, %v3713
          %3721 = vst.msk [vmem:[%s3719 + $0x8] sm:$0xff] %vm385, %v3714
          %s3722 = scalar_lea.vmem [#allocation6], 88
          %v3723 = vld [vmem:[%s3722] ss:$2 sm:$0xff]
          %s3724 = scalar_lea.vmem [#allocation6], 104
          %v3725 = vld [vmem:[%s3724] ss:$2 sm:$0xff]
          %s3726 = scalar_lea.vmem [#allocation6], 89
          %v3727 = vld [vmem:[%s3726] ss:$2 sm:$0xff]
          %s3728 = scalar_lea.vmem [#allocation6], 105
          %v3729 = vld [vmem:[%s3728] ss:$2 sm:$0xff]
          %s3730 = scalar_lea.vmem [#allocation6], 128
          %v3731 = vld [vmem:[%s3730] ss:$2 sm:$0xff]
          %s3732 = scalar_lea.vmem [#allocation6], 144
          %v3733 = vld [vmem:[%s3732] ss:$2 sm:$0xff]
          %s3734 = scalar_lea.vmem [#allocation6], 129
          %v3735 = vld [vmem:[%s3734] ss:$2 sm:$0xff]
          %s3736 = scalar_lea.vmem [#allocation6], 145
          %v3737 = vld [vmem:[%s3736] ss:$2 sm:$0xff]
          %v3738 = vmax.f32 %v3723, %v3727
          %v3739 = vmax.f32 %v3725, %v3729
          %v3740 = vmax.f32 %v3731, %v3735
          %v3741 = vmax.f32 %v3733, %v3737
          %v3742 = vmax.f32 %v3738, %v3740
          %v3743 = vmax.f32 %v3739, %v3741
          %s3744 = sadd.s32 %s3715, 5
          %s3745 = smul.u32 %s3744, 24
          %s3746 = sadd.s32 %s3745, 8
          %s3747 = scalar_lea.vmem [#allocation2], %s3746
          %3748 = vst.msk [vmem:[%s3747] sm:$0xff] %vm385, %v3742
          %3749 = vst.msk [vmem:[%s3747 + $0x8] sm:$0xff] %vm385, %v3743
        $region69: #{nutty_forward.1} parent=63 // loop_footer
          %s495 = sadd.s32 1, %s491
        $region70: #{nutty_forward.1} parent=63 // loop_footer_branch
          %490 = sbr.rel target = $region66
        $region71: #{nutty_forward.1} parent=63 // loop_exit
          _
        loop: start=0, step=1, limit=4
        $region72: #{nutty_forward.1} parent=63 // loop_pre_header
          _
        $region73: #{nutty_forward.1} parent=63 // loop_header
          %s3751 = sphi 0, %s3755
          %p3752 = scmp.ge.s32.totalorder %s3751, 4
        $region74: #{nutty_forward.1} parent=63 // loop_header_branch
          %3754 = sbr.rel (%p3752) target = $region78
        $region75: #{nutty_forward.1} parent=63 // loop_body
          %s3756 = smul.u32 %s3751, 4
          %s3757 = sadd.s32 %s3756, 4
          %s3758 = smul.u32 %s3757, 24
          %s3759 = sadd.s32 %s3758, 4294967246
          %s3760 = scalar_lea.vmem [#allocation2], %s3759
          %v3761 = vld [vmem:[%s3760] sm:$0xff]
          %v3762 = vld [vmem:[%s3760 + $0x8] sm:$0xff]
          %v3763 = vld [vmem:[%s3760 + $0x10] sm:$0xff]
          %v3764 = vld [vmem:[%s3760 + $0x18] sm:$0xff]
          %v3765 = vld [vmem:[%s3760 + $0x20] sm:$0xff]
          %v3766 = vld [vmem:[%s3760 + $0x28] sm:$0xff]
          %v3767 = vld [vmem:[%s3760 + $0x30] sm:$0xff]
          %v3768 = vld [vmem:[%s3760 + $0x38] sm:$0xff]
          %v3769 = vld [vmem:[%s3760 + $0x40] sm:$0xff]
          %v3770 = vld [vmem:[%s3760 + $0x48] sm:$0xff]
          %v3771 = vld [vmem:[%s3760 + $0x50] sm:$0xff]
          %v3772 = vld [vmem:[%s3760 + $0x58] sm:$0xff]
          %3773 = vst.msk [vmem:[#allocation7] sm:$0xff] %vm385, %v3761
          %3774 = vst.msk [vmem:[#allocation7 + $0x38] sm:$0xff] %vm385, %v3762
          %3775 = vst.msk [vmem:[#allocation7 + $0x70] sm:$0xff] %vm385, %v3763
          %3776 = vst.msk [vmem:[#allocation7 + $0xa8] sm:$0xff] %vm385, %v3764
          %3777 = vst.msk [vmem:[#allocation7 + $0xe0] sm:$0xff] %vm385, %v3765
          %3778 = vst.msk [vmem:[#allocation7 + $0x118] sm:$0xff] %vm385, %v3766
          %3779 = vst.msk [vmem:[#allocation7 + $0x150] sm:$0xff] %vm385, %v3767
          %3780 = vst.msk [vmem:[#allocation7 + $0x188] sm:$0xff] %vm385, %v3768
          %3781 = vst.msk [vmem:[#allocation7 + $0x1c0] sm:$0xff] %vm385, %v3769
          %3782 = vst.msk [vmem:[#allocation7 + $0x1f8] sm:$0xff] %vm385, %v3770
          %3783 = vst.msk [vmem:[#allocation7 + $0x230] sm:$0xff] %vm385, %v3771
          %3784 = vst.msk [vmem:[#allocation7 + $0x268] sm:$0xff] %vm385, %v3772
          %s3785 = sadd.s32 %s3758, 4294967247
          %s3786 = scalar_lea.vmem [#allocation2], %s3785
          %v3787 = vld [vmem:[%s3786] sm:$0xff]
          %v3788 = vld [vmem:[%s3786 + $0x8] sm:$0xff]
          %v3789 = vld [vmem:[%s3786 + $0x10] sm:$0xff]
          %v3790 = vld [vmem:[%s3786 + $0x18] sm:$0xff]
          %v3791 = vld [vmem:[%s3786 + $0x20] sm:$0xff]
          %v3792 = vld [vmem:[%s3786 + $0x28] sm:$0xff]
          %v3793 = vld [vmem:[%s3786 + $0x30] sm:$0xff]
          %v3794 = vld [vmem:[%s3786 + $0x38] sm:$0xff]
          %v3795 = vld [vmem:[%s3786 + $0x40] sm:$0xff]
          %v3796 = vld [vmem:[%s3786 + $0x48] sm:$0xff]
          %v3797 = vld [vmem:[%s3786 + $0x50] sm:$0xff]
          %v3798 = vld [vmem:[%s3786 + $0x58] sm:$0xff]
          %3811 = vrot.lane.b32.xlu0 %v3787, 32
          %v3812 = vpop.permute.xlu0 %3811
          %3813 = vrot.lane.b32.xlu0 %v3788, 32
          %v3814 = vpop.permute.xlu0 %3813
          %3815 = vrot.lane.b32.xlu0 %v3789, 32
          %v3816 = vpop.permute.xlu0 %3815
          %3817 = vrot.lane.b32.xlu0 %v3790, 32
          %v3818 = vpop.permute.xlu0 %3817
          %3819 = vrot.lane.b32.xlu0 %v3791, 32
          %v3820 = vpop.permute.xlu0 %3819
          %3821 = vrot.lane.b32.xlu0 %v3792, 32
          %v3822 = vpop.permute.xlu0 %3821
          %3823 = vrot.lane.b32.xlu0 %v3793, 32
          %v3824 = vpop.permute.xlu0 %3823
          %3825 = vrot.lane.b32.xlu0 %v3794, 32
          %v3826 = vpop.permute.xlu0 %3825
          %3827 = vrot.lane.b32.xlu0 %v3795, 32
          %v3828 = vpop.permute.xlu0 %3827
          %3829 = vrot.lane.b32.xlu0 %v3796, 32
          %v3830 = vpop.permute.xlu0 %3829
          %3831 = vrot.lane.b32.xlu0 %v3797, 32
          %v3832 = vpop.permute.xlu0 %3831
          %3833 = vrot.lane.b32.xlu0 %v3798, 32
          %v3834 = vpop.permute.xlu0 %3833
          %vm3847 = vcmask 523520
          %3848 = vst.msk [vmem:[#allocation7] sm:$0xff] %vm3847, %v3812
          %3849 = vst.msk [vmem:[#allocation7 + $0x38] sm:$0xff] %vm3847, %v3814
          %3850 = vst.msk [vmem:[#allocation7 + $0x70] sm:$0xff] %vm3847, %v3816
          %3851 = vst.msk [vmem:[#allocation7 + $0xa8] sm:$0xff] %vm3847, %v3818
          %3852 = vst.msk [vmem:[#allocation7 + $0xe0] sm:$0xff] %vm3847, %v3820
          %3853 = vst.msk [vmem:[#allocation7 + $0x118] sm:$0xff] %vm3847, %v3822
          %3854 = vst.msk [vmem:[#allocation7 + $0x150] sm:$0xff] %vm3847, %v3824
          %3855 = vst.msk [vmem:[#allocation7 + $0x188] sm:$0xff] %vm3847, %v3826
          %3856 = vst.msk [vmem:[#allocation7 + $0x1c0] sm:$0xff] %vm3847, %v3828
          %3857 = vst.msk [vmem:[#allocation7 + $0x1f8] sm:$0xff] %vm3847, %v3830
          %3858 = vst.msk [vmem:[#allocation7 + $0x230] sm:$0xff] %vm3847, %v3832
          %3859 = vst.msk [vmem:[#allocation7 + $0x268] sm:$0xff] %vm3847, %v3834
          %s3860 = sadd.s32 %s3758, 4294967248
          %s3861 = scalar_lea.vmem [#allocation2], %s3860
          %v3862 = vld [vmem:[%s3861] sm:$0xff]
          %v3863 = vld [vmem:[%s3861 + $0x8] sm:$0xff]
          %v3864 = vld [vmem:[%s3861 + $0x10] sm:$0xff]
          %v3865 = vld [vmem:[%s3861 + $0x18] sm:$0xff]
          %v3866 = vld [vmem:[%s3861 + $0x20] sm:$0xff]
          %v3867 = vld [vmem:[%s3861 + $0x28] sm:$0xff]
          %v3868 = vld [vmem:[%s3861 + $0x30] sm:$0xff]
          %v3869 = vld [vmem:[%s3861 + $0x38] sm:$0xff]
          %v3870 = vld [vmem:[%s3861 + $0x40] sm:$0xff]
          %v3871 = vld [vmem:[%s3861 + $0x48] sm:$0xff]
          %v3872 = vld [vmem:[%s3861 + $0x50] sm:$0xff]
          %v3873 = vld [vmem:[%s3861 + $0x58] sm:$0xff]
          %3886 = vrot.lane.b32.xlu0 %v3862, 64
          %v3887 = vpop.permute.xlu0 %3886
          %3888 = vrot.lane.b32.xlu0 %v3863, 64
          %v3889 = vpop.permute.xlu0 %3888
          %3890 = vrot.lane.b32.xlu0 %v3864, 64
          %v3891 = vpop.permute.xlu0 %3890
          %3892 = vrot.lane.b32.xlu0 %v3865, 64
          %v3893 = vpop.permute.xlu0 %3892
          %3894 = vrot.lane.b32.xlu0 %v3866, 64
          %v3895 = vpop.permute.xlu0 %3894
          %3896 = vrot.lane.b32.xlu0 %v3867, 64
          %v3897 = vpop.permute.xlu0 %3896
          %3898 = vrot.lane.b32.xlu0 %v3868, 64
          %v3899 = vpop.permute.xlu0 %3898
          %3900 = vrot.lane.b32.xlu0 %v3869, 64
          %v3901 = vpop.permute.xlu0 %3900
          %3902 = vrot.lane.b32.xlu0 %v3870, 64
          %v3903 = vpop.permute.xlu0 %3902
          %3904 = vrot.lane.b32.xlu0 %v3871, 64
          %v3905 = vpop.permute.xlu0 %3904
          %3906 = vrot.lane.b32.xlu0 %v3872, 64
          %v3907 = vpop.permute.xlu0 %3906
          %3908 = vrot.lane.b32.xlu0 %v3873, 64
          %v3909 = vpop.permute.xlu0 %3908
          %vm3922 = vcmask 785920
          %3923 = vst.msk [vmem:[#allocation7] sm:$0xff] %vm3922, %v3887
          %3924 = vst.msk [vmem:[#allocation7 + $0x38] sm:$0xff] %vm3922, %v3889
          %3925 = vst.msk [vmem:[#allocation7 + $0x70] sm:$0xff] %vm3922, %v3891
          %3926 = vst.msk [vmem:[#allocation7 + $0xa8] sm:$0xff] %vm3922, %v3893
          %3927 = vst.msk [vmem:[#allocation7 + $0xe0] sm:$0xff] %vm3922, %v3895
          %3928 = vst.msk [vmem:[#allocation7 + $0x118] sm:$0xff] %vm3922, %v3897
          %3929 = vst.msk [vmem:[#allocation7 + $0x150] sm:$0xff] %vm3922, %v3899
          %3930 = vst.msk [vmem:[#allocation7 + $0x188] sm:$0xff] %vm3922, %v3901
          %3931 = vst.msk [vmem:[#allocation7 + $0x1c0] sm:$0xff] %vm3922, %v3903
          %3932 = vst.msk [vmem:[#allocation7 + $0x1f8] sm:$0xff] %vm3922, %v3905
          %3933 = vst.msk [vmem:[#allocation7 + $0x230] sm:$0xff] %vm3922, %v3907
          %3934 = vst.msk [vmem:[#allocation7 + $0x268] sm:$0xff] %vm3922, %v3909
          %s3935 = sadd.s32 %s3758, 4294967249
          %s3936 = scalar_lea.vmem [#allocation2], %s3935
          %v3937 = vld [vmem:[%s3936] sm:$0xff]
          %v3938 = vld [vmem:[%s3936 + $0x8] sm:$0xff]
          %v3939 = vld [vmem:[%s3936 + $0x10] sm:$0xff]
          %v3940 = vld [vmem:[%s3936 + $0x18] sm:$0xff]
          %v3941 = vld [vmem:[%s3936 + $0x20] sm:$0xff]
          %v3942 = vld [vmem:[%s3936 + $0x28] sm:$0xff]
          %v3943 = vld [vmem:[%s3936 + $0x30] sm:$0xff]
          %v3944 = vld [vmem:[%s3936 + $0x38] sm:$0xff]
          %v3945 = vld [vmem:[%s3936 + $0x40] sm:$0xff]
          %v3946 = vld [vmem:[%s3936 + $0x48] sm:$0xff]
          %v3947 = vld [vmem:[%s3936 + $0x50] sm:$0xff]
          %v3948 = vld [vmem:[%s3936 + $0x58] sm:$0xff]
          %3961 = vrot.lane.b32.xlu0 %v3937, 96
          %v3962 = vpop.permute.xlu0 %3961
          %3963 = vrot.lane.b32.xlu0 %v3938, 96
          %v3964 = vpop.permute.xlu0 %3963
          %3965 = vrot.lane.b32.xlu0 %v3939, 96
          %v3966 = vpop.permute.xlu0 %3965
          %3967 = vrot.lane.b32.xlu0 %v3940, 96
          %v3968 = vpop.permute.xlu0 %3967
          %3969 = vrot.lane.b32.xlu0 %v3941, 96
          %v3970 = vpop.permute.xlu0 %3969
          %3971 = vrot.lane.b32.xlu0 %v3942, 96
          %v3972 = vpop.permute.xlu0 %3971
          %3973 = vrot.lane.b32.xlu0 %v3943, 96
          %v3974 = vpop.permute.xlu0 %3973
          %3975 = vrot.lane.b32.xlu0 %v3944, 96
          %v3976 = vpop.permute.xlu0 %3975
          %3977 = vrot.lane.b32.xlu0 %v3945, 96
          %v3978 = vpop.permute.xlu0 %3977
          %3979 = vrot.lane.b32.xlu0 %v3946, 96
          %v3980 = vpop.permute.xlu0 %3979
          %3981 = vrot.lane.b32.xlu0 %v3947, 96
          %v3982 = vpop.permute.xlu0 %3981
          %3983 = vrot.lane.b32.xlu0 %v3948, 96
          %v3984 = vpop.permute.xlu0 %3983
          %vm3997 = vcmask 1048320
          %3998 = vst.msk [vmem:[#allocation7] sm:$0xff] %vm3997, %v3962
          %3999 = vst.msk [vmem:[#allocation7 + $0x38] sm:$0xff] %vm3997, %v3964
          %4000 = vst.msk [vmem:[#allocation7 + $0x70] sm:$0xff] %vm3997, %v3966
          %4001 = vst.msk [vmem:[#allocation7 + $0xa8] sm:$0xff] %vm3997, %v3968
          %4002 = vst.msk [vmem:[#allocation7 + $0xe0] sm:$0xff] %vm3997, %v3970
          %4003 = vst.msk [vmem:[#allocation7 + $0x118] sm:$0xff] %vm3997, %v3972
          %4004 = vst.msk [vmem:[#allocation7 + $0x150] sm:$0xff] %vm3997, %v3974
          %4005 = vst.msk [vmem:[#allocation7 + $0x188] sm:$0xff] %vm3997, %v3976
          %4006 = vst.msk [vmem:[#allocation7 + $0x1c0] sm:$0xff] %vm3997, %v3978
          %4007 = vst.msk [vmem:[#allocation7 + $0x1f8] sm:$0xff] %vm3997, %v3980
          %4008 = vst.msk [vmem:[#allocation7 + $0x230] sm:$0xff] %vm3997, %v3982
          %4009 = vst.msk [vmem:[#allocation7 + $0x268] sm:$0xff] %vm3997, %v3984
          %s4010 = sadd.s32 %s3758, 4294967250
          %s4011 = scalar_lea.vmem [#allocation2], %s4010
          %v4012 = vld [vmem:[%s4011] sm:$0xff]
          %v4013 = vld [vmem:[%s4011 + $0x8] sm:$0xff]
          %v4014 = vld [vmem:[%s4011 + $0x10] sm:$0xff]
          %v4015 = vld [vmem:[%s4011 + $0x18] sm:$0xff]
          %v4016 = vld [vmem:[%s4011 + $0x20] sm:$0xff]
          %v4017 = vld [vmem:[%s4011 + $0x28] sm:$0xff]
          %v4018 = vld [vmem:[%s4011 + $0x30] sm:$0xff]
          %v4019 = vld [vmem:[%s4011 + $0x38] sm:$0xff]
          %v4020 = vld [vmem:[%s4011 + $0x40] sm:$0xff]
          %v4021 = vld [vmem:[%s4011 + $0x48] sm:$0xff]
          %v4022 = vld [vmem:[%s4011 + $0x50] sm:$0xff]
          %v4023 = vld [vmem:[%s4011 + $0x58] sm:$0xff]
          %4024 = vst.msk [vmem:[#allocation7 + $0x8] sm:$0xff] %vm385, %v4012
          %4025 = vst.msk [vmem:[#allocation7 + $0x40] sm:$0xff] %vm385, %v4013
          %4026 = vst.msk [vmem:[#allocation7 + $0x78] sm:$0xff] %vm385, %v4014
          %4027 = vst.msk [vmem:[#allocation7 + $0xb0] sm:$0xff] %vm385, %v4015
          %4028 = vst.msk [vmem:[#allocation7 + $0xe8] sm:$0xff] %vm385, %v4016
          %4029 = vst.msk [vmem:[#allocation7 + $0x120] sm:$0xff] %vm385, %v4017
          %4030 = vst.msk [vmem:[#allocation7 + $0x158] sm:$0xff] %vm385, %v4018
          %4031 = vst.msk [vmem:[#allocation7 + $0x190] sm:$0xff] %vm385, %v4019
          %4032 = vst.msk [vmem:[#allocation7 + $0x1c8] sm:$0xff] %vm385, %v4020
          %4033 = vst.msk [vmem:[#allocation7 + $0x200] sm:$0xff] %vm385, %v4021
          %4034 = vst.msk [vmem:[#allocation7 + $0x238] sm:$0xff] %vm385, %v4022
          %4035 = vst.msk [vmem:[#allocation7 + $0x270] sm:$0xff] %vm385, %v4023
          %s4036 = sadd.s32 %s3758, 4294967270
          %s4037 = scalar_lea.vmem [#allocation2], %s4036
          %v4038 = vld [vmem:[%s4037] sm:$0xff]
          %v4039 = vld [vmem:[%s4037 + $0x8] sm:$0xff]
          %v4040 = vld [vmem:[%s4037 + $0x10] sm:$0xff]
          %v4041 = vld [vmem:[%s4037 + $0x18] sm:$0xff]
          %v4042 = vld [vmem:[%s4037 + $0x20] sm:$0xff]
          %v4043 = vld [vmem:[%s4037 + $0x28] sm:$0xff]
          %v4044 = vld [vmem:[%s4037 + $0x30] sm:$0xff]
          %v4045 = vld [vmem:[%s4037 + $0x38] sm:$0xff]
          %v4046 = vld [vmem:[%s4037 + $0x40] sm:$0xff]
          %v4047 = vld [vmem:[%s4037 + $0x48] sm:$0xff]
          %v4048 = vld [vmem:[%s4037 + $0x50] sm:$0xff]
          %v4049 = vld [vmem:[%s4037 + $0x58] sm:$0xff]
          %4062 = vrot.lane.b32.xlu0 %v4038, 32
          %v4063 = vpop.permute.xlu0 %4062
          %4064 = vrot.lane.b32.xlu0 %v4039, 32
          %v4065 = vpop.permute.xlu0 %4064
          %4066 = vrot.lane.b32.xlu0 %v4040, 32
          %v4067 = vpop.permute.xlu0 %4066
          %4068 = vrot.lane.b32.xlu0 %v4041, 32
          %v4069 = vpop.permute.xlu0 %4068
          %4070 = vrot.lane.b32.xlu0 %v4042, 32
          %v4071 = vpop.permute.xlu0 %4070
          %4072 = vrot.lane.b32.xlu0 %v4043, 32
          %v4073 = vpop.permute.xlu0 %4072
          %4074 = vrot.lane.b32.xlu0 %v4044, 32
          %v4075 = vpop.permute.xlu0 %4074
          %4076 = vrot.lane.b32.xlu0 %v4045, 32
          %v4077 = vpop.permute.xlu0 %4076
          %4078 = vrot.lane.b32.xlu0 %v4046, 32
          %v4079 = vpop.permute.xlu0 %4078
          %4080 = vrot.lane.b32.xlu0 %v4047, 32
          %v4081 = vpop.permute.xlu0 %4080
          %4082 = vrot.lane.b32.xlu0 %v4048, 32
          %v4083 = vpop.permute.xlu0 %4082
          %4084 = vrot.lane.b32.xlu0 %v4049, 32
          %v4085 = vpop.permute.xlu0 %4084
          %4098 = vst.msk [vmem:[#allocation7 + $0x8] sm:$0xff] %vm3847, %v4063
          %4099 = vst.msk [vmem:[#allocation7 + $0x40] sm:$0xff] %vm3847, %v4065
          %4100 = vst.msk [vmem:[#allocation7 + $0x78] sm:$0xff] %vm3847, %v4067
          %4101 = vst.msk [vmem:[#allocation7 + $0xb0] sm:$0xff] %vm3847, %v4069
          %4102 = vst.msk [vmem:[#allocation7 + $0xe8] sm:$0xff] %vm3847, %v4071
          %4103 = vst.msk [vmem:[#allocation7 + $0x120] sm:$0xff] %vm3847, %v4073
          %4104 = vst.msk [vmem:[#allocation7 + $0x158] sm:$0xff] %vm3847, %v4075
          %4105 = vst.msk [vmem:[#allocation7 + $0x190] sm:$0xff] %vm3847, %v4077
          %4106 = vst.msk [vmem:[#allocation7 + $0x1c8] sm:$0xff] %vm3847, %v4079
          %4107 = vst.msk [vmem:[#allocation7 + $0x200] sm:$0xff] %vm3847, %v4081
          %4108 = vst.msk [vmem:[#allocation7 + $0x238] sm:$0xff] %vm3847, %v4083
          %4109 = vst.msk [vmem:[#allocation7 + $0x270] sm:$0xff] %vm3847, %v4085
          %s4110 = sadd.s32 %s3758, 4294967271
          %s4111 = scalar_lea.vmem [#allocation2], %s4110
          %v4112 = vld [vmem:[%s4111] sm:$0xff]
          %v4113 = vld [vmem:[%s4111 + $0x8] sm:$0xff]
          %v4114 = vld [vmem:[%s4111 + $0x10] sm:$0xff]
          %v4115 = vld [vmem:[%s4111 + $0x18] sm:$0xff]
          %v4116 = vld [vmem:[%s4111 + $0x20] sm:$0xff]
          %v4117 = vld [vmem:[%s4111 + $0x28] sm:$0xff]
          %v4118 = vld [vmem:[%s4111 + $0x30] sm:$0xff]
          %v4119 = vld [vmem:[%s4111 + $0x38] sm:$0xff]
          %v4120 = vld [vmem:[%s4111 + $0x40] sm:$0xff]
          %v4121 = vld [vmem:[%s4111 + $0x48] sm:$0xff]
          %v4122 = vld [vmem:[%s4111 + $0x50] sm:$0xff]
          %v4123 = vld [vmem:[%s4111 + $0x58] sm:$0xff]
          %4136 = vrot.lane.b32.xlu0 %v4112, 64
          %v4137 = vpop.permute.xlu0 %4136
          %4138 = vrot.lane.b32.xlu0 %v4113, 64
          %v4139 = vpop.permute.xlu0 %4138
          %4140 = vrot.lane.b32.xlu0 %v4114, 64
          %v4141 = vpop.permute.xlu0 %4140
          %4142 = vrot.lane.b32.xlu0 %v4115, 64
          %v4143 = vpop.permute.xlu0 %4142
          %4144 = vrot.lane.b32.xlu0 %v4116, 64
          %v4145 = vpop.permute.xlu0 %4144
          %4146 = vrot.lane.b32.xlu0 %v4117, 64
          %v4147 = vpop.permute.xlu0 %4146
          %4148 = vrot.lane.b32.xlu0 %v4118, 64
          %v4149 = vpop.permute.xlu0 %4148
          %4150 = vrot.lane.b32.xlu0 %v4119, 64
          %v4151 = vpop.permute.xlu0 %4150
          %4152 = vrot.lane.b32.xlu0 %v4120, 64
          %v4153 = vpop.permute.xlu0 %4152
          %4154 = vrot.lane.b32.xlu0 %v4121, 64
          %v4155 = vpop.permute.xlu0 %4154
          %4156 = vrot.lane.b32.xlu0 %v4122, 64
          %v4157 = vpop.permute.xlu0 %4156
          %4158 = vrot.lane.b32.xlu0 %v4123, 64
          %v4159 = vpop.permute.xlu0 %4158
          %4172 = vst.msk [vmem:[#allocation7 + $0x8] sm:$0xff] %vm3922, %v4137
          %4173 = vst.msk [vmem:[#allocation7 + $0x40] sm:$0xff] %vm3922, %v4139
          %4174 = vst.msk [vmem:[#allocation7 + $0x78] sm:$0xff] %vm3922, %v4141
          %4175 = vst.msk [vmem:[#allocation7 + $0xb0] sm:$0xff] %vm3922, %v4143
          %4176 = vst.msk [vmem:[#allocation7 + $0xe8] sm:$0xff] %vm3922, %v4145
          %4177 = vst.msk [vmem:[#allocation7 + $0x120] sm:$0xff] %vm3922, %v4147
          %4178 = vst.msk [vmem:[#allocation7 + $0x158] sm:$0xff] %vm3922, %v4149
          %4179 = vst.msk [vmem:[#allocation7 + $0x190] sm:$0xff] %vm3922, %v4151
          %4180 = vst.msk [vmem:[#allocation7 + $0x1c8] sm:$0xff] %vm3922, %v4153
          %4181 = vst.msk [vmem:[#allocation7 + $0x200] sm:$0xff] %vm3922, %v4155
          %4182 = vst.msk [vmem:[#allocation7 + $0x238] sm:$0xff] %vm3922, %v4157
          %4183 = vst.msk [vmem:[#allocation7 + $0x270] sm:$0xff] %vm3922, %v4159
          %s4184 = sadd.s32 %s3758, 4294967272
          %s4185 = scalar_lea.vmem [#allocation2], %s4184
          %v4186 = vld [vmem:[%s4185] sm:$0xff]
          %v4187 = vld [vmem:[%s4185 + $0x8] sm:$0xff]
          %v4188 = vld [vmem:[%s4185 + $0x10] sm:$0xff]
          %v4189 = vld [vmem:[%s4185 + $0x18] sm:$0xff]
          %v4190 = vld [vmem:[%s4185 + $0x20] sm:$0xff]
          %v4191 = vld [vmem:[%s4185 + $0x28] sm:$0xff]
          %v4192 = vld [vmem:[%s4185 + $0x30] sm:$0xff]
          %v4193 = vld [vmem:[%s4185 + $0x38] sm:$0xff]
          %v4194 = vld [vmem:[%s4185 + $0x40] sm:$0xff]
          %v4195 = vld [vmem:[%s4185 + $0x48] sm:$0xff]
          %v4196 = vld [vmem:[%s4185 + $0x50] sm:$0xff]
          %v4197 = vld [vmem:[%s4185 + $0x58] sm:$0xff]
          %4210 = vrot.lane.b32.xlu0 %v4186, 96
          %v4211 = vpop.permute.xlu0 %4210
          %4212 = vrot.lane.b32.xlu0 %v4187, 96
          %v4213 = vpop.permute.xlu0 %4212
          %4214 = vrot.lane.b32.xlu0 %v4188, 96
          %v4215 = vpop.permute.xlu0 %4214
          %4216 = vrot.lane.b32.xlu0 %v4189, 96
          %v4217 = vpop.permute.xlu0 %4216
          %4218 = vrot.lane.b32.xlu0 %v4190, 96
          %v4219 = vpop.permute.xlu0 %4218
          %4220 = vrot.lane.b32.xlu0 %v4191, 96
          %v4221 = vpop.permute.xlu0 %4220
          %4222 = vrot.lane.b32.xlu0 %v4192, 96
          %v4223 = vpop.permute.xlu0 %4222
          %4224 = vrot.lane.b32.xlu0 %v4193, 96
          %v4225 = vpop.permute.xlu0 %4224
          %4226 = vrot.lane.b32.xlu0 %v4194, 96
          %v4227 = vpop.permute.xlu0 %4226
          %4228 = vrot.lane.b32.xlu0 %v4195, 96
          %v4229 = vpop.permute.xlu0 %4228
          %4230 = vrot.lane.b32.xlu0 %v4196, 96
          %v4231 = vpop.permute.xlu0 %4230
          %4232 = vrot.lane.b32.xlu0 %v4197, 96
          %v4233 = vpop.permute.xlu0 %4232
          %4246 = vst.msk [vmem:[#allocation7 + $0x8] sm:$0xff] %vm3997, %v4211
          %4247 = vst.msk [vmem:[#allocation7 + $0x40] sm:$0xff] %vm3997, %v4213
          %4248 = vst.msk [vmem:[#allocation7 + $0x78] sm:$0xff] %vm3997, %v4215
          %4249 = vst.msk [vmem:[#allocation7 + $0xb0] sm:$0xff] %vm3997, %v4217
          %4250 = vst.msk [vmem:[#allocation7 + $0xe8] sm:$0xff] %vm3997, %v4219
          %4251 = vst.msk [vmem:[#allocation7 + $0x120] sm:$0xff] %vm3997, %v4221
          %4252 = vst.msk [vmem:[#allocation7 + $0x158] sm:$0xff] %vm3997, %v4223
          %4253 = vst.msk [vmem:[#allocation7 + $0x190] sm:$0xff] %vm3997, %v4225
          %4254 = vst.msk [vmem:[#allocation7 + $0x1c8] sm:$0xff] %vm3997, %v4227
          %4255 = vst.msk [vmem:[#allocation7 + $0x200] sm:$0xff] %vm3997, %v4229
          %4256 = vst.msk [vmem:[#allocation7 + $0x238] sm:$0xff] %vm3997, %v4231
          %4257 = vst.msk [vmem:[#allocation7 + $0x270] sm:$0xff] %vm3997, %v4233
          %s4258 = sadd.s32 %s3758, 4294967273
          %s4259 = scalar_lea.vmem [#allocation2], %s4258
          %v4260 = vld [vmem:[%s4259] sm:$0xff]
          %v4261 = vld [vmem:[%s4259 + $0x8] sm:$0xff]
          %v4262 = vld [vmem:[%s4259 + $0x10] sm:$0xff]
          %v4263 = vld [vmem:[%s4259 + $0x18] sm:$0xff]
          %v4264 = vld [vmem:[%s4259 + $0x20] sm:$0xff]
          %v4265 = vld [vmem:[%s4259 + $0x28] sm:$0xff]
          %v4266 = vld [vmem:[%s4259 + $0x30] sm:$0xff]
          %v4267 = vld [vmem:[%s4259 + $0x38] sm:$0xff]
          %v4268 = vld [vmem:[%s4259 + $0x40] sm:$0xff]
          %v4269 = vld [vmem:[%s4259 + $0x48] sm:$0xff]
          %v4270 = vld [vmem:[%s4259 + $0x50] sm:$0xff]
          %v4271 = vld [vmem:[%s4259 + $0x58] sm:$0xff]
          %4272 = vst.msk [vmem:[#allocation7 + $0x10] sm:$0xff] %vm385, %v4260
          %4273 = vst.msk [vmem:[#allocation7 + $0x48] sm:$0xff] %vm385, %v4261
          %4274 = vst.msk [vmem:[#allocation7 + $0x80] sm:$0xff] %vm385, %v4262
          %4275 = vst.msk [vmem:[#allocation7 + $0xb8] sm:$0xff] %vm385, %v4263
          %4276 = vst.msk [vmem:[#allocation7 + $0xf0] sm:$0xff] %vm385, %v4264
          %4277 = vst.msk [vmem:[#allocation7 + $0x128] sm:$0xff] %vm385, %v4265
          %4278 = vst.msk [vmem:[#allocation7 + $0x160] sm:$0xff] %vm385, %v4266
          %4279 = vst.msk [vmem:[#allocation7 + $0x198] sm:$0xff] %vm385, %v4267
          %4280 = vst.msk [vmem:[#allocation7 + $0x1d0] sm:$0xff] %vm385, %v4268
          %4281 = vst.msk [vmem:[#allocation7 + $0x208] sm:$0xff] %vm385, %v4269
          %4282 = vst.msk [vmem:[#allocation7 + $0x240] sm:$0xff] %vm385, %v4270
          %4283 = vst.msk [vmem:[#allocation7 + $0x278] sm:$0xff] %vm385, %v4271
          %s4284 = sadd.s32 %s3758, 4294967274
          %s4285 = scalar_lea.vmem [#allocation2], %s4284
          %v4286 = vld [vmem:[%s4285] sm:$0xff]
          %v4287 = vld [vmem:[%s4285 + $0x8] sm:$0xff]
          %v4288 = vld [vmem:[%s4285 + $0x10] sm:$0xff]
          %v4289 = vld [vmem:[%s4285 + $0x18] sm:$0xff]
          %v4290 = vld [vmem:[%s4285 + $0x20] sm:$0xff]
          %v4291 = vld [vmem:[%s4285 + $0x28] sm:$0xff]
          %v4292 = vld [vmem:[%s4285 + $0x30] sm:$0xff]
          %v4293 = vld [vmem:[%s4285 + $0x38] sm:$0xff]
          %v4294 = vld [vmem:[%s4285 + $0x40] sm:$0xff]
          %v4295 = vld [vmem:[%s4285 + $0x48] sm:$0xff]
          %v4296 = vld [vmem:[%s4285 + $0x50] sm:$0xff]
          %v4297 = vld [vmem:[%s4285 + $0x58] sm:$0xff]
          %4310 = vrot.lane.b32.xlu0 %v4286, 32
          %v4311 = vpop.permute.xlu0 %4310
          %4312 = vrot.lane.b32.xlu0 %v4287, 32
          %v4313 = vpop.permute.xlu0 %4312
          %4314 = vrot.lane.b32.xlu0 %v4288, 32
          %v4315 = vpop.permute.xlu0 %4314
          %4316 = vrot.lane.b32.xlu0 %v4289, 32
          %v4317 = vpop.permute.xlu0 %4316
          %4318 = vrot.lane.b32.xlu0 %v4290, 32
          %v4319 = vpop.permute.xlu0 %4318
          %4320 = vrot.lane.b32.xlu0 %v4291, 32
          %v4321 = vpop.permute.xlu0 %4320
          %4322 = vrot.lane.b32.xlu0 %v4292, 32
          %v4323 = vpop.permute.xlu0 %4322
          %4324 = vrot.lane.b32.xlu0 %v4293, 32
          %v4325 = vpop.permute.xlu0 %4324
          %4326 = vrot.lane.b32.xlu0 %v4294, 32
          %v4327 = vpop.permute.xlu0 %4326
          %4328 = vrot.lane.b32.xlu0 %v4295, 32
          %v4329 = vpop.permute.xlu0 %4328
          %4330 = vrot.lane.b32.xlu0 %v4296, 32
          %v4331 = vpop.permute.xlu0 %4330
          %4332 = vrot.lane.b32.xlu0 %v4297, 32
          %v4333 = vpop.permute.xlu0 %4332
          %4346 = vst.msk [vmem:[#allocation7 + $0x10] sm:$0xff] %vm3847, %v4311
          %4347 = vst.msk [vmem:[#allocation7 + $0x48] sm:$0xff] %vm3847, %v4313
          %4348 = vst.msk [vmem:[#allocation7 + $0x80] sm:$0xff] %vm3847, %v4315
          %4349 = vst.msk [vmem:[#allocation7 + $0xb8] sm:$0xff] %vm3847, %v4317
          %4350 = vst.msk [vmem:[#allocation7 + $0xf0] sm:$0xff] %vm3847, %v4319
          %4351 = vst.msk [vmem:[#allocation7 + $0x128] sm:$0xff] %vm3847, %v4321
          %4352 = vst.msk [vmem:[#allocation7 + $0x160] sm:$0xff] %vm3847, %v4323
          %4353 = vst.msk [vmem:[#allocation7 + $0x198] sm:$0xff] %vm3847, %v4325
          %4354 = vst.msk [vmem:[#allocation7 + $0x1d0] sm:$0xff] %vm3847, %v4327
          %4355 = vst.msk [vmem:[#allocation7 + $0x208] sm:$0xff] %vm3847, %v4329
          %4356 = vst.msk [vmem:[#allocation7 + $0x240] sm:$0xff] %vm3847, %v4331
          %4357 = vst.msk [vmem:[#allocation7 + $0x278] sm:$0xff] %vm3847, %v4333
          %s4358 = sadd.s32 %s3758, 4294967294
          %s4359 = scalar_lea.vmem [#allocation2], %s4358
          %v4360 = vld [vmem:[%s4359] sm:$0xff]
          %v4361 = vld [vmem:[%s4359 + $0x8] sm:$0xff]
          %v4362 = vld [vmem:[%s4359 + $0x10] sm:$0xff]
          %v4363 = vld [vmem:[%s4359 + $0x18] sm:$0xff]
          %v4364 = vld [vmem:[%s4359 + $0x20] sm:$0xff]
          %v4365 = vld [vmem:[%s4359 + $0x28] sm:$0xff]
          %v4366 = vld [vmem:[%s4359 + $0x30] sm:$0xff]
          %v4367 = vld [vmem:[%s4359 + $0x38] sm:$0xff]
          %v4368 = vld [vmem:[%s4359 + $0x40] sm:$0xff]
          %v4369 = vld [vmem:[%s4359 + $0x48] sm:$0xff]
          %v4370 = vld [vmem:[%s4359 + $0x50] sm:$0xff]
          %v4371 = vld [vmem:[%s4359 + $0x58] sm:$0xff]
          %4384 = vrot.lane.b32.xlu0 %v4360, 64
          %v4385 = vpop.permute.xlu0 %4384
          %4386 = vrot.lane.b32.xlu0 %v4361, 64
          %v4387 = vpop.permute.xlu0 %4386
          %4388 = vrot.lane.b32.xlu0 %v4362, 64
          %v4389 = vpop.permute.xlu0 %4388
          %4390 = vrot.lane.b32.xlu0 %v4363, 64
          %v4391 = vpop.permute.xlu0 %4390
          %4392 = vrot.lane.b32.xlu0 %v4364, 64
          %v4393 = vpop.permute.xlu0 %4392
          %4394 = vrot.lane.b32.xlu0 %v4365, 64
          %v4395 = vpop.permute.xlu0 %4394
          %4396 = vrot.lane.b32.xlu0 %v4366, 64
          %v4397 = vpop.permute.xlu0 %4396
          %4398 = vrot.lane.b32.xlu0 %v4367, 64
          %v4399 = vpop.permute.xlu0 %4398
          %4400 = vrot.lane.b32.xlu0 %v4368, 64
          %v4401 = vpop.permute.xlu0 %4400
          %4402 = vrot.lane.b32.xlu0 %v4369, 64
          %v4403 = vpop.permute.xlu0 %4402
          %4404 = vrot.lane.b32.xlu0 %v4370, 64
          %v4405 = vpop.permute.xlu0 %4404
          %4406 = vrot.lane.b32.xlu0 %v4371, 64
          %v4407 = vpop.permute.xlu0 %4406
          %4420 = vst.msk [vmem:[#allocation7 + $0x10] sm:$0xff] %vm3922, %v4385
          %4421 = vst.msk [vmem:[#allocation7 + $0x48] sm:$0xff] %vm3922, %v4387
          %4422 = vst.msk [vmem:[#allocation7 + $0x80] sm:$0xff] %vm3922, %v4389
          %4423 = vst.msk [vmem:[#allocation7 + $0xb8] sm:$0xff] %vm3922, %v4391
          %4424 = vst.msk [vmem:[#allocation7 + $0xf0] sm:$0xff] %vm3922, %v4393
          %4425 = vst.msk [vmem:[#allocation7 + $0x128] sm:$0xff] %vm3922, %v4395
          %4426 = vst.msk [vmem:[#allocation7 + $0x160] sm:$0xff] %vm3922, %v4397
          %4427 = vst.msk [vmem:[#allocation7 + $0x198] sm:$0xff] %vm3922, %v4399
          %4428 = vst.msk [vmem:[#allocation7 + $0x1d0] sm:$0xff] %vm3922, %v4401
          %4429 = vst.msk [vmem:[#allocation7 + $0x208] sm:$0xff] %vm3922, %v4403
          %4430 = vst.msk [vmem:[#allocation7 + $0x240] sm:$0xff] %vm3922, %v4405
          %4431 = vst.msk [vmem:[#allocation7 + $0x278] sm:$0xff] %vm3922, %v4407
          %s4432 = sadd.s32 %s3758, 4294967295
          %s4433 = scalar_lea.vmem [#allocation2], %s4432
          %v4434 = vld [vmem:[%s4433] sm:$0xff]
          %v4435 = vld [vmem:[%s4433 + $0x8] sm:$0xff]
          %v4436 = vld [vmem:[%s4433 + $0x10] sm:$0xff]
          %v4437 = vld [vmem:[%s4433 + $0x18] sm:$0xff]
          %v4438 = vld [vmem:[%s4433 + $0x20] sm:$0xff]
          %v4439 = vld [vmem:[%s4433 + $0x28] sm:$0xff]
          %v4440 = vld [vmem:[%s4433 + $0x30] sm:$0xff]
          %v4441 = vld [vmem:[%s4433 + $0x38] sm:$0xff]
          %v4442 = vld [vmem:[%s4433 + $0x40] sm:$0xff]
          %v4443 = vld [vmem:[%s4433 + $0x48] sm:$0xff]
          %v4444 = vld [vmem:[%s4433 + $0x50] sm:$0xff]
          %v4445 = vld [vmem:[%s4433 + $0x58] sm:$0xff]
          %4458 = vrot.lane.b32.xlu0 %v4434, 96
          %v4459 = vpop.permute.xlu0 %4458
          %4460 = vrot.lane.b32.xlu0 %v4435, 96
          %v4461 = vpop.permute.xlu0 %4460
          %4462 = vrot.lane.b32.xlu0 %v4436, 96
          %v4463 = vpop.permute.xlu0 %4462
          %4464 = vrot.lane.b32.xlu0 %v4437, 96
          %v4465 = vpop.permute.xlu0 %4464
          %4466 = vrot.lane.b32.xlu0 %v4438, 96
          %v4467 = vpop.permute.xlu0 %4466
          %4468 = vrot.lane.b32.xlu0 %v4439, 96
          %v4469 = vpop.permute.xlu0 %4468
          %4470 = vrot.lane.b32.xlu0 %v4440, 96
          %v4471 = vpop.permute.xlu0 %4470
          %4472 = vrot.lane.b32.xlu0 %v4441, 96
          %v4473 = vpop.permute.xlu0 %4472
          %4474 = vrot.lane.b32.xlu0 %v4442, 96
          %v4475 = vpop.permute.xlu0 %4474
          %4476 = vrot.lane.b32.xlu0 %v4443, 96
          %v4477 = vpop.permute.xlu0 %4476
          %4478 = vrot.lane.b32.xlu0 %v4444, 96
          %v4479 = vpop.permute.xlu0 %4478
          %4480 = vrot.lane.b32.xlu0 %v4445, 96
          %v4481 = vpop.permute.xlu0 %4480
          %4494 = vst.msk [vmem:[#allocation7 + $0x10] sm:$0xff] %vm3997, %v4459
          %4495 = vst.msk [vmem:[#allocation7 + $0x48] sm:$0xff] %vm3997, %v4461
          %4496 = vst.msk [vmem:[#allocation7 + $0x80] sm:$0xff] %vm3997, %v4463
          %4497 = vst.msk [vmem:[#allocation7 + $0xb8] sm:$0xff] %vm3997, %v4465
          %4498 = vst.msk [vmem:[#allocation7 + $0xf0] sm:$0xff] %vm3997, %v4467
          %4499 = vst.msk [vmem:[#allocation7 + $0x128] sm:$0xff] %vm3997, %v4469
          %4500 = vst.msk [vmem:[#allocation7 + $0x160] sm:$0xff] %vm3997, %v4471
          %4501 = vst.msk [vmem:[#allocation7 + $0x198] sm:$0xff] %vm3997, %v4473
          %4502 = vst.msk [vmem:[#allocation7 + $0x1d0] sm:$0xff] %vm3997, %v4475
          %4503 = vst.msk [vmem:[#allocation7 + $0x208] sm:$0xff] %vm3997, %v4477
          %4504 = vst.msk [vmem:[#allocation7 + $0x240] sm:$0xff] %vm3997, %v4479
          %4505 = vst.msk [vmem:[#allocation7 + $0x278] sm:$0xff] %vm3997, %v4481
          %s4506 = scalar_lea.vmem [#allocation2], %s3758
          %v4507 = vld [vmem:[%s4506] sm:$0xff]
          %v4508 = vld [vmem:[%s4506 + $0x8] sm:$0xff]
          %v4509 = vld [vmem:[%s4506 + $0x10] sm:$0xff]
          %v4510 = vld [vmem:[%s4506 + $0x18] sm:$0xff]
          %v4511 = vld [vmem:[%s4506 + $0x20] sm:$0xff]
          %v4512 = vld [vmem:[%s4506 + $0x28] sm:$0xff]
          %v4513 = vld [vmem:[%s4506 + $0x30] sm:$0xff]
          %v4514 = vld [vmem:[%s4506 + $0x38] sm:$0xff]
          %v4515 = vld [vmem:[%s4506 + $0x40] sm:$0xff]
          %v4516 = vld [vmem:[%s4506 + $0x48] sm:$0xff]
          %v4517 = vld [vmem:[%s4506 + $0x50] sm:$0xff]
          %v4518 = vld [vmem:[%s4506 + $0x58] sm:$0xff]
          %4519 = vst.msk [vmem:[#allocation7 + $0x18] sm:$0xff] %vm385, %v4507
          %4520 = vst.msk [vmem:[#allocation7 + $0x50] sm:$0xff] %vm385, %v4508
          %4521 = vst.msk [vmem:[#allocation7 + $0x88] sm:$0xff] %vm385, %v4509
          %4522 = vst.msk [vmem:[#allocation7 + $0xc0] sm:$0xff] %vm385, %v4510
          %4523 = vst.msk [vmem:[#allocation7 + $0xf8] sm:$0xff] %vm385, %v4511
          %4524 = vst.msk [vmem:[#allocation7 + $0x130] sm:$0xff] %vm385, %v4512
          %4525 = vst.msk [vmem:[#allocation7 + $0x168] sm:$0xff] %vm385, %v4513
          %4526 = vst.msk [vmem:[#allocation7 + $0x1a0] sm:$0xff] %vm385, %v4514
          %4527 = vst.msk [vmem:[#allocation7 + $0x1d8] sm:$0xff] %vm385, %v4515
          %4528 = vst.msk [vmem:[#allocation7 + $0x210] sm:$0xff] %vm385, %v4516
          %4529 = vst.msk [vmem:[#allocation7 + $0x248] sm:$0xff] %vm385, %v4517
          %4530 = vst.msk [vmem:[#allocation7 + $0x280] sm:$0xff] %vm385, %v4518
          %s4531 = sadd.s32 %s3758, 1
          %s4532 = scalar_lea.vmem [#allocation2], %s4531
          %v4533 = vld [vmem:[%s4532] sm:$0xff]
          %v4534 = vld [vmem:[%s4532 + $0x8] sm:$0xff]
          %v4535 = vld [vmem:[%s4532 + $0x10] sm:$0xff]
          %v4536 = vld [vmem:[%s4532 + $0x18] sm:$0xff]
          %v4537 = vld [vmem:[%s4532 + $0x20] sm:$0xff]
          %v4538 = vld [vmem:[%s4532 + $0x28] sm:$0xff]
          %v4539 = vld [vmem:[%s4532 + $0x30] sm:$0xff]
          %v4540 = vld [vmem:[%s4532 + $0x38] sm:$0xff]
          %v4541 = vld [vmem:[%s4532 + $0x40] sm:$0xff]
          %v4542 = vld [vmem:[%s4532 + $0x48] sm:$0xff]
          %v4543 = vld [vmem:[%s4532 + $0x50] sm:$0xff]
          %v4544 = vld [vmem:[%s4532 + $0x58] sm:$0xff]
          %4557 = vrot.lane.b32.xlu0 %v4533, 32
          %v4558 = vpop.permute.xlu0 %4557
          %4559 = vrot.lane.b32.xlu0 %v4534, 32
          %v4560 = vpop.permute.xlu0 %4559
          %4561 = vrot.lane.b32.xlu0 %v4535, 32
          %v4562 = vpop.permute.xlu0 %4561
          %4563 = vrot.lane.b32.xlu0 %v4536, 32
          %v4564 = vpop.permute.xlu0 %4563
          %4565 = vrot.lane.b32.xlu0 %v4537, 32
          %v4566 = vpop.permute.xlu0 %4565
          %4567 = vrot.lane.b32.xlu0 %v4538, 32
          %v4568 = vpop.permute.xlu0 %4567
          %4569 = vrot.lane.b32.xlu0 %v4539, 32
          %v4570 = vpop.permute.xlu0 %4569
          %4571 = vrot.lane.b32.xlu0 %v4540, 32
          %v4572 = vpop.permute.xlu0 %4571
          %4573 = vrot.lane.b32.xlu0 %v4541, 32
          %v4574 = vpop.permute.xlu0 %4573
          %4575 = vrot.lane.b32.xlu0 %v4542, 32
          %v4576 = vpop.permute.xlu0 %4575
          %4577 = vrot.lane.b32.xlu0 %v4543, 32
          %v4578 = vpop.permute.xlu0 %4577
          %4579 = vrot.lane.b32.xlu0 %v4544, 32
          %v4580 = vpop.permute.xlu0 %4579
          %4593 = vst.msk [vmem:[#allocation7 + $0x18] sm:$0xff] %vm3847, %v4558
          %4594 = vst.msk [vmem:[#allocation7 + $0x50] sm:$0xff] %vm3847, %v4560
          %4595 = vst.msk [vmem:[#allocation7 + $0x88] sm:$0xff] %vm3847, %v4562
          %4596 = vst.msk [vmem:[#allocation7 + $0xc0] sm:$0xff] %vm3847, %v4564
          %4597 = vst.msk [vmem:[#allocation7 + $0xf8] sm:$0xff] %vm3847, %v4566
          %4598 = vst.msk [vmem:[#allocation7 + $0x130] sm:$0xff] %vm3847, %v4568
          %4599 = vst.msk [vmem:[#allocation7 + $0x168] sm:$0xff] %vm3847, %v4570
          %4600 = vst.msk [vmem:[#allocation7 + $0x1a0] sm:$0xff] %vm3847, %v4572
          %4601 = vst.msk [vmem:[#allocation7 + $0x1d8] sm:$0xff] %vm3847, %v4574
          %4602 = vst.msk [vmem:[#allocation7 + $0x210] sm:$0xff] %vm3847, %v4576
          %4603 = vst.msk [vmem:[#allocation7 + $0x248] sm:$0xff] %vm3847, %v4578
          %4604 = vst.msk [vmem:[#allocation7 + $0x280] sm:$0xff] %vm3847, %v4580
          %s4605 = sadd.s32 %s3758, 2
          %s4606 = scalar_lea.vmem [#allocation2], %s4605
          %v4607 = vld [vmem:[%s4606] sm:$0xff]
          %v4608 = vld [vmem:[%s4606 + $0x8] sm:$0xff]
          %v4609 = vld [vmem:[%s4606 + $0x10] sm:$0xff]
          %v4610 = vld [vmem:[%s4606 + $0x18] sm:$0xff]
          %v4611 = vld [vmem:[%s4606 + $0x20] sm:$0xff]
          %v4612 = vld [vmem:[%s4606 + $0x28] sm:$0xff]
          %v4613 = vld [vmem:[%s4606 + $0x30] sm:$0xff]
          %v4614 = vld [vmem:[%s4606 + $0x38] sm:$0xff]
          %v4615 = vld [vmem:[%s4606 + $0x40] sm:$0xff]
          %v4616 = vld [vmem:[%s4606 + $0x48] sm:$0xff]
          %v4617 = vld [vmem:[%s4606 + $0x50] sm:$0xff]
          %v4618 = vld [vmem:[%s4606 + $0x58] sm:$0xff]
          %4631 = vrot.lane.b32.xlu0 %v4607, 64
          %v4632 = vpop.permute.xlu0 %4631
          %4633 = vrot.lane.b32.xlu0 %v4608, 64
          %v4634 = vpop.permute.xlu0 %4633
          %4635 = vrot.lane.b32.xlu0 %v4609, 64
          %v4636 = vpop.permute.xlu0 %4635
          %4637 = vrot.lane.b32.xlu0 %v4610, 64
          %v4638 = vpop.permute.xlu0 %4637
          %4639 = vrot.lane.b32.xlu0 %v4611, 64
          %v4640 = vpop.permute.xlu0 %4639
          %4641 = vrot.lane.b32.xlu0 %v4612, 64
          %v4642 = vpop.permute.xlu0 %4641
          %4643 = vrot.lane.b32.xlu0 %v4613, 64
          %v4644 = vpop.permute.xlu0 %4643
          %4645 = vrot.lane.b32.xlu0 %v4614, 64
          %v4646 = vpop.permute.xlu0 %4645
          %4647 = vrot.lane.b32.xlu0 %v4615, 64
          %v4648 = vpop.permute.xlu0 %4647
          %4649 = vrot.lane.b32.xlu0 %v4616, 64
          %v4650 = vpop.permute.xlu0 %4649
          %4651 = vrot.lane.b32.xlu0 %v4617, 64
          %v4652 = vpop.permute.xlu0 %4651
          %4653 = vrot.lane.b32.xlu0 %v4618, 64
          %v4654 = vpop.permute.xlu0 %4653
          %4667 = vst.msk [vmem:[#allocation7 + $0x18] sm:$0xff] %vm3922, %v4632
          %4668 = vst.msk [vmem:[#allocation7 + $0x50] sm:$0xff] %vm3922, %v4634
          %4669 = vst.msk [vmem:[#allocation7 + $0x88] sm:$0xff] %vm3922, %v4636
          %4670 = vst.msk [vmem:[#allocation7 + $0xc0] sm:$0xff] %vm3922, %v4638
          %4671 = vst.msk [vmem:[#allocation7 + $0xf8] sm:$0xff] %vm3922, %v4640
          %4672 = vst.msk [vmem:[#allocation7 + $0x130] sm:$0xff] %vm3922, %v4642
          %4673 = vst.msk [vmem:[#allocation7 + $0x168] sm:$0xff] %vm3922, %v4644
          %4674 = vst.msk [vmem:[#allocation7 + $0x1a0] sm:$0xff] %vm3922, %v4646
          %4675 = vst.msk [vmem:[#allocation7 + $0x1d8] sm:$0xff] %vm3922, %v4648
          %4676 = vst.msk [vmem:[#allocation7 + $0x210] sm:$0xff] %vm3922, %v4650
          %4677 = vst.msk [vmem:[#allocation7 + $0x248] sm:$0xff] %vm3922, %v4652
          %4678 = vst.msk [vmem:[#allocation7 + $0x280] sm:$0xff] %vm3922, %v4654
          %s4679 = sadd.s32 %s3758, 22
          %s4680 = scalar_lea.vmem [#allocation2], %s4679
          %v4681 = vld [vmem:[%s4680] sm:$0xff]
          %v4682 = vld [vmem:[%s4680 + $0x8] sm:$0xff]
          %v4683 = vld [vmem:[%s4680 + $0x10] sm:$0xff]
          %v4684 = vld [vmem:[%s4680 + $0x18] sm:$0xff]
          %v4685 = vld [vmem:[%s4680 + $0x20] sm:$0xff]
          %v4686 = vld [vmem:[%s4680 + $0x28] sm:$0xff]
          %v4687 = vld [vmem:[%s4680 + $0x30] sm:$0xff]
          %v4688 = vld [vmem:[%s4680 + $0x38] sm:$0xff]
          %v4689 = vld [vmem:[%s4680 + $0x40] sm:$0xff]
          %v4690 = vld [vmem:[%s4680 + $0x48] sm:$0xff]
          %v4691 = vld [vmem:[%s4680 + $0x50] sm:$0xff]
          %v4692 = vld [vmem:[%s4680 + $0x58] sm:$0xff]
          %4705 = vrot.lane.b32.xlu0 %v4681, 96
          %v4706 = vpop.permute.xlu0 %4705
          %4707 = vrot.lane.b32.xlu0 %v4682, 96
          %v4708 = vpop.permute.xlu0 %4707
          %4709 = vrot.lane.b32.xlu0 %v4683, 96
          %v4710 = vpop.permute.xlu0 %4709
          %4711 = vrot.lane.b32.xlu0 %v4684, 96
          %v4712 = vpop.permute.xlu0 %4711
          %4713 = vrot.lane.b32.xlu0 %v4685, 96
          %v4714 = vpop.permute.xlu0 %4713
          %4715 = vrot.lane.b32.xlu0 %v4686, 96
          %v4716 = vpop.permute.xlu0 %4715
          %4717 = vrot.lane.b32.xlu0 %v4687, 96
          %v4718 = vpop.permute.xlu0 %4717
          %4719 = vrot.lane.b32.xlu0 %v4688, 96
          %v4720 = vpop.permute.xlu0 %4719
          %4721 = vrot.lane.b32.xlu0 %v4689, 96
          %v4722 = vpop.permute.xlu0 %4721
          %4723 = vrot.lane.b32.xlu0 %v4690, 96
          %v4724 = vpop.permute.xlu0 %4723
          %4725 = vrot.lane.b32.xlu0 %v4691, 96
          %v4726 = vpop.permute.xlu0 %4725
          %4727 = vrot.lane.b32.xlu0 %v4692, 96
          %v4728 = vpop.permute.xlu0 %4727
          %4741 = vst.msk [vmem:[#allocation7 + $0x18] sm:$0xff] %vm3997, %v4706
          %4742 = vst.msk [vmem:[#allocation7 + $0x50] sm:$0xff] %vm3997, %v4708
          %4743 = vst.msk [vmem:[#allocation7 + $0x88] sm:$0xff] %vm3997, %v4710
          %4744 = vst.msk [vmem:[#allocation7 + $0xc0] sm:$0xff] %vm3997, %v4712
          %4745 = vst.msk [vmem:[#allocation7 + $0xf8] sm:$0xff] %vm3997, %v4714
          %4746 = vst.msk [vmem:[#allocation7 + $0x130] sm:$0xff] %vm3997, %v4716
          %4747 = vst.msk [vmem:[#allocation7 + $0x168] sm:$0xff] %vm3997, %v4718
          %4748 = vst.msk [vmem:[#allocation7 + $0x1a0] sm:$0xff] %vm3997, %v4720
          %4749 = vst.msk [vmem:[#allocation7 + $0x1d8] sm:$0xff] %vm3997, %v4722
          %4750 = vst.msk [vmem:[#allocation7 + $0x210] sm:$0xff] %vm3997, %v4724
          %4751 = vst.msk [vmem:[#allocation7 + $0x248] sm:$0xff] %vm3997, %v4726
          %4752 = vst.msk [vmem:[#allocation7 + $0x280] sm:$0xff] %vm3997, %v4728
          %s4753 = sadd.s32 %s3758, 23
          %s4754 = scalar_lea.vmem [#allocation2], %s4753
          %v4755 = vld [vmem:[%s4754] sm:$0xff]
          %v4756 = vld [vmem:[%s4754 + $0x8] sm:$0xff]
          %v4757 = vld [vmem:[%s4754 + $0x10] sm:$0xff]
          %v4758 = vld [vmem:[%s4754 + $0x18] sm:$0xff]
          %v4759 = vld [vmem:[%s4754 + $0x20] sm:$0xff]
          %v4760 = vld [vmem:[%s4754 + $0x28] sm:$0xff]
          %v4761 = vld [vmem:[%s4754 + $0x30] sm:$0xff]
          %v4762 = vld [vmem:[%s4754 + $0x38] sm:$0xff]
          %v4763 = vld [vmem:[%s4754 + $0x40] sm:$0xff]
          %v4764 = vld [vmem:[%s4754 + $0x48] sm:$0xff]
          %v4765 = vld [vmem:[%s4754 + $0x50] sm:$0xff]
          %v4766 = vld [vmem:[%s4754 + $0x58] sm:$0xff]
          %4767 = vst.msk [vmem:[#allocation7 + $0x20] sm:$0xff] %vm385, %v4755
          %4768 = vst.msk [vmem:[#allocation7 + $0x58] sm:$0xff] %vm385, %v4756
          %4769 = vst.msk [vmem:[#allocation7 + $0x90] sm:$0xff] %vm385, %v4757
          %4770 = vst.msk [vmem:[#allocation7 + $0xc8] sm:$0xff] %vm385, %v4758
          %4771 = vst.msk [vmem:[#allocation7 + $0x100] sm:$0xff] %vm385, %v4759
          %4772 = vst.msk [vmem:[#allocation7 + $0x138] sm:$0xff] %vm385, %v4760
          %4773 = vst.msk [vmem:[#allocation7 + $0x170] sm:$0xff] %vm385, %v4761
          %4774 = vst.msk [vmem:[#allocation7 + $0x1a8] sm:$0xff] %vm385, %v4762
          %4775 = vst.msk [vmem:[#allocation7 + $0x1e0] sm:$0xff] %vm385, %v4763
          %4776 = vst.msk [vmem:[#allocation7 + $0x218] sm:$0xff] %vm385, %v4764
          %4777 = vst.msk [vmem:[#allocation7 + $0x250] sm:$0xff] %vm385, %v4765
          %4778 = vst.msk [vmem:[#allocation7 + $0x288] sm:$0xff] %vm385, %v4766
          %s4779 = sadd.s32 %s3758, 24
          %s4780 = scalar_lea.vmem [#allocation2], %s4779
          %v4781 = vld [vmem:[%s4780] sm:$0xff]
          %v4782 = vld [vmem:[%s4780 + $0x8] sm:$0xff]
          %v4783 = vld [vmem:[%s4780 + $0x10] sm:$0xff]
          %v4784 = vld [vmem:[%s4780 + $0x18] sm:$0xff]
          %v4785 = vld [vmem:[%s4780 + $0x20] sm:$0xff]
          %v4786 = vld [vmem:[%s4780 + $0x28] sm:$0xff]
          %v4787 = vld [vmem:[%s4780 + $0x30] sm:$0xff]
          %v4788 = vld [vmem:[%s4780 + $0x38] sm:$0xff]
          %v4789 = vld [vmem:[%s4780 + $0x40] sm:$0xff]
          %v4790 = vld [vmem:[%s4780 + $0x48] sm:$0xff]
          %v4791 = vld [vmem:[%s4780 + $0x50] sm:$0xff]
          %v4792 = vld [vmem:[%s4780 + $0x58] sm:$0xff]
          %4805 = vrot.lane.b32.xlu0 %v4781, 32
          %v4806 = vpop.permute.xlu0 %4805
          %4807 = vrot.lane.b32.xlu0 %v4782, 32
          %v4808 = vpop.permute.xlu0 %4807
          %4809 = vrot.lane.b32.xlu0 %v4783, 32
          %v4810 = vpop.permute.xlu0 %4809
          %4811 = vrot.lane.b32.xlu0 %v4784, 32
          %v4812 = vpop.permute.xlu0 %4811
          %4813 = vrot.lane.b32.xlu0 %v4785, 32
          %v4814 = vpop.permute.xlu0 %4813
          %4815 = vrot.lane.b32.xlu0 %v4786, 32
          %v4816 = vpop.permute.xlu0 %4815
          %4817 = vrot.lane.b32.xlu0 %v4787, 32
          %v4818 = vpop.permute.xlu0 %4817
          %4819 = vrot.lane.b32.xlu0 %v4788, 32
          %v4820 = vpop.permute.xlu0 %4819
          %4821 = vrot.lane.b32.xlu0 %v4789, 32
          %v4822 = vpop.permute.xlu0 %4821
          %4823 = vrot.lane.b32.xlu0 %v4790, 32
          %v4824 = vpop.permute.xlu0 %4823
          %4825 = vrot.lane.b32.xlu0 %v4791, 32
          %v4826 = vpop.permute.xlu0 %4825
          %4827 = vrot.lane.b32.xlu0 %v4792, 32
          %v4828 = vpop.permute.xlu0 %4827
          %4841 = vst.msk [vmem:[#allocation7 + $0x20] sm:$0xff] %vm3847, %v4806
          %4842 = vst.msk [vmem:[#allocation7 + $0x58] sm:$0xff] %vm3847, %v4808
          %4843 = vst.msk [vmem:[#allocation7 + $0x90] sm:$0xff] %vm3847, %v4810
          %4844 = vst.msk [vmem:[#allocation7 + $0xc8] sm:$0xff] %vm3847, %v4812
          %4845 = vst.msk [vmem:[#allocation7 + $0x100] sm:$0xff] %vm3847, %v4814
          %4846 = vst.msk [vmem:[#allocation7 + $0x138] sm:$0xff] %vm3847, %v4816
          %4847 = vst.msk [vmem:[#allocation7 + $0x170] sm:$0xff] %vm3847, %v4818
          %4848 = vst.msk [vmem:[#allocation7 + $0x1a8] sm:$0xff] %vm3847, %v4820
          %4849 = vst.msk [vmem:[#allocation7 + $0x1e0] sm:$0xff] %vm3847, %v4822
          %4850 = vst.msk [vmem:[#allocation7 + $0x218] sm:$0xff] %vm3847, %v4824
          %4851 = vst.msk [vmem:[#allocation7 + $0x250] sm:$0xff] %vm3847, %v4826
          %4852 = vst.msk [vmem:[#allocation7 + $0x288] sm:$0xff] %vm3847, %v4828
          %s4853 = sadd.s32 %s3758, 25
          %s4854 = scalar_lea.vmem [#allocation2], %s4853
          %v4855 = vld [vmem:[%s4854] sm:$0xff]
          %v4856 = vld [vmem:[%s4854 + $0x8] sm:$0xff]
          %v4857 = vld [vmem:[%s4854 + $0x10] sm:$0xff]
          %v4858 = vld [vmem:[%s4854 + $0x18] sm:$0xff]
          %v4859 = vld [vmem:[%s4854 + $0x20] sm:$0xff]
          %v4860 = vld [vmem:[%s4854 + $0x28] sm:$0xff]
          %v4861 = vld [vmem:[%s4854 + $0x30] sm:$0xff]
          %v4862 = vld [vmem:[%s4854 + $0x38] sm:$0xff]
          %v4863 = vld [vmem:[%s4854 + $0x40] sm:$0xff]
          %v4864 = vld [vmem:[%s4854 + $0x48] sm:$0xff]
          %v4865 = vld [vmem:[%s4854 + $0x50] sm:$0xff]
          %v4866 = vld [vmem:[%s4854 + $0x58] sm:$0xff]
          %4879 = vrot.lane.b32.xlu0 %v4855, 64
          %v4880 = vpop.permute.xlu0 %4879
          %4881 = vrot.lane.b32.xlu0 %v4856, 64
          %v4882 = vpop.permute.xlu0 %4881
          %4883 = vrot.lane.b32.xlu0 %v4857, 64
          %v4884 = vpop.permute.xlu0 %4883
          %4885 = vrot.lane.b32.xlu0 %v4858, 64
          %v4886 = vpop.permute.xlu0 %4885
          %4887 = vrot.lane.b32.xlu0 %v4859, 64
          %v4888 = vpop.permute.xlu0 %4887
          %4889 = vrot.lane.b32.xlu0 %v4860, 64
          %v4890 = vpop.permute.xlu0 %4889
          %4891 = vrot.lane.b32.xlu0 %v4861, 64
          %v4892 = vpop.permute.xlu0 %4891
          %4893 = vrot.lane.b32.xlu0 %v4862, 64
          %v4894 = vpop.permute.xlu0 %4893
          %4895 = vrot.lane.b32.xlu0 %v4863, 64
          %v4896 = vpop.permute.xlu0 %4895
          %4897 = vrot.lane.b32.xlu0 %v4864, 64
          %v4898 = vpop.permute.xlu0 %4897
          %4899 = vrot.lane.b32.xlu0 %v4865, 64
          %v4900 = vpop.permute.xlu0 %4899
          %4901 = vrot.lane.b32.xlu0 %v4866, 64
          %v4902 = vpop.permute.xlu0 %4901
          %4915 = vst.msk [vmem:[#allocation7 + $0x20] sm:$0xff] %vm3922, %v4880
          %4916 = vst.msk [vmem:[#allocation7 + $0x58] sm:$0xff] %vm3922, %v4882
          %4917 = vst.msk [vmem:[#allocation7 + $0x90] sm:$0xff] %vm3922, %v4884
          %4918 = vst.msk [vmem:[#allocation7 + $0xc8] sm:$0xff] %vm3922, %v4886
          %4919 = vst.msk [vmem:[#allocation7 + $0x100] sm:$0xff] %vm3922, %v4888
          %4920 = vst.msk [vmem:[#allocation7 + $0x138] sm:$0xff] %vm3922, %v4890
          %4921 = vst.msk [vmem:[#allocation7 + $0x170] sm:$0xff] %vm3922, %v4892
          %4922 = vst.msk [vmem:[#allocation7 + $0x1a8] sm:$0xff] %vm3922, %v4894
          %4923 = vst.msk [vmem:[#allocation7 + $0x1e0] sm:$0xff] %vm3922, %v4896
          %4924 = vst.msk [vmem:[#allocation7 + $0x218] sm:$0xff] %vm3922, %v4898
          %4925 = vst.msk [vmem:[#allocation7 + $0x250] sm:$0xff] %vm3922, %v4900
          %4926 = vst.msk [vmem:[#allocation7 + $0x288] sm:$0xff] %vm3922, %v4902
          %s4927 = sadd.s32 %s3758, 26
          %s4928 = scalar_lea.vmem [#allocation2], %s4927
          %v4929 = vld [vmem:[%s4928] sm:$0xff]
          %v4930 = vld [vmem:[%s4928 + $0x8] sm:$0xff]
          %v4931 = vld [vmem:[%s4928 + $0x10] sm:$0xff]
          %v4932 = vld [vmem:[%s4928 + $0x18] sm:$0xff]
          %v4933 = vld [vmem:[%s4928 + $0x20] sm:$0xff]
          %v4934 = vld [vmem:[%s4928 + $0x28] sm:$0xff]
          %v4935 = vld [vmem:[%s4928 + $0x30] sm:$0xff]
          %v4936 = vld [vmem:[%s4928 + $0x38] sm:$0xff]
          %v4937 = vld [vmem:[%s4928 + $0x40] sm:$0xff]
          %v4938 = vld [vmem:[%s4928 + $0x48] sm:$0xff]
          %v4939 = vld [vmem:[%s4928 + $0x50] sm:$0xff]
          %v4940 = vld [vmem:[%s4928 + $0x58] sm:$0xff]
          %4953 = vrot.lane.b32.xlu0 %v4929, 96
          %v4954 = vpop.permute.xlu0 %4953
          %4955 = vrot.lane.b32.xlu0 %v4930, 96
          %v4956 = vpop.permute.xlu0 %4955
          %4957 = vrot.lane.b32.xlu0 %v4931, 96
          %v4958 = vpop.permute.xlu0 %4957
          %4959 = vrot.lane.b32.xlu0 %v4932, 96
          %v4960 = vpop.permute.xlu0 %4959
          %4961 = vrot.lane.b32.xlu0 %v4933, 96
          %v4962 = vpop.permute.xlu0 %4961
          %4963 = vrot.lane.b32.xlu0 %v4934, 96
          %v4964 = vpop.permute.xlu0 %4963
          %4965 = vrot.lane.b32.xlu0 %v4935, 96
          %v4966 = vpop.permute.xlu0 %4965
          %4967 = vrot.lane.b32.xlu0 %v4936, 96
          %v4968 = vpop.permute.xlu0 %4967
          %4969 = vrot.lane.b32.xlu0 %v4937, 96
          %v4970 = vpop.permute.xlu0 %4969
          %4971 = vrot.lane.b32.xlu0 %v4938, 96
          %v4972 = vpop.permute.xlu0 %4971
          %4973 = vrot.lane.b32.xlu0 %v4939, 96
          %v4974 = vpop.permute.xlu0 %4973
          %4975 = vrot.lane.b32.xlu0 %v4940, 96
          %v4976 = vpop.permute.xlu0 %4975
          %4989 = vst.msk [vmem:[#allocation7 + $0x20] sm:$0xff] %vm3997, %v4954
          %4990 = vst.msk [vmem:[#allocation7 + $0x58] sm:$0xff] %vm3997, %v4956
          %4991 = vst.msk [vmem:[#allocation7 + $0x90] sm:$0xff] %vm3997, %v4958
          %4992 = vst.msk [vmem:[#allocation7 + $0xc8] sm:$0xff] %vm3997, %v4960
          %4993 = vst.msk [vmem:[#allocation7 + $0x100] sm:$0xff] %vm3997, %v4962
          %4994 = vst.msk [vmem:[#allocation7 + $0x138] sm:$0xff] %vm3997, %v4964
          %4995 = vst.msk [vmem:[#allocation7 + $0x170] sm:$0xff] %vm3997, %v4966
          %4996 = vst.msk [vmem:[#allocation7 + $0x1a8] sm:$0xff] %vm3997, %v4968
          %4997 = vst.msk [vmem:[#allocation7 + $0x1e0] sm:$0xff] %vm3997, %v4970
          %4998 = vst.msk [vmem:[#allocation7 + $0x218] sm:$0xff] %vm3997, %v4972
          %4999 = vst.msk [vmem:[#allocation7 + $0x250] sm:$0xff] %vm3997, %v4974
          %5000 = vst.msk [vmem:[#allocation7 + $0x288] sm:$0xff] %vm3997, %v4976
          %s5001 = sadd.s32 %s3758, 46
          %s5002 = scalar_lea.vmem [#allocation2], %s5001
          %v5003 = vld [vmem:[%s5002] sm:$0xff]
          %v5004 = vld [vmem:[%s5002 + $0x8] sm:$0xff]
          %v5005 = vld [vmem:[%s5002 + $0x10] sm:$0xff]
          %v5006 = vld [vmem:[%s5002 + $0x18] sm:$0xff]
          %v5007 = vld [vmem:[%s5002 + $0x20] sm:$0xff]
          %v5008 = vld [vmem:[%s5002 + $0x28] sm:$0xff]
          %v5009 = vld [vmem:[%s5002 + $0x30] sm:$0xff]
          %v5010 = vld [vmem:[%s5002 + $0x38] sm:$0xff]
          %v5011 = vld [vmem:[%s5002 + $0x40] sm:$0xff]
          %v5012 = vld [vmem:[%s5002 + $0x48] sm:$0xff]
          %v5013 = vld [vmem:[%s5002 + $0x50] sm:$0xff]
          %v5014 = vld [vmem:[%s5002 + $0x58] sm:$0xff]
          %5015 = vst.msk [vmem:[#allocation7 + $0x28] sm:$0xff] %vm385, %v5003
          %5016 = vst.msk [vmem:[#allocation7 + $0x60] sm:$0xff] %vm385, %v5004
          %5017 = vst.msk [vmem:[#allocation7 + $0x98] sm:$0xff] %vm385, %v5005
          %5018 = vst.msk [vmem:[#allocation7 + $0xd0] sm:$0xff] %vm385, %v5006
          %5019 = vst.msk [vmem:[#allocation7 + $0x108] sm:$0xff] %vm385, %v5007
          %5020 = vst.msk [vmem:[#allocation7 + $0x140] sm:$0xff] %vm385, %v5008
          %5021 = vst.msk [vmem:[#allocation7 + $0x178] sm:$0xff] %vm385, %v5009
          %5022 = vst.msk [vmem:[#allocation7 + $0x1b0] sm:$0xff] %vm385, %v5010
          %5023 = vst.msk [vmem:[#allocation7 + $0x1e8] sm:$0xff] %vm385, %v5011
          %5024 = vst.msk [vmem:[#allocation7 + $0x220] sm:$0xff] %vm385, %v5012
          %5025 = vst.msk [vmem:[#allocation7 + $0x258] sm:$0xff] %vm385, %v5013
          %5026 = vst.msk [vmem:[#allocation7 + $0x290] sm:$0xff] %vm385, %v5014
          %s5027 = sadd.s32 %s3758, 47
          %s5028 = scalar_lea.vmem [#allocation2], %s5027
          %v5029 = vld [vmem:[%s5028] sm:$0xff]
          %v5030 = vld [vmem:[%s5028 + $0x8] sm:$0xff]
          %v5031 = vld [vmem:[%s5028 + $0x10] sm:$0xff]
          %v5032 = vld [vmem:[%s5028 + $0x18] sm:$0xff]
          %v5033 = vld [vmem:[%s5028 + $0x20] sm:$0xff]
          %v5034 = vld [vmem:[%s5028 + $0x28] sm:$0xff]
          %v5035 = vld [vmem:[%s5028 + $0x30] sm:$0xff]
          %v5036 = vld [vmem:[%s5028 + $0x38] sm:$0xff]
          %v5037 = vld [vmem:[%s5028 + $0x40] sm:$0xff]
          %v5038 = vld [vmem:[%s5028 + $0x48] sm:$0xff]
          %v5039 = vld [vmem:[%s5028 + $0x50] sm:$0xff]
          %v5040 = vld [vmem:[%s5028 + $0x58] sm:$0xff]
          %5053 = vrot.lane.b32.xlu0 %v5029, 32
          %v5054 = vpop.permute.xlu0 %5053
          %5055 = vrot.lane.b32.xlu0 %v5030, 32
          %v5056 = vpop.permute.xlu0 %5055
          %5057 = vrot.lane.b32.xlu0 %v5031, 32
          %v5058 = vpop.permute.xlu0 %5057
          %5059 = vrot.lane.b32.xlu0 %v5032, 32
          %v5060 = vpop.permute.xlu0 %5059
          %5061 = vrot.lane.b32.xlu0 %v5033, 32
          %v5062 = vpop.permute.xlu0 %5061
          %5063 = vrot.lane.b32.xlu0 %v5034, 32
          %v5064 = vpop.permute.xlu0 %5063
          %5065 = vrot.lane.b32.xlu0 %v5035, 32
          %v5066 = vpop.permute.xlu0 %5065
          %5067 = vrot.lane.b32.xlu0 %v5036, 32
          %v5068 = vpop.permute.xlu0 %5067
          %5069 = vrot.lane.b32.xlu0 %v5037, 32
          %v5070 = vpop.permute.xlu0 %5069
          %5071 = vrot.lane.b32.xlu0 %v5038, 32
          %v5072 = vpop.permute.xlu0 %5071
          %5073 = vrot.lane.b32.xlu0 %v5039, 32
          %v5074 = vpop.permute.xlu0 %5073
          %5075 = vrot.lane.b32.xlu0 %v5040, 32
          %v5076 = vpop.permute.xlu0 %5075
          %5089 = vst.msk [vmem:[#allocation7 + $0x28] sm:$0xff] %vm3847, %v5054
          %5090 = vst.msk [vmem:[#allocation7 + $0x60] sm:$0xff] %vm3847, %v5056
          %5091 = vst.msk [vmem:[#allocation7 + $0x98] sm:$0xff] %vm3847, %v5058
          %5092 = vst.msk [vmem:[#allocation7 + $0xd0] sm:$0xff] %vm3847, %v5060
          %5093 = vst.msk [vmem:[#allocation7 + $0x108] sm:$0xff] %vm3847, %v5062
          %5094 = vst.msk [vmem:[#allocation7 + $0x140] sm:$0xff] %vm3847, %v5064
          %5095 = vst.msk [vmem:[#allocation7 + $0x178] sm:$0xff] %vm3847, %v5066
          %5096 = vst.msk [vmem:[#allocation7 + $0x1b0] sm:$0xff] %vm3847, %v5068
          %5097 = vst.msk [vmem:[#allocation7 + $0x1e8] sm:$0xff] %vm3847, %v5070
          %5098 = vst.msk [vmem:[#allocation7 + $0x220] sm:$0xff] %vm3847, %v5072
          %5099 = vst.msk [vmem:[#allocation7 + $0x258] sm:$0xff] %vm3847, %v5074
          %5100 = vst.msk [vmem:[#allocation7 + $0x290] sm:$0xff] %vm3847, %v5076
          %s5101 = sadd.s32 %s3758, 48
          %s5102 = scalar_lea.vmem [#allocation2], %s5101
          %v5103 = vld [vmem:[%s5102] sm:$0xff]
          %v5104 = vld [vmem:[%s5102 + $0x8] sm:$0xff]
          %v5105 = vld [vmem:[%s5102 + $0x10] sm:$0xff]
          %v5106 = vld [vmem:[%s5102 + $0x18] sm:$0xff]
          %v5107 = vld [vmem:[%s5102 + $0x20] sm:$0xff]
          %v5108 = vld [vmem:[%s5102 + $0x28] sm:$0xff]
          %v5109 = vld [vmem:[%s5102 + $0x30] sm:$0xff]
          %v5110 = vld [vmem:[%s5102 + $0x38] sm:$0xff]
          %v5111 = vld [vmem:[%s5102 + $0x40] sm:$0xff]
          %v5112 = vld [vmem:[%s5102 + $0x48] sm:$0xff]
          %v5113 = vld [vmem:[%s5102 + $0x50] sm:$0xff]
          %v5114 = vld [vmem:[%s5102 + $0x58] sm:$0xff]
          %5127 = vrot.lane.b32.xlu0 %v5103, 64
          %v5128 = vpop.permute.xlu0 %5127
          %5129 = vrot.lane.b32.xlu0 %v5104, 64
          %v5130 = vpop.permute.xlu0 %5129
          %5131 = vrot.lane.b32.xlu0 %v5105, 64
          %v5132 = vpop.permute.xlu0 %5131
          %5133 = vrot.lane.b32.xlu0 %v5106, 64
          %v5134 = vpop.permute.xlu0 %5133
          %5135 = vrot.lane.b32.xlu0 %v5107, 64
          %v5136 = vpop.permute.xlu0 %5135
          %5137 = vrot.lane.b32.xlu0 %v5108, 64
          %v5138 = vpop.permute.xlu0 %5137
          %5139 = vrot.lane.b32.xlu0 %v5109, 64
          %v5140 = vpop.permute.xlu0 %5139
          %5141 = vrot.lane.b32.xlu0 %v5110, 64
          %v5142 = vpop.permute.xlu0 %5141
          %5143 = vrot.lane.b32.xlu0 %v5111, 64
          %v5144 = vpop.permute.xlu0 %5143
          %5145 = vrot.lane.b32.xlu0 %v5112, 64
          %v5146 = vpop.permute.xlu0 %5145
          %5147 = vrot.lane.b32.xlu0 %v5113, 64
          %v5148 = vpop.permute.xlu0 %5147
          %5149 = vrot.lane.b32.xlu0 %v5114, 64
          %v5150 = vpop.permute.xlu0 %5149
          %5163 = vst.msk [vmem:[#allocation7 + $0x28] sm:$0xff] %vm3922, %v5128
          %5164 = vst.msk [vmem:[#allocation7 + $0x60] sm:$0xff] %vm3922, %v5130
          %5165 = vst.msk [vmem:[#allocation7 + $0x98] sm:$0xff] %vm3922, %v5132
          %5166 = vst.msk [vmem:[#allocation7 + $0xd0] sm:$0xff] %vm3922, %v5134
          %5167 = vst.msk [vmem:[#allocation7 + $0x108] sm:$0xff] %vm3922, %v5136
          %5168 = vst.msk [vmem:[#allocation7 + $0x140] sm:$0xff] %vm3922, %v5138
          %5169 = vst.msk [vmem:[#allocation7 + $0x178] sm:$0xff] %vm3922, %v5140
          %5170 = vst.msk [vmem:[#allocation7 + $0x1b0] sm:$0xff] %vm3922, %v5142
          %5171 = vst.msk [vmem:[#allocation7 + $0x1e8] sm:$0xff] %vm3922, %v5144
          %5172 = vst.msk [vmem:[#allocation7 + $0x220] sm:$0xff] %vm3922, %v5146
          %5173 = vst.msk [vmem:[#allocation7 + $0x258] sm:$0xff] %vm3922, %v5148
          %5174 = vst.msk [vmem:[#allocation7 + $0x290] sm:$0xff] %vm3922, %v5150
          %s5175 = sadd.s32 %s3758, 49
          %s5176 = scalar_lea.vmem [#allocation2], %s5175
          %v5177 = vld [vmem:[%s5176] sm:$0xff]
          %v5178 = vld [vmem:[%s5176 + $0x8] sm:$0xff]
          %v5179 = vld [vmem:[%s5176 + $0x10] sm:$0xff]
          %v5180 = vld [vmem:[%s5176 + $0x18] sm:$0xff]
          %v5181 = vld [vmem:[%s5176 + $0x20] sm:$0xff]
          %v5182 = vld [vmem:[%s5176 + $0x28] sm:$0xff]
          %v5183 = vld [vmem:[%s5176 + $0x30] sm:$0xff]
          %v5184 = vld [vmem:[%s5176 + $0x38] sm:$0xff]
          %v5185 = vld [vmem:[%s5176 + $0x40] sm:$0xff]
          %v5186 = vld [vmem:[%s5176 + $0x48] sm:$0xff]
          %v5187 = vld [vmem:[%s5176 + $0x50] sm:$0xff]
          %v5188 = vld [vmem:[%s5176 + $0x58] sm:$0xff]
          %5201 = vrot.lane.b32.xlu0 %v5177, 96
          %v5202 = vpop.permute.xlu0 %5201
          %5203 = vrot.lane.b32.xlu0 %v5178, 96
          %v5204 = vpop.permute.xlu0 %5203
          %5205 = vrot.lane.b32.xlu0 %v5179, 96
          %v5206 = vpop.permute.xlu0 %5205
          %5207 = vrot.lane.b32.xlu0 %v5180, 96
          %v5208 = vpop.permute.xlu0 %5207
          %5209 = vrot.lane.b32.xlu0 %v5181, 96
          %v5210 = vpop.permute.xlu0 %5209
          %5211 = vrot.lane.b32.xlu0 %v5182, 96
          %v5212 = vpop.permute.xlu0 %5211
          %5213 = vrot.lane.b32.xlu0 %v5183, 96
          %v5214 = vpop.permute.xlu0 %5213
          %5215 = vrot.lane.b32.xlu0 %v5184, 96
          %v5216 = vpop.permute.xlu0 %5215
          %5217 = vrot.lane.b32.xlu0 %v5185, 96
          %v5218 = vpop.permute.xlu0 %5217
          %5219 = vrot.lane.b32.xlu0 %v5186, 96
          %v5220 = vpop.permute.xlu0 %5219
          %5221 = vrot.lane.b32.xlu0 %v5187, 96
          %v5222 = vpop.permute.xlu0 %5221
          %5223 = vrot.lane.b32.xlu0 %v5188, 96
          %v5224 = vpop.permute.xlu0 %5223
          %5237 = vst.msk [vmem:[#allocation7 + $0x28] sm:$0xff] %vm3997, %v5202
          %5238 = vst.msk [vmem:[#allocation7 + $0x60] sm:$0xff] %vm3997, %v5204
          %5239 = vst.msk [vmem:[#allocation7 + $0x98] sm:$0xff] %vm3997, %v5206
          %5240 = vst.msk [vmem:[#allocation7 + $0xd0] sm:$0xff] %vm3997, %v5208
          %5241 = vst.msk [vmem:[#allocation7 + $0x108] sm:$0xff] %vm3997, %v5210
          %5242 = vst.msk [vmem:[#allocation7 + $0x140] sm:$0xff] %vm3997, %v5212
          %5243 = vst.msk [vmem:[#allocation7 + $0x178] sm:$0xff] %vm3997, %v5214
          %5244 = vst.msk [vmem:[#allocation7 + $0x1b0] sm:$0xff] %vm3997, %v5216
          %5245 = vst.msk [vmem:[#allocation7 + $0x1e8] sm:$0xff] %vm3997, %v5218
          %5246 = vst.msk [vmem:[#allocation7 + $0x220] sm:$0xff] %vm3997, %v5220
          %5247 = vst.msk [vmem:[#allocation7 + $0x258] sm:$0xff] %vm3997, %v5222
          %5248 = vst.msk [vmem:[#allocation7 + $0x290] sm:$0xff] %vm3997, %v5224
          %s5249 = sadd.s32 %s3758, 50
          %s5250 = scalar_lea.vmem [#allocation2], %s5249
          %v5251 = vld [vmem:[%s5250] sm:$0xff]
          %v5252 = vld [vmem:[%s5250 + $0x8] sm:$0xff]
          %v5253 = vld [vmem:[%s5250 + $0x10] sm:$0xff]
          %v5254 = vld [vmem:[%s5250 + $0x18] sm:$0xff]
          %v5255 = vld [vmem:[%s5250 + $0x20] sm:$0xff]
          %v5256 = vld [vmem:[%s5250 + $0x28] sm:$0xff]
          %v5257 = vld [vmem:[%s5250 + $0x30] sm:$0xff]
          %v5258 = vld [vmem:[%s5250 + $0x38] sm:$0xff]
          %v5259 = vld [vmem:[%s5250 + $0x40] sm:$0xff]
          %v5260 = vld [vmem:[%s5250 + $0x48] sm:$0xff]
          %v5261 = vld [vmem:[%s5250 + $0x50] sm:$0xff]
          %v5262 = vld [vmem:[%s5250 + $0x58] sm:$0xff]
          %5263 = vst.msk [vmem:[#allocation7 + $0x30] sm:$0xff] %vm385, %v5251
          %5264 = vst.msk [vmem:[#allocation7 + $0x68] sm:$0xff] %vm385, %v5252
          %5265 = vst.msk [vmem:[#allocation7 + $0xa0] sm:$0xff] %vm385, %v5253
          %5266 = vst.msk [vmem:[#allocation7 + $0xd8] sm:$0xff] %vm385, %v5254
          %5267 = vst.msk [vmem:[#allocation7 + $0x110] sm:$0xff] %vm385, %v5255
          %5268 = vst.msk [vmem:[#allocation7 + $0x148] sm:$0xff] %vm385, %v5256
          %5269 = vst.msk [vmem:[#allocation7 + $0x180] sm:$0xff] %vm385, %v5257
          %5270 = vst.msk [vmem:[#allocation7 + $0x1b8] sm:$0xff] %vm385, %v5258
          %5271 = vst.msk [vmem:[#allocation7 + $0x1f0] sm:$0xff] %vm385, %v5259
          %5272 = vst.msk [vmem:[#allocation7 + $0x228] sm:$0xff] %vm385, %v5260
          %5273 = vst.msk [vmem:[#allocation7 + $0x260] sm:$0xff] %vm385, %v5261
          %5274 = vst.msk [vmem:[#allocation7 + $0x298] sm:$0xff] %vm385, %v5262
          %v5275 = vld [vmem:[#allocation7] sm:$0xff]
          %v5276 = vld [vmem:[#allocation7 + $0x8] sm:$0xff]
          %v5277 = vld [vmem:[#allocation7 + $0x10] sm:$0xff]
          %v5278 = vld [vmem:[#allocation7 + $0x18] sm:$0xff]
          %v5279 = vld [vmem:[#allocation7 + $0x20] sm:$0xff]
          %v5280 = vld [vmem:[#allocation7 + $0x28] sm:$0xff]
          %v5281 = vld [vmem:[#allocation7 + $0x30] sm:$0xff]
          %v5282 = vld [vmem:[#allocation7 + $0x38] sm:$0xff]
          %v5283 = vld [vmem:[#allocation7 + $0x40] sm:$0xff]
          %v5284 = vld [vmem:[#allocation7 + $0x48] sm:$0xff]
          %v5285 = vld [vmem:[#allocation7 + $0x50] sm:$0xff]
          %v5286 = vld [vmem:[#allocation7 + $0x58] sm:$0xff]
          %v5287 = vld [vmem:[#allocation7 + $0x60] sm:$0xff]
          %v5288 = vld [vmem:[#allocation7 + $0x68] sm:$0xff]
          %v5289 = vld [vmem:[#allocation7 + $0x70] sm:$0xff]
          %v5290 = vld [vmem:[#allocation7 + $0x78] sm:$0xff]
          %v5291 = vld [vmem:[#allocation7 + $0x80] sm:$0xff]
          %v5292 = vld [vmem:[#allocation7 + $0x88] sm:$0xff]
          %v5293 = vld [vmem:[#allocation7 + $0x90] sm:$0xff]
          %v5294 = vld [vmem:[#allocation7 + $0x98] sm:$0xff]
          %v5295 = vld [vmem:[#allocation7 + $0xa0] sm:$0xff]
          %v5296 = vld [vmem:[#allocation7 + $0xa8] sm:$0xff]
          %v5297 = vld [vmem:[#allocation7 + $0xb0] sm:$0xff]
          %v5298 = vld [vmem:[#allocation7 + $0xb8] sm:$0xff]
          %v5299 = vld [vmem:[#allocation7 + $0xc0] sm:$0xff]
          %v5300 = vld [vmem:[#allocation7 + $0xc8] sm:$0xff]
          %v5301 = vld [vmem:[#allocation7 + $0xd0] sm:$0xff]
          %v5302 = vld [vmem:[#allocation7 + $0xd8] sm:$0xff]
          %v5303 = vld [vmem:[#allocation7 + $0xe0] sm:$0xff]
          %v5304 = vld [vmem:[#allocation7 + $0xe8] sm:$0xff]
          %v5305 = vld [vmem:[#allocation7 + $0xf0] sm:$0xff]
          %v5306 = vld [vmem:[#allocation7 + $0xf8] sm:$0xff]
          %v5307 = vld [vmem:[#allocation7 + $0x100] sm:$0xff]
          %v5308 = vld [vmem:[#allocation7 + $0x108] sm:$0xff]
          %v5309 = vld [vmem:[#allocation7 + $0x110] sm:$0xff]
          %v5310 = vld [vmem:[#allocation7 + $0x118] sm:$0xff]
          %v5311 = vld [vmem:[#allocation7 + $0x120] sm:$0xff]
          %v5312 = vld [vmem:[#allocation7 + $0x128] sm:$0xff]
          %v5313 = vld [vmem:[#allocation7 + $0x130] sm:$0xff]
          %v5314 = vld [vmem:[#allocation7 + $0x138] sm:$0xff]
          %v5315 = vld [vmem:[#allocation7 + $0x140] sm:$0xff]
          %v5316 = vld [vmem:[#allocation7 + $0x148] sm:$0xff]
          %v5317 = vld [vmem:[#allocation7 + $0x150] sm:$0xff]
          %v5318 = vld [vmem:[#allocation7 + $0x158] sm:$0xff]
          %v5319 = vld [vmem:[#allocation7 + $0x160] sm:$0xff]
          %v5320 = vld [vmem:[#allocation7 + $0x168] sm:$0xff]
          %v5321 = vld [vmem:[#allocation7 + $0x170] sm:$0xff]
          %v5322 = vld [vmem:[#allocation7 + $0x178] sm:$0xff]
          %v5323 = vld [vmem:[#allocation7 + $0x180] sm:$0xff]
          %v5324 = vld [vmem:[#allocation7 + $0x188] sm:$0xff]
          %v5325 = vld [vmem:[#allocation7 + $0x190] sm:$0xff]
          %v5326 = vld [vmem:[#allocation7 + $0x198] sm:$0xff]
          %v5327 = vld [vmem:[#allocation7 + $0x1a0] sm:$0xff]
          %v5328 = vld [vmem:[#allocation7 + $0x1a8] sm:$0xff]
          %v5329 = vld [vmem:[#allocation7 + $0x1b0] sm:$0xff]
          %v5330 = vld [vmem:[#allocation7 + $0x1b8] sm:$0xff]
          %v5331 = vld [vmem:[#allocation7 + $0x1c0] sm:$0xff]
          %v5332 = vld [vmem:[#allocation7 + $0x1c8] sm:$0xff]
          %v5333 = vld [vmem:[#allocation7 + $0x1d0] sm:$0xff]
          %v5334 = vld [vmem:[#allocation7 + $0x1d8] sm:$0xff]
          %v5335 = vld [vmem:[#allocation7 + $0x1e0] sm:$0xff]
          %v5336 = vld [vmem:[#allocation7 + $0x1e8] sm:$0xff]
          %v5337 = vld [vmem:[#allocation7 + $0x1f0] sm:$0xff]
          %v5338 = vld [vmem:[#allocation7 + $0x1f8] sm:$0xff]
          %v5339 = vld [vmem:[#allocation7 + $0x200] sm:$0xff]
          %v5340 = vld [vmem:[#allocation7 + $0x208] sm:$0xff]
          %v5341 = vld [vmem:[#allocation7 + $0x210] sm:$0xff]
          %v5342 = vld [vmem:[#allocation7 + $0x218] sm:$0xff]
          %v5343 = vld [vmem:[#allocation7 + $0x220] sm:$0xff]
          %v5344 = vld [vmem:[#allocation7 + $0x228] sm:$0xff]
          %v5345 = vld [vmem:[#allocation7 + $0x230] sm:$0xff]
          %v5346 = vld [vmem:[#allocation7 + $0x238] sm:$0xff]
          %v5347 = vld [vmem:[#allocation7 + $0x240] sm:$0xff]
          %v5348 = vld [vmem:[#allocation7 + $0x248] sm:$0xff]
          %v5349 = vld [vmem:[#allocation7 + $0x250] sm:$0xff]
          %v5350 = vld [vmem:[#allocation7 + $0x258] sm:$0xff]
          %v5351 = vld [vmem:[#allocation7 + $0x260] sm:$0xff]
          %v5352 = vld [vmem:[#allocation7 + $0x268] sm:$0xff]
          %v5353 = vld [vmem:[#allocation7 + $0x270] sm:$0xff]
          %v5354 = vld [vmem:[#allocation7 + $0x278] sm:$0xff]
          %v5355 = vld [vmem:[#allocation7 + $0x280] sm:$0xff]
          %v5356 = vld [vmem:[#allocation7 + $0x288] sm:$0xff]
          %v5357 = vld [vmem:[#allocation7 + $0x290] sm:$0xff]
          %v5358 = vld [vmem:[#allocation7 + $0x298] sm:$0xff]
          %v5359 = vpack.c.bf16 %v5282, %v5275
          %v5360 = vpack.c.bf16 %v5283, %v5276
          %v5361 = vpack.c.bf16 %v5284, %v5277
          %v5362 = vpack.c.bf16 %v5285, %v5278
          %v5363 = vpack.c.bf16 %v5286, %v5279
          %v5364 = vpack.c.bf16 %v5287, %v5280
          %v5365 = vpack.c.bf16 %v5288, %v5281
          %v5366 = vpack.c.bf16 %v5296, %v5289
          %v5367 = vpack.c.bf16 %v5297, %v5290
          %v5368 = vpack.c.bf16 %v5298, %v5291
          %v5369 = vpack.c.bf16 %v5299, %v5292
          %v5370 = vpack.c.bf16 %v5300, %v5293
          %v5371 = vpack.c.bf16 %v5301, %v5294
          %v5372 = vpack.c.bf16 %v5302, %v5295
          %v5373 = vpack.c.bf16 %v5310, %v5303
          %v5374 = vpack.c.bf16 %v5311, %v5304
          %v5375 = vpack.c.bf16 %v5312, %v5305
          %v5376 = vpack.c.bf16 %v5313, %v5306
          %v5377 = vpack.c.bf16 %v5314, %v5307
          %v5378 = vpack.c.bf16 %v5315, %v5308
          %v5379 = vpack.c.bf16 %v5316, %v5309
          %v5380 = vpack.c.bf16 %v5324, %v5317
          %v5381 = vpack.c.bf16 %v5325, %v5318
          %v5382 = vpack.c.bf16 %v5326, %v5319
          %v5383 = vpack.c.bf16 %v5327, %v5320
          %v5384 = vpack.c.bf16 %v5328, %v5321
          %v5385 = vpack.c.bf16 %v5329, %v5322
          %v5386 = vpack.c.bf16 %v5330, %v5323
          %v5387 = vpack.c.bf16 %v5338, %v5331
          %v5388 = vpack.c.bf16 %v5339, %v5332
          %v5389 = vpack.c.bf16 %v5340, %v5333
          %v5390 = vpack.c.bf16 %v5341, %v5334
          %v5391 = vpack.c.bf16 %v5342, %v5335
          %v5392 = vpack.c.bf16 %v5343, %v5336
          %v5393 = vpack.c.bf16 %v5344, %v5337
          %v5394 = vpack.c.bf16 %v5352, %v5345
          %v5395 = vpack.c.bf16 %v5353, %v5346
          %v5396 = vpack.c.bf16 %v5354, %v5347
          %v5397 = vpack.c.bf16 %v5355, %v5348
          %v5398 = vpack.c.bf16 %v5356, %v5349
          %v5399 = vpack.c.bf16 %v5357, %v5350
          %v5400 = vpack.c.bf16 %v5358, %v5351
          %v5401 = vld [vmem:[%s3] sm:$0xf]
          %v5402 = vld [vmem:[%s3 + $0x4] sm:$0xf]
          %v5403 = vld [vmem:[%s3 + $0x8] sm:$0xf]
          %v5404 = vld [vmem:[%s3 + $0xc] sm:$0xf]
          %v5405 = vld [vmem:[%s3 + $0x10] sm:$0xf]
          %v5406 = vld [vmem:[%s3 + $0x14] sm:$0xf]
          %v5407 = vld [vmem:[%s3 + $0x18] sm:$0xf]
          %v5408 = vld [vmem:[%s3 + $0x1c] sm:$0xf]
          %v5409 = vld [vmem:[%s3 + $0x20] sm:$0xf]
          %v5410 = vld [vmem:[%s3 + $0x24] sm:$0xf]
          %v5411 = vld [vmem:[%s3 + $0x28] sm:$0xf]
          %v5412 = vld [vmem:[%s3 + $0x2c] sm:$0xf]
          %v5413 = vld [vmem:[%s3 + $0x30] sm:$0xf]
          %v5414 = vld [vmem:[%s3 + $0x34] sm:$0xf]
          %v5415 = vld [vmem:[%s3 + $0x38] sm:$0xf]
          %v5416 = vld [vmem:[%s3 + $0x3c] sm:$0xf]
          %v5417 = vld [vmem:[%s3 + $0x40] sm:$0xf]
          %v5418 = vld [vmem:[%s3 + $0x44] sm:$0xf]
          %v5419 = vld [vmem:[%s3 + $0x48] sm:$0xf]
          %v5420 = vld [vmem:[%s3 + $0x4c] sm:$0xf]
          %v5421 = vld [vmem:[%s3 + $0x50] sm:$0xf]
          %v5422 = vld [vmem:[%s3 + $0x54] sm:$0xf]
          %v5423 = vld [vmem:[%s3 + $0x58] sm:$0xf]
          %v5424 = vld [vmem:[%s3 + $0x5c] sm:$0xf]
          %v5425 = vld [vmem:[%s3 + $0x60] sm:$0xf]
          %v5426 = vld [vmem:[%s3 + $0x64] sm:$0xf]
          %v5427 = vld [vmem:[%s3 + $0x68] sm:$0xf]
          %v5428 = vld [vmem:[%s3 + $0x6c] sm:$0xf]
          %v5429 = vld [vmem:[%s3 + $0x70] sm:$0xf]
          %v5430 = vld [vmem:[%s3 + $0x74] sm:$0xf]
          %v5431 = vld [vmem:[%s3 + $0x78] sm:$0xf]
          %v5432 = vld [vmem:[%s3 + $0x7c] sm:$0xf]
          %v5433 = vld [vmem:[%s3 + $0x80] sm:$0xf]
          %v5434 = vld [vmem:[%s3 + $0x84] sm:$0xf]
          %v5435 = vld [vmem:[%s3 + $0x88] sm:$0xf]
          %v5436 = vld [vmem:[%s3 + $0x8c] sm:$0xf]
          %v5437 = vld [vmem:[%s3 + $0x90] sm:$0xf]
          %v5438 = vld [vmem:[%s3 + $0x94] sm:$0xf]
          %v5439 = vld [vmem:[%s3 + $0x98] sm:$0xf]
          %v5440 = vld [vmem:[%s3 + $0x9c] sm:$0xf]
          %v5441 = vld [vmem:[%s3 + $0xa0] sm:$0xf]
          %v5442 = vld [vmem:[%s3 + $0xa4] sm:$0xf]
          %v5443 = vld [vmem:[%s3 + $0xa8] sm:$0xf]
          %v5444 = vld [vmem:[%s3 + $0xac] sm:$0xf]
          %v5445 = vld [vmem:[%s3 + $0xb0] sm:$0xf]
          %v5446 = vld [vmem:[%s3 + $0xb4] sm:$0xf]
          %v5447 = vld [vmem:[%s3 + $0xb8] sm:$0xf]
          %v5448 = vld [vmem:[%s3 + $0xbc] sm:$0xf]
          %v5449 = vld [vmem:[%s3 + $0xc0] sm:$0xf]
          %v5450 = vld [vmem:[%s3 + $0xc4] sm:$0xf]
          %v5451 = vld [vmem:[%s3 + $0xc8] sm:$0xf]
          %v5452 = vld [vmem:[%s3 + $0xcc] sm:$0xf]
          %v5453 = vld [vmem:[%s3 + $0xd0] sm:$0xf]
          %v5454 = vld [vmem:[%s3 + $0xd4] sm:$0xf]
          %v5455 = vld [vmem:[%s3 + $0xd8] sm:$0xf]
          %v5456 = vld [vmem:[%s3 + $0xdc] sm:$0xf]
          %v5457 = vld [vmem:[%s3 + $0xe0] sm:$0xf]
          %v5458 = vld [vmem:[%s3 + $0xe4] sm:$0xf]
          %v5459 = vld [vmem:[%s3 + $0xe8] sm:$0xf]
          %v5460 = vld [vmem:[%s3 + $0xec] sm:$0xf]
          %v5461 = vld [vmem:[%s3 + $0xf0] sm:$0xf]
          %v5462 = vld [vmem:[%s3 + $0xf4] sm:$0xf]
          %v5463 = vld [vmem:[%s3 + $0xf8] sm:$0xf]
          %v5464 = vld [vmem:[%s3 + $0xfc] sm:$0xf]
          %v5465 = vld [vmem:[%s3 + $0x100] sm:$0xf]
          %v5466 = vld [vmem:[%s3 + $0x104] sm:$0xf]
          %v5467 = vld [vmem:[%s3 + $0x108] sm:$0xf]
          %v5468 = vld [vmem:[%s3 + $0x10c] sm:$0xf]
          %v5469 = vld [vmem:[%s3 + $0x110] sm:$0xf]
          %v5470 = vld [vmem:[%s3 + $0x114] sm:$0xf]
          %v5471 = vld [vmem:[%s3 + $0x118] sm:$0xf]
          %v5472 = vld [vmem:[%s3 + $0x11c] sm:$0xf]
          %v5473 = vld [vmem:[%s3 + $0x120] sm:$0xf]
          %v5474 = vld [vmem:[%s3 + $0x124] sm:$0xf]
          %v5475 = vld [vmem:[%s3 + $0x128] sm:$0xf]
          %v5476 = vld [vmem:[%s3 + $0x12c] sm:$0xf]
          %v5477 = vld [vmem:[%s3 + $0x130] sm:$0xf]
          %v5478 = vld [vmem:[%s3 + $0x134] sm:$0xf]
          %v5479 = vld [vmem:[%s3 + $0x138] sm:$0xf]
          %v5480 = vld [vmem:[%s3 + $0x13c] sm:$0xf]
          %v5481 = vld [vmem:[%s3 + $0x140] sm:$0xf]
          %v5482 = vld [vmem:[%s3 + $0x144] sm:$0xf]
          %v5483 = vld [vmem:[%s3 + $0x148] sm:$0xf]
          %v5484 = vld [vmem:[%s3 + $0x14c] sm:$0xf]
          %v5485 = vld [vmem:[%s3 + $0x150] sm:$0xf]
          %v5486 = vld [vmem:[%s3 + $0x154] sm:$0xf]
          %v5487 = vld [vmem:[%s3 + $0x158] sm:$0xf]
          %v5488 = vld [vmem:[%s3 + $0x15c] sm:$0xf]
          %v5489 = vld [vmem:[%s3 + $0x160] sm:$0xf]
          %v5490 = vld [vmem:[%s3 + $0x164] sm:$0xf]
          %v5491 = vld [vmem:[%s3 + $0x168] sm:$0xf]
          %v5492 = vld [vmem:[%s3 + $0x16c] sm:$0xf]
          %v5493 = vld [vmem:[%s3 + $0x170] sm:$0xf]
          %v5494 = vld [vmem:[%s3 + $0x174] sm:$0xf]
          %v5495 = vld [vmem:[%s3 + $0x178] sm:$0xf]
          %v5496 = vld [vmem:[%s3 + $0x17c] sm:$0xf]
          %v5497 = vld [vmem:[%s3 + $0x180] sm:$0xf]
          %v5498 = vld [vmem:[%s3 + $0x184] sm:$0xf]
          %v5499 = vld [vmem:[%s3 + $0x188] sm:$0xf]
          %v5500 = vld [vmem:[%s3 + $0x18c] sm:$0xf]
          %v5501 = vld [vmem:[%s4] sm:$0x1]
          %v5503 = vperm.slane %v5501, 0
          %v5605 = vunpack.c.l.b16 %v5401
          %v5606 = vunpack.c.l.b16 %v5402
          %v5607 = vunpack.c.l.b16 %v5403
          %v5608 = vunpack.c.l.b16 %v5404
          %v5609 = vunpack.c.l.b16 %v5405
          %v5610 = vunpack.c.l.b16 %v5406
          %v5611 = vunpack.c.l.b16 %v5407
          %v5612 = vunpack.c.l.b16 %v5408
          %v5613 = vunpack.c.l.b16 %v5409
          %v5614 = vunpack.c.l.b16 %v5410
          %v5615 = vunpack.c.l.b16 %v5411
          %v5616 = vunpack.c.l.b16 %v5412
          %v5617 = vunpack.c.l.b16 %v5413
          %v5618 = vunpack.c.l.b16 %v5414
          %v5619 = vunpack.c.l.b16 %v5415
          %v5620 = vunpack.c.l.b16 %v5416
          %v5621 = vunpack.c.l.b16 %v5417
          %v5622 = vunpack.c.l.b16 %v5418
          %v5623 = vunpack.c.l.b16 %v5419
          %v5624 = vunpack.c.l.b16 %v5420
          %v5625 = vunpack.c.l.b16 %v5421
          %v5626 = vunpack.c.l.b16 %v5422
          %v5627 = vunpack.c.l.b16 %v5423
          %v5628 = vunpack.c.l.b16 %v5424
          %v5629 = vunpack.c.l.b16 %v5425
          %v5630 = vunpack.c.l.b16 %v5426
          %v5631 = vunpack.c.l.b16 %v5427
          %v5632 = vunpack.c.l.b16 %v5428
          %v5633 = vunpack.c.l.b16 %v5429
          %v5634 = vunpack.c.l.b16 %v5430
          %v5635 = vunpack.c.l.b16 %v5431
          %v5636 = vunpack.c.l.b16 %v5432
          %v5637 = vunpack.c.l.b16 %v5433
          %v5638 = vunpack.c.l.b16 %v5434
          %v5639 = vunpack.c.l.b16 %v5435
          %v5640 = vunpack.c.l.b16 %v5436
          %v5641 = vunpack.c.l.b16 %v5437
          %v5642 = vunpack.c.l.b16 %v5438
          %v5643 = vunpack.c.l.b16 %v5439
          %v5644 = vunpack.c.l.b16 %v5440
          %v5645 = vunpack.c.l.b16 %v5441
          %v5646 = vunpack.c.l.b16 %v5442
          %v5647 = vunpack.c.l.b16 %v5443
          %v5648 = vunpack.c.l.b16 %v5444
          %v5649 = vunpack.c.l.b16 %v5445
          %v5650 = vunpack.c.l.b16 %v5446
          %v5651 = vunpack.c.l.b16 %v5447
          %v5652 = vunpack.c.l.b16 %v5448
          %v5653 = vunpack.c.l.b16 %v5449
          %v5654 = vunpack.c.l.b16 %v5450
          %v5655 = vunpack.c.l.b16 %v5451
          %v5656 = vunpack.c.l.b16 %v5452
          %v5657 = vunpack.c.l.b16 %v5453
          %v5658 = vunpack.c.l.b16 %v5454
          %v5659 = vunpack.c.l.b16 %v5455
          %v5660 = vunpack.c.l.b16 %v5456
          %v5661 = vunpack.c.l.b16 %v5457
          %v5662 = vunpack.c.l.b16 %v5458
          %v5663 = vunpack.c.l.b16 %v5459
          %v5664 = vunpack.c.l.b16 %v5460
          %v5665 = vunpack.c.l.b16 %v5461
          %v5666 = vunpack.c.l.b16 %v5462
          %v5667 = vunpack.c.l.b16 %v5463
          %v5668 = vunpack.c.l.b16 %v5464
          %v5669 = vunpack.c.l.b16 %v5465
          %v5670 = vunpack.c.l.b16 %v5466
          %v5671 = vunpack.c.l.b16 %v5467
          %v5672 = vunpack.c.l.b16 %v5468
          %v5673 = vunpack.c.l.b16 %v5469
          %v5674 = vunpack.c.l.b16 %v5470
          %v5675 = vunpack.c.l.b16 %v5471
          %v5676 = vunpack.c.l.b16 %v5472
          %v5677 = vunpack.c.l.b16 %v5473
          %v5678 = vunpack.c.l.b16 %v5474
          %v5679 = vunpack.c.l.b16 %v5475
          %v5680 = vunpack.c.l.b16 %v5476
          %v5681 = vunpack.c.l.b16 %v5477
          %v5682 = vunpack.c.l.b16 %v5478
          %v5683 = vunpack.c.l.b16 %v5479
          %v5684 = vunpack.c.l.b16 %v5480
          %v5685 = vunpack.c.l.b16 %v5481
          %v5686 = vunpack.c.l.b16 %v5482
          %v5687 = vunpack.c.l.b16 %v5483
          %v5688 = vunpack.c.l.b16 %v5484
          %v5689 = vunpack.c.l.b16 %v5485
          %v5690 = vunpack.c.l.b16 %v5486
          %v5691 = vunpack.c.l.b16 %v5487
          %v5692 = vunpack.c.l.b16 %v5488
          %v5693 = vunpack.c.l.b16 %v5489
          %v5694 = vunpack.c.l.b16 %v5490
          %v5695 = vunpack.c.l.b16 %v5491
          %v5696 = vunpack.c.l.b16 %v5492
          %v5697 = vunpack.c.l.b16 %v5493
          %v5698 = vunpack.c.l.b16 %v5494
          %v5699 = vunpack.c.l.b16 %v5495
          %v5700 = vunpack.c.l.b16 %v5496
          %v5701 = vunpack.c.l.b16 %v5497
          %v5702 = vunpack.c.l.b16 %v5498
          %v5703 = vunpack.c.l.b16 %v5499
          %v5704 = vunpack.c.l.b16 %v5500
          %v5705 = vpack.c.b16 %v5606, %v5605
          %v5706 = vpack.c.b16 %v5608, %v5607
          %v5707 = vpack.c.b16 %v5610, %v5609
          %v5708 = vpack.c.b16 %v5612, %v5611
          %v5709 = vpack.c.b16 %v5614, %v5613
          %v5710 = vpack.c.b16 %v5616, %v5615
          %v5711 = vpack.c.b16 %v5618, %v5617
          %v5712 = vpack.c.b16 %v5620, %v5619
          %v5713 = vpack.c.b16 %v5622, %v5621
          %v5714 = vpack.c.b16 %v5624, %v5623
          %v5715 = vpack.c.b16 %v5626, %v5625
          %v5716 = vpack.c.b16 %v5628, %v5627
          %v5717 = vpack.c.b16 %v5630, %v5629
          %v5718 = vpack.c.b16 %v5632, %v5631
          %v5719 = vpack.c.b16 %v5634, %v5633
          %v5720 = vpack.c.b16 %v5636, %v5635
          %v5721 = vpack.c.b16 %v5638, %v5637
          %v5722 = vpack.c.b16 %v5640, %v5639
          %v5723 = vpack.c.b16 %v5642, %v5641
          %v5724 = vpack.c.b16 %v5644, %v5643
          %v5725 = vpack.c.b16 %v5646, %v5645
          %v5726 = vpack.c.b16 %v5648, %v5647
          %v5727 = vpack.c.b16 %v5650, %v5649
          %v5728 = vpack.c.b16 %v5652, %v5651
          %v5729 = vpack.c.b16 %v5654, %v5653
          %v5730 = vpack.c.b16 %v5656, %v5655
          %v5731 = vpack.c.b16 %v5658, %v5657
          %v5732 = vpack.c.b16 %v5660, %v5659
          %v5733 = vpack.c.b16 %v5662, %v5661
          %v5734 = vpack.c.b16 %v5664, %v5663
          %v5735 = vpack.c.b16 %v5666, %v5665
          %v5736 = vpack.c.b16 %v5668, %v5667
          %v5737 = vpack.c.b16 %v5670, %v5669
          %v5738 = vpack.c.b16 %v5672, %v5671
          %v5739 = vpack.c.b16 %v5674, %v5673
          %v5740 = vpack.c.b16 %v5676, %v5675
          %v5741 = vpack.c.b16 %v5678, %v5677
          %v5742 = vpack.c.b16 %v5680, %v5679
          %v5743 = vpack.c.b16 %v5682, %v5681
          %v5744 = vpack.c.b16 %v5684, %v5683
          %v5745 = vpack.c.b16 %v5686, %v5685
          %v5746 = vpack.c.b16 %v5688, %v5687
          %v5747 = vpack.c.b16 %v5690, %v5689
          %v5748 = vpack.c.b16 %v5692, %v5691
          %v5749 = vpack.c.b16 %v5694, %v5693
          %v5750 = vpack.c.b16 %v5696, %v5695
          %v5751 = vpack.c.b16 %v5698, %v5697
          %v5752 = vpack.c.b16 %v5700, %v5699
          %v5753 = vpack.c.b16 %v5702, %v5701
          %v5754 = vpack.c.b16 %v5704, %v5703
          %v5806 = vsel %vm385, %v5365, 0
          %v5809 = vsel %vm385, %v5372, 0
          %v5812 = vsel %vm385, %v5379, 0
          %v5815 = vsel %vm385, %v5386, 0
          %v5818 = vsel %vm385, %v5393, 0
          %v5821 = vsel %vm385, %v5400, 0
          %5823 = vmatpush.bf16.msra.mxu0 %v5712
          %5824 = vmatpush.bf16.msra.mxu0 %v5711
          %5825 = vmatpush.bf16.msra.mxu0 %v5710
          %5826 = vmatpush.bf16.msra.mxu0 %v5709
          %5827 = vmatpush.bf16.msra.mxu0 %v5708
          %5828 = vmatpush.bf16.msra.mxu0 %v5707
          %5829 = vmatpush.bf16.msra.mxu0 %v5706
          %5830 = vmatpush.bf16.msra.mxu0 %v5705
          %5831 = vmatmul.bf16.gmra.mxu0 %v5359
          %v5832 = vpop.f32.mrf.mxu0
          %v5833 = vadd.f32 %v5503, %v5832
          %v5834 = vpop.f32.mrf.mxu0
          %v5835 = vadd.f32 %v5503, %v5834
          %5836 = vmatmul.bf16.gmra.mxu0 %v5366
          %v5837 = vpop.f32.mrf.mxu0
          %v5838 = vadd.f32 %v5503, %v5837
          %v5839 = vpop.f32.mrf.mxu0
          %v5840 = vadd.f32 %v5503, %v5839
          %5841 = vmatmul.bf16.gmra.mxu0 %v5373
          %v5842 = vpop.f32.mrf.mxu0
          %v5843 = vadd.f32 %v5503, %v5842
          %v5844 = vpop.f32.mrf.mxu0
          %v5845 = vadd.f32 %v5503, %v5844
          %5846 = vmatmul.bf16.gmra.mxu0 %v5380
          %v5847 = vpop.f32.mrf.mxu0
          %v5848 = vadd.f32 %v5503, %v5847
          %v5849 = vpop.f32.mrf.mxu0
          %v5850 = vadd.f32 %v5503, %v5849
          %5851 = vmatmul.bf16.gmra.mxu0 %v5387
          %v5852 = vpop.f32.mrf.mxu0
          %v5853 = vadd.f32 %v5503, %v5852
          %v5854 = vpop.f32.mrf.mxu0
          %v5855 = vadd.f32 %v5503, %v5854
          %5856 = vmatmul.bf16.gmra.mxu0 %v5394
          %v5857 = vpop.f32.mrf.mxu0
          %v5858 = vadd.f32 %v5503, %v5857
          %v5859 = vpop.f32.mrf.mxu0
          %v5860 = vadd.f32 %v5503, %v5859
          %5861 = vdwg.mxu0
          %5862 = vmatpush.bf16.msra.mxu0 %v5720
          %5863 = vmatpush.bf16.msra.mxu0 %v5719
          %5864 = vmatpush.bf16.msra.mxu0 %v5718
          %5865 = vmatpush.bf16.msra.mxu0 %v5717
          %5866 = vmatpush.bf16.msra.mxu0 %v5716
          %5867 = vmatpush.bf16.msra.mxu0 %v5715
          %5868 = vmatpush.bf16.msra.mxu0 %v5714
          %5869 = vmatpush.bf16.msra.mxu0 %v5713
          %5870 = vmatmul.bf16.gmra.mxu0 %v5360
          %v5871 = vpop.f32.mrf.mxu0
          %v5872 = vadd.f32 %v5833, %v5871
          %v5873 = vpop.f32.mrf.mxu0
          %v5874 = vadd.f32 %v5835, %v5873
          %5875 = vmatmul.bf16.gmra.mxu0 %v5367
          %v5876 = vpop.f32.mrf.mxu0
          %v5877 = vadd.f32 %v5838, %v5876
          %v5878 = vpop.f32.mrf.mxu0
          %v5879 = vadd.f32 %v5840, %v5878
          %5880 = vmatmul.bf16.gmra.mxu0 %v5374
          %v5881 = vpop.f32.mrf.mxu0
          %v5882 = vadd.f32 %v5843, %v5881
          %v5883 = vpop.f32.mrf.mxu0
          %v5884 = vadd.f32 %v5845, %v5883
          %5885 = vmatmul.bf16.gmra.mxu0 %v5381
          %v5886 = vpop.f32.mrf.mxu0
          %v5887 = vadd.f32 %v5848, %v5886
          %v5888 = vpop.f32.mrf.mxu0
          %v5889 = vadd.f32 %v5850, %v5888
          %5890 = vmatmul.bf16.gmra.mxu0 %v5388
          %v5891 = vpop.f32.mrf.mxu0
          %v5892 = vadd.f32 %v5853, %v5891
          %v5893 = vpop.f32.mrf.mxu0
          %v5894 = vadd.f32 %v5855, %v5893
          %5895 = vmatmul.bf16.gmra.mxu0 %v5395
          %v5896 = vpop.f32.mrf.mxu0
          %v5897 = vadd.f32 %v5858, %v5896
          %v5898 = vpop.f32.mrf.mxu0
          %v5899 = vadd.f32 %v5860, %v5898
          %5900 = vdwg.mxu0
          %5901 = vmatpush.bf16.msra.mxu0 %v5728
          %5902 = vmatpush.bf16.msra.mxu0 %v5727
          %5903 = vmatpush.bf16.msra.mxu0 %v5726
          %5904 = vmatpush.bf16.msra.mxu0 %v5725
          %5905 = vmatpush.bf16.msra.mxu0 %v5724
          %5906 = vmatpush.bf16.msra.mxu0 %v5723
          %5907 = vmatpush.bf16.msra.mxu0 %v5722
          %5908 = vmatpush.bf16.msra.mxu0 %v5721
          %5909 = vmatmul.bf16.gmra.mxu0 %v5361
          %v5910 = vpop.f32.mrf.mxu0
          %v5911 = vadd.f32 %v5872, %v5910
          %v5912 = vpop.f32.mrf.mxu0
          %v5913 = vadd.f32 %v5874, %v5912
          %5914 = vmatmul.bf16.gmra.mxu0 %v5368
          %v5915 = vpop.f32.mrf.mxu0
          %v5916 = vadd.f32 %v5877, %v5915
          %v5917 = vpop.f32.mrf.mxu0
          %v5918 = vadd.f32 %v5879, %v5917
          %5919 = vmatmul.bf16.gmra.mxu0 %v5375
          %v5920 = vpop.f32.mrf.mxu0
          %v5921 = vadd.f32 %v5882, %v5920
          %v5922 = vpop.f32.mrf.mxu0
          %v5923 = vadd.f32 %v5884, %v5922
          %5924 = vmatmul.bf16.gmra.mxu0 %v5382
          %v5925 = vpop.f32.mrf.mxu0
          %v5926 = vadd.f32 %v5887, %v5925
          %v5927 = vpop.f32.mrf.mxu0
          %v5928 = vadd.f32 %v5889, %v5927
          %5929 = vmatmul.bf16.gmra.mxu0 %v5389
          %v5930 = vpop.f32.mrf.mxu0
          %v5931 = vadd.f32 %v5892, %v5930
          %v5932 = vpop.f32.mrf.mxu0
          %v5933 = vadd.f32 %v5894, %v5932
          %5934 = vmatmul.bf16.gmra.mxu0 %v5396
          %v5935 = vpop.f32.mrf.mxu0
          %v5936 = vadd.f32 %v5897, %v5935
          %v5937 = vpop.f32.mrf.mxu0
          %v5938 = vadd.f32 %v5899, %v5937
          %5939 = vdwg.mxu0
          %5940 = vmatpush.bf16.msra.mxu0 %v5736
          %5941 = vmatpush.bf16.msra.mxu0 %v5735
          %5942 = vmatpush.bf16.msra.mxu0 %v5734
          %5943 = vmatpush.bf16.msra.mxu0 %v5733
          %5944 = vmatpush.bf16.msra.mxu0 %v5732
          %5945 = vmatpush.bf16.msra.mxu0 %v5731
          %5946 = vmatpush.bf16.msra.mxu0 %v5730
          %5947 = vmatpush.bf16.msra.mxu0 %v5729
          %5948 = vmatmul.bf16.gmra.mxu0 %v5362
          %v5949 = vpop.f32.mrf.mxu0
          %v5950 = vadd.f32 %v5911, %v5949
          %v5951 = vpop.f32.mrf.mxu0
          %v5952 = vadd.f32 %v5913, %v5951
          %5953 = vmatmul.bf16.gmra.mxu0 %v5369
          %v5954 = vpop.f32.mrf.mxu0
          %v5955 = vadd.f32 %v5916, %v5954
          %v5956 = vpop.f32.mrf.mxu0
          %v5957 = vadd.f32 %v5918, %v5956
          %5958 = vmatmul.bf16.gmra.mxu0 %v5376
          %v5959 = vpop.f32.mrf.mxu0
          %v5960 = vadd.f32 %v5921, %v5959
          %v5961 = vpop.f32.mrf.mxu0
          %v5962 = vadd.f32 %v5923, %v5961
          %5963 = vmatmul.bf16.gmra.mxu0 %v5383
          %v5964 = vpop.f32.mrf.mxu0
          %v5965 = vadd.f32 %v5926, %v5964
          %v5966 = vpop.f32.mrf.mxu0
          %v5967 = vadd.f32 %v5928, %v5966
          %5968 = vmatmul.bf16.gmra.mxu0 %v5390
          %v5969 = vpop.f32.mrf.mxu0
          %v5970 = vadd.f32 %v5931, %v5969
          %v5971 = vpop.f32.mrf.mxu0
          %v5972 = vadd.f32 %v5933, %v5971
          %5973 = vmatmul.bf16.gmra.mxu0 %v5397
          %v5974 = vpop.f32.mrf.mxu0
          %v5975 = vadd.f32 %v5936, %v5974
          %v5976 = vpop.f32.mrf.mxu0
          %v5977 = vadd.f32 %v5938, %v5976
          %5978 = vdwg.mxu0
          %5979 = vmatpush.bf16.msra.mxu0 %v5744
          %5980 = vmatpush.bf16.msra.mxu0 %v5743
          %5981 = vmatpush.bf16.msra.mxu0 %v5742
          %5982 = vmatpush.bf16.msra.mxu0 %v5741
          %5983 = vmatpush.bf16.msra.mxu0 %v5740
          %5984 = vmatpush.bf16.msra.mxu0 %v5739
          %5985 = vmatpush.bf16.msra.mxu0 %v5738
          %5986 = vmatpush.bf16.msra.mxu0 %v5737
          %5987 = vmatmul.bf16.gmra.mxu0 %v5363
          %v5988 = vpop.f32.mrf.mxu0
          %v5989 = vadd.f32 %v5950, %v5988
          %v5990 = vpop.f32.mrf.mxu0
          %v5991 = vadd.f32 %v5952, %v5990
          %5992 = vmatmul.bf16.gmra.mxu0 %v5370
          %v5993 = vpop.f32.mrf.mxu0
          %v5994 = vadd.f32 %v5955, %v5993
          %v5995 = vpop.f32.mrf.mxu0
          %v5996 = vadd.f32 %v5957, %v5995
          %5997 = vmatmul.bf16.gmra.mxu0 %v5377
          %v5998 = vpop.f32.mrf.mxu0
          %v5999 = vadd.f32 %v5960, %v5998
          %v6000 = vpop.f32.mrf.mxu0
          %v6001 = vadd.f32 %v5962, %v6000
          %6002 = vmatmul.bf16.gmra.mxu0 %v5384
          %v6003 = vpop.f32.mrf.mxu0
          %v6004 = vadd.f32 %v5965, %v6003
          %v6005 = vpop.f32.mrf.mxu0
          %v6006 = vadd.f32 %v5967, %v6005
          %6007 = vmatmul.bf16.gmra.mxu0 %v5391
          %v6008 = vpop.f32.mrf.mxu0
          %v6009 = vadd.f32 %v5970, %v6008
          %v6010 = vpop.f32.mrf.mxu0
          %v6011 = vadd.f32 %v5972, %v6010
          %6012 = vmatmul.bf16.gmra.mxu0 %v5398
          %v6013 = vpop.f32.mrf.mxu0
          %v6014 = vadd.f32 %v5975, %v6013
          %v6015 = vpop.f32.mrf.mxu0
          %v6016 = vadd.f32 %v5977, %v6015
          %6017 = vdwg.mxu0
          %6018 = vmatpush.bf16.msra.mxu0 %v5752
          %6019 = vmatpush.bf16.msra.mxu0 %v5751
          %6020 = vmatpush.bf16.msra.mxu0 %v5750
          %6021 = vmatpush.bf16.msra.mxu0 %v5749
          %6022 = vmatpush.bf16.msra.mxu0 %v5748
          %6023 = vmatpush.bf16.msra.mxu0 %v5747
          %6024 = vmatpush.bf16.msra.mxu0 %v5746
          %6025 = vmatpush.bf16.msra.mxu0 %v5745
          %6026 = vmatmul.bf16.gmra.mxu0 %v5364
          %v6027 = vpop.f32.mrf.mxu0
          %v6028 = vadd.f32 %v5989, %v6027
          %v6029 = vpop.f32.mrf.mxu0
          %v6030 = vadd.f32 %v5991, %v6029
          %6031 = vmatmul.bf16.gmra.mxu0 %v5371
          %v6032 = vpop.f32.mrf.mxu0
          %v6033 = vadd.f32 %v5994, %v6032
          %v6034 = vpop.f32.mrf.mxu0
          %v6035 = vadd.f32 %v5996, %v6034
          %6036 = vmatmul.bf16.gmra.mxu0 %v5378
          %v6037 = vpop.f32.mrf.mxu0
          %v6038 = vadd.f32 %v5999, %v6037
          %v6039 = vpop.f32.mrf.mxu0
          %v6040 = vadd.f32 %v6001, %v6039
          %6041 = vmatmul.bf16.gmra.mxu0 %v5385
          %v6042 = vpop.f32.mrf.mxu0
          %v6043 = vadd.f32 %v6004, %v6042
          %v6044 = vpop.f32.mrf.mxu0
          %v6045 = vadd.f32 %v6006, %v6044
          %6046 = vmatmul.bf16.gmra.mxu0 %v5392
          %v6047 = vpop.f32.mrf.mxu0
          %v6048 = vadd.f32 %v6009, %v6047
          %v6049 = vpop.f32.mrf.mxu0
          %v6050 = vadd.f32 %v6011, %v6049
          %6051 = vmatmul.bf16.gmra.mxu0 %v5399
          %v6052 = vpop.f32.mrf.mxu0
          %v6053 = vadd.f32 %v6014, %v6052
          %v6054 = vpop.f32.mrf.mxu0
          %v6055 = vadd.f32 %v6016, %v6054
          %6056 = vdwg.mxu0
          %6057 = vmatpush.bf16.msra.mxu0 0
          %6058 = vmatpush.bf16.msra.mxu0 0
          %6059 = vmatpush.bf16.msra.mxu0 0
          %6060 = vmatpush.bf16.msra.mxu0 0
          %6061 = vmatpush.bf16.msra.mxu0 0
          %6062 = vmatpush.bf16.msra.mxu0 0
          %6063 = vmatpush.bf16.msra.mxu0 %v5754
          %6064 = vmatpush.bf16.msra.mxu0 %v5753
          %6065 = vmatmul.bf16.gmra.mxu0 %v5806
          %v6066 = vpop.f32.mrf.mxu0
          %v6067 = vadd.f32 %v6028, %v6066
          %v6068 = vpop.f32.mrf.mxu0
          %v6069 = vadd.f32 %v6030, %v6068
          %6070 = vmatmul.bf16.gmra.mxu0 %v5809
          %v6071 = vpop.f32.mrf.mxu0
          %v6072 = vadd.f32 %v6033, %v6071
          %v6073 = vpop.f32.mrf.mxu0
          %v6074 = vadd.f32 %v6035, %v6073
          %6075 = vmatmul.bf16.gmra.mxu0 %v5812
          %v6076 = vpop.f32.mrf.mxu0
          %v6077 = vadd.f32 %v6038, %v6076
          %v6078 = vpop.f32.mrf.mxu0
          %v6079 = vadd.f32 %v6040, %v6078
          %6080 = vmatmul.bf16.gmra.mxu0 %v5815
          %v6081 = vpop.f32.mrf.mxu0
          %v6082 = vadd.f32 %v6043, %v6081
          %v6083 = vpop.f32.mrf.mxu0
          %v6084 = vadd.f32 %v6045, %v6083
          %6085 = vmatmul.bf16.gmra.mxu0 %v5818
          %v6086 = vpop.f32.mrf.mxu0
          %v6087 = vadd.f32 %v6048, %v6086
          %v6088 = vpop.f32.mrf.mxu0
          %v6089 = vadd.f32 %v6050, %v6088
          %6090 = vmatmul.bf16.gmra.mxu0 %v5821
          %v6091 = vpop.f32.mrf.mxu0
          %v6092 = vadd.f32 %v6053, %v6091
          %v6093 = vpop.f32.mrf.mxu0
          %v6094 = vadd.f32 %v6055, %v6093
          %6095 = vdwg.mxu0
          %6096 = vst.msk [vmem:[#allocation8] sm:$0xff] %vm385, %v6067
          %6097 = vst.msk [vmem:[#allocation8 + $0x8] sm:$0xff] %vm385, %v6069
          %6098 = vst.msk [vmem:[#allocation8 + $0x10] sm:$0xff] %vm385, %v6072
          %6099 = vst.msk [vmem:[#allocation8 + $0x18] sm:$0xff] %vm385, %v6074
          %6100 = vst.msk [vmem:[#allocation8 + $0x20] sm:$0xff] %vm385, %v6077
          %6101 = vst.msk [vmem:[#allocation8 + $0x28] sm:$0xff] %vm385, %v6079
          %6102 = vst.msk [vmem:[#allocation8 + $0x30] sm:$0xff] %vm385, %v6082
          %6103 = vst.msk [vmem:[#allocation8 + $0x38] sm:$0xff] %vm385, %v6084
          %6104 = vst.msk [vmem:[#allocation8 + $0x40] sm:$0xff] %vm385, %v6087
          %6105 = vst.msk [vmem:[#allocation8 + $0x48] sm:$0xff] %vm385, %v6089
          %6106 = vst.msk [vmem:[#allocation8 + $0x50] sm:$0xff] %vm385, %v6092
          %6107 = vst.msk [vmem:[#allocation8 + $0x58] sm:$0xff] %vm385, %v6094
          %s6108 = scalar_lea.vmem [#allocation8], 8
          %v6109 = vld [vmem:[%s6108] ss:$2 sm:$0xff]
          %s6110 = scalar_lea.vmem [#allocation8], 9
          %v6111 = vld [vmem:[%s6110] ss:$2 sm:$0xff]
          %s6112 = scalar_lea.vmem [#allocation8], 32
          %v6113 = vld [vmem:[%s6112] ss:$2 sm:$0xff]
          %s6114 = scalar_lea.vmem [#allocation8], 33
          %v6115 = vld [vmem:[%s6114] ss:$2 sm:$0xff]
          %v6116 = vmax.f32 %v6109, %v6111
          %v6117 = vmax.f32 %v6113, %v6115
          %v6118 = vmax.f32 %v6116, %v6117
          %s6119 = smul.u32 %s3751, 2
          %s6120 = sadd.s32 %s6119, 4
          %s6121 = smul.u32 %s6120, 16
          %s6122 = sadd.s32 %s6121, 8
          %s6123 = scalar_lea.vmem [#allocation3], %s6122
          %6124 = vst.msk [vmem:[%s6123] sm:$0xff] %vm385, %v6118
          %s6125 = scalar_lea.vmem [#allocation8], 56
          %v6126 = vld [vmem:[%s6125] ss:$2 sm:$0xff]
          %s6127 = scalar_lea.vmem [#allocation8], 57
          %v6128 = vld [vmem:[%s6127] ss:$2 sm:$0xff]
          %s6129 = scalar_lea.vmem [#allocation8], 80
          %v6130 = vld [vmem:[%s6129] ss:$2 sm:$0xff]
          %s6131 = scalar_lea.vmem [#allocation8], 81
          %v6132 = vld [vmem:[%s6131] ss:$2 sm:$0xff]
          %v6133 = vmax.f32 %v6126, %v6128
          %v6134 = vmax.f32 %v6130, %v6132
          %v6135 = vmax.f32 %v6133, %v6134
          %s6136 = sadd.s32 %s6119, 5
          %s6137 = smul.u32 %s6136, 16
          %s6138 = sadd.s32 %s6137, 8
          %s6139 = scalar_lea.vmem [#allocation3], %s6138
          %6140 = vst.msk [vmem:[%s6139] sm:$0xff] %vm385, %v6135
        $region76: #{nutty_forward.1} parent=63 // loop_footer
          %s3755 = sadd.s32 1, %s3751
        $region77: #{nutty_forward.1} parent=63 // loop_footer_branch
          %3750 = sbr.rel target = $region73
        $region78: #{nutty_forward.1} parent=63 // loop_exit
          _
        %v6141 = vld [vmem:[#allocation3 + $0x1e] sm:$0xff]
        %v6142 = vld [vmem:[#allocation3 + $0x26] sm:$0xff]
        %v6143 = vld [vmem:[#allocation3 + $0x2e] sm:$0xff]
        %v6144 = vld [vmem:[#allocation3 + $0x36] sm:$0xff]
        %v6145 = vld [vmem:[#allocation3 + $0x3e] sm:$0xff]
        %v6146 = vld [vmem:[#allocation3 + $0x46] sm:$0xff]
        %v6147 = vld [vmem:[#allocation3 + $0x4e] sm:$0xff]
        %v6148 = vld [vmem:[#allocation3 + $0x56] sm:$0xff]
        %v6149 = vld [vmem:[#allocation3 + $0x5e] sm:$0xff]
        %v6150 = vld [vmem:[#allocation3 + $0x66] sm:$0xff]
        %v6151 = vld [vmem:[#allocation3 + $0x6e] sm:$0xff]
        %v6152 = vld [vmem:[#allocation3 + $0x76] sm:$0xff]
        %v6153 = vld [vmem:[#allocation3 + $0x7e] sm:$0xff]
        %v6154 = vld [vmem:[#allocation3 + $0x86] sm:$0xff]
        %v6155 = vld [vmem:[#allocation3 + $0x8e] sm:$0xff]
        %v6156 = vld [vmem:[#allocation3 + $0x96] sm:$0xff]
        %6157 = vst.msk [vmem:[#allocation9] sm:$0xff] %vm385, %v6141
        %6158 = vst.msk [vmem:[#allocation9 + $0x38] sm:$0xff] %vm385, %v6142
        %6159 = vst.msk [vmem:[#allocation9 + $0x70] sm:$0xff] %vm385, %v6143
        %6160 = vst.msk [vmem:[#allocation9 + $0xa8] sm:$0xff] %vm385, %v6144
        %6161 = vst.msk [vmem:[#allocation9 + $0xe0] sm:$0xff] %vm385, %v6145
        %6162 = vst.msk [vmem:[#allocation9 + $0x118] sm:$0xff] %vm385, %v6146
        %6163 = vst.msk [vmem:[#allocation9 + $0x150] sm:$0xff] %vm385, %v6147
        %6164 = vst.msk [vmem:[#allocation9 + $0x188] sm:$0xff] %vm385, %v6148
        %6165 = vst.msk [vmem:[#allocation9 + $0x1c0] sm:$0xff] %vm385, %v6149
        %6166 = vst.msk [vmem:[#allocation9 + $0x1f8] sm:$0xff] %vm385, %v6150
        %6167 = vst.msk [vmem:[#allocation9 + $0x230] sm:$0xff] %vm385, %v6151
        %6168 = vst.msk [vmem:[#allocation9 + $0x268] sm:$0xff] %vm385, %v6152
        %6169 = vst.msk [vmem:[#allocation9 + $0x2a0] sm:$0xff] %vm385, %v6153
        %6170 = vst.msk [vmem:[#allocation9 + $0x2d8] sm:$0xff] %vm385, %v6154
        %6171 = vst.msk [vmem:[#allocation9 + $0x310] sm:$0xff] %vm385, %v6155
        %6172 = vst.msk [vmem:[#allocation9 + $0x348] sm:$0xff] %vm385, %v6156
        %v6173 = vld [vmem:[#allocation3 + $0x1f] sm:$0xff]
        %v6174 = vld [vmem:[#allocation3 + $0x27] sm:$0xff]
        %v6175 = vld [vmem:[#allocation3 + $0x2f] sm:$0xff]
        %v6176 = vld [vmem:[#allocation3 + $0x37] sm:$0xff]
        %v6177 = vld [vmem:[#allocation3 + $0x3f] sm:$0xff]
        %v6178 = vld [vmem:[#allocation3 + $0x47] sm:$0xff]
        %v6179 = vld [vmem:[#allocation3 + $0x4f] sm:$0xff]
        %v6180 = vld [vmem:[#allocation3 + $0x57] sm:$0xff]
        %v6181 = vld [vmem:[#allocation3 + $0x5f] sm:$0xff]
        %v6182 = vld [vmem:[#allocation3 + $0x67] sm:$0xff]
        %v6183 = vld [vmem:[#allocation3 + $0x6f] sm:$0xff]
        %v6184 = vld [vmem:[#allocation3 + $0x77] sm:$0xff]
        %v6185 = vld [vmem:[#allocation3 + $0x7f] sm:$0xff]
        %v6186 = vld [vmem:[#allocation3 + $0x87] sm:$0xff]
        %v6187 = vld [vmem:[#allocation3 + $0x8f] sm:$0xff]
        %v6188 = vld [vmem:[#allocation3 + $0x97] sm:$0xff]
        %6205 = vrot.lane.b32.xlu0 %v6173, 32
        %v6206 = vpop.permute.xlu0 %6205
        %6207 = vrot.lane.b32.xlu0 %v6174, 32
        %v6208 = vpop.permute.xlu0 %6207
        %6209 = vrot.lane.b32.xlu0 %v6175, 32
        %v6210 = vpop.permute.xlu0 %6209
        %6211 = vrot.lane.b32.xlu0 %v6176, 32
        %v6212 = vpop.permute.xlu0 %6211
        %6213 = vrot.lane.b32.xlu0 %v6177, 32
        %v6214 = vpop.permute.xlu0 %6213
        %6215 = vrot.lane.b32.xlu0 %v6178, 32
        %v6216 = vpop.permute.xlu0 %6215
        %6217 = vrot.lane.b32.xlu0 %v6179, 32
        %v6218 = vpop.permute.xlu0 %6217
        %6219 = vrot.lane.b32.xlu0 %v6180, 32
        %v6220 = vpop.permute.xlu0 %6219
        %6221 = vrot.lane.b32.xlu0 %v6181, 32
        %v6222 = vpop.permute.xlu0 %6221
        %6223 = vrot.lane.b32.xlu0 %v6182, 32
        %v6224 = vpop.permute.xlu0 %6223
        %6225 = vrot.lane.b32.xlu0 %v6183, 32
        %v6226 = vpop.permute.xlu0 %6225
        %6227 = vrot.lane.b32.xlu0 %v6184, 32
        %v6228 = vpop.permute.xlu0 %6227
        %6229 = vrot.lane.b32.xlu0 %v6185, 32
        %v6230 = vpop.permute.xlu0 %6229
        %6231 = vrot.lane.b32.xlu0 %v6186, 32
        %v6232 = vpop.permute.xlu0 %6231
        %6233 = vrot.lane.b32.xlu0 %v6187, 32
        %v6234 = vpop.permute.xlu0 %6233
        %6235 = vrot.lane.b32.xlu0 %v6188, 32
        %v6236 = vpop.permute.xlu0 %6235
        %vm6253 = vcmask 523520
        %6254 = vst.msk [vmem:[#allocation9] sm:$0xff] %vm6253, %v6206
        %6255 = vst.msk [vmem:[#allocation9 + $0x38] sm:$0xff] %vm6253, %v6208
        %6256 = vst.msk [vmem:[#allocation9 + $0x70] sm:$0xff] %vm6253, %v6210
        %6257 = vst.msk [vmem:[#allocation9 + $0xa8] sm:$0xff] %vm6253, %v6212
        %6258 = vst.msk [vmem:[#allocation9 + $0xe0] sm:$0xff] %vm6253, %v6214
        %6259 = vst.msk [vmem:[#allocation9 + $0x118] sm:$0xff] %vm6253, %v6216
        %6260 = vst.msk [vmem:[#allocation9 + $0x150] sm:$0xff] %vm6253, %v6218
        %6261 = vst.msk [vmem:[#allocation9 + $0x188] sm:$0xff] %vm6253, %v6220
        %6262 = vst.msk [vmem:[#allocation9 + $0x1c0] sm:$0xff] %vm6253, %v6222
        %6263 = vst.msk [vmem:[#allocation9 + $0x1f8] sm:$0xff] %vm6253, %v6224
        %6264 = vst.msk [vmem:[#allocation9 + $0x230] sm:$0xff] %vm6253, %v6226
        %6265 = vst.msk [vmem:[#allocation9 + $0x268] sm:$0xff] %vm6253, %v6228
        %6266 = vst.msk [vmem:[#allocation9 + $0x2a0] sm:$0xff] %vm6253, %v6230
        %6267 = vst.msk [vmem:[#allocation9 + $0x2d8] sm:$0xff] %vm6253, %v6232
        %6268 = vst.msk [vmem:[#allocation9 + $0x310] sm:$0xff] %vm6253, %v6234
        %6269 = vst.msk [vmem:[#allocation9 + $0x348] sm:$0xff] %vm6253, %v6236
        %v6270 = vld [vmem:[#allocation3 + $0x20] sm:$0xff]
        %v6271 = vld [vmem:[#allocation3 + $0x28] sm:$0xff]
        %v6272 = vld [vmem:[#allocation3 + $0x30] sm:$0xff]
        %v6273 = vld [vmem:[#allocation3 + $0x38] sm:$0xff]
        %v6274 = vld [vmem:[#allocation3 + $0x40] sm:$0xff]
        %v6275 = vld [vmem:[#allocation3 + $0x48] sm:$0xff]
        %v6276 = vld [vmem:[#allocation3 + $0x50] sm:$0xff]
        %v6277 = vld [vmem:[#allocation3 + $0x58] sm:$0xff]
        %v6278 = vld [vmem:[#allocation3 + $0x60] sm:$0xff]
        %v6279 = vld [vmem:[#allocation3 + $0x68] sm:$0xff]
        %v6280 = vld [vmem:[#allocation3 + $0x70] sm:$0xff]
        %v6281 = vld [vmem:[#allocation3 + $0x78] sm:$0xff]
        %v6282 = vld [vmem:[#allocation3 + $0x80] sm:$0xff]
        %v6283 = vld [vmem:[#allocation3 + $0x88] sm:$0xff]
        %v6284 = vld [vmem:[#allocation3 + $0x90] sm:$0xff]
        %v6285 = vld [vmem:[#allocation3 + $0x98] sm:$0xff]
        %6302 = vrot.lane.b32.xlu0 %v6270, 64
        %v6303 = vpop.permute.xlu0 %6302
        %6304 = vrot.lane.b32.xlu0 %v6271, 64
        %v6305 = vpop.permute.xlu0 %6304
        %6306 = vrot.lane.b32.xlu0 %v6272, 64
        %v6307 = vpop.permute.xlu0 %6306
        %6308 = vrot.lane.b32.xlu0 %v6273, 64
        %v6309 = vpop.permute.xlu0 %6308
        %6310 = vrot.lane.b32.xlu0 %v6274, 64
        %v6311 = vpop.permute.xlu0 %6310
        %6312 = vrot.lane.b32.xlu0 %v6275, 64
        %v6313 = vpop.permute.xlu0 %6312
        %6314 = vrot.lane.b32.xlu0 %v6276, 64
        %v6315 = vpop.permute.xlu0 %6314
        %6316 = vrot.lane.b32.xlu0 %v6277, 64
        %v6317 = vpop.permute.xlu0 %6316
        %6318 = vrot.lane.b32.xlu0 %v6278, 64
        %v6319 = vpop.permute.xlu0 %6318
        %6320 = vrot.lane.b32.xlu0 %v6279, 64
        %v6321 = vpop.permute.xlu0 %6320
        %6322 = vrot.lane.b32.xlu0 %v6280, 64
        %v6323 = vpop.permute.xlu0 %6322
        %6324 = vrot.lane.b32.xlu0 %v6281, 64
        %v6325 = vpop.permute.xlu0 %6324
        %6326 = vrot.lane.b32.xlu0 %v6282, 64
        %v6327 = vpop.permute.xlu0 %6326
        %6328 = vrot.lane.b32.xlu0 %v6283, 64
        %v6329 = vpop.permute.xlu0 %6328
        %6330 = vrot.lane.b32.xlu0 %v6284, 64
        %v6331 = vpop.permute.xlu0 %6330
        %6332 = vrot.lane.b32.xlu0 %v6285, 64
        %v6333 = vpop.permute.xlu0 %6332
        %vm6350 = vcmask 785920
        %6351 = vst.msk [vmem:[#allocation9] sm:$0xff] %vm6350, %v6303
        %6352 = vst.msk [vmem:[#allocation9 + $0x38] sm:$0xff] %vm6350, %v6305
        %6353 = vst.msk [vmem:[#allocation9 + $0x70] sm:$0xff] %vm6350, %v6307
        %6354 = vst.msk [vmem:[#allocation9 + $0xa8] sm:$0xff] %vm6350, %v6309
        %6355 = vst.msk [vmem:[#allocation9 + $0xe0] sm:$0xff] %vm6350, %v6311
        %6356 = vst.msk [vmem:[#allocation9 + $0x118] sm:$0xff] %vm6350, %v6313
        %6357 = vst.msk [vmem:[#allocation9 + $0x150] sm:$0xff] %vm6350, %v6315
        %6358 = vst.msk [vmem:[#allocation9 + $0x188] sm:$0xff] %vm6350, %v6317
        %6359 = vst.msk [vmem:[#allocation9 + $0x1c0] sm:$0xff] %vm6350, %v6319
        %6360 = vst.msk [vmem:[#allocation9 + $0x1f8] sm:$0xff] %vm6350, %v6321
        %6361 = vst.msk [vmem:[#allocation9 + $0x230] sm:$0xff] %vm6350, %v6323
        %6362 = vst.msk [vmem:[#allocation9 + $0x268] sm:$0xff] %vm6350, %v6325
        %6363 = vst.msk [vmem:[#allocation9 + $0x2a0] sm:$0xff] %vm6350, %v6327
        %6364 = vst.msk [vmem:[#allocation9 + $0x2d8] sm:$0xff] %vm6350, %v6329
        %6365 = vst.msk [vmem:[#allocation9 + $0x310] sm:$0xff] %vm6350, %v6331
        %6366 = vst.msk [vmem:[#allocation9 + $0x348] sm:$0xff] %vm6350, %v6333
        %v6367 = vld [vmem:[#allocation3 + $0x21] sm:$0xff]
        %v6368 = vld [vmem:[#allocation3 + $0x29] sm:$0xff]
        %v6369 = vld [vmem:[#allocation3 + $0x31] sm:$0xff]
        %v6370 = vld [vmem:[#allocation3 + $0x39] sm:$0xff]
        %v6371 = vld [vmem:[#allocation3 + $0x41] sm:$0xff]
        %v6372 = vld [vmem:[#allocation3 + $0x49] sm:$0xff]
        %v6373 = vld [vmem:[#allocation3 + $0x51] sm:$0xff]
        %v6374 = vld [vmem:[#allocation3 + $0x59] sm:$0xff]
        %v6375 = vld [vmem:[#allocation3 + $0x61] sm:$0xff]
        %v6376 = vld [vmem:[#allocation3 + $0x69] sm:$0xff]
        %v6377 = vld [vmem:[#allocation3 + $0x71] sm:$0xff]
        %v6378 = vld [vmem:[#allocation3 + $0x79] sm:$0xff]
        %v6379 = vld [vmem:[#allocation3 + $0x81] sm:$0xff]
        %v6380 = vld [vmem:[#allocation3 + $0x89] sm:$0xff]
        %v6381 = vld [vmem:[#allocation3 + $0x91] sm:$0xff]
        %v6382 = vld [vmem:[#allocation3 + $0x99] sm:$0xff]
        %6399 = vrot.lane.b32.xlu0 %v6367, 96
        %v6400 = vpop.permute.xlu0 %6399
        %6401 = vrot.lane.b32.xlu0 %v6368, 96
        %v6402 = vpop.permute.xlu0 %6401
        %6403 = vrot.lane.b32.xlu0 %v6369, 96
        %v6404 = vpop.permute.xlu0 %6403
        %6405 = vrot.lane.b32.xlu0 %v6370, 96
        %v6406 = vpop.permute.xlu0 %6405
        %6407 = vrot.lane.b32.xlu0 %v6371, 96
        %v6408 = vpop.permute.xlu0 %6407
        %6409 = vrot.lane.b32.xlu0 %v6372, 96
        %v6410 = vpop.permute.xlu0 %6409
        %6411 = vrot.lane.b32.xlu0 %v6373, 96
        %v6412 = vpop.permute.xlu0 %6411
        %6413 = vrot.lane.b32.xlu0 %v6374, 96
        %v6414 = vpop.permute.xlu0 %6413
        %6415 = vrot.lane.b32.xlu0 %v6375, 96
        %v6416 = vpop.permute.xlu0 %6415
        %6417 = vrot.lane.b32.xlu0 %v6376, 96
        %v6418 = vpop.permute.xlu0 %6417
        %6419 = vrot.lane.b32.xlu0 %v6377, 96
        %v6420 = vpop.permute.xlu0 %6419
        %6421 = vrot.lane.b32.xlu0 %v6378, 96
        %v6422 = vpop.permute.xlu0 %6421
        %6423 = vrot.lane.b32.xlu0 %v6379, 96
        %v6424 = vpop.permute.xlu0 %6423
        %6425 = vrot.lane.b32.xlu0 %v6380, 96
        %v6426 = vpop.permute.xlu0 %6425
        %6427 = vrot.lane.b32.xlu0 %v6381, 96
        %v6428 = vpop.permute.xlu0 %6427
        %6429 = vrot.lane.b32.xlu0 %v6382, 96
        %v6430 = vpop.permute.xlu0 %6429
        %vm6447 = vcmask 1048320
        %6448 = vst.msk [vmem:[#allocation9] sm:$0xff] %vm6447, %v6400
        %6449 = vst.msk [vmem:[#allocation9 + $0x38] sm:$0xff] %vm6447, %v6402
        %6450 = vst.msk [vmem:[#allocation9 + $0x70] sm:$0xff] %vm6447, %v6404
        %6451 = vst.msk [vmem:[#allocation9 + $0xa8] sm:$0xff] %vm6447, %v6406
        %6452 = vst.msk [vmem:[#allocation9 + $0xe0] sm:$0xff] %vm6447, %v6408
        %6453 = vst.msk [vmem:[#allocation9 + $0x118] sm:$0xff] %vm6447, %v6410
        %6454 = vst.msk [vmem:[#allocation9 + $0x150] sm:$0xff] %vm6447, %v6412
        %6455 = vst.msk [vmem:[#allocation9 + $0x188] sm:$0xff] %vm6447, %v6414
        %6456 = vst.msk [vmem:[#allocation9 + $0x1c0] sm:$0xff] %vm6447, %v6416
        %6457 = vst.msk [vmem:[#allocation9 + $0x1f8] sm:$0xff] %vm6447, %v6418
        %6458 = vst.msk [vmem:[#allocation9 + $0x230] sm:$0xff] %vm6447, %v6420
        %6459 = vst.msk [vmem:[#allocation9 + $0x268] sm:$0xff] %vm6447, %v6422
        %6460 = vst.msk [vmem:[#allocation9 + $0x2a0] sm:$0xff] %vm6447, %v6424
        %6461 = vst.msk [vmem:[#allocation9 + $0x2d8] sm:$0xff] %vm6447, %v6426
        %6462 = vst.msk [vmem:[#allocation9 + $0x310] sm:$0xff] %vm6447, %v6428
        %6463 = vst.msk [vmem:[#allocation9 + $0x348] sm:$0xff] %vm6447, %v6430
        %v6464 = vld [vmem:[#allocation3 + $0x22] sm:$0xff]
        %v6465 = vld [vmem:[#allocation3 + $0x2a] sm:$0xff]
        %v6466 = vld [vmem:[#allocation3 + $0x32] sm:$0xff]
        %v6467 = vld [vmem:[#allocation3 + $0x3a] sm:$0xff]
        %v6468 = vld [vmem:[#allocation3 + $0x42] sm:$0xff]
        %v6469 = vld [vmem:[#allocation3 + $0x4a] sm:$0xff]
        %v6470 = vld [vmem:[#allocation3 + $0x52] sm:$0xff]
        %v6471 = vld [vmem:[#allocation3 + $0x5a] sm:$0xff]
        %v6472 = vld [vmem:[#allocation3 + $0x62] sm:$0xff]
        %v6473 = vld [vmem:[#allocation3 + $0x6a] sm:$0xff]
        %v6474 = vld [vmem:[#allocation3 + $0x72] sm:$0xff]
        %v6475 = vld [vmem:[#allocation3 + $0x7a] sm:$0xff]
        %v6476 = vld [vmem:[#allocation3 + $0x82] sm:$0xff]
        %v6477 = vld [vmem:[#allocation3 + $0x8a] sm:$0xff]
        %v6478 = vld [vmem:[#allocation3 + $0x92] sm:$0xff]
        %v6479 = vld [vmem:[#allocation3 + $0x9a] sm:$0xff]
        %6480 = vst.msk [vmem:[#allocation9 + $0x8] sm:$0xff] %vm385, %v6464
        %6481 = vst.msk [vmem:[#allocation9 + $0x40] sm:$0xff] %vm385, %v6465
        %6482 = vst.msk [vmem:[#allocation9 + $0x78] sm:$0xff] %vm385, %v6466
        %6483 = vst.msk [vmem:[#allocation9 + $0xb0] sm:$0xff] %vm385, %v6467
        %6484 = vst.msk [vmem:[#allocation9 + $0xe8] sm:$0xff] %vm385, %v6468
        %6485 = vst.msk [vmem:[#allocation9 + $0x120] sm:$0xff] %vm385, %v6469
        %6486 = vst.msk [vmem:[#allocation9 + $0x158] sm:$0xff] %vm385, %v6470
        %6487 = vst.msk [vmem:[#allocation9 + $0x190] sm:$0xff] %vm385, %v6471
        %6488 = vst.msk [vmem:[#allocation9 + $0x1c8] sm:$0xff] %vm385, %v6472
        %6489 = vst.msk [vmem:[#allocation9 + $0x200] sm:$0xff] %vm385, %v6473
        %6490 = vst.msk [vmem:[#allocation9 + $0x238] sm:$0xff] %vm385, %v6474
        %6491 = vst.msk [vmem:[#allocation9 + $0x270] sm:$0xff] %vm385, %v6475
        %6492 = vst.msk [vmem:[#allocation9 + $0x2a8] sm:$0xff] %vm385, %v6476
        %6493 = vst.msk [vmem:[#allocation9 + $0x2e0] sm:$0xff] %vm385, %v6477
        %6494 = vst.msk [vmem:[#allocation9 + $0x318] sm:$0xff] %vm385, %v6478
        %6495 = vst.msk [vmem:[#allocation9 + $0x350] sm:$0xff] %vm385, %v6479
        %v6496 = vld [vmem:[#allocation3 + $0x2e] sm:$0xff]
        %v6497 = vld [vmem:[#allocation3 + $0x36] sm:$0xff]
        %v6498 = vld [vmem:[#allocation3 + $0x3e] sm:$0xff]
        %v6499 = vld [vmem:[#allocation3 + $0x46] sm:$0xff]
        %v6500 = vld [vmem:[#allocation3 + $0x4e] sm:$0xff]
        %v6501 = vld [vmem:[#allocation3 + $0x56] sm:$0xff]
        %v6502 = vld [vmem:[#allocation3 + $0x5e] sm:$0xff]
        %v6503 = vld [vmem:[#allocation3 + $0x66] sm:$0xff]
        %v6504 = vld [vmem:[#allocation3 + $0x6e] sm:$0xff]
        %v6505 = vld [vmem:[#allocation3 + $0x76] sm:$0xff]
        %v6506 = vld [vmem:[#allocation3 + $0x7e] sm:$0xff]
        %v6507 = vld [vmem:[#allocation3 + $0x86] sm:$0xff]
        %v6508 = vld [vmem:[#allocation3 + $0x8e] sm:$0xff]
        %v6509 = vld [vmem:[#allocation3 + $0x96] sm:$0xff]
        %v6510 = vld [vmem:[#allocation3 + $0x9e] sm:$0xff]
        %v6511 = vld [vmem:[#allocation3 + $0xa6] sm:$0xff]
        %6528 = vrot.lane.b32.xlu0 %v6496, 32
        %v6529 = vpop.permute.xlu0 %6528
        %6530 = vrot.lane.b32.xlu0 %v6497, 32
        %v6531 = vpop.permute.xlu0 %6530
        %6532 = vrot.lane.b32.xlu0 %v6498, 32
        %v6533 = vpop.permute.xlu0 %6532
        %6534 = vrot.lane.b32.xlu0 %v6499, 32
        %v6535 = vpop.permute.xlu0 %6534
        %6536 = vrot.lane.b32.xlu0 %v6500, 32
        %v6537 = vpop.permute.xlu0 %6536
        %6538 = vrot.lane.b32.xlu0 %v6501, 32
        %v6539 = vpop.permute.xlu0 %6538
        %6540 = vrot.lane.b32.xlu0 %v6502, 32
        %v6541 = vpop.permute.xlu0 %6540
        %6542 = vrot.lane.b32.xlu0 %v6503, 32
        %v6543 = vpop.permute.xlu0 %6542
        %6544 = vrot.lane.b32.xlu0 %v6504, 32
        %v6545 = vpop.permute.xlu0 %6544
        %6546 = vrot.lane.b32.xlu0 %v6505, 32
        %v6547 = vpop.permute.xlu0 %6546
        %6548 = vrot.lane.b32.xlu0 %v6506, 32
        %v6549 = vpop.permute.xlu0 %6548
        %6550 = vrot.lane.b32.xlu0 %v6507, 32
        %v6551 = vpop.permute.xlu0 %6550
        %6552 = vrot.lane.b32.xlu0 %v6508, 32
        %v6553 = vpop.permute.xlu0 %6552
        %6554 = vrot.lane.b32.xlu0 %v6509, 32
        %v6555 = vpop.permute.xlu0 %6554
        %6556 = vrot.lane.b32.xlu0 %v6510, 32
        %v6557 = vpop.permute.xlu0 %6556
        %6558 = vrot.lane.b32.xlu0 %v6511, 32
        %v6559 = vpop.permute.xlu0 %6558
        %6576 = vst.msk [vmem:[#allocation9 + $0x8] sm:$0xff] %vm6253, %v6529
        %6577 = vst.msk [vmem:[#allocation9 + $0x40] sm:$0xff] %vm6253, %v6531
        %6578 = vst.msk [vmem:[#allocation9 + $0x78] sm:$0xff] %vm6253, %v6533
        %6579 = vst.msk [vmem:[#allocation9 + $0xb0] sm:$0xff] %vm6253, %v6535
        %6580 = vst.msk [vmem:[#allocation9 + $0xe8] sm:$0xff] %vm6253, %v6537
        %6581 = vst.msk [vmem:[#allocation9 + $0x120] sm:$0xff] %vm6253, %v6539
        %6582 = vst.msk [vmem:[#allocation9 + $0x158] sm:$0xff] %vm6253, %v6541
        %6583 = vst.msk [vmem:[#allocation9 + $0x190] sm:$0xff] %vm6253, %v6543
        %6584 = vst.msk [vmem:[#allocation9 + $0x1c8] sm:$0xff] %vm6253, %v6545
        %6585 = vst.msk [vmem:[#allocation9 + $0x200] sm:$0xff] %vm6253, %v6547
        %6586 = vst.msk [vmem:[#allocation9 + $0x238] sm:$0xff] %vm6253, %v6549
        %6587 = vst.msk [vmem:[#allocation9 + $0x270] sm:$0xff] %vm6253, %v6551
        %6588 = vst.msk [vmem:[#allocation9 + $0x2a8] sm:$0xff] %vm6253, %v6553
        %6589 = vst.msk [vmem:[#allocation9 + $0x2e0] sm:$0xff] %vm6253, %v6555
        %6590 = vst.msk [vmem:[#allocation9 + $0x318] sm:$0xff] %vm6253, %v6557
        %6591 = vst.msk [vmem:[#allocation9 + $0x350] sm:$0xff] %vm6253, %v6559
        %v6592 = vld [vmem:[#allocation3 + $0x2f] sm:$0xff]
        %v6593 = vld [vmem:[#allocation3 + $0x37] sm:$0xff]
        %v6594 = vld [vmem:[#allocation3 + $0x3f] sm:$0xff]
        %v6595 = vld [vmem:[#allocation3 + $0x47] sm:$0xff]
        %v6596 = vld [vmem:[#allocation3 + $0x4f] sm:$0xff]
        %v6597 = vld [vmem:[#allocation3 + $0x57] sm:$0xff]
        %v6598 = vld [vmem:[#allocation3 + $0x5f] sm:$0xff]
        %v6599 = vld [vmem:[#allocation3 + $0x67] sm:$0xff]
        %v6600 = vld [vmem:[#allocation3 + $0x6f] sm:$0xff]
        %v6601 = vld [vmem:[#allocation3 + $0x77] sm:$0xff]
        %v6602 = vld [vmem:[#allocation3 + $0x7f] sm:$0xff]
        %v6603 = vld [vmem:[#allocation3 + $0x87] sm:$0xff]
        %v6604 = vld [vmem:[#allocation3 + $0x8f] sm:$0xff]
        %v6605 = vld [vmem:[#allocation3 + $0x97] sm:$0xff]
        %v6606 = vld [vmem:[#allocation3 + $0x9f] sm:$0xff]
        %v6607 = vld [vmem:[#allocation3 + $0xa7] sm:$0xff]
        %6624 = vrot.lane.b32.xlu0 %v6592, 64
        %v6625 = vpop.permute.xlu0 %6624
        %6626 = vrot.lane.b32.xlu0 %v6593, 64
        %v6627 = vpop.permute.xlu0 %6626
        %6628 = vrot.lane.b32.xlu0 %v6594, 64
        %v6629 = vpop.permute.xlu0 %6628
        %6630 = vrot.lane.b32.xlu0 %v6595, 64
        %v6631 = vpop.permute.xlu0 %6630
        %6632 = vrot.lane.b32.xlu0 %v6596, 64
        %v6633 = vpop.permute.xlu0 %6632
        %6634 = vrot.lane.b32.xlu0 %v6597, 64
        %v6635 = vpop.permute.xlu0 %6634
        %6636 = vrot.lane.b32.xlu0 %v6598, 64
        %v6637 = vpop.permute.xlu0 %6636
        %6638 = vrot.lane.b32.xlu0 %v6599, 64
        %v6639 = vpop.permute.xlu0 %6638
        %6640 = vrot.lane.b32.xlu0 %v6600, 64
        %v6641 = vpop.permute.xlu0 %6640
        %6642 = vrot.lane.b32.xlu0 %v6601, 64
        %v6643 = vpop.permute.xlu0 %6642
        %6644 = vrot.lane.b32.xlu0 %v6602, 64
        %v6645 = vpop.permute.xlu0 %6644
        %6646 = vrot.lane.b32.xlu0 %v6603, 64
        %v6647 = vpop.permute.xlu0 %6646
        %6648 = vrot.lane.b32.xlu0 %v6604, 64
        %v6649 = vpop.permute.xlu0 %6648
        %6650 = vrot.lane.b32.xlu0 %v6605, 64
        %v6651 = vpop.permute.xlu0 %6650
        %6652 = vrot.lane.b32.xlu0 %v6606, 64
        %v6653 = vpop.permute.xlu0 %6652
        %6654 = vrot.lane.b32.xlu0 %v6607, 64
        %v6655 = vpop.permute.xlu0 %6654
        %6672 = vst.msk [vmem:[#allocation9 + $0x8] sm:$0xff] %vm6350, %v6625
        %6673 = vst.msk [vmem:[#allocation9 + $0x40] sm:$0xff] %vm6350, %v6627
        %6674 = vst.msk [vmem:[#allocation9 + $0x78] sm:$0xff] %vm6350, %v6629
        %6675 = vst.msk [vmem:[#allocation9 + $0xb0] sm:$0xff] %vm6350, %v6631
        %6676 = vst.msk [vmem:[#allocation9 + $0xe8] sm:$0xff] %vm6350, %v6633
        %6677 = vst.msk [vmem:[#allocation9 + $0x120] sm:$0xff] %vm6350, %v6635
        %6678 = vst.msk [vmem:[#allocation9 + $0x158] sm:$0xff] %vm6350, %v6637
        %6679 = vst.msk [vmem:[#allocation9 + $0x190] sm:$0xff] %vm6350, %v6639
        %6680 = vst.msk [vmem:[#allocation9 + $0x1c8] sm:$0xff] %vm6350, %v6641
        %6681 = vst.msk [vmem:[#allocation9 + $0x200] sm:$0xff] %vm6350, %v6643
        %6682 = vst.msk [vmem:[#allocation9 + $0x238] sm:$0xff] %vm6350, %v6645
        %6683 = vst.msk [vmem:[#allocation9 + $0x270] sm:$0xff] %vm6350, %v6647
        %6684 = vst.msk [vmem:[#allocation9 + $0x2a8] sm:$0xff] %vm6350, %v6649
        %6685 = vst.msk [vmem:[#allocation9 + $0x2e0] sm:$0xff] %vm6350, %v6651
        %6686 = vst.msk [vmem:[#allocation9 + $0x318] sm:$0xff] %vm6350, %v6653
        %6687 = vst.msk [vmem:[#allocation9 + $0x350] sm:$0xff] %vm6350, %v6655
        %v6688 = vld [vmem:[#allocation3 + $0x30] sm:$0xff]
        %v6689 = vld [vmem:[#allocation3 + $0x38] sm:$0xff]
        %v6690 = vld [vmem:[#allocation3 + $0x40] sm:$0xff]
        %v6691 = vld [vmem:[#allocation3 + $0x48] sm:$0xff]
        %v6692 = vld [vmem:[#allocation3 + $0x50] sm:$0xff]
        %v6693 = vld [vmem:[#allocation3 + $0x58] sm:$0xff]
        %v6694 = vld [vmem:[#allocation3 + $0x60] sm:$0xff]
        %v6695 = vld [vmem:[#allocation3 + $0x68] sm:$0xff]
        %v6696 = vld [vmem:[#allocation3 + $0x70] sm:$0xff]
        %v6697 = vld [vmem:[#allocation3 + $0x78] sm:$0xff]
        %v6698 = vld [vmem:[#allocation3 + $0x80] sm:$0xff]
        %v6699 = vld [vmem:[#allocation3 + $0x88] sm:$0xff]
        %v6700 = vld [vmem:[#allocation3 + $0x90] sm:$0xff]
        %v6701 = vld [vmem:[#allocation3 + $0x98] sm:$0xff]
        %v6702 = vld [vmem:[#allocation3 + $0xa0] sm:$0xff]
        %v6703 = vld [vmem:[#allocation3 + $0xa8] sm:$0xff]
        %6720 = vrot.lane.b32.xlu0 %v6688, 96
        %v6721 = vpop.permute.xlu0 %6720
        %6722 = vrot.lane.b32.xlu0 %v6689, 96
        %v6723 = vpop.permute.xlu0 %6722
        %6724 = vrot.lane.b32.xlu0 %v6690, 96
        %v6725 = vpop.permute.xlu0 %6724
        %6726 = vrot.lane.b32.xlu0 %v6691, 96
        %v6727 = vpop.permute.xlu0 %6726
        %6728 = vrot.lane.b32.xlu0 %v6692, 96
        %v6729 = vpop.permute.xlu0 %6728
        %6730 = vrot.lane.b32.xlu0 %v6693, 96
        %v6731 = vpop.permute.xlu0 %6730
        %6732 = vrot.lane.b32.xlu0 %v6694, 96
        %v6733 = vpop.permute.xlu0 %6732
        %6734 = vrot.lane.b32.xlu0 %v6695, 96
        %v6735 = vpop.permute.xlu0 %6734
        %6736 = vrot.lane.b32.xlu0 %v6696, 96
        %v6737 = vpop.permute.xlu0 %6736
        %6738 = vrot.lane.b32.xlu0 %v6697, 96
        %v6739 = vpop.permute.xlu0 %6738
        %6740 = vrot.lane.b32.xlu0 %v6698, 96
        %v6741 = vpop.permute.xlu0 %6740
        %6742 = vrot.lane.b32.xlu0 %v6699, 96
        %v6743 = vpop.permute.xlu0 %6742
        %6744 = vrot.lane.b32.xlu0 %v6700, 96
        %v6745 = vpop.permute.xlu0 %6744
        %6746 = vrot.lane.b32.xlu0 %v6701, 96
        %v6747 = vpop.permute.xlu0 %6746
        %6748 = vrot.lane.b32.xlu0 %v6702, 96
        %v6749 = vpop.permute.xlu0 %6748
        %6750 = vrot.lane.b32.xlu0 %v6703, 96
        %v6751 = vpop.permute.xlu0 %6750
        %6768 = vst.msk [vmem:[#allocation9 + $0x8] sm:$0xff] %vm6447, %v6721
        %6769 = vst.msk [vmem:[#allocation9 + $0x40] sm:$0xff] %vm6447, %v6723
        %6770 = vst.msk [vmem:[#allocation9 + $0x78] sm:$0xff] %vm6447, %v6725
        %6771 = vst.msk [vmem:[#allocation9 + $0xb0] sm:$0xff] %vm6447, %v6727
        %6772 = vst.msk [vmem:[#allocation9 + $0xe8] sm:$0xff] %vm6447, %v6729
        %6773 = vst.msk [vmem:[#allocation9 + $0x120] sm:$0xff] %vm6447, %v6731
        %6774 = vst.msk [vmem:[#allocation9 + $0x158] sm:$0xff] %vm6447, %v6733
        %6775 = vst.msk [vmem:[#allocation9 + $0x190] sm:$0xff] %vm6447, %v6735
        %6776 = vst.msk [vmem:[#allocation9 + $0x1c8] sm:$0xff] %vm6447, %v6737
        %6777 = vst.msk [vmem:[#allocation9 + $0x200] sm:$0xff] %vm6447, %v6739
        %6778 = vst.msk [vmem:[#allocation9 + $0x238] sm:$0xff] %vm6447, %v6741
        %6779 = vst.msk [vmem:[#allocation9 + $0x270] sm:$0xff] %vm6447, %v6743
        %6780 = vst.msk [vmem:[#allocation9 + $0x2a8] sm:$0xff] %vm6447, %v6745
        %6781 = vst.msk [vmem:[#allocation9 + $0x2e0] sm:$0xff] %vm6447, %v6747
        %6782 = vst.msk [vmem:[#allocation9 + $0x318] sm:$0xff] %vm6447, %v6749
        %6783 = vst.msk [vmem:[#allocation9 + $0x350] sm:$0xff] %vm6447, %v6751
        %v6784 = vld [vmem:[#allocation3 + $0x31] sm:$0xff]
        %v6785 = vld [vmem:[#allocation3 + $0x39] sm:$0xff]
        %v6786 = vld [vmem:[#allocation3 + $0x41] sm:$0xff]
        %v6787 = vld [vmem:[#allocation3 + $0x49] sm:$0xff]
        %v6788 = vld [vmem:[#allocation3 + $0x51] sm:$0xff]
        %v6789 = vld [vmem:[#allocation3 + $0x59] sm:$0xff]
        %v6790 = vld [vmem:[#allocation3 + $0x61] sm:$0xff]
        %v6791 = vld [vmem:[#allocation3 + $0x69] sm:$0xff]
        %v6792 = vld [vmem:[#allocation3 + $0x71] sm:$0xff]
        %v6793 = vld [vmem:[#allocation3 + $0x79] sm:$0xff]
        %v6794 = vld [vmem:[#allocation3 + $0x81] sm:$0xff]
        %v6795 = vld [vmem:[#allocation3 + $0x89] sm:$0xff]
        %v6796 = vld [vmem:[#allocation3 + $0x91] sm:$0xff]
        %v6797 = vld [vmem:[#allocation3 + $0x99] sm:$0xff]
        %v6798 = vld [vmem:[#allocation3 + $0xa1] sm:$0xff]
        %v6799 = vld [vmem:[#allocation3 + $0xa9] sm:$0xff]
        %6800 = vst.msk [vmem:[#allocation9 + $0x10] sm:$0xff] %vm385, %v6784
        %6801 = vst.msk [vmem:[#allocation9 + $0x48] sm:$0xff] %vm385, %v6785
        %6802 = vst.msk [vmem:[#allocation9 + $0x80] sm:$0xff] %vm385, %v6786
        %6803 = vst.msk [vmem:[#allocation9 + $0xb8] sm:$0xff] %vm385, %v6787
        %6804 = vst.msk [vmem:[#allocation9 + $0xf0] sm:$0xff] %vm385, %v6788
        %6805 = vst.msk [vmem:[#allocation9 + $0x128] sm:$0xff] %vm385, %v6789
        %6806 = vst.msk [vmem:[#allocation9 + $0x160] sm:$0xff] %vm385, %v6790
        %6807 = vst.msk [vmem:[#allocation9 + $0x198] sm:$0xff] %vm385, %v6791
        %6808 = vst.msk [vmem:[#allocation9 + $0x1d0] sm:$0xff] %vm385, %v6792
        %6809 = vst.msk [vmem:[#allocation9 + $0x208] sm:$0xff] %vm385, %v6793
        %6810 = vst.msk [vmem:[#allocation9 + $0x240] sm:$0xff] %vm385, %v6794
        %6811 = vst.msk [vmem:[#allocation9 + $0x278] sm:$0xff] %vm385, %v6795
        %6812 = vst.msk [vmem:[#allocation9 + $0x2b0] sm:$0xff] %vm385, %v6796
        %6813 = vst.msk [vmem:[#allocation9 + $0x2e8] sm:$0xff] %vm385, %v6797
        %6814 = vst.msk [vmem:[#allocation9 + $0x320] sm:$0xff] %vm385, %v6798
        %6815 = vst.msk [vmem:[#allocation9 + $0x358] sm:$0xff] %vm385, %v6799
        %v6816 = vld [vmem:[#allocation3 + $0x32] sm:$0xff]
        %v6817 = vld [vmem:[#allocation3 + $0x3a] sm:$0xff]
        %v6818 = vld [vmem:[#allocation3 + $0x42] sm:$0xff]
        %v6819 = vld [vmem:[#allocation3 + $0x4a] sm:$0xff]
        %v6820 = vld [vmem:[#allocation3 + $0x52] sm:$0xff]
        %v6821 = vld [vmem:[#allocation3 + $0x5a] sm:$0xff]
        %v6822 = vld [vmem:[#allocation3 + $0x62] sm:$0xff]
        %v6823 = vld [vmem:[#allocation3 + $0x6a] sm:$0xff]
        %v6824 = vld [vmem:[#allocation3 + $0x72] sm:$0xff]
        %v6825 = vld [vmem:[#allocation3 + $0x7a] sm:$0xff]
        %v6826 = vld [vmem:[#allocation3 + $0x82] sm:$0xff]
        %v6827 = vld [vmem:[#allocation3 + $0x8a] sm:$0xff]
        %v6828 = vld [vmem:[#allocation3 + $0x92] sm:$0xff]
        %v6829 = vld [vmem:[#allocation3 + $0x9a] sm:$0xff]
        %v6830 = vld [vmem:[#allocation3 + $0xa2] sm:$0xff]
        %v6831 = vld [vmem:[#allocation3 + $0xaa] sm:$0xff]
        %6848 = vrot.lane.b32.xlu0 %v6816, 32
        %v6849 = vpop.permute.xlu0 %6848
        %6850 = vrot.lane.b32.xlu0 %v6817, 32
        %v6851 = vpop.permute.xlu0 %6850
        %6852 = vrot.lane.b32.xlu0 %v6818, 32
        %v6853 = vpop.permute.xlu0 %6852
        %6854 = vrot.lane.b32.xlu0 %v6819, 32
        %v6855 = vpop.permute.xlu0 %6854
        %6856 = vrot.lane.b32.xlu0 %v6820, 32
        %v6857 = vpop.permute.xlu0 %6856
        %6858 = vrot.lane.b32.xlu0 %v6821, 32
        %v6859 = vpop.permute.xlu0 %6858
        %6860 = vrot.lane.b32.xlu0 %v6822, 32
        %v6861 = vpop.permute.xlu0 %6860
        %6862 = vrot.lane.b32.xlu0 %v6823, 32
        %v6863 = vpop.permute.xlu0 %6862
        %6864 = vrot.lane.b32.xlu0 %v6824, 32
        %v6865 = vpop.permute.xlu0 %6864
        %6866 = vrot.lane.b32.xlu0 %v6825, 32
        %v6867 = vpop.permute.xlu0 %6866
        %6868 = vrot.lane.b32.xlu0 %v6826, 32
        %v6869 = vpop.permute.xlu0 %6868
        %6870 = vrot.lane.b32.xlu0 %v6827, 32
        %v6871 = vpop.permute.xlu0 %6870
        %6872 = vrot.lane.b32.xlu0 %v6828, 32
        %v6873 = vpop.permute.xlu0 %6872
        %6874 = vrot.lane.b32.xlu0 %v6829, 32
        %v6875 = vpop.permute.xlu0 %6874
        %6876 = vrot.lane.b32.xlu0 %v6830, 32
        %v6877 = vpop.permute.xlu0 %6876
        %6878 = vrot.lane.b32.xlu0 %v6831, 32
        %v6879 = vpop.permute.xlu0 %6878
        %6896 = vst.msk [vmem:[#allocation9 + $0x10] sm:$0xff] %vm6253, %v6849
        %6897 = vst.msk [vmem:[#allocation9 + $0x48] sm:$0xff] %vm6253, %v6851
        %6898 = vst.msk [vmem:[#allocation9 + $0x80] sm:$0xff] %vm6253, %v6853
        %6899 = vst.msk [vmem:[#allocation9 + $0xb8] sm:$0xff] %vm6253, %v6855
        %6900 = vst.msk [vmem:[#allocation9 + $0xf0] sm:$0xff] %vm6253, %v6857
        %6901 = vst.msk [vmem:[#allocation9 + $0x128] sm:$0xff] %vm6253, %v6859
        %6902 = vst.msk [vmem:[#allocation9 + $0x160] sm:$0xff] %vm6253, %v6861
        %6903 = vst.msk [vmem:[#allocation9 + $0x198] sm:$0xff] %vm6253, %v6863
        %6904 = vst.msk [vmem:[#allocation9 + $0x1d0] sm:$0xff] %vm6253, %v6865
        %6905 = vst.msk [vmem:[#allocation9 + $0x208] sm:$0xff] %vm6253, %v6867
        %6906 = vst.msk [vmem:[#allocation9 + $0x240] sm:$0xff] %vm6253, %v6869
        %6907 = vst.msk [vmem:[#allocation9 + $0x278] sm:$0xff] %vm6253, %v6871
        %6908 = vst.msk [vmem:[#allocation9 + $0x2b0] sm:$0xff] %vm6253, %v6873
        %6909 = vst.msk [vmem:[#allocation9 + $0x2e8] sm:$0xff] %vm6253, %v6875
        %6910 = vst.msk [vmem:[#allocation9 + $0x320] sm:$0xff] %vm6253, %v6877
        %6911 = vst.msk [vmem:[#allocation9 + $0x358] sm:$0xff] %vm6253, %v6879
        %v6912 = vld [vmem:[#allocation3 + $0x3e] sm:$0xff]
        %v6913 = vld [vmem:[#allocation3 + $0x46] sm:$0xff]
        %v6914 = vld [vmem:[#allocation3 + $0x4e] sm:$0xff]
        %v6915 = vld [vmem:[#allocation3 + $0x56] sm:$0xff]
        %v6916 = vld [vmem:[#allocation3 + $0x5e] sm:$0xff]
        %v6917 = vld [vmem:[#allocation3 + $0x66] sm:$0xff]
        %v6918 = vld [vmem:[#allocation3 + $0x6e] sm:$0xff]
        %v6919 = vld [vmem:[#allocation3 + $0x76] sm:$0xff]
        %v6920 = vld [vmem:[#allocation3 + $0x7e] sm:$0xff]
        %v6921 = vld [vmem:[#allocation3 + $0x86] sm:$0xff]
        %v6922 = vld [vmem:[#allocation3 + $0x8e] sm:$0xff]
        %v6923 = vld [vmem:[#allocation3 + $0x96] sm:$0xff]
        %v6924 = vld [vmem:[#allocation3 + $0x9e] sm:$0xff]
        %v6925 = vld [vmem:[#allocation3 + $0xa6] sm:$0xff]
        %v6926 = vld [vmem:[#allocation3 + $0xae] sm:$0xff]
        %v6927 = vld [vmem:[#allocation3 + $0xb6] sm:$0xff]
        %6944 = vrot.lane.b32.xlu0 %v6912, 64
        %v6945 = vpop.permute.xlu0 %6944
        %6946 = vrot.lane.b32.xlu0 %v6913, 64
        %v6947 = vpop.permute.xlu0 %6946
        %6948 = vrot.lane.b32.xlu0 %v6914, 64
        %v6949 = vpop.permute.xlu0 %6948
        %6950 = vrot.lane.b32.xlu0 %v6915, 64
        %v6951 = vpop.permute.xlu0 %6950
        %6952 = vrot.lane.b32.xlu0 %v6916, 64
        %v6953 = vpop.permute.xlu0 %6952
        %6954 = vrot.lane.b32.xlu0 %v6917, 64
        %v6955 = vpop.permute.xlu0 %6954
        %6956 = vrot.lane.b32.xlu0 %v6918, 64
        %v6957 = vpop.permute.xlu0 %6956
        %6958 = vrot.lane.b32.xlu0 %v6919, 64
        %v6959 = vpop.permute.xlu0 %6958
        %6960 = vrot.lane.b32.xlu0 %v6920, 64
        %v6961 = vpop.permute.xlu0 %6960
        %6962 = vrot.lane.b32.xlu0 %v6921, 64
        %v6963 = vpop.permute.xlu0 %6962
        %6964 = vrot.lane.b32.xlu0 %v6922, 64
        %v6965 = vpop.permute.xlu0 %6964
        %6966 = vrot.lane.b32.xlu0 %v6923, 64
        %v6967 = vpop.permute.xlu0 %6966
        %6968 = vrot.lane.b32.xlu0 %v6924, 64
        %v6969 = vpop.permute.xlu0 %6968
        %6970 = vrot.lane.b32.xlu0 %v6925, 64
        %v6971 = vpop.permute.xlu0 %6970
        %6972 = vrot.lane.b32.xlu0 %v6926, 64
        %v6973 = vpop.permute.xlu0 %6972
        %6974 = vrot.lane.b32.xlu0 %v6927, 64
        %v6975 = vpop.permute.xlu0 %6974
        %6992 = vst.msk [vmem:[#allocation9 + $0x10] sm:$0xff] %vm6350, %v6945
        %6993 = vst.msk [vmem:[#allocation9 + $0x48] sm:$0xff] %vm6350, %v6947
        %6994 = vst.msk [vmem:[#allocation9 + $0x80] sm:$0xff] %vm6350, %v6949
        %6995 = vst.msk [vmem:[#allocation9 + $0xb8] sm:$0xff] %vm6350, %v6951
        %6996 = vst.msk [vmem:[#allocation9 + $0xf0] sm:$0xff] %vm6350, %v6953
        %6997 = vst.msk [vmem:[#allocation9 + $0x128] sm:$0xff] %vm6350, %v6955
        %6998 = vst.msk [vmem:[#allocation9 + $0x160] sm:$0xff] %vm6350, %v6957
        %6999 = vst.msk [vmem:[#allocation9 + $0x198] sm:$0xff] %vm6350, %v6959
        %7000 = vst.msk [vmem:[#allocation9 + $0x1d0] sm:$0xff] %vm6350, %v6961
        %7001 = vst.msk [vmem:[#allocation9 + $0x208] sm:$0xff] %vm6350, %v6963
        %7002 = vst.msk [vmem:[#allocation9 + $0x240] sm:$0xff] %vm6350, %v6965
        %7003 = vst.msk [vmem:[#allocation9 + $0x278] sm:$0xff] %vm6350, %v6967
        %7004 = vst.msk [vmem:[#allocation9 + $0x2b0] sm:$0xff] %vm6350, %v6969
        %7005 = vst.msk [vmem:[#allocation9 + $0x2e8] sm:$0xff] %vm6350, %v6971
        %7006 = vst.msk [vmem:[#allocation9 + $0x320] sm:$0xff] %vm6350, %v6973
        %7007 = vst.msk [vmem:[#allocation9 + $0x358] sm:$0xff] %vm6350, %v6975
        %v7008 = vld [vmem:[#allocation3 + $0x3f] sm:$0xff]
        %v7009 = vld [vmem:[#allocation3 + $0x47] sm:$0xff]
        %v7010 = vld [vmem:[#allocation3 + $0x4f] sm:$0xff]
        %v7011 = vld [vmem:[#allocation3 + $0x57] sm:$0xff]
        %v7012 = vld [vmem:[#allocation3 + $0x5f] sm:$0xff]
        %v7013 = vld [vmem:[#allocation3 + $0x67] sm:$0xff]
        %v7014 = vld [vmem:[#allocation3 + $0x6f] sm:$0xff]
        %v7015 = vld [vmem:[#allocation3 + $0x77] sm:$0xff]
        %v7016 = vld [vmem:[#allocation3 + $0x7f] sm:$0xff]
        %v7017 = vld [vmem:[#allocation3 + $0x87] sm:$0xff]
        %v7018 = vld [vmem:[#allocation3 + $0x8f] sm:$0xff]
        %v7019 = vld [vmem:[#allocation3 + $0x97] sm:$0xff]
        %v7020 = vld [vmem:[#allocation3 + $0x9f] sm:$0xff]
        %v7021 = vld [vmem:[#allocation3 + $0xa7] sm:$0xff]
        %v7022 = vld [vmem:[#allocation3 + $0xaf] sm:$0xff]
        %v7023 = vld [vmem:[#allocation3 + $0xb7] sm:$0xff]
        %7040 = vrot.lane.b32.xlu0 %v7008, 96
        %v7041 = vpop.permute.xlu0 %7040
        %7042 = vrot.lane.b32.xlu0 %v7009, 96
        %v7043 = vpop.permute.xlu0 %7042
        %7044 = vrot.lane.b32.xlu0 %v7010, 96
        %v7045 = vpop.permute.xlu0 %7044
        %7046 = vrot.lane.b32.xlu0 %v7011, 96
        %v7047 = vpop.permute.xlu0 %7046
        %7048 = vrot.lane.b32.xlu0 %v7012, 96
        %v7049 = vpop.permute.xlu0 %7048
        %7050 = vrot.lane.b32.xlu0 %v7013, 96
        %v7051 = vpop.permute.xlu0 %7050
        %7052 = vrot.lane.b32.xlu0 %v7014, 96
        %v7053 = vpop.permute.xlu0 %7052
        %7054 = vrot.lane.b32.xlu0 %v7015, 96
        %v7055 = vpop.permute.xlu0 %7054
        %7056 = vrot.lane.b32.xlu0 %v7016, 96
        %v7057 = vpop.permute.xlu0 %7056
        %7058 = vrot.lane.b32.xlu0 %v7017, 96
        %v7059 = vpop.permute.xlu0 %7058
        %7060 = vrot.lane.b32.xlu0 %v7018, 96
        %v7061 = vpop.permute.xlu0 %7060
        %7062 = vrot.lane.b32.xlu0 %v7019, 96
        %v7063 = vpop.permute.xlu0 %7062
        %7064 = vrot.lane.b32.xlu0 %v7020, 96
        %v7065 = vpop.permute.xlu0 %7064
        %7066 = vrot.lane.b32.xlu0 %v7021, 96
        %v7067 = vpop.permute.xlu0 %7066
        %7068 = vrot.lane.b32.xlu0 %v7022, 96
        %v7069 = vpop.permute.xlu0 %7068
        %7070 = vrot.lane.b32.xlu0 %v7023, 96
        %v7071 = vpop.permute.xlu0 %7070
        %7088 = vst.msk [vmem:[#allocation9 + $0x10] sm:$0xff] %vm6447, %v7041
        %7089 = vst.msk [vmem:[#allocation9 + $0x48] sm:$0xff] %vm6447, %v7043
        %7090 = vst.msk [vmem:[#allocation9 + $0x80] sm:$0xff] %vm6447, %v7045
        %7091 = vst.msk [vmem:[#allocation9 + $0xb8] sm:$0xff] %vm6447, %v7047
        %7092 = vst.msk [vmem:[#allocation9 + $0xf0] sm:$0xff] %vm6447, %v7049
        %7093 = vst.msk [vmem:[#allocation9 + $0x128] sm:$0xff] %vm6447, %v7051
        %7094 = vst.msk [vmem:[#allocation9 + $0x160] sm:$0xff] %vm6447, %v7053
        %7095 = vst.msk [vmem:[#allocation9 + $0x198] sm:$0xff] %vm6447, %v7055
        %7096 = vst.msk [vmem:[#allocation9 + $0x1d0] sm:$0xff] %vm6447, %v7057
        %7097 = vst.msk [vmem:[#allocation9 + $0x208] sm:$0xff] %vm6447, %v7059
        %7098 = vst.msk [vmem:[#allocation9 + $0x240] sm:$0xff] %vm6447, %v7061
        %7099 = vst.msk [vmem:[#allocation9 + $0x278] sm:$0xff] %vm6447, %v7063
        %7100 = vst.msk [vmem:[#allocation9 + $0x2b0] sm:$0xff] %vm6447, %v7065
        %7101 = vst.msk [vmem:[#allocation9 + $0x2e8] sm:$0xff] %vm6447, %v7067
        %7102 = vst.msk [vmem:[#allocation9 + $0x320] sm:$0xff] %vm6447, %v7069
        %7103 = vst.msk [vmem:[#allocation9 + $0x358] sm:$0xff] %vm6447, %v7071
        %v7104 = vld [vmem:[#allocation3 + $0x40] sm:$0xff]
        %v7105 = vld [vmem:[#allocation3 + $0x48] sm:$0xff]
        %v7106 = vld [vmem:[#allocation3 + $0x50] sm:$0xff]
        %v7107 = vld [vmem:[#allocation3 + $0x58] sm:$0xff]
        %v7108 = vld [vmem:[#allocation3 + $0x60] sm:$0xff]
        %v7109 = vld [vmem:[#allocation3 + $0x68] sm:$0xff]
        %v7110 = vld [vmem:[#allocation3 + $0x70] sm:$0xff]
        %v7111 = vld [vmem:[#allocation3 + $0x78] sm:$0xff]
        %v7112 = vld [vmem:[#allocation3 + $0x80] sm:$0xff]
        %v7113 = vld [vmem:[#allocation3 + $0x88] sm:$0xff]
        %v7114 = vld [vmem:[#allocation3 + $0x90] sm:$0xff]
        %v7115 = vld [vmem:[#allocation3 + $0x98] sm:$0xff]
        %v7116 = vld [vmem:[#allocation3 + $0xa0] sm:$0xff]
        %v7117 = vld [vmem:[#allocation3 + $0xa8] sm:$0xff]
        %v7118 = vld [vmem:[#allocation3 + $0xb0] sm:$0xff]
        %v7119 = vld [vmem:[#allocation3 + $0xb8] sm:$0xff]
        %7120 = vst.msk [vmem:[#allocation9 + $0x18] sm:$0xff] %vm385, %v7104
        %7121 = vst.msk [vmem:[#allocation9 + $0x50] sm:$0xff] %vm385, %v7105
        %7122 = vst.msk [vmem:[#allocation9 + $0x88] sm:$0xff] %vm385, %v7106
        %7123 = vst.msk [vmem:[#allocation9 + $0xc0] sm:$0xff] %vm385, %v7107
        %7124 = vst.msk [vmem:[#allocation9 + $0xf8] sm:$0xff] %vm385, %v7108
        %7125 = vst.msk [vmem:[#allocation9 + $0x130] sm:$0xff] %vm385, %v7109
        %7126 = vst.msk [vmem:[#allocation9 + $0x168] sm:$0xff] %vm385, %v7110
        %7127 = vst.msk [vmem:[#allocation9 + $0x1a0] sm:$0xff] %vm385, %v7111
        %7128 = vst.msk [vmem:[#allocation9 + $0x1d8] sm:$0xff] %vm385, %v7112
        %7129 = vst.msk [vmem:[#allocation9 + $0x210] sm:$0xff] %vm385, %v7113
        %7130 = vst.msk [vmem:[#allocation9 + $0x248] sm:$0xff] %vm385, %v7114
        %7131 = vst.msk [vmem:[#allocation9 + $0x280] sm:$0xff] %vm385, %v7115
        %7132 = vst.msk [vmem:[#allocation9 + $0x2b8] sm:$0xff] %vm385, %v7116
        %7133 = vst.msk [vmem:[#allocation9 + $0x2f0] sm:$0xff] %vm385, %v7117
        %7134 = vst.msk [vmem:[#allocation9 + $0x328] sm:$0xff] %vm385, %v7118
        %7135 = vst.msk [vmem:[#allocation9 + $0x360] sm:$0xff] %vm385, %v7119
        %v7136 = vld [vmem:[#allocation3 + $0x41] sm:$0xff]
        %v7137 = vld [vmem:[#allocation3 + $0x49] sm:$0xff]
        %v7138 = vld [vmem:[#allocation3 + $0x51] sm:$0xff]
        %v7139 = vld [vmem:[#allocation3 + $0x59] sm:$0xff]
        %v7140 = vld [vmem:[#allocation3 + $0x61] sm:$0xff]
        %v7141 = vld [vmem:[#allocation3 + $0x69] sm:$0xff]
        %v7142 = vld [vmem:[#allocation3 + $0x71] sm:$0xff]
        %v7143 = vld [vmem:[#allocation3 + $0x79] sm:$0xff]
        %v7144 = vld [vmem:[#allocation3 + $0x81] sm:$0xff]
        %v7145 = vld [vmem:[#allocation3 + $0x89] sm:$0xff]
        %v7146 = vld [vmem:[#allocation3 + $0x91] sm:$0xff]
        %v7147 = vld [vmem:[#allocation3 + $0x99] sm:$0xff]
        %v7148 = vld [vmem:[#allocation3 + $0xa1] sm:$0xff]
        %v7149 = vld [vmem:[#allocation3 + $0xa9] sm:$0xff]
        %v7150 = vld [vmem:[#allocation3 + $0xb1] sm:$0xff]
        %v7151 = vld [vmem:[#allocation3 + $0xb9] sm:$0xff]
        %7168 = vrot.lane.b32.xlu0 %v7136, 32
        %v7169 = vpop.permute.xlu0 %7168
        %7170 = vrot.lane.b32.xlu0 %v7137, 32
        %v7171 = vpop.permute.xlu0 %7170
        %7172 = vrot.lane.b32.xlu0 %v7138, 32
        %v7173 = vpop.permute.xlu0 %7172
        %7174 = vrot.lane.b32.xlu0 %v7139, 32
        %v7175 = vpop.permute.xlu0 %7174
        %7176 = vrot.lane.b32.xlu0 %v7140, 32
        %v7177 = vpop.permute.xlu0 %7176
        %7178 = vrot.lane.b32.xlu0 %v7141, 32
        %v7179 = vpop.permute.xlu0 %7178
        %7180 = vrot.lane.b32.xlu0 %v7142, 32
        %v7181 = vpop.permute.xlu0 %7180
        %7182 = vrot.lane.b32.xlu0 %v7143, 32
        %v7183 = vpop.permute.xlu0 %7182
        %7184 = vrot.lane.b32.xlu0 %v7144, 32
        %v7185 = vpop.permute.xlu0 %7184
        %7186 = vrot.lane.b32.xlu0 %v7145, 32
        %v7187 = vpop.permute.xlu0 %7186
        %7188 = vrot.lane.b32.xlu0 %v7146, 32
        %v7189 = vpop.permute.xlu0 %7188
        %7190 = vrot.lane.b32.xlu0 %v7147, 32
        %v7191 = vpop.permute.xlu0 %7190
        %7192 = vrot.lane.b32.xlu0 %v7148, 32
        %v7193 = vpop.permute.xlu0 %7192
        %7194 = vrot.lane.b32.xlu0 %v7149, 32
        %v7195 = vpop.permute.xlu0 %7194
        %7196 = vrot.lane.b32.xlu0 %v7150, 32
        %v7197 = vpop.permute.xlu0 %7196
        %7198 = vrot.lane.b32.xlu0 %v7151, 32
        %v7199 = vpop.permute.xlu0 %7198
        %7216 = vst.msk [vmem:[#allocation9 + $0x18] sm:$0xff] %vm6253, %v7169
        %7217 = vst.msk [vmem:[#allocation9 + $0x50] sm:$0xff] %vm6253, %v7171
        %7218 = vst.msk [vmem:[#allocation9 + $0x88] sm:$0xff] %vm6253, %v7173
        %7219 = vst.msk [vmem:[#allocation9 + $0xc0] sm:$0xff] %vm6253, %v7175
        %7220 = vst.msk [vmem:[#allocation9 + $0xf8] sm:$0xff] %vm6253, %v7177
        %7221 = vst.msk [vmem:[#allocation9 + $0x130] sm:$0xff] %vm6253, %v7179
        %7222 = vst.msk [vmem:[#allocation9 + $0x168] sm:$0xff] %vm6253, %v7181
        %7223 = vst.msk [vmem:[#allocation9 + $0x1a0] sm:$0xff] %vm6253, %v7183
        %7224 = vst.msk [vmem:[#allocation9 + $0x1d8] sm:$0xff] %vm6253, %v7185
        %7225 = vst.msk [vmem:[#allocation9 + $0x210] sm:$0xff] %vm6253, %v7187
        %7226 = vst.msk [vmem:[#allocation9 + $0x248] sm:$0xff] %vm6253, %v7189
        %7227 = vst.msk [vmem:[#allocation9 + $0x280] sm:$0xff] %vm6253, %v7191
        %7228 = vst.msk [vmem:[#allocation9 + $0x2b8] sm:$0xff] %vm6253, %v7193
        %7229 = vst.msk [vmem:[#allocation9 + $0x2f0] sm:$0xff] %vm6253, %v7195
        %7230 = vst.msk [vmem:[#allocation9 + $0x328] sm:$0xff] %vm6253, %v7197
        %7231 = vst.msk [vmem:[#allocation9 + $0x360] sm:$0xff] %vm6253, %v7199
        %v7232 = vld [vmem:[#allocation3 + $0x42] sm:$0xff]
        %v7233 = vld [vmem:[#allocation3 + $0x4a] sm:$0xff]
        %v7234 = vld [vmem:[#allocation3 + $0x52] sm:$0xff]
        %v7235 = vld [vmem:[#allocation3 + $0x5a] sm:$0xff]
        %v7236 = vld [vmem:[#allocation3 + $0x62] sm:$0xff]
        %v7237 = vld [vmem:[#allocation3 + $0x6a] sm:$0xff]
        %v7238 = vld [vmem:[#allocation3 + $0x72] sm:$0xff]
        %v7239 = vld [vmem:[#allocation3 + $0x7a] sm:$0xff]
        %v7240 = vld [vmem:[#allocation3 + $0x82] sm:$0xff]
        %v7241 = vld [vmem:[#allocation3 + $0x8a] sm:$0xff]
        %v7242 = vld [vmem:[#allocation3 + $0x92] sm:$0xff]
        %v7243 = vld [vmem:[#allocation3 + $0x9a] sm:$0xff]
        %v7244 = vld [vmem:[#allocation3 + $0xa2] sm:$0xff]
        %v7245 = vld [vmem:[#allocation3 + $0xaa] sm:$0xff]
        %v7246 = vld [vmem:[#allocation3 + $0xb2] sm:$0xff]
        %v7247 = vld [vmem:[#allocation3 + $0xba] sm:$0xff]
        %7264 = vrot.lane.b32.xlu0 %v7232, 64
        %v7265 = vpop.permute.xlu0 %7264
        %7266 = vrot.lane.b32.xlu0 %v7233, 64
        %v7267 = vpop.permute.xlu0 %7266
        %7268 = vrot.lane.b32.xlu0 %v7234, 64
        %v7269 = vpop.permute.xlu0 %7268
        %7270 = vrot.lane.b32.xlu0 %v7235, 64
        %v7271 = vpop.permute.xlu0 %7270
        %7272 = vrot.lane.b32.xlu0 %v7236, 64
        %v7273 = vpop.permute.xlu0 %7272
        %7274 = vrot.lane.b32.xlu0 %v7237, 64
        %v7275 = vpop.permute.xlu0 %7274
        %7276 = vrot.lane.b32.xlu0 %v7238, 64
        %v7277 = vpop.permute.xlu0 %7276
        %7278 = vrot.lane.b32.xlu0 %v7239, 64
        %v7279 = vpop.permute.xlu0 %7278
        %7280 = vrot.lane.b32.xlu0 %v7240, 64
        %v7281 = vpop.permute.xlu0 %7280
        %7282 = vrot.lane.b32.xlu0 %v7241, 64
        %v7283 = vpop.permute.xlu0 %7282
        %7284 = vrot.lane.b32.xlu0 %v7242, 64
        %v7285 = vpop.permute.xlu0 %7284
        %7286 = vrot.lane.b32.xlu0 %v7243, 64
        %v7287 = vpop.permute.xlu0 %7286
        %7288 = vrot.lane.b32.xlu0 %v7244, 64
        %v7289 = vpop.permute.xlu0 %7288
        %7290 = vrot.lane.b32.xlu0 %v7245, 64
        %v7291 = vpop.permute.xlu0 %7290
        %7292 = vrot.lane.b32.xlu0 %v7246, 64
        %v7293 = vpop.permute.xlu0 %7292
        %7294 = vrot.lane.b32.xlu0 %v7247, 64
        %v7295 = vpop.permute.xlu0 %7294
        %7312 = vst.msk [vmem:[#allocation9 + $0x18] sm:$0xff] %vm6350, %v7265
        %7313 = vst.msk [vmem:[#allocation9 + $0x50] sm:$0xff] %vm6350, %v7267
        %7314 = vst.msk [vmem:[#allocation9 + $0x88] sm:$0xff] %vm6350, %v7269
        %7315 = vst.msk [vmem:[#allocation9 + $0xc0] sm:$0xff] %vm6350, %v7271
        %7316 = vst.msk [vmem:[#allocation9 + $0xf8] sm:$0xff] %vm6350, %v7273
        %7317 = vst.msk [vmem:[#allocation9 + $0x130] sm:$0xff] %vm6350, %v7275
        %7318 = vst.msk [vmem:[#allocation9 + $0x168] sm:$0xff] %vm6350, %v7277
        %7319 = vst.msk [vmem:[#allocation9 + $0x1a0] sm:$0xff] %vm6350, %v7279
        %7320 = vst.msk [vmem:[#allocation9 + $0x1d8] sm:$0xff] %vm6350, %v7281
        %7321 = vst.msk [vmem:[#allocation9 + $0x210] sm:$0xff] %vm6350, %v7283
        %7322 = vst.msk [vmem:[#allocation9 + $0x248] sm:$0xff] %vm6350, %v7285
        %7323 = vst.msk [vmem:[#allocation9 + $0x280] sm:$0xff] %vm6350, %v7287
        %7324 = vst.msk [vmem:[#allocation9 + $0x2b8] sm:$0xff] %vm6350, %v7289
        %7325 = vst.msk [vmem:[#allocation9 + $0x2f0] sm:$0xff] %vm6350, %v7291
        %7326 = vst.msk [vmem:[#allocation9 + $0x328] sm:$0xff] %vm6350, %v7293
        %7327 = vst.msk [vmem:[#allocation9 + $0x360] sm:$0xff] %vm6350, %v7295
        %v7328 = vld [vmem:[#allocation3 + $0x4e] sm:$0xff]
        %v7329 = vld [vmem:[#allocation3 + $0x56] sm:$0xff]
        %v7330 = vld [vmem:[#allocation3 + $0x5e] sm:$0xff]
        %v7331 = vld [vmem:[#allocation3 + $0x66] sm:$0xff]
        %v7332 = vld [vmem:[#allocation3 + $0x6e] sm:$0xff]
        %v7333 = vld [vmem:[#allocation3 + $0x76] sm:$0xff]
        %v7334 = vld [vmem:[#allocation3 + $0x7e] sm:$0xff]
        %v7335 = vld [vmem:[#allocation3 + $0x86] sm:$0xff]
        %v7336 = vld [vmem:[#allocation3 + $0x8e] sm:$0xff]
        %v7337 = vld [vmem:[#allocation3 + $0x96] sm:$0xff]
        %v7338 = vld [vmem:[#allocation3 + $0x9e] sm:$0xff]
        %v7339 = vld [vmem:[#allocation3 + $0xa6] sm:$0xff]
        %v7340 = vld [vmem:[#allocation3 + $0xae] sm:$0xff]
        %v7341 = vld [vmem:[#allocation3 + $0xb6] sm:$0xff]
        %v7342 = vld [vmem:[#allocation3 + $0xbe] sm:$0xff]
        %v7343 = vld [vmem:[#allocation3 + $0xc6] sm:$0xff]
        %7360 = vrot.lane.b32.xlu0 %v7328, 96
        %v7361 = vpop.permute.xlu0 %7360
        %7362 = vrot.lane.b32.xlu0 %v7329, 96
        %v7363 = vpop.permute.xlu0 %7362
        %7364 = vrot.lane.b32.xlu0 %v7330, 96
        %v7365 = vpop.permute.xlu0 %7364
        %7366 = vrot.lane.b32.xlu0 %v7331, 96
        %v7367 = vpop.permute.xlu0 %7366
        %7368 = vrot.lane.b32.xlu0 %v7332, 96
        %v7369 = vpop.permute.xlu0 %7368
        %7370 = vrot.lane.b32.xlu0 %v7333, 96
        %v7371 = vpop.permute.xlu0 %7370
        %7372 = vrot.lane.b32.xlu0 %v7334, 96
        %v7373 = vpop.permute.xlu0 %7372
        %7374 = vrot.lane.b32.xlu0 %v7335, 96
        %v7375 = vpop.permute.xlu0 %7374
        %7376 = vrot.lane.b32.xlu0 %v7336, 96
        %v7377 = vpop.permute.xlu0 %7376
        %7378 = vrot.lane.b32.xlu0 %v7337, 96
        %v7379 = vpop.permute.xlu0 %7378
        %7380 = vrot.lane.b32.xlu0 %v7338, 96
        %v7381 = vpop.permute.xlu0 %7380
        %7382 = vrot.lane.b32.xlu0 %v7339, 96
        %v7383 = vpop.permute.xlu0 %7382
        %7384 = vrot.lane.b32.xlu0 %v7340, 96
        %v7385 = vpop.permute.xlu0 %7384
        %7386 = vrot.lane.b32.xlu0 %v7341, 96
        %v7387 = vpop.permute.xlu0 %7386
        %7388 = vrot.lane.b32.xlu0 %v7342, 96
        %v7389 = vpop.permute.xlu0 %7388
        %7390 = vrot.lane.b32.xlu0 %v7343, 96
        %v7391 = vpop.permute.xlu0 %7390
        %7408 = vst.msk [vmem:[#allocation9 + $0x18] sm:$0xff] %vm6447, %v7361
        %7409 = vst.msk [vmem:[#allocation9 + $0x50] sm:$0xff] %vm6447, %v7363
        %7410 = vst.msk [vmem:[#allocation9 + $0x88] sm:$0xff] %vm6447, %v7365
        %7411 = vst.msk [vmem:[#allocation9 + $0xc0] sm:$0xff] %vm6447, %v7367
        %7412 = vst.msk [vmem:[#allocation9 + $0xf8] sm:$0xff] %vm6447, %v7369
        %7413 = vst.msk [vmem:[#allocation9 + $0x130] sm:$0xff] %vm6447, %v7371
        %7414 = vst.msk [vmem:[#allocation9 + $0x168] sm:$0xff] %vm6447, %v7373
        %7415 = vst.msk [vmem:[#allocation9 + $0x1a0] sm:$0xff] %vm6447, %v7375
        %7416 = vst.msk [vmem:[#allocation9 + $0x1d8] sm:$0xff] %vm6447, %v7377
        %7417 = vst.msk [vmem:[#allocation9 + $0x210] sm:$0xff] %vm6447, %v7379
        %7418 = vst.msk [vmem:[#allocation9 + $0x248] sm:$0xff] %vm6447, %v7381
        %7419 = vst.msk [vmem:[#allocation9 + $0x280] sm:$0xff] %vm6447, %v7383
        %7420 = vst.msk [vmem:[#allocation9 + $0x2b8] sm:$0xff] %vm6447, %v7385
        %7421 = vst.msk [vmem:[#allocation9 + $0x2f0] sm:$0xff] %vm6447, %v7387
        %7422 = vst.msk [vmem:[#allocation9 + $0x328] sm:$0xff] %vm6447, %v7389
        %7423 = vst.msk [vmem:[#allocation9 + $0x360] sm:$0xff] %vm6447, %v7391
        %v7424 = vld [vmem:[#allocation3 + $0x4f] sm:$0xff]
        %v7425 = vld [vmem:[#allocation3 + $0x57] sm:$0xff]
        %v7426 = vld [vmem:[#allocation3 + $0x5f] sm:$0xff]
        %v7427 = vld [vmem:[#allocation3 + $0x67] sm:$0xff]
        %v7428 = vld [vmem:[#allocation3 + $0x6f] sm:$0xff]
        %v7429 = vld [vmem:[#allocation3 + $0x77] sm:$0xff]
        %v7430 = vld [vmem:[#allocation3 + $0x7f] sm:$0xff]
        %v7431 = vld [vmem:[#allocation3 + $0x87] sm:$0xff]
        %v7432 = vld [vmem:[#allocation3 + $0x8f] sm:$0xff]
        %v7433 = vld [vmem:[#allocation3 + $0x97] sm:$0xff]
        %v7434 = vld [vmem:[#allocation3 + $0x9f] sm:$0xff]
        %v7435 = vld [vmem:[#allocation3 + $0xa7] sm:$0xff]
        %v7436 = vld [vmem:[#allocation3 + $0xaf] sm:$0xff]
        %v7437 = vld [vmem:[#allocation3 + $0xb7] sm:$0xff]
        %v7438 = vld [vmem:[#allocation3 + $0xbf] sm:$0xff]
        %v7439 = vld [vmem:[#allocation3 + $0xc7] sm:$0xff]
        %7440 = vst.msk [vmem:[#allocation9 + $0x20] sm:$0xff] %vm385, %v7424
        %7441 = vst.msk [vmem:[#allocation9 + $0x58] sm:$0xff] %vm385, %v7425
        %7442 = vst.msk [vmem:[#allocation9 + $0x90] sm:$0xff] %vm385, %v7426
        %7443 = vst.msk [vmem:[#allocation9 + $0xc8] sm:$0xff] %vm385, %v7427
        %7444 = vst.msk [vmem:[#allocation9 + $0x100] sm:$0xff] %vm385, %v7428
        %7445 = vst.msk [vmem:[#allocation9 + $0x138] sm:$0xff] %vm385, %v7429
        %7446 = vst.msk [vmem:[#allocation9 + $0x170] sm:$0xff] %vm385, %v7430
        %7447 = vst.msk [vmem:[#allocation9 + $0x1a8] sm:$0xff] %vm385, %v7431
        %7448 = vst.msk [vmem:[#allocation9 + $0x1e0] sm:$0xff] %vm385, %v7432
        %7449 = vst.msk [vmem:[#allocation9 + $0x218] sm:$0xff] %vm385, %v7433
        %7450 = vst.msk [vmem:[#allocation9 + $0x250] sm:$0xff] %vm385, %v7434
        %7451 = vst.msk [vmem:[#allocation9 + $0x288] sm:$0xff] %vm385, %v7435
        %7452 = vst.msk [vmem:[#allocation9 + $0x2c0] sm:$0xff] %vm385, %v7436
        %7453 = vst.msk [vmem:[#allocation9 + $0x2f8] sm:$0xff] %vm385, %v7437
        %7454 = vst.msk [vmem:[#allocation9 + $0x330] sm:$0xff] %vm385, %v7438
        %7455 = vst.msk [vmem:[#allocation9 + $0x368] sm:$0xff] %vm385, %v7439
        %v7456 = vld [vmem:[#allocation3 + $0x50] sm:$0xff]
        %v7457 = vld [vmem:[#allocation3 + $0x58] sm:$0xff]
        %v7458 = vld [vmem:[#allocation3 + $0x60] sm:$0xff]
        %v7459 = vld [vmem:[#allocation3 + $0x68] sm:$0xff]
        %v7460 = vld [vmem:[#allocation3 + $0x70] sm:$0xff]
        %v7461 = vld [vmem:[#allocation3 + $0x78] sm:$0xff]
        %v7462 = vld [vmem:[#allocation3 + $0x80] sm:$0xff]
        %v7463 = vld [vmem:[#allocation3 + $0x88] sm:$0xff]
        %v7464 = vld [vmem:[#allocation3 + $0x90] sm:$0xff]
        %v7465 = vld [vmem:[#allocation3 + $0x98] sm:$0xff]
        %v7466 = vld [vmem:[#allocation3 + $0xa0] sm:$0xff]
        %v7467 = vld [vmem:[#allocation3 + $0xa8] sm:$0xff]
        %v7468 = vld [vmem:[#allocation3 + $0xb0] sm:$0xff]
        %v7469 = vld [vmem:[#allocation3 + $0xb8] sm:$0xff]
        %v7470 = vld [vmem:[#allocation3 + $0xc0] sm:$0xff]
        %v7471 = vld [vmem:[#allocation3 + $0xc8] sm:$0xff]
        %7488 = vrot.lane.b32.xlu0 %v7456, 32
        %v7489 = vpop.permute.xlu0 %7488
        %7490 = vrot.lane.b32.xlu0 %v7457, 32
        %v7491 = vpop.permute.xlu0 %7490
        %7492 = vrot.lane.b32.xlu0 %v7458, 32
        %v7493 = vpop.permute.xlu0 %7492
        %7494 = vrot.lane.b32.xlu0 %v7459, 32
        %v7495 = vpop.permute.xlu0 %7494
        %7496 = vrot.lane.b32.xlu0 %v7460, 32
        %v7497 = vpop.permute.xlu0 %7496
        %7498 = vrot.lane.b32.xlu0 %v7461, 32
        %v7499 = vpop.permute.xlu0 %7498
        %7500 = vrot.lane.b32.xlu0 %v7462, 32
        %v7501 = vpop.permute.xlu0 %7500
        %7502 = vrot.lane.b32.xlu0 %v7463, 32
        %v7503 = vpop.permute.xlu0 %7502
        %7504 = vrot.lane.b32.xlu0 %v7464, 32
        %v7505 = vpop.permute.xlu0 %7504
        %7506 = vrot.lane.b32.xlu0 %v7465, 32
        %v7507 = vpop.permute.xlu0 %7506
        %7508 = vrot.lane.b32.xlu0 %v7466, 32
        %v7509 = vpop.permute.xlu0 %7508
        %7510 = vrot.lane.b32.xlu0 %v7467, 32
        %v7511 = vpop.permute.xlu0 %7510
        %7512 = vrot.lane.b32.xlu0 %v7468, 32
        %v7513 = vpop.permute.xlu0 %7512
        %7514 = vrot.lane.b32.xlu0 %v7469, 32
        %v7515 = vpop.permute.xlu0 %7514
        %7516 = vrot.lane.b32.xlu0 %v7470, 32
        %v7517 = vpop.permute.xlu0 %7516
        %7518 = vrot.lane.b32.xlu0 %v7471, 32
        %v7519 = vpop.permute.xlu0 %7518
        %7536 = vst.msk [vmem:[#allocation9 + $0x20] sm:$0xff] %vm6253, %v7489
        %7537 = vst.msk [vmem:[#allocation9 + $0x58] sm:$0xff] %vm6253, %v7491
        %7538 = vst.msk [vmem:[#allocation9 + $0x90] sm:$0xff] %vm6253, %v7493
        %7539 = vst.msk [vmem:[#allocation9 + $0xc8] sm:$0xff] %vm6253, %v7495
        %7540 = vst.msk [vmem:[#allocation9 + $0x100] sm:$0xff] %vm6253, %v7497
        %7541 = vst.msk [vmem:[#allocation9 + $0x138] sm:$0xff] %vm6253, %v7499
        %7542 = vst.msk [vmem:[#allocation9 + $0x170] sm:$0xff] %vm6253, %v7501
        %7543 = vst.msk [vmem:[#allocation9 + $0x1a8] sm:$0xff] %vm6253, %v7503
        %7544 = vst.msk [vmem:[#allocation9 + $0x1e0] sm:$0xff] %vm6253, %v7505
        %7545 = vst.msk [vmem:[#allocation9 + $0x218] sm:$0xff] %vm6253, %v7507
        %7546 = vst.msk [vmem:[#allocation9 + $0x250] sm:$0xff] %vm6253, %v7509
        %7547 = vst.msk [vmem:[#allocation9 + $0x288] sm:$0xff] %vm6253, %v7511
        %7548 = vst.msk [vmem:[#allocation9 + $0x2c0] sm:$0xff] %vm6253, %v7513
        %7549 = vst.msk [vmem:[#allocation9 + $0x2f8] sm:$0xff] %vm6253, %v7515
        %7550 = vst.msk [vmem:[#allocation9 + $0x330] sm:$0xff] %vm6253, %v7517
        %7551 = vst.msk [vmem:[#allocation9 + $0x368] sm:$0xff] %vm6253, %v7519
        %v7552 = vld [vmem:[#allocation3 + $0x51] sm:$0xff]
        %v7553 = vld [vmem:[#allocation3 + $0x59] sm:$0xff]
        %v7554 = vld [vmem:[#allocation3 + $0x61] sm:$0xff]
        %v7555 = vld [vmem:[#allocation3 + $0x69] sm:$0xff]
        %v7556 = vld [vmem:[#allocation3 + $0x71] sm:$0xff]
        %v7557 = vld [vmem:[#allocation3 + $0x79] sm:$0xff]
        %v7558 = vld [vmem:[#allocation3 + $0x81] sm:$0xff]
        %v7559 = vld [vmem:[#allocation3 + $0x89] sm:$0xff]
        %v7560 = vld [vmem:[#allocation3 + $0x91] sm:$0xff]
        %v7561 = vld [vmem:[#allocation3 + $0x99] sm:$0xff]
        %v7562 = vld [vmem:[#allocation3 + $0xa1] sm:$0xff]
        %v7563 = vld [vmem:[#allocation3 + $0xa9] sm:$0xff]
        %v7564 = vld [vmem:[#allocation3 + $0xb1] sm:$0xff]
        %v7565 = vld [vmem:[#allocation3 + $0xb9] sm:$0xff]
        %v7566 = vld [vmem:[#allocation3 + $0xc1] sm:$0xff]
        %v7567 = vld [vmem:[#allocation3 + $0xc9] sm:$0xff]
        %7584 = vrot.lane.b32.xlu0 %v7552, 64
        %v7585 = vpop.permute.xlu0 %7584
        %7586 = vrot.lane.b32.xlu0 %v7553, 64
        %v7587 = vpop.permute.xlu0 %7586
        %7588 = vrot.lane.b32.xlu0 %v7554, 64
        %v7589 = vpop.permute.xlu0 %7588
        %7590 = vrot.lane.b32.xlu0 %v7555, 64
        %v7591 = vpop.permute.xlu0 %7590
        %7592 = vrot.lane.b32.xlu0 %v7556, 64
        %v7593 = vpop.permute.xlu0 %7592
        %7594 = vrot.lane.b32.xlu0 %v7557, 64
        %v7595 = vpop.permute.xlu0 %7594
        %7596 = vrot.lane.b32.xlu0 %v7558, 64
        %v7597 = vpop.permute.xlu0 %7596
        %7598 = vrot.lane.b32.xlu0 %v7559, 64
        %v7599 = vpop.permute.xlu0 %7598
        %7600 = vrot.lane.b32.xlu0 %v7560, 64
        %v7601 = vpop.permute.xlu0 %7600
        %7602 = vrot.lane.b32.xlu0 %v7561, 64
        %v7603 = vpop.permute.xlu0 %7602
        %7604 = vrot.lane.b32.xlu0 %v7562, 64
        %v7605 = vpop.permute.xlu0 %7604
        %7606 = vrot.lane.b32.xlu0 %v7563, 64
        %v7607 = vpop.permute.xlu0 %7606
        %7608 = vrot.lane.b32.xlu0 %v7564, 64
        %v7609 = vpop.permute.xlu0 %7608
        %7610 = vrot.lane.b32.xlu0 %v7565, 64
        %v7611 = vpop.permute.xlu0 %7610
        %7612 = vrot.lane.b32.xlu0 %v7566, 64
        %v7613 = vpop.permute.xlu0 %7612
        %7614 = vrot.lane.b32.xlu0 %v7567, 64
        %v7615 = vpop.permute.xlu0 %7614
        %7632 = vst.msk [vmem:[#allocation9 + $0x20] sm:$0xff] %vm6350, %v7585
        %7633 = vst.msk [vmem:[#allocation9 + $0x58] sm:$0xff] %vm6350, %v7587
        %7634 = vst.msk [vmem:[#allocation9 + $0x90] sm:$0xff] %vm6350, %v7589
        %7635 = vst.msk [vmem:[#allocation9 + $0xc8] sm:$0xff] %vm6350, %v7591
        %7636 = vst.msk [vmem:[#allocation9 + $0x100] sm:$0xff] %vm6350, %v7593
        %7637 = vst.msk [vmem:[#allocation9 + $0x138] sm:$0xff] %vm6350, %v7595
        %7638 = vst.msk [vmem:[#allocation9 + $0x170] sm:$0xff] %vm6350, %v7597
        %7639 = vst.msk [vmem:[#allocation9 + $0x1a8] sm:$0xff] %vm6350, %v7599
        %7640 = vst.msk [vmem:[#allocation9 + $0x1e0] sm:$0xff] %vm6350, %v7601
        %7641 = vst.msk [vmem:[#allocation9 + $0x218] sm:$0xff] %vm6350, %v7603
        %7642 = vst.msk [vmem:[#allocation9 + $0x250] sm:$0xff] %vm6350, %v7605
        %7643 = vst.msk [vmem:[#allocation9 + $0x288] sm:$0xff] %vm6350, %v7607
        %7644 = vst.msk [vmem:[#allocation9 + $0x2c0] sm:$0xff] %vm6350, %v7609
        %7645 = vst.msk [vmem:[#allocation9 + $0x2f8] sm:$0xff] %vm6350, %v7611
        %7646 = vst.msk [vmem:[#allocation9 + $0x330] sm:$0xff] %vm6350, %v7613
        %7647 = vst.msk [vmem:[#allocation9 + $0x368] sm:$0xff] %vm6350, %v7615
        %v7648 = vld [vmem:[#allocation3 + $0x52] sm:$0xff]
        %v7649 = vld [vmem:[#allocation3 + $0x5a] sm:$0xff]
        %v7650 = vld [vmem:[#allocation3 + $0x62] sm:$0xff]
        %v7651 = vld [vmem:[#allocation3 + $0x6a] sm:$0xff]
        %v7652 = vld [vmem:[#allocation3 + $0x72] sm:$0xff]
        %v7653 = vld [vmem:[#allocation3 + $0x7a] sm:$0xff]
        %v7654 = vld [vmem:[#allocation3 + $0x82] sm:$0xff]
        %v7655 = vld [vmem:[#allocation3 + $0x8a] sm:$0xff]
        %v7656 = vld [vmem:[#allocation3 + $0x92] sm:$0xff]
        %v7657 = vld [vmem:[#allocation3 + $0x9a] sm:$0xff]
        %v7658 = vld [vmem:[#allocation3 + $0xa2] sm:$0xff]
        %v7659 = vld [vmem:[#allocation3 + $0xaa] sm:$0xff]
        %v7660 = vld [vmem:[#allocation3 + $0xb2] sm:$0xff]
        %v7661 = vld [vmem:[#allocation3 + $0xba] sm:$0xff]
        %v7662 = vld [vmem:[#allocation3 + $0xc2] sm:$0xff]
        %v7663 = vld [vmem:[#allocation3 + $0xca] sm:$0xff]
        %7680 = vrot.lane.b32.xlu0 %v7648, 96
        %v7681 = vpop.permute.xlu0 %7680
        %7682 = vrot.lane.b32.xlu0 %v7649, 96
        %v7683 = vpop.permute.xlu0 %7682
        %7684 = vrot.lane.b32.xlu0 %v7650, 96
        %v7685 = vpop.permute.xlu0 %7684
        %7686 = vrot.lane.b32.xlu0 %v7651, 96
        %v7687 = vpop.permute.xlu0 %7686
        %7688 = vrot.lane.b32.xlu0 %v7652, 96
        %v7689 = vpop.permute.xlu0 %7688
        %7690 = vrot.lane.b32.xlu0 %v7653, 96
        %v7691 = vpop.permute.xlu0 %7690
        %7692 = vrot.lane.b32.xlu0 %v7654, 96
        %v7693 = vpop.permute.xlu0 %7692
        %7694 = vrot.lane.b32.xlu0 %v7655, 96
        %v7695 = vpop.permute.xlu0 %7694
        %7696 = vrot.lane.b32.xlu0 %v7656, 96
        %v7697 = vpop.permute.xlu0 %7696
        %7698 = vrot.lane.b32.xlu0 %v7657, 96
        %v7699 = vpop.permute.xlu0 %7698
        %7700 = vrot.lane.b32.xlu0 %v7658, 96
        %v7701 = vpop.permute.xlu0 %7700
        %7702 = vrot.lane.b32.xlu0 %v7659, 96
        %v7703 = vpop.permute.xlu0 %7702
        %7704 = vrot.lane.b32.xlu0 %v7660, 96
        %v7705 = vpop.permute.xlu0 %7704
        %7706 = vrot.lane.b32.xlu0 %v7661, 96
        %v7707 = vpop.permute.xlu0 %7706
        %7708 = vrot.lane.b32.xlu0 %v7662, 96
        %v7709 = vpop.permute.xlu0 %7708
        %7710 = vrot.lane.b32.xlu0 %v7663, 96
        %v7711 = vpop.permute.xlu0 %7710
        %7728 = vst.msk [vmem:[#allocation9 + $0x20] sm:$0xff] %vm6447, %v7681
        %7729 = vst.msk [vmem:[#allocation9 + $0x58] sm:$0xff] %vm6447, %v7683
        %7730 = vst.msk [vmem:[#allocation9 + $0x90] sm:$0xff] %vm6447, %v7685
        %7731 = vst.msk [vmem:[#allocation9 + $0xc8] sm:$0xff] %vm6447, %v7687
        %7732 = vst.msk [vmem:[#allocation9 + $0x100] sm:$0xff] %vm6447, %v7689
        %7733 = vst.msk [vmem:[#allocation9 + $0x138] sm:$0xff] %vm6447, %v7691
        %7734 = vst.msk [vmem:[#allocation9 + $0x170] sm:$0xff] %vm6447, %v7693
        %7735 = vst.msk [vmem:[#allocation9 + $0x1a8] sm:$0xff] %vm6447, %v7695
        %7736 = vst.msk [vmem:[#allocation9 + $0x1e0] sm:$0xff] %vm6447, %v7697
        %7737 = vst.msk [vmem:[#allocation9 + $0x218] sm:$0xff] %vm6447, %v7699
        %7738 = vst.msk [vmem:[#allocation9 + $0x250] sm:$0xff] %vm6447, %v7701
        %7739 = vst.msk [vmem:[#allocation9 + $0x288] sm:$0xff] %vm6447, %v7703
        %7740 = vst.msk [vmem:[#allocation9 + $0x2c0] sm:$0xff] %vm6447, %v7705
        %7741 = vst.msk [vmem:[#allocation9 + $0x2f8] sm:$0xff] %vm6447, %v7707
        %7742 = vst.msk [vmem:[#allocation9 + $0x330] sm:$0xff] %vm6447, %v7709
        %7743 = vst.msk [vmem:[#allocation9 + $0x368] sm:$0xff] %vm6447, %v7711
        %v7744 = vld [vmem:[#allocation3 + $0x5e] sm:$0xff]
        %v7745 = vld [vmem:[#allocation3 + $0x66] sm:$0xff]
        %v7746 = vld [vmem:[#allocation3 + $0x6e] sm:$0xff]
        %v7747 = vld [vmem:[#allocation3 + $0x76] sm:$0xff]
        %v7748 = vld [vmem:[#allocation3 + $0x7e] sm:$0xff]
        %v7749 = vld [vmem:[#allocation3 + $0x86] sm:$0xff]
        %v7750 = vld [vmem:[#allocation3 + $0x8e] sm:$0xff]
        %v7751 = vld [vmem:[#allocation3 + $0x96] sm:$0xff]
        %v7752 = vld [vmem:[#allocation3 + $0x9e] sm:$0xff]
        %v7753 = vld [vmem:[#allocation3 + $0xa6] sm:$0xff]
        %v7754 = vld [vmem:[#allocation3 + $0xae] sm:$0xff]
        %v7755 = vld [vmem:[#allocation3 + $0xb6] sm:$0xff]
        %v7756 = vld [vmem:[#allocation3 + $0xbe] sm:$0xff]
        %v7757 = vld [vmem:[#allocation3 + $0xc6] sm:$0xff]
        %v7758 = vld [vmem:[#allocation3 + $0xce] sm:$0xff]
        %v7759 = vld [vmem:[#allocation3 + $0xd6] sm:$0xff]
        %7760 = vst.msk [vmem:[#allocation9 + $0x28] sm:$0xff] %vm385, %v7744
        %7761 = vst.msk [vmem:[#allocation9 + $0x60] sm:$0xff] %vm385, %v7745
        %7762 = vst.msk [vmem:[#allocation9 + $0x98] sm:$0xff] %vm385, %v7746
        %7763 = vst.msk [vmem:[#allocation9 + $0xd0] sm:$0xff] %vm385, %v7747
        %7764 = vst.msk [vmem:[#allocation9 + $0x108] sm:$0xff] %vm385, %v7748
        %7765 = vst.msk [vmem:[#allocation9 + $0x140] sm:$0xff] %vm385, %v7749
        %7766 = vst.msk [vmem:[#allocation9 + $0x178] sm:$0xff] %vm385, %v7750
        %7767 = vst.msk [vmem:[#allocation9 + $0x1b0] sm:$0xff] %vm385, %v7751
        %7768 = vst.msk [vmem:[#allocation9 + $0x1e8] sm:$0xff] %vm385, %v7752
        %7769 = vst.msk [vmem:[#allocation9 + $0x220] sm:$0xff] %vm385, %v7753
        %7770 = vst.msk [vmem:[#allocation9 + $0x258] sm:$0xff] %vm385, %v7754
        %7771 = vst.msk [vmem:[#allocation9 + $0x290] sm:$0xff] %vm385, %v7755
        %7772 = vst.msk [vmem:[#allocation9 + $0x2c8] sm:$0xff] %vm385, %v7756
        %7773 = vst.msk [vmem:[#allocation9 + $0x300] sm:$0xff] %vm385, %v7757
        %7774 = vst.msk [vmem:[#allocation9 + $0x338] sm:$0xff] %vm385, %v7758
        %7775 = vst.msk [vmem:[#allocation9 + $0x370] sm:$0xff] %vm385, %v7759
        %v7776 = vld [vmem:[#allocation3 + $0x5f] sm:$0xff]
        %v7777 = vld [vmem:[#allocation3 + $0x67] sm:$0xff]
        %v7778 = vld [vmem:[#allocation3 + $0x6f] sm:$0xff]
        %v7779 = vld [vmem:[#allocation3 + $0x77] sm:$0xff]
        %v7780 = vld [vmem:[#allocation3 + $0x7f] sm:$0xff]
        %v7781 = vld [vmem:[#allocation3 + $0x87] sm:$0xff]
        %v7782 = vld [vmem:[#allocation3 + $0x8f] sm:$0xff]
        %v7783 = vld [vmem:[#allocation3 + $0x97] sm:$0xff]
        %v7784 = vld [vmem:[#allocation3 + $0x9f] sm:$0xff]
        %v7785 = vld [vmem:[#allocation3 + $0xa7] sm:$0xff]
        %v7786 = vld [vmem:[#allocation3 + $0xaf] sm:$0xff]
        %v7787 = vld [vmem:[#allocation3 + $0xb7] sm:$0xff]
        %v7788 = vld [vmem:[#allocation3 + $0xbf] sm:$0xff]
        %v7789 = vld [vmem:[#allocation3 + $0xc7] sm:$0xff]
        %v7790 = vld [vmem:[#allocation3 + $0xcf] sm:$0xff]
        %v7791 = vld [vmem:[#allocation3 + $0xd7] sm:$0xff]
        %7808 = vrot.lane.b32.xlu0 %v7776, 32
        %v7809 = vpop.permute.xlu0 %7808
        %7810 = vrot.lane.b32.xlu0 %v7777, 32
        %v7811 = vpop.permute.xlu0 %7810
        %7812 = vrot.lane.b32.xlu0 %v7778, 32
        %v7813 = vpop.permute.xlu0 %7812
        %7814 = vrot.lane.b32.xlu0 %v7779, 32
        %v7815 = vpop.permute.xlu0 %7814
        %7816 = vrot.lane.b32.xlu0 %v7780, 32
        %v7817 = vpop.permute.xlu0 %7816
        %7818 = vrot.lane.b32.xlu0 %v7781, 32
        %v7819 = vpop.permute.xlu0 %7818
        %7820 = vrot.lane.b32.xlu0 %v7782, 32
        %v7821 = vpop.permute.xlu0 %7820
        %7822 = vrot.lane.b32.xlu0 %v7783, 32
        %v7823 = vpop.permute.xlu0 %7822
        %7824 = vrot.lane.b32.xlu0 %v7784, 32
        %v7825 = vpop.permute.xlu0 %7824
        %7826 = vrot.lane.b32.xlu0 %v7785, 32
        %v7827 = vpop.permute.xlu0 %7826
        %7828 = vrot.lane.b32.xlu0 %v7786, 32
        %v7829 = vpop.permute.xlu0 %7828
        %7830 = vrot.lane.b32.xlu0 %v7787, 32
        %v7831 = vpop.permute.xlu0 %7830
        %7832 = vrot.lane.b32.xlu0 %v7788, 32
        %v7833 = vpop.permute.xlu0 %7832
        %7834 = vrot.lane.b32.xlu0 %v7789, 32
        %v7835 = vpop.permute.xlu0 %7834
        %7836 = vrot.lane.b32.xlu0 %v7790, 32
        %v7837 = vpop.permute.xlu0 %7836
        %7838 = vrot.lane.b32.xlu0 %v7791, 32
        %v7839 = vpop.permute.xlu0 %7838
        %7856 = vst.msk [vmem:[#allocation9 + $0x28] sm:$0xff] %vm6253, %v7809
        %7857 = vst.msk [vmem:[#allocation9 + $0x60] sm:$0xff] %vm6253, %v7811
        %7858 = vst.msk [vmem:[#allocation9 + $0x98] sm:$0xff] %vm6253, %v7813
        %7859 = vst.msk [vmem:[#allocation9 + $0xd0] sm:$0xff] %vm6253, %v7815
        %7860 = vst.msk [vmem:[#allocation9 + $0x108] sm:$0xff] %vm6253, %v7817
        %7861 = vst.msk [vmem:[#allocation9 + $0x140] sm:$0xff] %vm6253, %v7819
        %7862 = vst.msk [vmem:[#allocation9 + $0x178] sm:$0xff] %vm6253, %v7821
        %7863 = vst.msk [vmem:[#allocation9 + $0x1b0] sm:$0xff] %vm6253, %v7823
        %7864 = vst.msk [vmem:[#allocation9 + $0x1e8] sm:$0xff] %vm6253, %v7825
        %7865 = vst.msk [vmem:[#allocation9 + $0x220] sm:$0xff] %vm6253, %v7827
        %7866 = vst.msk [vmem:[#allocation9 + $0x258] sm:$0xff] %vm6253, %v7829
        %7867 = vst.msk [vmem:[#allocation9 + $0x290] sm:$0xff] %vm6253, %v7831
        %7868 = vst.msk [vmem:[#allocation9 + $0x2c8] sm:$0xff] %vm6253, %v7833
        %7869 = vst.msk [vmem:[#allocation9 + $0x300] sm:$0xff] %vm6253, %v7835
        %7870 = vst.msk [vmem:[#allocation9 + $0x338] sm:$0xff] %vm6253, %v7837
        %7871 = vst.msk [vmem:[#allocation9 + $0x370] sm:$0xff] %vm6253, %v7839
        %v7872 = vld [vmem:[#allocation3 + $0x60] sm:$0xff]
        %v7873 = vld [vmem:[#allocation3 + $0x68] sm:$0xff]
        %v7874 = vld [vmem:[#allocation3 + $0x70] sm:$0xff]
        %v7875 = vld [vmem:[#allocation3 + $0x78] sm:$0xff]
        %v7876 = vld [vmem:[#allocation3 + $0x80] sm:$0xff]
        %v7877 = vld [vmem:[#allocation3 + $0x88] sm:$0xff]
        %v7878 = vld [vmem:[#allocation3 + $0x90] sm:$0xff]
        %v7879 = vld [vmem:[#allocation3 + $0x98] sm:$0xff]
        %v7880 = vld [vmem:[#allocation3 + $0xa0] sm:$0xff]
        %v7881 = vld [vmem:[#allocation3 + $0xa8] sm:$0xff]
        %v7882 = vld [vmem:[#allocation3 + $0xb0] sm:$0xff]
        %v7883 = vld [vmem:[#allocation3 + $0xb8] sm:$0xff]
        %v7884 = vld [vmem:[#allocation3 + $0xc0] sm:$0xff]
        %v7885 = vld [vmem:[#allocation3 + $0xc8] sm:$0xff]
        %v7886 = vld [vmem:[#allocation3 + $0xd0] sm:$0xff]
        %v7887 = vld [vmem:[#allocation3 + $0xd8] sm:$0xff]
        %7904 = vrot.lane.b32.xlu0 %v7872, 64
        %v7905 = vpop.permute.xlu0 %7904
        %7906 = vrot.lane.b32.xlu0 %v7873, 64
        %v7907 = vpop.permute.xlu0 %7906
        %7908 = vrot.lane.b32.xlu0 %v7874, 64
        %v7909 = vpop.permute.xlu0 %7908
        %7910 = vrot.lane.b32.xlu0 %v7875, 64
        %v7911 = vpop.permute.xlu0 %7910
        %7912 = vrot.lane.b32.xlu0 %v7876, 64
        %v7913 = vpop.permute.xlu0 %7912
        %7914 = vrot.lane.b32.xlu0 %v7877, 64
        %v7915 = vpop.permute.xlu0 %7914
        %7916 = vrot.lane.b32.xlu0 %v7878, 64
        %v7917 = vpop.permute.xlu0 %7916
        %7918 = vrot.lane.b32.xlu0 %v7879, 64
        %v7919 = vpop.permute.xlu0 %7918
        %7920 = vrot.lane.b32.xlu0 %v7880, 64
        %v7921 = vpop.permute.xlu0 %7920
        %7922 = vrot.lane.b32.xlu0 %v7881, 64
        %v7923 = vpop.permute.xlu0 %7922
        %7924 = vrot.lane.b32.xlu0 %v7882, 64
        %v7925 = vpop.permute.xlu0 %7924
        %7926 = vrot.lane.b32.xlu0 %v7883, 64
        %v7927 = vpop.permute.xlu0 %7926
        %7928 = vrot.lane.b32.xlu0 %v7884, 64
        %v7929 = vpop.permute.xlu0 %7928
        %7930 = vrot.lane.b32.xlu0 %v7885, 64
        %v7931 = vpop.permute.xlu0 %7930
        %7932 = vrot.lane.b32.xlu0 %v7886, 64
        %v7933 = vpop.permute.xlu0 %7932
        %7934 = vrot.lane.b32.xlu0 %v7887, 64
        %v7935 = vpop.permute.xlu0 %7934
        %7952 = vst.msk [vmem:[#allocation9 + $0x28] sm:$0xff] %vm6350, %v7905
        %7953 = vst.msk [vmem:[#allocation9 + $0x60] sm:$0xff] %vm6350, %v7907
        %7954 = vst.msk [vmem:[#allocation9 + $0x98] sm:$0xff] %vm6350, %v7909
        %7955 = vst.msk [vmem:[#allocation9 + $0xd0] sm:$0xff] %vm6350, %v7911
        %7956 = vst.msk [vmem:[#allocation9 + $0x108] sm:$0xff] %vm6350, %v7913
        %7957 = vst.msk [vmem:[#allocation9 + $0x140] sm:$0xff] %vm6350, %v7915
        %7958 = vst.msk [vmem:[#allocation9 + $0x178] sm:$0xff] %vm6350, %v7917
        %7959 = vst.msk [vmem:[#allocation9 + $0x1b0] sm:$0xff] %vm6350, %v7919
        %7960 = vst.msk [vmem:[#allocation9 + $0x1e8] sm:$0xff] %vm6350, %v7921
        %7961 = vst.msk [vmem:[#allocation9 + $0x220] sm:$0xff] %vm6350, %v7923
        %7962 = vst.msk [vmem:[#allocation9 + $0x258] sm:$0xff] %vm6350, %v7925
        %7963 = vst.msk [vmem:[#allocation9 + $0x290] sm:$0xff] %vm6350, %v7927
        %7964 = vst.msk [vmem:[#allocation9 + $0x2c8] sm:$0xff] %vm6350, %v7929
        %7965 = vst.msk [vmem:[#allocation9 + $0x300] sm:$0xff] %vm6350, %v7931
        %7966 = vst.msk [vmem:[#allocation9 + $0x338] sm:$0xff] %vm6350, %v7933
        %7967 = vst.msk [vmem:[#allocation9 + $0x370] sm:$0xff] %vm6350, %v7935
        %v7968 = vld [vmem:[#allocation3 + $0x61] sm:$0xff]
        %v7969 = vld [vmem:[#allocation3 + $0x69] sm:$0xff]
        %v7970 = vld [vmem:[#allocation3 + $0x71] sm:$0xff]
        %v7971 = vld [vmem:[#allocation3 + $0x79] sm:$0xff]
        %v7972 = vld [vmem:[#allocation3 + $0x81] sm:$0xff]
        %v7973 = vld [vmem:[#allocation3 + $0x89] sm:$0xff]
        %v7974 = vld [vmem:[#allocation3 + $0x91] sm:$0xff]
        %v7975 = vld [vmem:[#allocation3 + $0x99] sm:$0xff]
        %v7976 = vld [vmem:[#allocation3 + $0xa1] sm:$0xff]
        %v7977 = vld [vmem:[#allocation3 + $0xa9] sm:$0xff]
        %v7978 = vld [vmem:[#allocation3 + $0xb1] sm:$0xff]
        %v7979 = vld [vmem:[#allocation3 + $0xb9] sm:$0xff]
        %v7980 = vld [vmem:[#allocation3 + $0xc1] sm:$0xff]
        %v7981 = vld [vmem:[#allocation3 + $0xc9] sm:$0xff]
        %v7982 = vld [vmem:[#allocation3 + $0xd1] sm:$0xff]
        %v7983 = vld [vmem:[#allocation3 + $0xd9] sm:$0xff]
        %8000 = vrot.lane.b32.xlu0 %v7968, 96
        %v8001 = vpop.permute.xlu0 %8000
        %8002 = vrot.lane.b32.xlu0 %v7969, 96
        %v8003 = vpop.permute.xlu0 %8002
        %8004 = vrot.lane.b32.xlu0 %v7970, 96
        %v8005 = vpop.permute.xlu0 %8004
        %8006 = vrot.lane.b32.xlu0 %v7971, 96
        %v8007 = vpop.permute.xlu0 %8006
        %8008 = vrot.lane.b32.xlu0 %v7972, 96
        %v8009 = vpop.permute.xlu0 %8008
        %8010 = vrot.lane.b32.xlu0 %v7973, 96
        %v8011 = vpop.permute.xlu0 %8010
        %8012 = vrot.lane.b32.xlu0 %v7974, 96
        %v8013 = vpop.permute.xlu0 %8012
        %8014 = vrot.lane.b32.xlu0 %v7975, 96
        %v8015 = vpop.permute.xlu0 %8014
        %8016 = vrot.lane.b32.xlu0 %v7976, 96
        %v8017 = vpop.permute.xlu0 %8016
        %8018 = vrot.lane.b32.xlu0 %v7977, 96
        %v8019 = vpop.permute.xlu0 %8018
        %8020 = vrot.lane.b32.xlu0 %v7978, 96
        %v8021 = vpop.permute.xlu0 %8020
        %8022 = vrot.lane.b32.xlu0 %v7979, 96
        %v8023 = vpop.permute.xlu0 %8022
        %8024 = vrot.lane.b32.xlu0 %v7980, 96
        %v8025 = vpop.permute.xlu0 %8024
        %8026 = vrot.lane.b32.xlu0 %v7981, 96
        %v8027 = vpop.permute.xlu0 %8026
        %8028 = vrot.lane.b32.xlu0 %v7982, 96
        %v8029 = vpop.permute.xlu0 %8028
        %8030 = vrot.lane.b32.xlu0 %v7983, 96
        %v8031 = vpop.permute.xlu0 %8030
        %8048 = vst.msk [vmem:[#allocation9 + $0x28] sm:$0xff] %vm6447, %v8001
        %8049 = vst.msk [vmem:[#allocation9 + $0x60] sm:$0xff] %vm6447, %v8003
        %8050 = vst.msk [vmem:[#allocation9 + $0x98] sm:$0xff] %vm6447, %v8005
        %8051 = vst.msk [vmem:[#allocation9 + $0xd0] sm:$0xff] %vm6447, %v8007
        %8052 = vst.msk [vmem:[#allocation9 + $0x108] sm:$0xff] %vm6447, %v8009
        %8053 = vst.msk [vmem:[#allocation9 + $0x140] sm:$0xff] %vm6447, %v8011
        %8054 = vst.msk [vmem:[#allocation9 + $0x178] sm:$0xff] %vm6447, %v8013
        %8055 = vst.msk [vmem:[#allocation9 + $0x1b0] sm:$0xff] %vm6447, %v8015
        %8056 = vst.msk [vmem:[#allocation9 + $0x1e8] sm:$0xff] %vm6447, %v8017
        %8057 = vst.msk [vmem:[#allocation9 + $0x220] sm:$0xff] %vm6447, %v8019
        %8058 = vst.msk [vmem:[#allocation9 + $0x258] sm:$0xff] %vm6447, %v8021
        %8059 = vst.msk [vmem:[#allocation9 + $0x290] sm:$0xff] %vm6447, %v8023
        %8060 = vst.msk [vmem:[#allocation9 + $0x2c8] sm:$0xff] %vm6447, %v8025
        %8061 = vst.msk [vmem:[#allocation9 + $0x300] sm:$0xff] %vm6447, %v8027
        %8062 = vst.msk [vmem:[#allocation9 + $0x338] sm:$0xff] %vm6447, %v8029
        %8063 = vst.msk [vmem:[#allocation9 + $0x370] sm:$0xff] %vm6447, %v8031
        %v8064 = vld [vmem:[#allocation3 + $0x62] sm:$0xff]
        %v8065 = vld [vmem:[#allocation3 + $0x6a] sm:$0xff]
        %v8066 = vld [vmem:[#allocation3 + $0x72] sm:$0xff]
        %v8067 = vld [vmem:[#allocation3 + $0x7a] sm:$0xff]
        %v8068 = vld [vmem:[#allocation3 + $0x82] sm:$0xff]
        %v8069 = vld [vmem:[#allocation3 + $0x8a] sm:$0xff]
        %v8070 = vld [vmem:[#allocation3 + $0x92] sm:$0xff]
        %v8071 = vld [vmem:[#allocation3 + $0x9a] sm:$0xff]
        %v8072 = vld [vmem:[#allocation3 + $0xa2] sm:$0xff]
        %v8073 = vld [vmem:[#allocation3 + $0xaa] sm:$0xff]
        %v8074 = vld [vmem:[#allocation3 + $0xb2] sm:$0xff]
        %v8075 = vld [vmem:[#allocation3 + $0xba] sm:$0xff]
        %v8076 = vld [vmem:[#allocation3 + $0xc2] sm:$0xff]
        %v8077 = vld [vmem:[#allocation3 + $0xca] sm:$0xff]
        %v8078 = vld [vmem:[#allocation3 + $0xd2] sm:$0xff]
        %v8079 = vld [vmem:[#allocation3 + $0xda] sm:$0xff]
        %8080 = vst.msk [vmem:[#allocation9 + $0x30] sm:$0xff] %vm385, %v8064
        %8081 = vst.msk [vmem:[#allocation9 + $0x68] sm:$0xff] %vm385, %v8065
        %8082 = vst.msk [vmem:[#allocation9 + $0xa0] sm:$0xff] %vm385, %v8066
        %8083 = vst.msk [vmem:[#allocation9 + $0xd8] sm:$0xff] %vm385, %v8067
        %8084 = vst.msk [vmem:[#allocation9 + $0x110] sm:$0xff] %vm385, %v8068
        %8085 = vst.msk [vmem:[#allocation9 + $0x148] sm:$0xff] %vm385, %v8069
        %8086 = vst.msk [vmem:[#allocation9 + $0x180] sm:$0xff] %vm385, %v8070
        %8087 = vst.msk [vmem:[#allocation9 + $0x1b8] sm:$0xff] %vm385, %v8071
        %8088 = vst.msk [vmem:[#allocation9 + $0x1f0] sm:$0xff] %vm385, %v8072
        %8089 = vst.msk [vmem:[#allocation9 + $0x228] sm:$0xff] %vm385, %v8073
        %8090 = vst.msk [vmem:[#allocation9 + $0x260] sm:$0xff] %vm385, %v8074
        %8091 = vst.msk [vmem:[#allocation9 + $0x298] sm:$0xff] %vm385, %v8075
        %8092 = vst.msk [vmem:[#allocation9 + $0x2d0] sm:$0xff] %vm385, %v8076
        %8093 = vst.msk [vmem:[#allocation9 + $0x308] sm:$0xff] %vm385, %v8077
        %8094 = vst.msk [vmem:[#allocation9 + $0x340] sm:$0xff] %vm385, %v8078
        %8095 = vst.msk [vmem:[#allocation9 + $0x378] sm:$0xff] %vm385, %v8079
        %v8096 = vld [vmem:[#allocation9] sm:$0xff]
        %v8097 = vld [vmem:[#allocation9 + $0x8] sm:$0xff]
        %v8098 = vld [vmem:[#allocation9 + $0x10] sm:$0xff]
        %v8099 = vld [vmem:[#allocation9 + $0x18] sm:$0xff]
        %v8100 = vld [vmem:[#allocation9 + $0x20] sm:$0xff]
        %v8101 = vld [vmem:[#allocation9 + $0x28] sm:$0xff]
        %v8102 = vld [vmem:[#allocation9 + $0x30] sm:$0xff]
        %v8103 = vld [vmem:[#allocation9 + $0x38] sm:$0xff]
        %v8104 = vld [vmem:[#allocation9 + $0x40] sm:$0xff]
        %v8105 = vld [vmem:[#allocation9 + $0x48] sm:$0xff]
        %v8106 = vld [vmem:[#allocation9 + $0x50] sm:$0xff]
        %v8107 = vld [vmem:[#allocation9 + $0x58] sm:$0xff]
        %v8108 = vld [vmem:[#allocation9 + $0x60] sm:$0xff]
        %v8109 = vld [vmem:[#allocation9 + $0x68] sm:$0xff]
        %v8110 = vld [vmem:[#allocation9 + $0x70] sm:$0xff]
        %v8111 = vld [vmem:[#allocation9 + $0x78] sm:$0xff]
        %v8112 = vld [vmem:[#allocation9 + $0x80] sm:$0xff]
        %v8113 = vld [vmem:[#allocation9 + $0x88] sm:$0xff]
        %v8114 = vld [vmem:[#allocation9 + $0x90] sm:$0xff]
        %v8115 = vld [vmem:[#allocation9 + $0x98] sm:$0xff]
        %v8116 = vld [vmem:[#allocation9 + $0xa0] sm:$0xff]
        %v8117 = vld [vmem:[#allocation9 + $0xa8] sm:$0xff]
        %v8118 = vld [vmem:[#allocation9 + $0xb0] sm:$0xff]
        %v8119 = vld [vmem:[#allocation9 + $0xb8] sm:$0xff]
        %v8120 = vld [vmem:[#allocation9 + $0xc0] sm:$0xff]
        %v8121 = vld [vmem:[#allocation9 + $0xc8] sm:$0xff]
        %v8122 = vld [vmem:[#allocation9 + $0xd0] sm:$0xff]
        %v8123 = vld [vmem:[#allocation9 + $0xd8] sm:$0xff]
        %v8124 = vld [vmem:[#allocation9 + $0xe0] sm:$0xff]
        %v8125 = vld [vmem:[#allocation9 + $0xe8] sm:$0xff]
        %v8126 = vld [vmem:[#allocation9 + $0xf0] sm:$0xff]
        %v8127 = vld [vmem:[#allocation9 + $0xf8] sm:$0xff]
        %v8128 = vld [vmem:[#allocation9 + $0x100] sm:$0xff]
        %v8129 = vld [vmem:[#allocation9 + $0x108] sm:$0xff]
        %v8130 = vld [vmem:[#allocation9 + $0x110] sm:$0xff]
        %v8131 = vld [vmem:[#allocation9 + $0x118] sm:$0xff]
        %v8132 = vld [vmem:[#allocation9 + $0x120] sm:$0xff]
        %v8133 = vld [vmem:[#allocation9 + $0x128] sm:$0xff]
        %v8134 = vld [vmem:[#allocation9 + $0x130] sm:$0xff]
        %v8135 = vld [vmem:[#allocation9 + $0x138] sm:$0xff]
        %v8136 = vld [vmem:[#allocation9 + $0x140] sm:$0xff]
        %v8137 = vld [vmem:[#allocation9 + $0x148] sm:$0xff]
        %v8138 = vld [vmem:[#allocation9 + $0x150] sm:$0xff]
        %v8139 = vld [vmem:[#allocation9 + $0x158] sm:$0xff]
        %v8140 = vld [vmem:[#allocation9 + $0x160] sm:$0xff]
        %v8141 = vld [vmem:[#allocation9 + $0x168] sm:$0xff]
        %v8142 = vld [vmem:[#allocation9 + $0x170] sm:$0xff]
        %v8143 = vld [vmem:[#allocation9 + $0x178] sm:$0xff]
        %v8144 = vld [vmem:[#allocation9 + $0x180] sm:$0xff]
        %v8145 = vld [vmem:[#allocation9 + $0x188] sm:$0xff]
        %v8146 = vld [vmem:[#allocation9 + $0x190] sm:$0xff]
        %v8147 = vld [vmem:[#allocation9 + $0x198] sm:$0xff]
        %v8148 = vld [vmem:[#allocation9 + $0x1a0] sm:$0xff]
        %v8149 = vld [vmem:[#allocation9 + $0x1a8] sm:$0xff]
        %v8150 = vld [vmem:[#allocation9 + $0x1b0] sm:$0xff]
        %v8151 = vld [vmem:[#allocation9 + $0x1b8] sm:$0xff]
        %v8152 = vld [vmem:[#allocation9 + $0x1c0] sm:$0xff]
        %v8153 = vld [vmem:[#allocation9 + $0x1c8] sm:$0xff]
        %v8154 = vld [vmem:[#allocation9 + $0x1d0] sm:$0xff]
        %v8155 = vld [vmem:[#allocation9 + $0x1d8] sm:$0xff]
        %v8156 = vld [vmem:[#allocation9 + $0x1e0] sm:$0xff]
        %v8157 = vld [vmem:[#allocation9 + $0x1e8] sm:$0xff]
        %v8158 = vld [vmem:[#allocation9 + $0x1f0] sm:$0xff]
        %v8159 = vld [vmem:[#allocation9 + $0x1f8] sm:$0xff]
        %v8160 = vld [vmem:[#allocation9 + $0x200] sm:$0xff]
        %v8161 = vld [vmem:[#allocation9 + $0x208] sm:$0xff]
        %v8162 = vld [vmem:[#allocation9 + $0x210] sm:$0xff]
        %v8163 = vld [vmem:[#allocation9 + $0x218] sm:$0xff]
        %v8164 = vld [vmem:[#allocation9 + $0x220] sm:$0xff]
        %v8165 = vld [vmem:[#allocation9 + $0x228] sm:$0xff]
        %v8166 = vld [vmem:[#allocation9 + $0x230] sm:$0xff]
        %v8167 = vld [vmem:[#allocation9 + $0x238] sm:$0xff]
        %v8168 = vld [vmem:[#allocation9 + $0x240] sm:$0xff]
        %v8169 = vld [vmem:[#allocation9 + $0x248] sm:$0xff]
        %v8170 = vld [vmem:[#allocation9 + $0x250] sm:$0xff]
        %v8171 = vld [vmem:[#allocation9 + $0x258] sm:$0xff]
        %v8172 = vld [vmem:[#allocation9 + $0x260] sm:$0xff]
        %v8173 = vld [vmem:[#allocation9 + $0x268] sm:$0xff]
        %v8174 = vld [vmem:[#allocation9 + $0x270] sm:$0xff]
        %v8175 = vld [vmem:[#allocation9 + $0x278] sm:$0xff]
        %v8176 = vld [vmem:[#allocation9 + $0x280] sm:$0xff]
        %v8177 = vld [vmem:[#allocation9 + $0x288] sm:$0xff]
        %v8178 = vld [vmem:[#allocation9 + $0x290] sm:$0xff]
        %v8179 = vld [vmem:[#allocation9 + $0x298] sm:$0xff]
        %v8180 = vld [vmem:[#allocation9 + $0x2a0] sm:$0xff]
        %v8181 = vld [vmem:[#allocation9 + $0x2a8] sm:$0xff]
        %v8182 = vld [vmem:[#allocation9 + $0x2b0] sm:$0xff]
        %v8183 = vld [vmem:[#allocation9 + $0x2b8] sm:$0xff]
        %v8184 = vld [vmem:[#allocation9 + $0x2c0] sm:$0xff]
        %v8185 = vld [vmem:[#allocation9 + $0x2c8] sm:$0xff]
        %v8186 = vld [vmem:[#allocation9 + $0x2d0] sm:$0xff]
        %v8187 = vld [vmem:[#allocation9 + $0x2d8] sm:$0xff]
        %v8188 = vld [vmem:[#allocation9 + $0x2e0] sm:$0xff]
        %v8189 = vld [vmem:[#allocation9 + $0x2e8] sm:$0xff]
        %v8190 = vld [vmem:[#allocation9 + $0x2f0] sm:$0xff]
        %v8191 = vld [vmem:[#allocation9 + $0x2f8] sm:$0xff]
        %v8192 = vld [vmem:[#allocation9 + $0x300] sm:$0xff]
        %v8193 = vld [vmem:[#allocation9 + $0x308] sm:$0xff]
        %v8194 = vld [vmem:[#allocation9 + $0x310] sm:$0xff]
        %v8195 = vld [vmem:[#allocation9 + $0x318] sm:$0xff]
        %v8196 = vld [vmem:[#allocation9 + $0x320] sm:$0xff]
        %v8197 = vld [vmem:[#allocation9 + $0x328] sm:$0xff]
        %v8198 = vld [vmem:[#allocation9 + $0x330] sm:$0xff]
        %v8199 = vld [vmem:[#allocation9 + $0x338] sm:$0xff]
        %v8200 = vld [vmem:[#allocation9 + $0x340] sm:$0xff]
        %v8201 = vld [vmem:[#allocation9 + $0x348] sm:$0xff]
        %v8202 = vld [vmem:[#allocation9 + $0x350] sm:$0xff]
        %v8203 = vld [vmem:[#allocation9 + $0x358] sm:$0xff]
        %v8204 = vld [vmem:[#allocation9 + $0x360] sm:$0xff]
        %v8205 = vld [vmem:[#allocation9 + $0x368] sm:$0xff]
        %v8206 = vld [vmem:[#allocation9 + $0x370] sm:$0xff]
        %v8207 = vld [vmem:[#allocation9 + $0x378] sm:$0xff]
        %v8208 = vpack.c.bf16 %v8103, %v8096
        %v8209 = vpack.c.bf16 %v8104, %v8097
        %v8210 = vpack.c.bf16 %v8105, %v8098
        %v8211 = vpack.c.bf16 %v8106, %v8099
        %v8212 = vpack.c.bf16 %v8107, %v8100
        %v8213 = vpack.c.bf16 %v8108, %v8101
        %v8214 = vpack.c.bf16 %v8109, %v8102
        %v8215 = vpack.c.bf16 %v8117, %v8110
        %v8216 = vpack.c.bf16 %v8118, %v8111
        %v8217 = vpack.c.bf16 %v8119, %v8112
        %v8218 = vpack.c.bf16 %v8120, %v8113
        %v8219 = vpack.c.bf16 %v8121, %v8114
        %v8220 = vpack.c.bf16 %v8122, %v8115
        %v8221 = vpack.c.bf16 %v8123, %v8116
        %v8222 = vpack.c.bf16 %v8131, %v8124
        %v8223 = vpack.c.bf16 %v8132, %v8125
        %v8224 = vpack.c.bf16 %v8133, %v8126
        %v8225 = vpack.c.bf16 %v8134, %v8127
        %v8226 = vpack.c.bf16 %v8135, %v8128
        %v8227 = vpack.c.bf16 %v8136, %v8129
        %v8228 = vpack.c.bf16 %v8137, %v8130
        %v8229 = vpack.c.bf16 %v8145, %v8138
        %v8230 = vpack.c.bf16 %v8146, %v8139
        %v8231 = vpack.c.bf16 %v8147, %v8140
        %v8232 = vpack.c.bf16 %v8148, %v8141
        %v8233 = vpack.c.bf16 %v8149, %v8142
        %v8234 = vpack.c.bf16 %v8150, %v8143
        %v8235 = vpack.c.bf16 %v8151, %v8144
        %v8236 = vpack.c.bf16 %v8159, %v8152
        %v8237 = vpack.c.bf16 %v8160, %v8153
        %v8238 = vpack.c.bf16 %v8161, %v8154
        %v8239 = vpack.c.bf16 %v8162, %v8155
        %v8240 = vpack.c.bf16 %v8163, %v8156
        %v8241 = vpack.c.bf16 %v8164, %v8157
        %v8242 = vpack.c.bf16 %v8165, %v8158
        %v8243 = vpack.c.bf16 %v8173, %v8166
        %v8244 = vpack.c.bf16 %v8174, %v8167
        %v8245 = vpack.c.bf16 %v8175, %v8168
        %v8246 = vpack.c.bf16 %v8176, %v8169
        %v8247 = vpack.c.bf16 %v8177, %v8170
        %v8248 = vpack.c.bf16 %v8178, %v8171
        %v8249 = vpack.c.bf16 %v8179, %v8172
        %v8250 = vpack.c.bf16 %v8187, %v8180
        %v8251 = vpack.c.bf16 %v8188, %v8181
        %v8252 = vpack.c.bf16 %v8189, %v8182
        %v8253 = vpack.c.bf16 %v8190, %v8183
        %v8254 = vpack.c.bf16 %v8191, %v8184
        %v8255 = vpack.c.bf16 %v8192, %v8185
        %v8256 = vpack.c.bf16 %v8193, %v8186
        %v8257 = vpack.c.bf16 %v8201, %v8194
        %v8258 = vpack.c.bf16 %v8202, %v8195
        %v8259 = vpack.c.bf16 %v8203, %v8196
        %v8260 = vpack.c.bf16 %v8204, %v8197
        %v8261 = vpack.c.bf16 %v8205, %v8198
        %v8262 = vpack.c.bf16 %v8206, %v8199
        %v8263 = vpack.c.bf16 %v8207, %v8200
        %v8264 = vld [vmem:[%s5] sm:$0xf]
        %v8265 = vld [vmem:[%s5 + $0x4] sm:$0xf]
        %v8266 = vld [vmem:[%s5 + $0x8] sm:$0xf]
        %v8267 = vld [vmem:[%s5 + $0xc] sm:$0xf]
        %v8268 = vld [vmem:[%s5 + $0x10] sm:$0xf]
        %v8269 = vld [vmem:[%s5 + $0x14] sm:$0xf]
        %v8270 = vld [vmem:[%s5 + $0x18] sm:$0xf]
        %v8271 = vld [vmem:[%s5 + $0x1c] sm:$0xf]
        %v8272 = vld [vmem:[%s5 + $0x20] sm:$0xf]
        %v8273 = vld [vmem:[%s5 + $0x24] sm:$0xf]
        %v8274 = vld [vmem:[%s5 + $0x28] sm:$0xf]
        %v8275 = vld [vmem:[%s5 + $0x2c] sm:$0xf]
        %v8276 = vld [vmem:[%s5 + $0x30] sm:$0xf]
        %v8277 = vld [vmem:[%s5 + $0x34] sm:$0xf]
        %v8278 = vld [vmem:[%s5 + $0x38] sm:$0xf]
        %v8279 = vld [vmem:[%s5 + $0x3c] sm:$0xf]
        %v8280 = vld [vmem:[%s5 + $0x40] sm:$0xf]
        %v8281 = vld [vmem:[%s5 + $0x44] sm:$0xf]
        %v8282 = vld [vmem:[%s5 + $0x48] sm:$0xf]
        %v8283 = vld [vmem:[%s5 + $0x4c] sm:$0xf]
        %v8284 = vld [vmem:[%s5 + $0x50] sm:$0xf]
        %v8285 = vld [vmem:[%s5 + $0x54] sm:$0xf]
        %v8286 = vld [vmem:[%s5 + $0x58] sm:$0xf]
        %v8287 = vld [vmem:[%s5 + $0x5c] sm:$0xf]
        %v8288 = vld [vmem:[%s5 + $0x60] sm:$0xf]
        %v8289 = vld [vmem:[%s5 + $0x64] sm:$0xf]
        %v8290 = vld [vmem:[%s5 + $0x68] sm:$0xf]
        %v8291 = vld [vmem:[%s5 + $0x6c] sm:$0xf]
        %v8292 = vld [vmem:[%s5 + $0x70] sm:$0xf]
        %v8293 = vld [vmem:[%s5 + $0x74] sm:$0xf]
        %v8294 = vld [vmem:[%s5 + $0x78] sm:$0xf]
        %v8295 = vld [vmem:[%s5 + $0x7c] sm:$0xf]
        %v8296 = vld [vmem:[%s5 + $0x80] sm:$0xf]
        %v8297 = vld [vmem:[%s5 + $0x84] sm:$0xf]
        %v8298 = vld [vmem:[%s5 + $0x88] sm:$0xf]
        %v8299 = vld [vmem:[%s5 + $0x8c] sm:$0xf]
        %v8300 = vld [vmem:[%s5 + $0x90] sm:$0xf]
        %v8301 = vld [vmem:[%s5 + $0x94] sm:$0xf]
        %v8302 = vld [vmem:[%s5 + $0x98] sm:$0xf]
        %v8303 = vld [vmem:[%s5 + $0x9c] sm:$0xf]
        %v8304 = vld [vmem:[%s5 + $0xa0] sm:$0xf]
        %v8305 = vld [vmem:[%s5 + $0xa4] sm:$0xf]
        %v8306 = vld [vmem:[%s5 + $0xa8] sm:$0xf]
        %v8307 = vld [vmem:[%s5 + $0xac] sm:$0xf]
        %v8308 = vld [vmem:[%s5 + $0xb0] sm:$0xf]
        %v8309 = vld [vmem:[%s5 + $0xb4] sm:$0xf]
        %v8310 = vld [vmem:[%s5 + $0xb8] sm:$0xf]
        %v8311 = vld [vmem:[%s5 + $0xbc] sm:$0xf]
        %v8312 = vld [vmem:[%s5 + $0xc0] sm:$0xf]
        %v8313 = vld [vmem:[%s5 + $0xc4] sm:$0xf]
        %v8314 = vld [vmem:[%s5 + $0xc8] sm:$0xf]
        %v8315 = vld [vmem:[%s5 + $0xcc] sm:$0xf]
        %v8316 = vld [vmem:[%s5 + $0xd0] sm:$0xf]
        %v8317 = vld [vmem:[%s5 + $0xd4] sm:$0xf]
        %v8318 = vld [vmem:[%s5 + $0xd8] sm:$0xf]
        %v8319 = vld [vmem:[%s5 + $0xdc] sm:$0xf]
        %v8320 = vld [vmem:[%s5 + $0xe0] sm:$0xf]
        %v8321 = vld [vmem:[%s5 + $0xe4] sm:$0xf]
        %v8322 = vld [vmem:[%s5 + $0xe8] sm:$0xf]
        %v8323 = vld [vmem:[%s5 + $0xec] sm:$0xf]
        %v8324 = vld [vmem:[%s5 + $0xf0] sm:$0xf]
        %v8325 = vld [vmem:[%s5 + $0xf4] sm:$0xf]
        %v8326 = vld [vmem:[%s5 + $0xf8] sm:$0xf]
        %v8327 = vld [vmem:[%s5 + $0xfc] sm:$0xf]
        %v8328 = vld [vmem:[%s5 + $0x100] sm:$0xf]
        %v8329 = vld [vmem:[%s5 + $0x104] sm:$0xf]
        %v8330 = vld [vmem:[%s5 + $0x108] sm:$0xf]
        %v8331 = vld [vmem:[%s5 + $0x10c] sm:$0xf]
        %v8332 = vld [vmem:[%s5 + $0x110] sm:$0xf]
        %v8333 = vld [vmem:[%s5 + $0x114] sm:$0xf]
        %v8334 = vld [vmem:[%s5 + $0x118] sm:$0xf]
        %v8335 = vld [vmem:[%s5 + $0x11c] sm:$0xf]
        %v8336 = vld [vmem:[%s5 + $0x120] sm:$0xf]
        %v8337 = vld [vmem:[%s5 + $0x124] sm:$0xf]
        %v8338 = vld [vmem:[%s5 + $0x128] sm:$0xf]
        %v8339 = vld [vmem:[%s5 + $0x12c] sm:$0xf]
        %v8340 = vld [vmem:[%s5 + $0x130] sm:$0xf]
        %v8341 = vld [vmem:[%s5 + $0x134] sm:$0xf]
        %v8342 = vld [vmem:[%s5 + $0x138] sm:$0xf]
        %v8343 = vld [vmem:[%s5 + $0x13c] sm:$0xf]
        %v8344 = vld [vmem:[%s5 + $0x140] sm:$0xf]
        %v8345 = vld [vmem:[%s5 + $0x144] sm:$0xf]
        %v8346 = vld [vmem:[%s5 + $0x148] sm:$0xf]
        %v8347 = vld [vmem:[%s5 + $0x14c] sm:$0xf]
        %v8348 = vld [vmem:[%s5 + $0x150] sm:$0xf]
        %v8349 = vld [vmem:[%s5 + $0x154] sm:$0xf]
        %v8350 = vld [vmem:[%s5 + $0x158] sm:$0xf]
        %v8351 = vld [vmem:[%s5 + $0x15c] sm:$0xf]
        %v8352 = vld [vmem:[%s5 + $0x160] sm:$0xf]
        %v8353 = vld [vmem:[%s5 + $0x164] sm:$0xf]
        %v8354 = vld [vmem:[%s5 + $0x168] sm:$0xf]
        %v8355 = vld [vmem:[%s5 + $0x16c] sm:$0xf]
        %v8356 = vld [vmem:[%s5 + $0x170] sm:$0xf]
        %v8357 = vld [vmem:[%s5 + $0x174] sm:$0xf]
        %v8358 = vld [vmem:[%s5 + $0x178] sm:$0xf]
        %v8359 = vld [vmem:[%s5 + $0x17c] sm:$0xf]
        %v8360 = vld [vmem:[%s5 + $0x180] sm:$0xf]
        %v8361 = vld [vmem:[%s5 + $0x184] sm:$0xf]
        %v8362 = vld [vmem:[%s5 + $0x188] sm:$0xf]
        %v8363 = vld [vmem:[%s5 + $0x18c] sm:$0xf]
        %v8364 = vld [vmem:[%s6] sm:$0x1]
        %v8366 = vperm.slane %v8364, 0
        %v8468 = vunpack.c.l.b16 %v8264
        %v8469 = vunpack.c.l.b16 %v8265
        %v8470 = vunpack.c.l.b16 %v8266
        %v8471 = vunpack.c.l.b16 %v8267
        %v8472 = vunpack.c.l.b16 %v8268
        %v8473 = vunpack.c.l.b16 %v8269
        %v8474 = vunpack.c.l.b16 %v8270
        %v8475 = vunpack.c.l.b16 %v8271
        %v8476 = vunpack.c.l.b16 %v8272
        %v8477 = vunpack.c.l.b16 %v8273
        %v8478 = vunpack.c.l.b16 %v8274
        %v8479 = vunpack.c.l.b16 %v8275
        %v8480 = vunpack.c.l.b16 %v8276
        %v8481 = vunpack.c.l.b16 %v8277
        %v8482 = vunpack.c.l.b16 %v8278
        %v8483 = vunpack.c.l.b16 %v8279
        %v8484 = vunpack.c.l.b16 %v8280
        %v8485 = vunpack.c.l.b16 %v8281
        %v8486 = vunpack.c.l.b16 %v8282
        %v8487 = vunpack.c.l.b16 %v8283
        %v8488 = vunpack.c.l.b16 %v8284
        %v8489 = vunpack.c.l.b16 %v8285
        %v8490 = vunpack.c.l.b16 %v8286
        %v8491 = vunpack.c.l.b16 %v8287
        %v8492 = vunpack.c.l.b16 %v8288
        %v8493 = vunpack.c.l.b16 %v8289
        %v8494 = vunpack.c.l.b16 %v8290
        %v8495 = vunpack.c.l.b16 %v8291
        %v8496 = vunpack.c.l.b16 %v8292
        %v8497 = vunpack.c.l.b16 %v8293
        %v8498 = vunpack.c.l.b16 %v8294
        %v8499 = vunpack.c.l.b16 %v8295
        %v8500 = vunpack.c.l.b16 %v8296
        %v8501 = vunpack.c.l.b16 %v8297
        %v8502 = vunpack.c.l.b16 %v8298
        %v8503 = vunpack.c.l.b16 %v8299
        %v8504 = vunpack.c.l.b16 %v8300
        %v8505 = vunpack.c.l.b16 %v8301
        %v8506 = vunpack.c.l.b16 %v8302
        %v8507 = vunpack.c.l.b16 %v8303
        %v8508 = vunpack.c.l.b16 %v8304
        %v8509 = vunpack.c.l.b16 %v8305
        %v8510 = vunpack.c.l.b16 %v8306
        %v8511 = vunpack.c.l.b16 %v8307
        %v8512 = vunpack.c.l.b16 %v8308
        %v8513 = vunpack.c.l.b16 %v8309
        %v8514 = vunpack.c.l.b16 %v8310
        %v8515 = vunpack.c.l.b16 %v8311
        %v8516 = vunpack.c.l.b16 %v8312
        %v8517 = vunpack.c.l.b16 %v8313
        %v8518 = vunpack.c.l.b16 %v8314
        %v8519 = vunpack.c.l.b16 %v8315
        %v8520 = vunpack.c.l.b16 %v8316
        %v8521 = vunpack.c.l.b16 %v8317
        %v8522 = vunpack.c.l.b16 %v8318
        %v8523 = vunpack.c.l.b16 %v8319
        %v8524 = vunpack.c.l.b16 %v8320
        %v8525 = vunpack.c.l.b16 %v8321
        %v8526 = vunpack.c.l.b16 %v8322
        %v8527 = vunpack.c.l.b16 %v8323
        %v8528 = vunpack.c.l.b16 %v8324
        %v8529 = vunpack.c.l.b16 %v8325
        %v8530 = vunpack.c.l.b16 %v8326
        %v8531 = vunpack.c.l.b16 %v8327
        %v8532 = vunpack.c.l.b16 %v8328
        %v8533 = vunpack.c.l.b16 %v8329
        %v8534 = vunpack.c.l.b16 %v8330
        %v8535 = vunpack.c.l.b16 %v8331
        %v8536 = vunpack.c.l.b16 %v8332
        %v8537 = vunpack.c.l.b16 %v8333
        %v8538 = vunpack.c.l.b16 %v8334
        %v8539 = vunpack.c.l.b16 %v8335
        %v8540 = vunpack.c.l.b16 %v8336
        %v8541 = vunpack.c.l.b16 %v8337
        %v8542 = vunpack.c.l.b16 %v8338
        %v8543 = vunpack.c.l.b16 %v8339
        %v8544 = vunpack.c.l.b16 %v8340
        %v8545 = vunpack.c.l.b16 %v8341
        %v8546 = vunpack.c.l.b16 %v8342
        %v8547 = vunpack.c.l.b16 %v8343
        %v8548 = vunpack.c.l.b16 %v8344
        %v8549 = vunpack.c.l.b16 %v8345
        %v8550 = vunpack.c.l.b16 %v8346
        %v8551 = vunpack.c.l.b16 %v8347
        %v8552 = vunpack.c.l.b16 %v8348
        %v8553 = vunpack.c.l.b16 %v8349
        %v8554 = vunpack.c.l.b16 %v8350
        %v8555 = vunpack.c.l.b16 %v8351
        %v8556 = vunpack.c.l.b16 %v8352
        %v8557 = vunpack.c.l.b16 %v8353
        %v8558 = vunpack.c.l.b16 %v8354
        %v8559 = vunpack.c.l.b16 %v8355
        %v8560 = vunpack.c.l.b16 %v8356
        %v8561 = vunpack.c.l.b16 %v8357
        %v8562 = vunpack.c.l.b16 %v8358
        %v8563 = vunpack.c.l.b16 %v8359
        %v8564 = vunpack.c.l.b16 %v8360
        %v8565 = vunpack.c.l.b16 %v8361
        %v8566 = vunpack.c.l.b16 %v8362
        %v8567 = vunpack.c.l.b16 %v8363
        %v8568 = vpack.c.b16 %v8469, %v8468
        %v8569 = vpack.c.b16 %v8471, %v8470
        %v8570 = vpack.c.b16 %v8473, %v8472
        %v8571 = vpack.c.b16 %v8475, %v8474
        %v8572 = vpack.c.b16 %v8477, %v8476
        %v8573 = vpack.c.b16 %v8479, %v8478
        %v8574 = vpack.c.b16 %v8481, %v8480
        %v8575 = vpack.c.b16 %v8483, %v8482
        %v8576 = vpack.c.b16 %v8485, %v8484
        %v8577 = vpack.c.b16 %v8487, %v8486
        %v8578 = vpack.c.b16 %v8489, %v8488
        %v8579 = vpack.c.b16 %v8491, %v8490
        %v8580 = vpack.c.b16 %v8493, %v8492
        %v8581 = vpack.c.b16 %v8495, %v8494
        %v8582 = vpack.c.b16 %v8497, %v8496
        %v8583 = vpack.c.b16 %v8499, %v8498
        %v8584 = vpack.c.b16 %v8501, %v8500
        %v8585 = vpack.c.b16 %v8503, %v8502
        %v8586 = vpack.c.b16 %v8505, %v8504
        %v8587 = vpack.c.b16 %v8507, %v8506
        %v8588 = vpack.c.b16 %v8509, %v8508
        %v8589 = vpack.c.b16 %v8511, %v8510
        %v8590 = vpack.c.b16 %v8513, %v8512
        %v8591 = vpack.c.b16 %v8515, %v8514
        %v8592 = vpack.c.b16 %v8517, %v8516
        %v8593 = vpack.c.b16 %v8519, %v8518
        %v8594 = vpack.c.b16 %v8521, %v8520
        %v8595 = vpack.c.b16 %v8523, %v8522
        %v8596 = vpack.c.b16 %v8525, %v8524
        %v8597 = vpack.c.b16 %v8527, %v8526
        %v8598 = vpack.c.b16 %v8529, %v8528
        %v8599 = vpack.c.b16 %v8531, %v8530
        %v8600 = vpack.c.b16 %v8533, %v8532
        %v8601 = vpack.c.b16 %v8535, %v8534
        %v8602 = vpack.c.b16 %v8537, %v8536
        %v8603 = vpack.c.b16 %v8539, %v8538
        %v8604 = vpack.c.b16 %v8541, %v8540
        %v8605 = vpack.c.b16 %v8543, %v8542
        %v8606 = vpack.c.b16 %v8545, %v8544
        %v8607 = vpack.c.b16 %v8547, %v8546
        %v8608 = vpack.c.b16 %v8549, %v8548
        %v8609 = vpack.c.b16 %v8551, %v8550
        %v8610 = vpack.c.b16 %v8553, %v8552
        %v8611 = vpack.c.b16 %v8555, %v8554
        %v8612 = vpack.c.b16 %v8557, %v8556
        %v8613 = vpack.c.b16 %v8559, %v8558
        %v8614 = vpack.c.b16 %v8561, %v8560
        %v8615 = vpack.c.b16 %v8563, %v8562
        %v8616 = vpack.c.b16 %v8565, %v8564
        %v8617 = vpack.c.b16 %v8567, %v8566
        %v8669 = vsel %vm385, %v8214, 0
        %v8672 = vsel %vm385, %v8221, 0
        %v8675 = vsel %vm385, %v8228, 0
        %v8678 = vsel %vm385, %v8235, 0
        %v8681 = vsel %vm385, %v8242, 0
        %v8684 = vsel %vm385, %v8249, 0
        %v8687 = vsel %vm385, %v8256, 0
        %v8690 = vsel %vm385, %v8263, 0
        %8692 = vmatpush.bf16.msra.mxu0 %v8575
        %8693 = vmatpush.bf16.msra.mxu0 %v8574
        %8694 = vmatpush.bf16.msra.mxu0 %v8573
        %8695 = vmatpush.bf16.msra.mxu0 %v8572
        %8696 = vmatpush.bf16.msra.mxu0 %v8571
        %8697 = vmatpush.bf16.msra.mxu0 %v8570
        %8698 = vmatpush.bf16.msra.mxu0 %v8569
        %8699 = vmatpush.bf16.msra.mxu0 %v8568
        %8700 = vmatmul.bf16.gmra.mxu0 %v8208
        %v8701 = vpop.f32.mrf.mxu0
        %v8702 = vadd.f32 %v8366, %v8701
        %v8703 = vpop.f32.mrf.mxu0
        %v8704 = vadd.f32 %v8366, %v8703
        %8705 = vmatmul.bf16.gmra.mxu0 %v8215
        %v8706 = vpop.f32.mrf.mxu0
        %v8707 = vadd.f32 %v8366, %v8706
        %v8708 = vpop.f32.mrf.mxu0
        %v8709 = vadd.f32 %v8366, %v8708
        %8710 = vmatmul.bf16.gmra.mxu0 %v8222
        %v8711 = vpop.f32.mrf.mxu0
        %v8712 = vadd.f32 %v8366, %v8711
        %v8713 = vpop.f32.mrf.mxu0
        %v8714 = vadd.f32 %v8366, %v8713
        %8715 = vmatmul.bf16.gmra.mxu0 %v8229
        %v8716 = vpop.f32.mrf.mxu0
        %v8717 = vadd.f32 %v8366, %v8716
        %v8718 = vpop.f32.mrf.mxu0
        %v8719 = vadd.f32 %v8366, %v8718
        %8720 = vmatmul.bf16.gmra.mxu0 %v8236
        %v8721 = vpop.f32.mrf.mxu0
        %v8722 = vadd.f32 %v8366, %v8721
        %v8723 = vpop.f32.mrf.mxu0
        %v8724 = vadd.f32 %v8366, %v8723
        %8725 = vmatmul.bf16.gmra.mxu0 %v8243
        %v8726 = vpop.f32.mrf.mxu0
        %v8727 = vadd.f32 %v8366, %v8726
        %v8728 = vpop.f32.mrf.mxu0
        %v8729 = vadd.f32 %v8366, %v8728
        %8730 = vmatmul.bf16.gmra.mxu0 %v8250
        %v8731 = vpop.f32.mrf.mxu0
        %v8732 = vadd.f32 %v8366, %v8731
        %v8733 = vpop.f32.mrf.mxu0
        %v8734 = vadd.f32 %v8366, %v8733
        %8735 = vmatmul.bf16.gmra.mxu0 %v8257
        %v8736 = vpop.f32.mrf.mxu0
        %v8737 = vadd.f32 %v8366, %v8736
        %v8738 = vpop.f32.mrf.mxu0
        %v8739 = vadd.f32 %v8366, %v8738
        %8740 = vdwg.mxu0
        %8741 = vmatpush.bf16.msra.mxu0 %v8583
        %8742 = vmatpush.bf16.msra.mxu0 %v8582
        %8743 = vmatpush.bf16.msra.mxu0 %v8581
        %8744 = vmatpush.bf16.msra.mxu0 %v8580
        %8745 = vmatpush.bf16.msra.mxu0 %v8579
        %8746 = vmatpush.bf16.msra.mxu0 %v8578
        %8747 = vmatpush.bf16.msra.mxu0 %v8577
        %8748 = vmatpush.bf16.msra.mxu0 %v8576
        %8749 = vmatmul.bf16.gmra.mxu0 %v8209
        %v8750 = vpop.f32.mrf.mxu0
        %v8751 = vadd.f32 %v8702, %v8750
        %v8752 = vpop.f32.mrf.mxu0
        %v8753 = vadd.f32 %v8704, %v8752
        %8754 = vmatmul.bf16.gmra.mxu0 %v8216
        %v8755 = vpop.f32.mrf.mxu0
        %v8756 = vadd.f32 %v8707, %v8755
        %v8757 = vpop.f32.mrf.mxu0
        %v8758 = vadd.f32 %v8709, %v8757
        %8759 = vmatmul.bf16.gmra.mxu0 %v8223
        %v8760 = vpop.f32.mrf.mxu0
        %v8761 = vadd.f32 %v8712, %v8760
        %v8762 = vpop.f32.mrf.mxu0
        %v8763 = vadd.f32 %v8714, %v8762
        %8764 = vmatmul.bf16.gmra.mxu0 %v8230
        %v8765 = vpop.f32.mrf.mxu0
        %v8766 = vadd.f32 %v8717, %v8765
        %v8767 = vpop.f32.mrf.mxu0
        %v8768 = vadd.f32 %v8719, %v8767
        %8769 = vmatmul.bf16.gmra.mxu0 %v8237
        %v8770 = vpop.f32.mrf.mxu0
        %v8771 = vadd.f32 %v8722, %v8770
        %v8772 = vpop.f32.mrf.mxu0
        %v8773 = vadd.f32 %v8724, %v8772
        %8774 = vmatmul.bf16.gmra.mxu0 %v8244
        %v8775 = vpop.f32.mrf.mxu0
        %v8776 = vadd.f32 %v8727, %v8775
        %v8777 = vpop.f32.mrf.mxu0
        %v8778 = vadd.f32 %v8729, %v8777
        %8779 = vmatmul.bf16.gmra.mxu0 %v8251
        %v8780 = vpop.f32.mrf.mxu0
        %v8781 = vadd.f32 %v8732, %v8780
        %v8782 = vpop.f32.mrf.mxu0
        %v8783 = vadd.f32 %v8734, %v8782
        %8784 = vmatmul.bf16.gmra.mxu0 %v8258
        %v8785 = vpop.f32.mrf.mxu0
        %v8786 = vadd.f32 %v8737, %v8785
        %v8787 = vpop.f32.mrf.mxu0
        %v8788 = vadd.f32 %v8739, %v8787
        %8789 = vdwg.mxu0
        %8790 = vmatpush.bf16.msra.mxu0 %v8591
        %8791 = vmatpush.bf16.msra.mxu0 %v8590
        %8792 = vmatpush.bf16.msra.mxu0 %v8589
        %8793 = vmatpush.bf16.msra.mxu0 %v8588
        %8794 = vmatpush.bf16.msra.mxu0 %v8587
        %8795 = vmatpush.bf16.msra.mxu0 %v8586
        %8796 = vmatpush.bf16.msra.mxu0 %v8585
        %8797 = vmatpush.bf16.msra.mxu0 %v8584
        %8798 = vmatmul.bf16.gmra.mxu0 %v8210
        %v8799 = vpop.f32.mrf.mxu0
        %v8800 = vadd.f32 %v8751, %v8799
        %v8801 = vpop.f32.mrf.mxu0
        %v8802 = vadd.f32 %v8753, %v8801
        %8803 = vmatmul.bf16.gmra.mxu0 %v8217
        %v8804 = vpop.f32.mrf.mxu0
        %v8805 = vadd.f32 %v8756, %v8804
        %v8806 = vpop.f32.mrf.mxu0
        %v8807 = vadd.f32 %v8758, %v8806
        %8808 = vmatmul.bf16.gmra.mxu0 %v8224
        %v8809 = vpop.f32.mrf.mxu0
        %v8810 = vadd.f32 %v8761, %v8809
        %v8811 = vpop.f32.mrf.mxu0
        %v8812 = vadd.f32 %v8763, %v8811
        %8813 = vmatmul.bf16.gmra.mxu0 %v8231
        %v8814 = vpop.f32.mrf.mxu0
        %v8815 = vadd.f32 %v8766, %v8814
        %v8816 = vpop.f32.mrf.mxu0
        %v8817 = vadd.f32 %v8768, %v8816
        %8818 = vmatmul.bf16.gmra.mxu0 %v8238
        %v8819 = vpop.f32.mrf.mxu0
        %v8820 = vadd.f32 %v8771, %v8819
        %v8821 = vpop.f32.mrf.mxu0
        %v8822 = vadd.f32 %v8773, %v8821
        %8823 = vmatmul.bf16.gmra.mxu0 %v8245
        %v8824 = vpop.f32.mrf.mxu0
        %v8825 = vadd.f32 %v8776, %v8824
        %v8826 = vpop.f32.mrf.mxu0
        %v8827 = vadd.f32 %v8778, %v8826
        %8828 = vmatmul.bf16.gmra.mxu0 %v8252
        %v8829 = vpop.f32.mrf.mxu0
        %v8830 = vadd.f32 %v8781, %v8829
        %v8831 = vpop.f32.mrf.mxu0
        %v8832 = vadd.f32 %v8783, %v8831
        %8833 = vmatmul.bf16.gmra.mxu0 %v8259
        %v8834 = vpop.f32.mrf.mxu0
        %v8835 = vadd.f32 %v8786, %v8834
        %v8836 = vpop.f32.mrf.mxu0
        %v8837 = vadd.f32 %v8788, %v8836
        %8838 = vdwg.mxu0
        %8839 = vmatpush.bf16.msra.mxu0 %v8599
        %8840 = vmatpush.bf16.msra.mxu0 %v8598
        %8841 = vmatpush.bf16.msra.mxu0 %v8597
        %8842 = vmatpush.bf16.msra.mxu0 %v8596
        %8843 = vmatpush.bf16.msra.mxu0 %v8595
        %8844 = vmatpush.bf16.msra.mxu0 %v8594
        %8845 = vmatpush.bf16.msra.mxu0 %v8593
        %8846 = vmatpush.bf16.msra.mxu0 %v8592
        %8847 = vmatmul.bf16.gmra.mxu0 %v8211
        %v8848 = vpop.f32.mrf.mxu0
        %v8849 = vadd.f32 %v8800, %v8848
        %v8850 = vpop.f32.mrf.mxu0
        %v8851 = vadd.f32 %v8802, %v8850
        %8852 = vmatmul.bf16.gmra.mxu0 %v8218
        %v8853 = vpop.f32.mrf.mxu0
        %v8854 = vadd.f32 %v8805, %v8853
        %v8855 = vpop.f32.mrf.mxu0
        %v8856 = vadd.f32 %v8807, %v8855
        %8857 = vmatmul.bf16.gmra.mxu0 %v8225
        %v8858 = vpop.f32.mrf.mxu0
        %v8859 = vadd.f32 %v8810, %v8858
        %v8860 = vpop.f32.mrf.mxu0
        %v8861 = vadd.f32 %v8812, %v8860
        %8862 = vmatmul.bf16.gmra.mxu0 %v8232
        %v8863 = vpop.f32.mrf.mxu0
        %v8864 = vadd.f32 %v8815, %v8863
        %v8865 = vpop.f32.mrf.mxu0
        %v8866 = vadd.f32 %v8817, %v8865
        %8867 = vmatmul.bf16.gmra.mxu0 %v8239
        %v8868 = vpop.f32.mrf.mxu0
        %v8869 = vadd.f32 %v8820, %v8868
        %v8870 = vpop.f32.mrf.mxu0
        %v8871 = vadd.f32 %v8822, %v8870
        %8872 = vmatmul.bf16.gmra.mxu0 %v8246
        %v8873 = vpop.f32.mrf.mxu0
        %v8874 = vadd.f32 %v8825, %v8873
        %v8875 = vpop.f32.mrf.mxu0
        %v8876 = vadd.f32 %v8827, %v8875
        %8877 = vmatmul.bf16.gmra.mxu0 %v8253
        %v8878 = vpop.f32.mrf.mxu0
        %v8879 = vadd.f32 %v8830, %v8878
        %v8880 = vpop.f32.mrf.mxu0
        %v8881 = vadd.f32 %v8832, %v8880
        %8882 = vmatmul.bf16.gmra.mxu0 %v8260
        %v8883 = vpop.f32.mrf.mxu0
        %v8884 = vadd.f32 %v8835, %v8883
        %v8885 = vpop.f32.mrf.mxu0
        %v8886 = vadd.f32 %v8837, %v8885
        %8887 = vdwg.mxu0
        %8888 = vmatpush.bf16.msra.mxu0 %v8607
        %8889 = vmatpush.bf16.msra.mxu0 %v8606
        %8890 = vmatpush.bf16.msra.mxu0 %v8605
        %8891 = vmatpush.bf16.msra.mxu0 %v8604
        %8892 = vmatpush.bf16.msra.mxu0 %v8603
        %8893 = vmatpush.bf16.msra.mxu0 %v8602
        %8894 = vmatpush.bf16.msra.mxu0 %v8601
        %8895 = vmatpush.bf16.msra.mxu0 %v8600
        %8896 = vmatmul.bf16.gmra.mxu0 %v8212
        %v8897 = vpop.f32.mrf.mxu0
        %v8898 = vadd.f32 %v8849, %v8897
        %v8899 = vpop.f32.mrf.mxu0
        %v8900 = vadd.f32 %v8851, %v8899
        %8901 = vmatmul.bf16.gmra.mxu0 %v8219
        %v8902 = vpop.f32.mrf.mxu0
        %v8903 = vadd.f32 %v8854, %v8902
        %v8904 = vpop.f32.mrf.mxu0
        %v8905 = vadd.f32 %v8856, %v8904
        %8906 = vmatmul.bf16.gmra.mxu0 %v8226
        %v8907 = vpop.f32.mrf.mxu0
        %v8908 = vadd.f32 %v8859, %v8907
        %v8909 = vpop.f32.mrf.mxu0
        %v8910 = vadd.f32 %v8861, %v8909
        %8911 = vmatmul.bf16.gmra.mxu0 %v8233
        %v8912 = vpop.f32.mrf.mxu0
        %v8913 = vadd.f32 %v8864, %v8912
        %v8914 = vpop.f32.mrf.mxu0
        %v8915 = vadd.f32 %v8866, %v8914
        %8916 = vmatmul.bf16.gmra.mxu0 %v8240
        %v8917 = vpop.f32.mrf.mxu0
        %v8918 = vadd.f32 %v8869, %v8917
        %v8919 = vpop.f32.mrf.mxu0
        %v8920 = vadd.f32 %v8871, %v8919
        %8921 = vmatmul.bf16.gmra.mxu0 %v8247
        %v8922 = vpop.f32.mrf.mxu0
        %v8923 = vadd.f32 %v8874, %v8922
        %v8924 = vpop.f32.mrf.mxu0
        %v8925 = vadd.f32 %v8876, %v8924
        %8926 = vmatmul.bf16.gmra.mxu0 %v8254
        %v8927 = vpop.f32.mrf.mxu0
        %v8928 = vadd.f32 %v8879, %v8927
        %v8929 = vpop.f32.mrf.mxu0
        %v8930 = vadd.f32 %v8881, %v8929
        %8931 = vmatmul.bf16.gmra.mxu0 %v8261
        %v8932 = vpop.f32.mrf.mxu0
        %v8933 = vadd.f32 %v8884, %v8932
        %v8934 = vpop.f32.mrf.mxu0
        %v8935 = vadd.f32 %v8886, %v8934
        %8936 = vdwg.mxu0
        %8937 = vmatpush.bf16.msra.mxu0 %v8615
        %8938 = vmatpush.bf16.msra.mxu0 %v8614
        %8939 = vmatpush.bf16.msra.mxu0 %v8613
        %8940 = vmatpush.bf16.msra.mxu0 %v8612
        %8941 = vmatpush.bf16.msra.mxu0 %v8611
        %8942 = vmatpush.bf16.msra.mxu0 %v8610
        %8943 = vmatpush.bf16.msra.mxu0 %v8609
        %8944 = vmatpush.bf16.msra.mxu0 %v8608
        %8945 = vmatmul.bf16.gmra.mxu0 %v8213
        %v8946 = vpop.f32.mrf.mxu0
        %v8947 = vadd.f32 %v8898, %v8946
        %v8948 = vpop.f32.mrf.mxu0
        %v8949 = vadd.f32 %v8900, %v8948
        %8950 = vmatmul.bf16.gmra.mxu0 %v8220
        %v8951 = vpop.f32.mrf.mxu0
        %v8952 = vadd.f32 %v8903, %v8951
        %v8953 = vpop.f32.mrf.mxu0
        %v8954 = vadd.f32 %v8905, %v8953
        %8955 = vmatmul.bf16.gmra.mxu0 %v8227
        %v8956 = vpop.f32.mrf.mxu0
        %v8957 = vadd.f32 %v8908, %v8956
        %v8958 = vpop.f32.mrf.mxu0
        %v8959 = vadd.f32 %v8910, %v8958
        %8960 = vmatmul.bf16.gmra.mxu0 %v8234
        %v8961 = vpop.f32.mrf.mxu0
        %v8962 = vadd.f32 %v8913, %v8961
        %v8963 = vpop.f32.mrf.mxu0
        %v8964 = vadd.f32 %v8915, %v8963
        %8965 = vmatmul.bf16.gmra.mxu0 %v8241
        %v8966 = vpop.f32.mrf.mxu0
        %v8967 = vadd.f32 %v8918, %v8966
        %v8968 = vpop.f32.mrf.mxu0
        %v8969 = vadd.f32 %v8920, %v8968
        %8970 = vmatmul.bf16.gmra.mxu0 %v8248
        %v8971 = vpop.f32.mrf.mxu0
        %v8972 = vadd.f32 %v8923, %v8971
        %v8973 = vpop.f32.mrf.mxu0
        %v8974 = vadd.f32 %v8925, %v8973
        %8975 = vmatmul.bf16.gmra.mxu0 %v8255
        %v8976 = vpop.f32.mrf.mxu0
        %v8977 = vadd.f32 %v8928, %v8976
        %v8978 = vpop.f32.mrf.mxu0
        %v8979 = vadd.f32 %v8930, %v8978
        %8980 = vmatmul.bf16.gmra.mxu0 %v8262
        %v8981 = vpop.f32.mrf.mxu0
        %v8982 = vadd.f32 %v8933, %v8981
        %v8983 = vpop.f32.mrf.mxu0
        %v8984 = vadd.f32 %v8935, %v8983
        %8985 = vdwg.mxu0
        %8986 = vmatpush.bf16.msra.mxu0 0
        %8987 = vmatpush.bf16.msra.mxu0 0
        %8988 = vmatpush.bf16.msra.mxu0 0
        %8989 = vmatpush.bf16.msra.mxu0 0
        %8990 = vmatpush.bf16.msra.mxu0 0
        %8991 = vmatpush.bf16.msra.mxu0 0
        %8992 = vmatpush.bf16.msra.mxu0 %v8617
        %8993 = vmatpush.bf16.msra.mxu0 %v8616
        %8994 = vmatmul.bf16.gmra.mxu0 %v8669
        %v8995 = vpop.f32.mrf.mxu0
        %v8996 = vadd.f32 %v8947, %v8995
        %v8997 = vpop.f32.mrf.mxu0
        %v8998 = vadd.f32 %v8949, %v8997
        %8999 = vmatmul.bf16.gmra.mxu0 %v8672
        %v9000 = vpop.f32.mrf.mxu0
        %v9001 = vadd.f32 %v8952, %v9000
        %v9002 = vpop.f32.mrf.mxu0
        %v9003 = vadd.f32 %v8954, %v9002
        %9004 = vmatmul.bf16.gmra.mxu0 %v8675
        %v9005 = vpop.f32.mrf.mxu0
        %v9006 = vadd.f32 %v8957, %v9005
        %v9007 = vpop.f32.mrf.mxu0
        %v9008 = vadd.f32 %v8959, %v9007
        %9009 = vmatmul.bf16.gmra.mxu0 %v8678
        %v9010 = vpop.f32.mrf.mxu0
        %v9011 = vadd.f32 %v8962, %v9010
        %v9012 = vpop.f32.mrf.mxu0
        %v9013 = vadd.f32 %v8964, %v9012
        %9014 = vmatmul.bf16.gmra.mxu0 %v8681
        %v9015 = vpop.f32.mrf.mxu0
        %v9016 = vadd.f32 %v8967, %v9015
        %v9017 = vpop.f32.mrf.mxu0
        %v9018 = vadd.f32 %v8969, %v9017
        %9019 = vmatmul.bf16.gmra.mxu0 %v8684
        %v9020 = vpop.f32.mrf.mxu0
        %v9021 = vadd.f32 %v8972, %v9020
        %v9022 = vpop.f32.mrf.mxu0
        %v9023 = vadd.f32 %v8974, %v9022
        %9024 = vmatmul.bf16.gmra.mxu0 %v8687
        %v9025 = vpop.f32.mrf.mxu0
        %v9026 = vadd.f32 %v8977, %v9025
        %v9027 = vpop.f32.mrf.mxu0
        %v9028 = vadd.f32 %v8979, %v9027
        %9029 = vmatmul.bf16.gmra.mxu0 %v8690
        %v9030 = vpop.f32.mrf.mxu0
        %v9031 = vadd.f32 %v8982, %v9030
        %v9032 = vpop.f32.mrf.mxu0
        %v9033 = vadd.f32 %v8984, %v9032
        %9034 = vdwg.mxu0
        %vm9035 = vcmask 523264
        %9036 = vst.msk [vmem:[#allocation10] sm:$0xff] %vm9035, %v8996
        %9037 = vst.msk [vmem:[#allocation10 + $0x8] sm:$0xff] %vm9035, %v8998
        %9038 = vst.msk [vmem:[#allocation10 + $0x10] sm:$0xff] %vm9035, %v9001
        %9039 = vst.msk [vmem:[#allocation10 + $0x18] sm:$0xff] %vm9035, %v9003
        %9040 = vst.msk [vmem:[#allocation10 + $0x20] sm:$0xff] %vm9035, %v9006
        %9041 = vst.msk [vmem:[#allocation10 + $0x28] sm:$0xff] %vm9035, %v9008
        %9042 = vst.msk [vmem:[#allocation10 + $0x30] sm:$0xff] %vm9035, %v9011
        %9043 = vst.msk [vmem:[#allocation10 + $0x38] sm:$0xff] %vm9035, %v9013
        %9044 = vst.msk [vmem:[#allocation10 + $0x40] sm:$0xff] %vm9035, %v9016
        %9045 = vst.msk [vmem:[#allocation10 + $0x48] sm:$0xff] %vm9035, %v9018
        %9046 = vst.msk [vmem:[#allocation10 + $0x50] sm:$0xff] %vm9035, %v9021
        %9047 = vst.msk [vmem:[#allocation10 + $0x58] sm:$0xff] %vm9035, %v9023
        %9048 = vst.msk [vmem:[#allocation10 + $0x60] sm:$0xff] %vm9035, %v9026
        %9049 = vst.msk [vmem:[#allocation10 + $0x68] sm:$0xff] %vm9035, %v9028
        %9050 = vst.msk [vmem:[#allocation10 + $0x70] sm:$0xff] %vm9035, %v9031
        %9051 = vst.msk [vmem:[#allocation10 + $0x78] sm:$0xff] %vm9035, %v9033
        %s9052 = scalar_lea.vmem [#allocation10], 8
        %v9053 = vld [vmem:[%s9052] ss:$2 sm:$0xf]
        %s9054 = scalar_lea.vmem [#allocation10], 9
        %v9055 = vld [vmem:[%s9054] ss:$2 sm:$0xf]
        %s9056 = scalar_lea.vmem [#allocation10], 24
        %v9057 = vld [vmem:[%s9056] ss:$2 sm:$0xf]
        %s9058 = scalar_lea.vmem [#allocation10], 25
        %v9059 = vld [vmem:[%s9058] ss:$2 sm:$0xf]
        %v9060 = vmax.f32 %v9053, %v9055
        %v9061 = vmax.f32 %v9057, %v9059
        %v9062 = vmax.f32 %v9060, %v9061
        %v9063 = vlaneseq
        %vm9064 = vcmp.ge.s32.totalorder %v9063, 0
        %vm9065 = vcmp.lt.s32.totalorder %v9063, 64
        %vm9066 = vmand %vm9064, %vm9065
        %9067 = vst.msk [vmem:[#allocation4] sm:$0x1] %vm9066, %v9062
        %9069 = vst [vmem:[#allocation1] sm:$0xff] %v9062
        %s9070 = scalar_lea.vmem [#allocation1], 1
        %v9071 = vld [vmem:[%s9070] ss:$9 sm:$0xff]
        %9072 = vrot.lane.b32.xlu0 %v9071, 64
        %v9073 = vpop.permute.xlu0 %9072
        %vm9075 = vcmp.ge.s32.totalorder %v9063, 64
        %vm9076 = vcmp.lt.s32.totalorder %v9063, 128
        %vm9077 = vmand %vm9075, %vm9076
        %9078 = vst.msk [vmem:[#allocation4] sm:$0x1] %vm9077, %v9073
        %9079 = vst [vmem:[#allocation1] sm:$0xff] %v9062
        %s9080 = scalar_lea.vmem [#allocation1], 2
        %v9081 = vld [vmem:[%s9080] ss:$9 sm:$0xff]
        %9083 = vst.msk [vmem:[#allocation4 + $0x1] sm:$0x1] %vm9066, %v9081
        %9084 = vst [vmem:[#allocation1] sm:$0xff] %v9062
        %s9085 = scalar_lea.vmem [#allocation1], 3
        %v9086 = vld [vmem:[%s9085] ss:$9 sm:$0xff]
        %9087 = vrot.lane.b32.xlu0 %v9086, 64
        %v9088 = vpop.permute.xlu0 %9087
        %9090 = vst.msk [vmem:[#allocation4 + $0x1] sm:$0x1] %vm9077, %v9088
        %s9091 = scalar_lea.vmem [#allocation10], 40
        %v9092 = vld [vmem:[%s9091] ss:$2 sm:$0xf]
        %s9093 = scalar_lea.vmem [#allocation10], 41
        %v9094 = vld [vmem:[%s9093] ss:$2 sm:$0xf]
        %s9095 = scalar_lea.vmem [#allocation10], 56
        %v9096 = vld [vmem:[%s9095] ss:$2 sm:$0xf]
        %s9097 = scalar_lea.vmem [#allocation10], 57
        %v9098 = vld [vmem:[%s9097] ss:$2 sm:$0xf]
        %v9099 = vmax.f32 %v9092, %v9094
        %v9100 = vmax.f32 %v9096, %v9098
        %v9101 = vmax.f32 %v9099, %v9100
        %9102 = vst.msk [vmem:[#allocation4 + $0x2] sm:$0x1] %vm9066, %v9101
        %9104 = vst [vmem:[#allocation1] sm:$0xff] %v9101
        %s9105 = scalar_lea.vmem [#allocation1], 1
        %v9106 = vld [vmem:[%s9105] ss:$9 sm:$0xff]
        %9107 = vrot.lane.b32.xlu0 %v9106, 64
        %v9108 = vpop.permute.xlu0 %9107
        %9110 = vst.msk [vmem:[#allocation4 + $0x2] sm:$0x1] %vm9077, %v9108
        %9111 = vst [vmem:[#allocation1] sm:$0xff] %v9101
        %s9112 = scalar_lea.vmem [#allocation1], 2
        %v9113 = vld [vmem:[%s9112] ss:$9 sm:$0xff]
        %9115 = vst.msk [vmem:[#allocation4 + $0x3] sm:$0x1] %vm9066, %v9113
        %9116 = vst [vmem:[#allocation1] sm:$0xff] %v9101
        %s9117 = scalar_lea.vmem [#allocation1], 3
        %v9118 = vld [vmem:[%s9117] ss:$9 sm:$0xff]
        %9119 = vrot.lane.b32.xlu0 %v9118, 64
        %v9120 = vpop.permute.xlu0 %9119
        %9122 = vst.msk [vmem:[#allocation4 + $0x3] sm:$0x1] %vm9077, %v9120
        %s9123 = scalar_lea.vmem [#allocation10], 72
        %v9124 = vld [vmem:[%s9123] ss:$2 sm:$0xf]
        %s9125 = scalar_lea.vmem [#allocation10], 73
        %v9126 = vld [vmem:[%s9125] ss:$2 sm:$0xf]
        %s9127 = scalar_lea.vmem [#allocation10], 88
        %v9128 = vld [vmem:[%s9127] ss:$2 sm:$0xf]
        %s9129 = scalar_lea.vmem [#allocation10], 89
        %v9130 = vld [vmem:[%s9129] ss:$2 sm:$0xf]
        %v9131 = vmax.f32 %v9124, %v9126
        %v9132 = vmax.f32 %v9128, %v9130
        %v9133 = vmax.f32 %v9131, %v9132
        %9134 = vst.msk [vmem:[#allocation4 + $0x4] sm:$0x1] %vm9066, %v9133
        %9136 = vst [vmem:[#allocation1] sm:$0xff] %v9133
        %s9137 = scalar_lea.vmem [#allocation1], 1
        %v9138 = vld [vmem:[%s9137] ss:$9 sm:$0xff]
        %9139 = vrot.lane.b32.xlu0 %v9138, 64
        %v9140 = vpop.permute.xlu0 %9139
        %9142 = vst.msk [vmem:[#allocation4 + $0x4] sm:$0x1] %vm9077, %v9140
        %9143 = vst [vmem:[#allocation1] sm:$0xff] %v9133
        %s9144 = scalar_lea.vmem [#allocation1], 2
        %v9145 = vld [vmem:[%s9144] ss:$9 sm:$0xff]
        %9147 = vst.msk [vmem:[#allocation4 + $0x5] sm:$0x1] %vm9066, %v9145
        %9148 = vst [vmem:[#allocation1] sm:$0xff] %v9133
        %s9149 = scalar_lea.vmem [#allocation1], 3
        %v9150 = vld [vmem:[%s9149] ss:$9 sm:$0xff]
        %9151 = vrot.lane.b32.xlu0 %v9150, 64
        %v9152 = vpop.permute.xlu0 %9151
        %9154 = vst.msk [vmem:[#allocation4 + $0x5] sm:$0x1] %vm9077, %v9152
        %s9155 = scalar_lea.vmem [#allocation10], 104
        %v9156 = vld [vmem:[%s9155] ss:$2 sm:$0xf]
        %s9157 = scalar_lea.vmem [#allocation10], 105
        %v9158 = vld [vmem:[%s9157] ss:$2 sm:$0xf]
        %s9159 = scalar_lea.vmem [#allocation10], 120
        %v9160 = vld [vmem:[%s9159] ss:$2 sm:$0xf]
        %s9161 = scalar_lea.vmem [#allocation10], 121
        %v9162 = vld [vmem:[%s9161] ss:$2 sm:$0xf]
        %v9163 = vmax.f32 %v9156, %v9158
        %v9164 = vmax.f32 %v9160, %v9162
        %v9165 = vmax.f32 %v9163, %v9164
        %9166 = vst.msk [vmem:[#allocation4 + $0x6] sm:$0x1] %vm9066, %v9165
        %9168 = vst [vmem:[#allocation1] sm:$0xff] %v9165
        %s9169 = scalar_lea.vmem [#allocation1], 1
        %v9170 = vld [vmem:[%s9169] ss:$9 sm:$0xff]
        %9171 = vrot.lane.b32.xlu0 %v9170, 64
        %v9172 = vpop.permute.xlu0 %9171
        %9174 = vst.msk [vmem:[#allocation4 + $0x6] sm:$0x1] %vm9077, %v9172
        %9175 = vst [vmem:[#allocation1] sm:$0xff] %v9165
        %s9176 = scalar_lea.vmem [#allocation1], 2
        %v9177 = vld [vmem:[%s9176] ss:$9 sm:$0xff]
        %9179 = vst.msk [vmem:[#allocation4 + $0x7] sm:$0x1] %vm9066, %v9177
        %9180 = vst [vmem:[#allocation1] sm:$0xff] %v9165
        %s9181 = scalar_lea.vmem [#allocation1], 3
        %v9182 = vld [vmem:[%s9181] ss:$9 sm:$0xff]
        %9183 = vrot.lane.b32.xlu0 %v9182, 64
        %v9184 = vpop.permute.xlu0 %9183
        %9186 = vst.msk [vmem:[#allocation4 + $0x7] sm:$0x1] %vm9077, %v9184
        %v9187 = vld [vmem:[#allocation4] sm:$0xff]
        %v9189 = vperm.slane %v9187, 0
        %v9190 = vperm.slane %v9187, 1
        %v9191 = vperm.slane %v9187, 2
        %v9192 = vperm.slane %v9187, 3
        %v9193 = vperm.slane %v9187, 4
        %v9194 = vperm.slane %v9187, 5
        %v9195 = vperm.slane %v9187, 6
        %v9196 = vperm.slane %v9187, 7
        %v9205 = vpack.c.bf16 %v9189, %v9189
        %v9206 = vpack.c.bf16 %v9190, %v9190
        %v9207 = vpack.c.bf16 %v9191, %v9191
        %v9208 = vpack.c.bf16 %v9192, %v9192
        %v9209 = vpack.c.bf16 %v9193, %v9193
        %v9210 = vpack.c.bf16 %v9194, %v9194
        %v9211 = vpack.c.bf16 %v9195, %v9195
        %v9212 = vpack.c.bf16 %v9196, %v9196
        %v9213 = vld [vmem:[%s7] sm:$0xf]
        %v9214 = vld [vmem:[%s7 + $0x4] sm:$0xf]
        %v9215 = vld [vmem:[%s7 + $0x8] sm:$0xf]
        %v9216 = vld [vmem:[%s7 + $0xc] sm:$0xf]
        %v9217 = vld [vmem:[%s7 + $0x10] sm:$0xf]
        %v9218 = vld [vmem:[%s7 + $0x14] sm:$0xf]
        %v9219 = vld [vmem:[%s7 + $0x18] sm:$0xf]
        %v9220 = vld [vmem:[%s7 + $0x1c] sm:$0xf]
        %v9221 = vld [vmem:[%s7 + $0x20] sm:$0xf]
        %v9222 = vld [vmem:[%s7 + $0x24] sm:$0xf]
        %v9223 = vld [vmem:[%s7 + $0x28] sm:$0xf]
        %v9224 = vld [vmem:[%s7 + $0x2c] sm:$0xf]
        %v9225 = vld [vmem:[%s7 + $0x30] sm:$0xf]
        %v9226 = vld [vmem:[%s7 + $0x34] sm:$0xf]
        %v9227 = vld [vmem:[%s7 + $0x38] sm:$0xf]
        %v9228 = vld [vmem:[%s7 + $0x3c] sm:$0xf]
        %v9229 = vld [vmem:[%s7 + $0x40] sm:$0xf]
        %v9230 = vld [vmem:[%s7 + $0x44] sm:$0xf]
        %v9231 = vld [vmem:[%s7 + $0x48] sm:$0xf]
        %v9232 = vld [vmem:[%s7 + $0x4c] sm:$0xf]
        %v9233 = vld [vmem:[%s7 + $0x50] sm:$0xf]
        %v9234 = vld [vmem:[%s7 + $0x54] sm:$0xf]
        %v9235 = vld [vmem:[%s7 + $0x58] sm:$0xf]
        %v9236 = vld [vmem:[%s7 + $0x5c] sm:$0xf]
        %v9237 = vld [vmem:[%s7 + $0x60] sm:$0xf]
        %v9238 = vld [vmem:[%s7 + $0x64] sm:$0xf]
        %v9239 = vld [vmem:[%s7 + $0x68] sm:$0xf]
        %v9240 = vld [vmem:[%s7 + $0x6c] sm:$0xf]
        %v9241 = vld [vmem:[%s7 + $0x70] sm:$0xf]
        %v9242 = vld [vmem:[%s7 + $0x74] sm:$0xf]
        %v9243 = vld [vmem:[%s7 + $0x78] sm:$0xf]
        %v9244 = vld [vmem:[%s7 + $0x7c] sm:$0xf]
        %v9245 = vld [vmem:[%s7 + $0x80] sm:$0xf]
        %v9246 = vld [vmem:[%s7 + $0x84] sm:$0xf]
        %v9247 = vld [vmem:[%s7 + $0x88] sm:$0xf]
        %v9248 = vld [vmem:[%s7 + $0x8c] sm:$0xf]
        %v9249 = vld [vmem:[%s7 + $0x90] sm:$0xf]
        %v9250 = vld [vmem:[%s7 + $0x94] sm:$0xf]
        %v9251 = vld [vmem:[%s7 + $0x98] sm:$0xf]
        %v9252 = vld [vmem:[%s7 + $0x9c] sm:$0xf]
        %v9253 = vld [vmem:[%s7 + $0xa0] sm:$0xf]
        %v9254 = vld [vmem:[%s7 + $0xa4] sm:$0xf]
        %v9255 = vld [vmem:[%s7 + $0xa8] sm:$0xf]
        %v9256 = vld [vmem:[%s7 + $0xac] sm:$0xf]
        %v9257 = vld [vmem:[%s7 + $0xb0] sm:$0xf]
        %v9258 = vld [vmem:[%s7 + $0xb4] sm:$0xf]
        %v9259 = vld [vmem:[%s7 + $0xb8] sm:$0xf]
        %v9260 = vld [vmem:[%s7 + $0xbc] sm:$0xf]
        %v9261 = vld [vmem:[%s7 + $0xc0] sm:$0xf]
        %v9262 = vld [vmem:[%s7 + $0xc4] sm:$0xf]
        %v9263 = vld [vmem:[%s7 + $0xc8] sm:$0xf]
        %v9264 = vld [vmem:[%s7 + $0xcc] sm:$0xf]
        %v9265 = vld [vmem:[%s7 + $0xd0] sm:$0xf]
        %v9266 = vld [vmem:[%s7 + $0xd4] sm:$0xf]
        %v9267 = vld [vmem:[%s7 + $0xd8] sm:$0xf]
        %v9268 = vld [vmem:[%s7 + $0xdc] sm:$0xf]
        %v9269 = vld [vmem:[%s7 + $0xe0] sm:$0xf]
        %v9270 = vld [vmem:[%s7 + $0xe4] sm:$0xf]
        %v9271 = vld [vmem:[%s7 + $0xe8] sm:$0xf]
        %v9272 = vld [vmem:[%s7 + $0xec] sm:$0xf]
        %v9273 = vld [vmem:[%s7 + $0xf0] sm:$0xf]
        %v9274 = vld [vmem:[%s7 + $0xf4] sm:$0xf]
        %v9275 = vld [vmem:[%s7 + $0xf8] sm:$0xf]
        %v9276 = vld [vmem:[%s7 + $0xfc] sm:$0xf]
        %v9277 = vld [vmem:[%s7 + $0x100] sm:$0xf]
        %v9278 = vld [vmem:[%s7 + $0x104] sm:$0xf]
        %v9279 = vld [vmem:[%s7 + $0x108] sm:$0xf]
        %v9280 = vld [vmem:[%s7 + $0x10c] sm:$0xf]
        %v9281 = vld [vmem:[%s7 + $0x110] sm:$0xf]
        %v9282 = vld [vmem:[%s7 + $0x114] sm:$0xf]
        %v9283 = vld [vmem:[%s7 + $0x118] sm:$0xf]
        %v9284 = vld [vmem:[%s7 + $0x11c] sm:$0xf]
        %v9285 = vld [vmem:[%s7 + $0x120] sm:$0xf]
        %v9286 = vld [vmem:[%s7 + $0x124] sm:$0xf]
        %v9287 = vld [vmem:[%s7 + $0x128] sm:$0xf]
        %v9288 = vld [vmem:[%s7 + $0x12c] sm:$0xf]
        %v9289 = vld [vmem:[%s7 + $0x130] sm:$0xf]
        %v9290 = vld [vmem:[%s7 + $0x134] sm:$0xf]
        %v9291 = vld [vmem:[%s7 + $0x138] sm:$0xf]
        %v9292 = vld [vmem:[%s7 + $0x13c] sm:$0xf]
        %v9293 = vld [vmem:[%s7 + $0x140] sm:$0xf]
        %v9294 = vld [vmem:[%s7 + $0x144] sm:$0xf]
        %v9295 = vld [vmem:[%s7 + $0x148] sm:$0xf]
        %v9296 = vld [vmem:[%s7 + $0x14c] sm:$0xf]
        %v9297 = vld [vmem:[%s7 + $0x150] sm:$0xf]
        %v9298 = vld [vmem:[%s7 + $0x154] sm:$0xf]
        %v9299 = vld [vmem:[%s7 + $0x158] sm:$0xf]
        %v9300 = vld [vmem:[%s7 + $0x15c] sm:$0xf]
        %v9301 = vld [vmem:[%s7 + $0x160] sm:$0xf]
        %v9302 = vld [vmem:[%s7 + $0x164] sm:$0xf]
        %v9303 = vld [vmem:[%s7 + $0x168] sm:$0xf]
        %v9304 = vld [vmem:[%s7 + $0x16c] sm:$0xf]
        %v9305 = vld [vmem:[%s7 + $0x170] sm:$0xf]
        %v9306 = vld [vmem:[%s7 + $0x174] sm:$0xf]
        %v9307 = vld [vmem:[%s7 + $0x178] sm:$0xf]
        %v9308 = vld [vmem:[%s7 + $0x17c] sm:$0xf]
        %v9309 = vld [vmem:[%s7 + $0x180] sm:$0xf]
        %v9310 = vld [vmem:[%s7 + $0x184] sm:$0xf]
        %v9311 = vld [vmem:[%s7 + $0x188] sm:$0xf]
        %v9312 = vld [vmem:[%s7 + $0x18c] sm:$0xf]
        %v9313 = vld [vmem:[%s7 + $0x190] sm:$0xf]
        %v9314 = vld [vmem:[%s7 + $0x194] sm:$0xf]
        %v9315 = vld [vmem:[%s7 + $0x198] sm:$0xf]
        %v9316 = vld [vmem:[%s7 + $0x19c] sm:$0xf]
        %v9317 = vld [vmem:[%s7 + $0x1a0] sm:$0xf]
        %v9318 = vld [vmem:[%s7 + $0x1a4] sm:$0xf]
        %v9319 = vld [vmem:[%s7 + $0x1a8] sm:$0xf]
        %v9320 = vld [vmem:[%s7 + $0x1ac] sm:$0xf]
        %v9321 = vld [vmem:[%s7 + $0x1b0] sm:$0xf]
        %v9322 = vld [vmem:[%s7 + $0x1b4] sm:$0xf]
        %v9323 = vld [vmem:[%s7 + $0x1b8] sm:$0xf]
        %v9324 = vld [vmem:[%s7 + $0x1bc] sm:$0xf]
        %v9325 = vld [vmem:[%s7 + $0x1c0] sm:$0xf]
        %v9326 = vld [vmem:[%s7 + $0x1c4] sm:$0xf]
        %v9327 = vld [vmem:[%s7 + $0x1c8] sm:$0xf]
        %v9328 = vld [vmem:[%s7 + $0x1cc] sm:$0xf]
        %v9329 = vld [vmem:[%s7 + $0x1d0] sm:$0xf]
        %v9330 = vld [vmem:[%s7 + $0x1d4] sm:$0xf]
        %v9331 = vld [vmem:[%s7 + $0x1d8] sm:$0xf]
        %v9332 = vld [vmem:[%s7 + $0x1dc] sm:$0xf]
        %v9333 = vld [vmem:[%s7 + $0x1e0] sm:$0xf]
        %v9334 = vld [vmem:[%s7 + $0x1e4] sm:$0xf]
        %v9335 = vld [vmem:[%s7 + $0x1e8] sm:$0xf]
        %v9336 = vld [vmem:[%s7 + $0x1ec] sm:$0xf]
        %v9337 = vld [vmem:[%s7 + $0x1f0] sm:$0xf]
        %v9338 = vld [vmem:[%s7 + $0x1f4] sm:$0xf]
        %v9339 = vld [vmem:[%s7 + $0x1f8] sm:$0xf]
        %v9340 = vld [vmem:[%s7 + $0x1fc] sm:$0xf]
        %v9341 = vld [vmem:[%s8] sm:$0x1]
        %v9470 = vunpack.c.l.b16 %v9213
        %v9471 = vunpack.c.l.b16 %v9214
        %v9472 = vunpack.c.l.b16 %v9215
        %v9473 = vunpack.c.l.b16 %v9216
        %v9474 = vunpack.c.l.b16 %v9217
        %v9475 = vunpack.c.l.b16 %v9218
        %v9476 = vunpack.c.l.b16 %v9219
        %v9477 = vunpack.c.l.b16 %v9220
        %v9478 = vunpack.c.l.b16 %v9221
        %v9479 = vunpack.c.l.b16 %v9222
        %v9480 = vunpack.c.l.b16 %v9223
        %v9481 = vunpack.c.l.b16 %v9224
        %v9482 = vunpack.c.l.b16 %v9225
        %v9483 = vunpack.c.l.b16 %v9226
        %v9484 = vunpack.c.l.b16 %v9227
        %v9485 = vunpack.c.l.b16 %v9228
        %v9486 = vunpack.c.l.b16 %v9229
        %v9487 = vunpack.c.l.b16 %v9230
        %v9488 = vunpack.c.l.b16 %v9231
        %v9489 = vunpack.c.l.b16 %v9232
        %v9490 = vunpack.c.l.b16 %v9233
        %v9491 = vunpack.c.l.b16 %v9234
        %v9492 = vunpack.c.l.b16 %v9235
        %v9493 = vunpack.c.l.b16 %v9236
        %v9494 = vunpack.c.l.b16 %v9237
        %v9495 = vunpack.c.l.b16 %v9238
        %v9496 = vunpack.c.l.b16 %v9239
        %v9497 = vunpack.c.l.b16 %v9240
        %v9498 = vunpack.c.l.b16 %v9241
        %v9499 = vunpack.c.l.b16 %v9242
        %v9500 = vunpack.c.l.b16 %v9243
        %v9501 = vunpack.c.l.b16 %v9244
        %v9502 = vunpack.c.l.b16 %v9245
        %v9503 = vunpack.c.l.b16 %v9246
        %v9504 = vunpack.c.l.b16 %v9247
        %v9505 = vunpack.c.l.b16 %v9248
        %v9506 = vunpack.c.l.b16 %v9249
        %v9507 = vunpack.c.l.b16 %v9250
        %v9508 = vunpack.c.l.b16 %v9251
        %v9509 = vunpack.c.l.b16 %v9252
        %v9510 = vunpack.c.l.b16 %v9253
        %v9511 = vunpack.c.l.b16 %v9254
        %v9512 = vunpack.c.l.b16 %v9255
        %v9513 = vunpack.c.l.b16 %v9256
        %v9514 = vunpack.c.l.b16 %v9257
        %v9515 = vunpack.c.l.b16 %v9258
        %v9516 = vunpack.c.l.b16 %v9259
        %v9517 = vunpack.c.l.b16 %v9260
        %v9518 = vunpack.c.l.b16 %v9261
        %v9519 = vunpack.c.l.b16 %v9262
        %v9520 = vunpack.c.l.b16 %v9263
        %v9521 = vunpack.c.l.b16 %v9264
        %v9522 = vunpack.c.l.b16 %v9265
        %v9523 = vunpack.c.l.b16 %v9266
        %v9524 = vunpack.c.l.b16 %v9267
        %v9525 = vunpack.c.l.b16 %v9268
        %v9526 = vunpack.c.l.b16 %v9269
        %v9527 = vunpack.c.l.b16 %v9270
        %v9528 = vunpack.c.l.b16 %v9271
        %v9529 = vunpack.c.l.b16 %v9272
        %v9530 = vunpack.c.l.b16 %v9273
        %v9531 = vunpack.c.l.b16 %v9274
        %v9532 = vunpack.c.l.b16 %v9275
        %v9533 = vunpack.c.l.b16 %v9276
        %v9534 = vunpack.c.l.b16 %v9277
        %v9535 = vunpack.c.l.b16 %v9278
        %v9536 = vunpack.c.l.b16 %v9279
        %v9537 = vunpack.c.l.b16 %v9280
        %v9538 = vunpack.c.l.b16 %v9281
        %v9539 = vunpack.c.l.b16 %v9282
        %v9540 = vunpack.c.l.b16 %v9283
        %v9541 = vunpack.c.l.b16 %v9284
        %v9542 = vunpack.c.l.b16 %v9285
        %v9543 = vunpack.c.l.b16 %v9286
        %v9544 = vunpack.c.l.b16 %v9287
        %v9545 = vunpack.c.l.b16 %v9288
        %v9546 = vunpack.c.l.b16 %v9289
        %v9547 = vunpack.c.l.b16 %v9290
        %v9548 = vunpack.c.l.b16 %v9291
        %v9549 = vunpack.c.l.b16 %v9292
        %v9550 = vunpack.c.l.b16 %v9293
        %v9551 = vunpack.c.l.b16 %v9294
        %v9552 = vunpack.c.l.b16 %v9295
        %v9553 = vunpack.c.l.b16 %v9296
        %v9554 = vunpack.c.l.b16 %v9297
        %v9555 = vunpack.c.l.b16 %v9298
        %v9556 = vunpack.c.l.b16 %v9299
        %v9557 = vunpack.c.l.b16 %v9300
        %v9558 = vunpack.c.l.b16 %v9301
        %v9559 = vunpack.c.l.b16 %v9302
        %v9560 = vunpack.c.l.b16 %v9303
        %v9561 = vunpack.c.l.b16 %v9304
        %v9562 = vunpack.c.l.b16 %v9305
        %v9563 = vunpack.c.l.b16 %v9306
        %v9564 = vunpack.c.l.b16 %v9307
        %v9565 = vunpack.c.l.b16 %v9308
        %v9566 = vunpack.c.l.b16 %v9309
        %v9567 = vunpack.c.l.b16 %v9310
        %v9568 = vunpack.c.l.b16 %v9311
        %v9569 = vunpack.c.l.b16 %v9312
        %v9570 = vunpack.c.l.b16 %v9313
        %v9571 = vunpack.c.l.b16 %v9314
        %v9572 = vunpack.c.l.b16 %v9315
        %v9573 = vunpack.c.l.b16 %v9316
        %v9574 = vunpack.c.l.b16 %v9317
        %v9575 = vunpack.c.l.b16 %v9318
        %v9576 = vunpack.c.l.b16 %v9319
        %v9577 = vunpack.c.l.b16 %v9320
        %v9578 = vunpack.c.l.b16 %v9321
        %v9579 = vunpack.c.l.b16 %v9322
        %v9580 = vunpack.c.l.b16 %v9323
        %v9581 = vunpack.c.l.b16 %v9324
        %v9582 = vunpack.c.l.b16 %v9325
        %v9583 = vunpack.c.l.b16 %v9326
        %v9584 = vunpack.c.l.b16 %v9327
        %v9585 = vunpack.c.l.b16 %v9328
        %v9586 = vunpack.c.l.b16 %v9329
        %v9587 = vunpack.c.l.b16 %v9330
        %v9588 = vunpack.c.l.b16 %v9331
        %v9589 = vunpack.c.l.b16 %v9332
        %v9590 = vunpack.c.l.b16 %v9333
        %v9591 = vunpack.c.l.b16 %v9334
        %v9592 = vunpack.c.l.b16 %v9335
        %v9593 = vunpack.c.l.b16 %v9336
        %v9594 = vunpack.c.l.b16 %v9337
        %v9595 = vunpack.c.l.b16 %v9338
        %v9596 = vunpack.c.l.b16 %v9339
        %v9597 = vunpack.c.l.b16 %v9340
        %v9598 = vpack.c.b16 %v9471, %v9470
        %v9599 = vpack.c.b16 %v9473, %v9472
        %v9600 = vpack.c.b16 %v9475, %v9474
        %v9601 = vpack.c.b16 %v9477, %v9476
        %v9602 = vpack.c.b16 %v9479, %v9478
        %v9603 = vpack.c.b16 %v9481, %v9480
        %v9604 = vpack.c.b16 %v9483, %v9482
        %v9605 = vpack.c.b16 %v9485, %v9484
        %v9606 = vpack.c.b16 %v9487, %v9486
        %v9607 = vpack.c.b16 %v9489, %v9488
        %v9608 = vpack.c.b16 %v9491, %v9490
        %v9609 = vpack.c.b16 %v9493, %v9492
        %v9610 = vpack.c.b16 %v9495, %v9494
        %v9611 = vpack.c.b16 %v9497, %v9496
        %v9612 = vpack.c.b16 %v9499, %v9498
        %v9613 = vpack.c.b16 %v9501, %v9500
        %v9614 = vpack.c.b16 %v9503, %v9502
        %v9615 = vpack.c.b16 %v9505, %v9504
        %v9616 = vpack.c.b16 %v9507, %v9506
        %v9617 = vpack.c.b16 %v9509, %v9508
        %v9618 = vpack.c.b16 %v9511, %v9510
        %v9619 = vpack.c.b16 %v9513, %v9512
        %v9620 = vpack.c.b16 %v9515, %v9514
        %v9621 = vpack.c.b16 %v9517, %v9516
        %v9622 = vpack.c.b16 %v9519, %v9518
        %v9623 = vpack.c.b16 %v9521, %v9520
        %v9624 = vpack.c.b16 %v9523, %v9522
        %v9625 = vpack.c.b16 %v9525, %v9524
        %v9626 = vpack.c.b16 %v9527, %v9526
        %v9627 = vpack.c.b16 %v9529, %v9528
        %v9628 = vpack.c.b16 %v9531, %v9530
        %v9629 = vpack.c.b16 %v9533, %v9532
        %v9630 = vpack.c.b16 %v9535, %v9534
        %v9631 = vpack.c.b16 %v9537, %v9536
        %v9632 = vpack.c.b16 %v9539, %v9538
        %v9633 = vpack.c.b16 %v9541, %v9540
        %v9634 = vpack.c.b16 %v9543, %v9542
        %v9635 = vpack.c.b16 %v9545, %v9544
        %v9636 = vpack.c.b16 %v9547, %v9546
        %v9637 = vpack.c.b16 %v9549, %v9548
        %v9638 = vpack.c.b16 %v9551, %v9550
        %v9639 = vpack.c.b16 %v9553, %v9552
        %v9640 = vpack.c.b16 %v9555, %v9554
        %v9641 = vpack.c.b16 %v9557, %v9556
        %v9642 = vpack.c.b16 %v9559, %v9558
        %v9643 = vpack.c.b16 %v9561, %v9560
        %v9644 = vpack.c.b16 %v9563, %v9562
        %v9645 = vpack.c.b16 %v9565, %v9564
        %v9646 = vpack.c.b16 %v9567, %v9566
        %v9647 = vpack.c.b16 %v9569, %v9568
        %v9648 = vpack.c.b16 %v9571, %v9570
        %v9649 = vpack.c.b16 %v9573, %v9572
        %v9650 = vpack.c.b16 %v9575, %v9574
        %v9651 = vpack.c.b16 %v9577, %v9576
        %v9652 = vpack.c.b16 %v9579, %v9578
        %v9653 = vpack.c.b16 %v9581, %v9580
        %v9654 = vpack.c.b16 %v9583, %v9582
        %v9655 = vpack.c.b16 %v9585, %v9584
        %v9656 = vpack.c.b16 %v9587, %v9586
        %v9657 = vpack.c.b16 %v9589, %v9588
        %v9658 = vpack.c.b16 %v9591, %v9590
        %v9659 = vpack.c.b16 %v9593, %v9592
        %v9660 = vpack.c.b16 %v9595, %v9594
        %v9661 = vpack.c.b16 %v9597, %v9596
        %9726 = vmatpush.bf16.msra.mxu0 %v9605
        %9727 = vmatpush.bf16.msra.mxu0 %v9604
        %9728 = vmatpush.bf16.msra.mxu0 %v9603
        %9729 = vmatpush.bf16.msra.mxu0 %v9602
        %9730 = vmatpush.bf16.msra.mxu0 %v9601
        %9731 = vmatpush.bf16.msra.mxu0 %v9600
        %9732 = vmatpush.bf16.msra.mxu0 %v9599
        %9733 = vmatpush.bf16.msra.mxu0 %v9598
        %9734 = vmatmul.bf16.gmra.mxu0 %v9205
        %v9735 = vpop.f32.mrf.mxu0
        %v9736 = vadd.f32 %v9341, %v9735
        %v9737 = vpop.f32.mrf.mxu0
        %9738 = vdwg.mxu0
        %9739 = vmatpush.bf16.msra.mxu0 %v9613
        %9740 = vmatpush.bf16.msra.mxu0 %v9612
        %9741 = vmatpush.bf16.msra.mxu0 %v9611
        %9742 = vmatpush.bf16.msra.mxu0 %v9610
        %9743 = vmatpush.bf16.msra.mxu0 %v9609
        %9744 = vmatpush.bf16.msra.mxu0 %v9608
        %9745 = vmatpush.bf16.msra.mxu0 %v9607
        %9746 = vmatpush.bf16.msra.mxu0 %v9606
        %9747 = vmatmul.bf16.gmra.mxu0 %v9206
        %v9748 = vpop.f32.mrf.mxu0
        %v9749 = vadd.f32 %v9736, %v9748
        %v9750 = vpop.f32.mrf.mxu0
        %9751 = vdwg.mxu0
        %9752 = vmatpush.bf16.msra.mxu0 %v9621
        %9753 = vmatpush.bf16.msra.mxu0 %v9620
        %9754 = vmatpush.bf16.msra.mxu0 %v9619
        %9755 = vmatpush.bf16.msra.mxu0 %v9618
        %9756 = vmatpush.bf16.msra.mxu0 %v9617
        %9757 = vmatpush.bf16.msra.mxu0 %v9616
        %9758 = vmatpush.bf16.msra.mxu0 %v9615
        %9759 = vmatpush.bf16.msra.mxu0 %v9614
        %9760 = vmatmul.bf16.gmra.mxu0 %v9207
        %v9761 = vpop.f32.mrf.mxu0
        %v9762 = vadd.f32 %v9749, %v9761
        %v9763 = vpop.f32.mrf.mxu0
        %9764 = vdwg.mxu0
        %9765 = vmatpush.bf16.msra.mxu0 %v9629
        %9766 = vmatpush.bf16.msra.mxu0 %v9628
        %9767 = vmatpush.bf16.msra.mxu0 %v9627
        %9768 = vmatpush.bf16.msra.mxu0 %v9626
        %9769 = vmatpush.bf16.msra.mxu0 %v9625
        %9770 = vmatpush.bf16.msra.mxu0 %v9624
        %9771 = vmatpush.bf16.msra.mxu0 %v9623
        %9772 = vmatpush.bf16.msra.mxu0 %v9622
        %9773 = vmatmul.bf16.gmra.mxu0 %v9208
        %v9774 = vpop.f32.mrf.mxu0
        %v9775 = vadd.f32 %v9762, %v9774
        %v9776 = vpop.f32.mrf.mxu0
        %9777 = vdwg.mxu0
        %9778 = vmatpush.bf16.msra.mxu0 %v9637
        %9779 = vmatpush.bf16.msra.mxu0 %v9636
        %9780 = vmatpush.bf16.msra.mxu0 %v9635
        %9781 = vmatpush.bf16.msra.mxu0 %v9634
        %9782 = vmatpush.bf16.msra.mxu0 %v9633
        %9783 = vmatpush.bf16.msra.mxu0 %v9632
        %9784 = vmatpush.bf16.msra.mxu0 %v9631
        %9785 = vmatpush.bf16.msra.mxu0 %v9630
        %9786 = vmatmul.bf16.gmra.mxu0 %v9209
        %v9787 = vpop.f32.mrf.mxu0
        %v9788 = vadd.f32 %v9775, %v9787
        %v9789 = vpop.f32.mrf.mxu0
        %9790 = vdwg.mxu0
        %9791 = vmatpush.bf16.msra.mxu0 %v9645
        %9792 = vmatpush.bf16.msra.mxu0 %v9644
        %9793 = vmatpush.bf16.msra.mxu0 %v9643
        %9794 = vmatpush.bf16.msra.mxu0 %v9642
        %9795 = vmatpush.bf16.msra.mxu0 %v9641
        %9796 = vmatpush.bf16.msra.mxu0 %v9640
        %9797 = vmatpush.bf16.msra.mxu0 %v9639
        %9798 = vmatpush.bf16.msra.mxu0 %v9638
        %9799 = vmatmul.bf16.gmra.mxu0 %v9210
        %v9800 = vpop.f32.mrf.mxu0
        %v9801 = vadd.f32 %v9788, %v9800
        %v9802 = vpop.f32.mrf.mxu0
        %9803 = vdwg.mxu0
        %9804 = vmatpush.bf16.msra.mxu0 %v9653
        %9805 = vmatpush.bf16.msra.mxu0 %v9652
        %9806 = vmatpush.bf16.msra.mxu0 %v9651
        %9807 = vmatpush.bf16.msra.mxu0 %v9650
        %9808 = vmatpush.bf16.msra.mxu0 %v9649
        %9809 = vmatpush.bf16.msra.mxu0 %v9648
        %9810 = vmatpush.bf16.msra.mxu0 %v9647
        %9811 = vmatpush.bf16.msra.mxu0 %v9646
        %9812 = vmatmul.bf16.gmra.mxu0 %v9211
        %v9813 = vpop.f32.mrf.mxu0
        %v9814 = vadd.f32 %v9801, %v9813
        %v9815 = vpop.f32.mrf.mxu0
        %9816 = vdwg.mxu0
        %9817 = vmatpush.bf16.msra.mxu0 %v9661
        %9818 = vmatpush.bf16.msra.mxu0 %v9660
        %9819 = vmatpush.bf16.msra.mxu0 %v9659
        %9820 = vmatpush.bf16.msra.mxu0 %v9658
        %9821 = vmatpush.bf16.msra.mxu0 %v9657
        %9822 = vmatpush.bf16.msra.mxu0 %v9656
        %9823 = vmatpush.bf16.msra.mxu0 %v9655
        %9824 = vmatpush.bf16.msra.mxu0 %v9654
        %9825 = vmatmul.bf16.gmra.mxu0 %v9212
        %v9826 = vpop.f32.mrf.mxu0
        %v9827 = vadd.f32 %v9814, %v9826
        %v9828 = vpop.f32.mrf.mxu0
        %9829 = vdwg.mxu0
        %v9830 = vpack.c.bf16 %v9827, %v9827
        %v9831 = vld [vmem:[%s9] sm:$0xf]
        %v9832 = vld [vmem:[%s9 + $0x4] sm:$0xf]
        %v9833 = vld [vmem:[%s9 + $0x8] sm:$0xf]
        %v9834 = vld [vmem:[%s9 + $0xc] sm:$0xf]
        %v9835 = vld [vmem:[%s9 + $0x10] sm:$0xf]
        %v9836 = vld [vmem:[%s9 + $0x14] sm:$0xf]
        %v9837 = vld [vmem:[%s9 + $0x18] sm:$0xf]
        %v9838 = vld [vmem:[%s9 + $0x1c] sm:$0xf]
        %v9839 = vld [vmem:[%s10] sm:$0x1]
        %v9848 = vunpack.c.l.b16 %v9831
        %v9849 = vunpack.c.l.b16 %v9832
        %v9850 = vunpack.c.l.b16 %v9833
        %v9851 = vunpack.c.l.b16 %v9834
        %v9852 = vunpack.c.l.b16 %v9835
        %v9853 = vunpack.c.l.b16 %v9836
        %v9854 = vunpack.c.l.b16 %v9837
        %v9855 = vunpack.c.l.b16 %v9838
        %v9856 = vpack.c.b16 %v9849, %v9848
        %v9857 = vpack.c.b16 %v9851, %v9850
        %v9858 = vpack.c.b16 %v9853, %v9852
        %v9859 = vpack.c.b16 %v9855, %v9854
        %v9865 = vsel %vm9035, %v9830, 0
        %9867 = vmatpush.bf16.msra.mxu0 0
        %9868 = vmatpush.bf16.msra.mxu0 0
        %9869 = vmatpush.bf16.msra.mxu0 0
        %9870 = vmatpush.bf16.msra.mxu0 0
        %9871 = vmatpush.bf16.msra.mxu0 %v9859
        %9872 = vmatpush.bf16.msra.mxu0 %v9858
        %9873 = vmatpush.bf16.msra.mxu0 %v9857
        %9874 = vmatpush.bf16.msra.mxu0 %v9856
        %9875 = vmatmul.bf16.gmra.mxu0 %v9865
        %v9876 = vpop.f32.mrf.mxu0
        %v9877 = vadd.f32 %v9839, %v9876
        %v9878 = vpop.f32.mrf.mxu0
        %9879 = vdwg.mxu0
        %vm9880 = vcmask 73728
        %9881 = vst.msk [vmem:[%s378] sm:$0x1] %vm9880, %v9877
        %s9882 = sand.u32 %s269, 1
        %s9883 = scalar_lea.sflag [#allocation12], %s9882
        %s9884 = sand.u32 %s269, 1
        %s9885 = scalar_lea.vmem [#allocation11], %s9884
        // Predicated region
        $region79: #{nutty_forward.1} parent=63 // pred_check
          %p9886 = pneg %p279
        $region80: #{nutty_forward.1} parent=63 // pred_check_branch
          %9888 = sbr.rel (%p9886) target = $region82
        $region81: #{nutty_forward.1} parent=63 // pred_region
          %9890 = vsyncadd %s9883, 0
          %s9891 = scalar_lea.hbm %s11, %s25
          %s9893 = sshll.u32 %s9885, 4
          %s9894 = int_to_ptr.vmem [resolvable:$true] %s9893
          %s9895 = sshll.u32 %s9891, 4
          %s9896 = int_to_ptr.hbm [resolvable:$true] %s9895
          %9898 = dma.vmem_to_hbm [thread:$0]  %s9894, 16, %s9896, %s9883
        $region82: #{nutty_forward.1} parent=63 // pred_fallthru
          _
      $region64: #{nutty_forward.1} parent=5 // pred_fallthru
        _
      %p9899 = scmp.le.s32.totalorder 2, %s20
      // Predicated region
      $region83: #{nutty_forward.1} parent=5 // pred_check
        %p9900 = pneg %p9899
      $region84: #{nutty_forward.1} parent=5 // pred_check_branch
        %9902 = sbr.rel (%p9900) target = $region86
      $region85: #{nutty_forward.1} parent=5 // pred_region
        %s9903 = ssub.s32 %s20, 2
        // Predicated region
        $region87: #{nutty_forward.1} parent=85 // pred_check
          %p9904 = pneg %p285
        $region88: #{nutty_forward.1} parent=85 // pred_check_branch
          %9906 = sbr.rel (%p9904) target = $region90
        $region89: #{nutty_forward.1} parent=85 // pred_region
          %s9907 = sand.u32 %s270, 1
          %s9908 = scalar_lea.sflag [#allocation12], %s9907
          %s9909 = sand.u32 %s270, 1
          %s9910 = scalar_lea.vmem [#allocation11], %s9909
          %9912 = dma.done %s9908, 16
        $region90: #{nutty_forward.1} parent=85 // pred_fallthru
          _
      $region86: #{nutty_forward.1} parent=5 // pred_fallthru
        _
    $region6: #{nutty_forward.1} parent=1 // loop_footer
      %s24 = sadd.s32 1, %s20
    $region7: #{nutty_forward.1} parent=1 // loop_footer_branch
      %19 = sbr.rel target = $region3
    $region8: #{nutty_forward.1} parent=1 // loop_exit
      _
    %9913 = vsyncpa [#allocation12], 1
    %s9914 = scalar_lea.sflag [#allocation12], 1
    %9915 = vsyncpa %s9914, 1

</llo_original>
